<compile_context>
chip_gen: v5e
topology: v5e:2x2
jax: 0.10.0
libtpu: 0.0.40
codegen_flags: <defaults>
</compile_context>

<pallas_src>
import functools
import math

import jax
import jax.numpy as jnp
from jax.experimental import pallas as pl
from jax.experimental.pallas import tpu as pltpu


# ---------------------------------------------------------------------------
# utilities
# ---------------------------------------------------------------------------
def _round_up(x, m):
    return ((x + m - 1) // m) * m


def _vmem_limit_bytes():
    """Generation-aware scoped-VMEM limit (~75% of physical VMEM)."""
    try:
        cap = int(pltpu.get_tpu_info().vmem_capacity_bytes)
    except Exception:
        cap = 64 * 1024 * 1024          # assume the smallest (v7x-like) part
    lim = (cap * 3) // 4
    return max(32 * 1024 * 1024, min(lim, 100 * 1024 * 1024))


_VMEM_LIMIT = _vmem_limit_bytes()


def _probe_buffered_weights():
    """Check once whether BlockSpec(pipeline_mode=pl.Buffered(1)) is usable."""
    try:
        wspec = pl.BlockSpec((8, 128), lambda i: (0, 0), pipeline_mode=pl.Buffered(1))
    except Exception:
        return False

    def _k(x_ref, w_ref, o_ref):
        o_ref[...] = x_ref[...] + w_ref[...]

    try:
        x = jnp.zeros((8, 128), jnp.float32)
        out = pl.pallas_call(
            _k,
            grid=(1,),
            in_specs=[pl.BlockSpec((8, 128), lambda i: (0, 0)), wspec],
            out_specs=pl.BlockSpec((8, 128), lambda i: (0, 0)),
            out_shape=jax.ShapeDtypeStruct((8, 128), jnp.float32),
        )(x, x)
        jax.block_until_ready(out)
        return True
    except Exception:
        return False


_USE_SINGLE_BUFFERED_WEIGHTS = _probe_buffered_weights()
_HAS_EINSHAPE = hasattr(pltpu, "einshape")


def _const_spec(shape):
    """BlockSpec for a grid-invariant operand (same block every grid step).
    Single-buffered when supported: weights are fetched once and not doubled."""
    index_map = lambda *_: (0,) * len(shape)
    if _USE_SINGLE_BUFFERED_WEIGHTS:
        return pl.BlockSpec(shape, index_map, pipeline_mode=pl.Buffered(1))
    return pl.BlockSpec(shape, index_map)


def _split_heads(x2d, rows, num_heads, head_dim):
    """[rows, H*Dh] -> [H, rows, Dh] (heads become a batch / non-lane axis)."""
    x3d = x2d.reshape(rows, num_heads, head_dim)
    if _HAS_EINSHAPE:
        return pltpu.einshape("mhd->hmd", x3d)
    return jnp.swapaxes(x3d, 0, 1)


def _merge_heads(x3d, rows, model_dim):
    """[H, rows, Dh] -> [rows, H*Dh]."""
    if _HAS_EINSHAPE:
        y = pltpu.einshape("hmd->mhd", x3d)
    else:
        y = jnp.swapaxes(x3d, 0, 1)
    return y.reshape(rows, model_dim)


# ---------------------------------------------------------------------------
# tiled linear (patch-embed projection).  weight is pre-cast bf16.
# ---------------------------------------------------------------------------
def _linear_kernel(x_ref, w_ref, b_ref, o_ref):
    x = x_ref[...].astype(jnp.bfloat16)
    o_ref[...] = jnp.dot(x, w_ref[...], preferred_element_type=jnp.float32) + b_ref[...]


def linear(x, w_bf16, b, *, block_m=512):
    """x: [M, K] f32, w_bf16: [K, N] bf16, b: [N] f32 -> [M, N] f32."""
    M, K = x.shape
    N = w_bf16.shape[1]
    Mp = _round_up(M, 8)
    if Mp != M:
        x = jnp.pad(x, ((0, Mp - M), (0, 0)))
    tm = min(Mp, block_m)
    cost = pl.CostEstimate(
        flops=int(2 * Mp * K * N), transcendentals=0,
        bytes_accessed=int(4 * (Mp * K + N + Mp * N) + 2 * K * N))
    out = pl.pallas_call(
        _linear_kernel,
        grid=(pl.cdiv(Mp, tm),),
        in_specs=[pl.BlockSpec((tm, K), lambda i: (i, 0)),
                  _const_spec((K, N)),
                  _const_spec((1, N))],
        out_specs=pl.BlockSpec((tm, N), lambda i: (i, 0)),
        out_shape=jax.ShapeDtypeStruct((Mp, N), jnp.float32),
        compiler_params=pltpu.CompilerParams(
            dimension_semantics=("parallel",), vmem_limit_bytes=_VMEM_LIMIT),
        cost_estimate=cost,
    )(x, w_bf16, b.reshape(1, N))
    return out[:M]


# ---------------------------------------------------------------------------
# standalone layernorm (only needed if the last block is also in out_index;
# in the normal path both inter_norm and final norm are fused into the block)
# ---------------------------------------------------------------------------
def _layernorm_kernel(x_ref, g_ref, b_ref, o_ref, *, eps):
    x = x_ref[...]
    mu = jnp.mean(x, axis=-1, keepdims=True)
    c = x - mu
    var = jnp.mean(c * c, axis=-1, keepdims=True)
    o_ref[...] = c * jax.lax.rsqrt(var + eps) * g_ref[...] + b_ref[...]


def layernorm(x2d, g, b, *, eps=1e-5, block_m=512):
    M, D = x2d.shape
    Mp = _round_up(M, 8)
    if Mp != M:
        x2d = jnp.pad(x2d, ((0, Mp - M), (0, 0)))
    tm = min(Mp, block_m)
    cost = pl.CostEstimate(flops=int(8 * Mp * D), transcendentals=int(Mp),
                           bytes_accessed=int(4 * (2 * Mp * D + 2 * D)))
    out = pl.pallas_call(
        functools.partial(_layernorm_kernel, eps=eps),
        grid=(pl.cdiv(Mp, tm),),
        in_specs=[pl.BlockSpec((tm, D), lambda i: (i, 0)),
                  _const_spec((1, D)), _const_spec((1, D))],
        out_specs=pl.BlockSpec((tm, D), lambda i: (i, 0)),
        out_shape=jax.ShapeDtypeStruct((Mp, D), jnp.float32),
        compiler_params=pltpu.CompilerParams(
            dimension_semantics=("parallel",), vmem_limit_bytes=_VMEM_LIMIT),
        cost_estimate=cost,
    )(x2d, g.reshape(1, D), b.reshape(1, D))
    return out[:M]


# ---------------------------------------------------------------------------
# fused transformer block kernel
#   LN1 -> Q/K/V matmuls -> batched multi-head softmax attention (padded keys
#   masked) -> proj -> +residual -> LN2 -> fc1 + GELU(erf) -> fc2 -> +residual
#   (+ optional fused extra LayerNorm output, + optional attention output)
# ---------------------------------------------------------------------------
def _block_kernel(x_ref,
                  n1g_ref, n1b_ref,
                  wq_ref, bq_ref, wk_ref, bk_ref, wv_ref, bv_ref,
                  wp_ref, bp_ref,
                  n2g_ref, n2b_ref,
                  w1_ref, b1_ref, w2_ref, b2_ref,
                  *rest,
                  num_heads, head_dim, s_valid, tq, want_attn, want_ln, eps):
    # optional fused-LN params are the last inputs, then the output refs follow
    pos = 0
    if want_ln:
        lng_ref, lnb_ref = rest[0], rest[1]
        pos = 2
    out_ref = rest[pos]
    pos += 1
    attn_ref = None
    if want_attn:
        attn_ref = rest[pos]
        pos += 1
    y_ref = rest[pos] if want_ln else None

    x = x_ref[0]                                   # [Sp, D] f32 (full sequence)
    Sp, D = x.shape
    H, Dh = num_heads, head_dim
    scale = float(head_dim) ** -0.5
    inv_sqrt2 = 1.0 / math.sqrt(2.0)

    def _ln(v, g_ref, b_ref):                      # biased var, f32 (== nn.LayerNorm)
        mu = jnp.mean(v, axis=-1, keepdims=True)
        c = v - mu
        var = jnp.mean(c * c, axis=-1, keepdims=True)
        return c * jax.lax.rsqrt(var + eps) * g_ref[...] + b_ref[...]

    def _mm(a, w_ref, b_ref):                      # bf16 MXU operands, f32 accumulate
        return jnp.dot(a.astype(jnp.bfloat16), w_ref[...],
                       preferred_element_type=jnp.float32) + b_ref[...]

    # ---- attention ----
    h_full = _ln(x, n1g_ref, n1b_ref)              # [Sp, D]
    if tq == Sp:
        xq, hq = x, h_full                         # single q-tile (demo / small S)
    else:
        q0 = pl.multiple_of(pl.program_id(1) * tq, 8)
        xq = x_ref[0, pl.ds(q0, tq), :]            # residual rows for this q tile
        hq = _ln(xq, n1g_ref, n1b_ref)

    q = _mm(hq, wq_ref, bq_ref)                    # [tq, D]
    k = _mm(h_full, wk_ref, bk_ref)                # [Sp, D]  (recomputed per q tile)
    v = _mm(h_full, wv_ref, bv_ref)                # [Sp, D]

    qh = _split_heads(q.astype(jnp.bfloat16), tq, H, Dh)    # [H, tq, Dh]
    kh = _split_heads(k.astype(jnp.bfloat16), Sp, H, Dh)    # [H, Sp, Dh]
    vh = _split_heads(v.astype(jnp.bfloat16), Sp, H, Dh)

    s = jnp.einsum("hqd,hkd->hqk", qh, kh,
                   preferred_element_type=jnp.float32) * scale      # [H, tq, Sp] f32
    if s_valid < Sp:                               # mask padded keys (scores stay f32)
        kmask = jax.lax.broadcasted_iota(jnp.int32, s.shape, 2) < s_valid
        s = jnp.where(kmask, s, -1e30)
    m = jnp.max(s, axis=-1, keepdims=True)
    e = jnp.exp(s - m)
    denom = jnp.sum(e, axis=-1, keepdims=True)
    if want_attn:
        p = e / denom                              # exact softmax for consumed attn
        attn_ref[0] = p                            # f32 for parity with torch.softmax
    else:
        p = e * pl.reciprocal(denom, approx=True)  # EUP reciprocal (nearly free)

    oh = jnp.einsum("hqk,hkd->hqd", p.astype(jnp.bfloat16), vh,
                    preferred_element_type=jnp.float32)              # [H, tq, Dh]
    o = _merge_heads(oh, tq, D)                    # [tq, D]

    x1 = xq + _mm(o, wp_ref, bp_ref)               # residual 1 (in VMEM)

    # ---- MLP ----
    h2 = _ln(x1, n2g_ref, n2b_ref)
    m1 = _mm(h2, w1_ref, b1_ref)
    m1 = 0.5 * m1 * (1.0 + jax.lax.erf(m1 * inv_sqrt2))   # exact GELU (torch default)
    x2 = x1 + _mm(m1, w2_ref, b2_ref)              # residual 2 (in VMEM)

    out_ref[0] = x2
    if want_ln:                                    # fused inter_norm / final norm
        y_ref[0] = _ln(x2, lng_ref, lnb_ref)


def block_apply(blk, x_pad, s_valid, want_attn, ln_gb):
    """One fused transformer block.
    x_pad: [B, Sp, D] f32 (Sp a multiple of the q-tile size chosen by the caller).
    Returns (x_new, attn or None, fused-LN output or None)."""
    B, Sp, D = x_pad.shape
    H = int(blk["num_heads"])
    Dh = D // H
    hidden = int(blk["fc1_b"].shape[0])
    tq = Sp if Sp <= 256 else 256                  # q-tile; caller padded Sp accordingly
    nq = Sp // tq
    want_ln = ln_gb is not None

    weights = [
        blk["norm1_g"].reshape(1, D), blk["norm1_b"].reshape(1, D),
        blk["wq"], blk["bq"].reshape(1, D),
        blk["wk"], blk["bk"].reshape(1, D),
        blk["wv"], blk["bv"].reshape(1, D),
        blk["proj_w"], blk["proj_b"].reshape(1, D),
        blk["norm2_g"].reshape(1, D), blk["norm2_b"].reshape(1, D),
        blk["fc1_w"], blk["fc1_b"].reshape(1, hidden),
        blk["fc2_w"], blk["fc2_b"].reshape(1, D),
    ]
    extra = []
    if want_ln:
        extra = [ln_gb[0].reshape(1, D), ln_gb[1].reshape(1, D)]

    in_specs = [pl.BlockSpec((1, Sp, D), lambda b, qi: (b, 0, 0))]
    in_specs += [_const_spec(w.shape) for w in weights + extra]

    out_specs = [pl.BlockSpec((1, tq, D), lambda b, qi: (b, qi, 0))]
    out_shapes = [jax.ShapeDtypeStruct((B, Sp, D), jnp.float32)]
    if want_attn:
        out_specs.append(pl.BlockSpec((1, H, tq, Sp), lambda b, qi: (b, 0, qi, 0)))
        out_shapes.append(jax.ShapeDtypeStruct((B, H, Sp, Sp), jnp.float32))
    if want_ln:
        out_specs.append(pl.BlockSpec((1, tq, D), lambda b, qi: (b, qi, 0)))
        out_shapes.append(jax.ShapeDtypeStruct((B, Sp, D), jnp.float32))

    # cost estimate (2-byte weight traffic after the bf16 pre-cast)
    mm_flops = (2 * Sp * D * D + 2 * nq * Sp * 2 * D * D + 4 * Sp * Sp * D
                + 2 * Sp * D * D + 4 * Sp * D * hidden)
    flops = int(B * mm_flops)
    trans = int(B * Sp * (H * Sp + hidden + 8))
    w_bytes = 2 * (4 * D * D + 2 * D * hidden) + 4 * (11 * D + hidden)
    act_bytes = (4 * B * Sp * D * (2 + (1 if want_ln else 0))
                 + (4 * B * H * Sp * Sp if want_attn else 0))
    cost = pl.CostEstimate(flops=flops, transcendentals=trans,
                           bytes_accessed=int(w_bytes + act_bytes))

    kernel = functools.partial(
        _block_kernel, num_heads=H, head_dim=Dh, s_valid=s_valid, tq=tq,
        want_attn=want_attn, want_ln=want_ln, eps=1e-5)

    res = pl.pallas_call(
        kernel,
        grid=(B, nq),                               # batch x q-tiles -> both TCs busy
        in_specs=in_specs,
        out_specs=tuple(out_specs),
        out_shape=tuple(out_shapes),
        # Reuse the activation HBM buffer across the per-block calls.  Safe only
        # when each grid step reads/writes exactly its own batch block (nq == 1).
        input_output_aliases={0: 0} if nq == 1 else {},
        compiler_params=pltpu.CompilerParams(
            dimension_semantics=("parallel", "parallel"),
            vmem_limit_bytes=_VMEM_LIMIT),
        cost_estimate=cost,
    )(x_pad, *weights, *extra)

    x_new = res[0]
    idx = 1
    attn = None
    if want_attn:
        attn = res[idx]
        idx += 1
    y = res[idx] if want_ln else None
    return x_new, attn, y


# ---------------------------------------------------------------------------
# parameter initialization (synthetic, deterministic)
# ---------------------------------------------------------------------------
def xavier_uniform(key, fan_out, fan_in):
    limit = math.sqrt(6.0 / (fan_in + fan_out))
    return jax.random.uniform(key, (fan_out, fan_in), jnp.float32, -limit, limit)


def init_params(key, *, img_size, patch_size, in_chans, embed_dim, depth,
                num_heads, num_heads_in_last_block, mlp_ratio):
    ph, pw = patch_size
    num_patches = (img_size[0] // ph) * (img_size[1] // pw)
    patch_dim = in_chans * ph * pw
    hidden = int(embed_dim * mlp_ratio)

    keys = jax.random.split(key, 3 + depth)
    params = {
        "patch_size": patch_size,
        "embed_dim": embed_dim,
        "out_index": [6],
        # patch-embed conv (kernel == stride) as a matmul; weight pre-cast bf16
        "patch_w": xavier_uniform(keys[0], embed_dim, patch_dim).T.astype(jnp.bfloat16),
        "patch_b": jnp.zeros((embed_dim,), jnp.float32),
        "cls_token": 0.02 * jax.random.normal(keys[1], (1, 1, embed_dim), jnp.float32),
        "pos_embed": jax.random.uniform(keys[2], (1, num_patches + 1, embed_dim),
                                        jnp.float32),
        "inter_norm_g": jnp.ones((embed_dim,), jnp.float32),
        "inter_norm_b": jnp.zeros((embed_dim,), jnp.float32),
        "norm_g": jnp.ones((embed_dim,), jnp.float32),
        "norm_b": jnp.zeros((embed_dim,), jnp.float32),
    }

    blocks = []
    for i in range(depth):
        heads = num_heads if i < depth - 1 else num_heads_in_last_block
        ks = jax.random.split(keys[3 + i], 4)
        qkv_w = xavier_uniform(ks[0], 3 * embed_dim, embed_dim).T       # [D, 3D]
        blocks.append(dict(
            num_heads=heads,
            norm1_g=jnp.ones((embed_dim,), jnp.float32),
            norm1_b=jnp.zeros((embed_dim,), jnp.float32),
            # QKV split into per-projection bf16 weights (no in-kernel lane slicing)
            wq=qkv_w[:, :embed_dim].astype(jnp.bfloat16),
            wk=qkv_w[:, embed_dim:2 * embed_dim].astype(jnp.bfloat16),
            wv=qkv_w[:, 2 * embed_dim:].astype(jnp.bfloat16),
            bq=jnp.zeros((embed_dim,), jnp.float32),
            bk=jnp.zeros((embed_dim,), jnp.float32),
            bv=jnp.zeros((embed_dim,), jnp.float32),
            proj_w=xavier_uniform(ks[1], embed_dim, embed_dim).T.astype(jnp.bfloat16),
            proj_b=jnp.zeros((embed_dim,), jnp.float32),
            norm2_g=jnp.ones((embed_dim,), jnp.float32),
            norm2_b=jnp.zeros((embed_dim,), jnp.float32),
            fc1_w=xavier_uniform(ks[2], hidden, embed_dim).T.astype(jnp.bfloat16),
            fc1_b=jnp.zeros((hidden,), jnp.float32),
            fc2_w=xavier_uniform(ks[3], embed_dim, hidden).T.astype(jnp.bfloat16),
            fc2_b=jnp.zeros((embed_dim,), jnp.float32),
        ))
    params["blocks"] = blocks
    return params


# ---------------------------------------------------------------------------
# model forward
# ---------------------------------------------------------------------------
def dpalvit_forward(params, x, mask_ratio=0.0, with_anchor_mask=False,
                    get_intermediate_only=False, with_cls_token=True,
                    return_resolution=False):
    ph_p, pw_p = params["patch_size"]
    B, C, Himg, Wimg = x.shape
    ph, pw = Himg // ph_p, Wimg // pw_p
    N = ph * pw
    D = params["embed_dim"]

    # --- PatchEmbed: Conv2d(kernel=stride=patch) == patch extraction + matmul ---
    patches = x.reshape(B, C, ph, ph_p, pw, pw_p)
    patches = patches.transpose(0, 2, 4, 1, 3, 5).reshape(B * N, C * ph_p * pw_p)
    tok = linear(patches, params["patch_w"], params["patch_b"]).reshape(B, N, D)

    # --- pos embed (npatch == num_patches here -> interpolation is identity) ---
    pos_embed = params["pos_embed"]
    assert pos_embed.shape[1] - 1 == N, "pos-embed interpolation path not exercised"
    # TODO(synk): bicubic pos-embed interpolation when npatch != num_patches.
    tok = tok + pos_embed[:, 1:, :]

    if mask_ratio > 0.0:
        # TODO(synk): random_masking / random_masking_with_ref_anchor (torch.rand +
        # argsort RNG) not reproduced; demo runs with mask_ratio=0.0.
        raise NotImplementedError("mask_ratio > 0.0 path not implemented")
    mask, ids_restore = None, None

    if with_cls_token:
        cls_token = params["cls_token"] + pos_embed[:, :1, :]
        cls_tokens = jnp.broadcast_to(cls_token, (B, 1, D))
        tok = jnp.concatenate([cls_tokens, tok], axis=1)

    # pad sequence once (sublane / q-tile aligned); padded keys masked in-kernel,
    # padded rows sliced off at the outputs.
    S = tok.shape[1]
    Sp = _round_up(S, 8)
    if Sp > 256:
        Sp = _round_up(Sp, 256)          # q-tile granularity for the (B, q-tile) grid
    if Sp != S:
        tok = jnp.pad(tok, ((0, 0), (0, Sp - S), (0, 0)))

    depth = len(params["blocks"])
    out_index = params["out_index"]
    outs = []
    attn = None
    y_final = None
    for i, blk in enumerate(params["blocks"]):
        is_last = i == depth - 1
        want_attn = is_last or (get_intermediate_only and i in out_index)
        if i in out_index:
            ln_gb = (params["inter_norm_g"], params["inter_norm_b"])   # fused inter_norm
        elif is_last:
            ln_gb = (params["norm_g"], params["norm_b"])               # fused final norm
        else:
            ln_gb = None
        tok, attn_i, y = block_apply(blk, tok, S, want_attn, ln_gb)
        if attn_i is not None:
            attn = attn_i[:, :, :S, :S]
        if i in out_index:
            outs.append(y[:, :S, :])
            if get_intermediate_only:
                return outs, mask, ids_restore, attn
        elif is_last:
            y_final = y
    if y_final is None:
        # rare case: last block also in out_index -> final norm computed standalone
        y_final = layernorm(tok.reshape(B * Sp, D),
                            params["norm_g"], params["norm_b"]).reshape(B, Sp, D)
    outs.append(y_final[:, :S, :])
    if return_resolution:
        return outs, mask, ids_restore, attn, (ph, pw)
    return outs, mask, ids_restore, attn


# ---------------------------------------------------------------------------
# demo
# ---------------------------------------------------------------------------
if __name__ == "__main__":
    key = jax.random.PRNGKey(0)
    k_param, k_x = jax.random.split(key)

    # small config consistent with the module (depth=8 so out_index=[6] is hit)
    # NOTE: D=32 underfills the 128-lane vregs; real configs should use D % 128 == 0.
    cfg = dict(img_size=(16, 16), patch_size=(8, 8), in_chans=3,
               embed_dim=32, depth=8, num_heads=4,
               num_heads_in_last_block=2, mlp_ratio=4.0)

    params = init_params(k_param, **cfg)
    x = jax.random.normal(k_x, (2, cfg["in_chans"], *cfg["img_size"]), jnp.float32)

    fwd = jax.jit(lambda inp: dpalvit_forward(params, inp, mask_ratio=0.0))
    outs, mask, ids_restore, attn = fwd(x)
    jax.block_until_ready(outs)
    jax.block_until_ready(attn)

    # sanity: 2 outputs (intermediate at block 6 + final), seq = 4 patches + cls
    assert len(outs) == 2
    assert outs[0].shape == (2, 5, 32) and outs[1].shape == (2, 5, 32)
    assert attn.shape == (2, 2, 5, 5)   # last block has 2 heads
    assert mask is None and ids_restore is None
    assert all(bool(jnp.all(jnp.isfinite(o))) for o in outs)
    assert bool(jnp.all(jnp.isfinite(attn)))
    # consumed attention uses exact softmax -> rows sum to 1 over valid keys
    assert bool(jnp.allclose(jnp.sum(attn, axis=-1), 1.0, atol=1e-3))

    print("KERNEL_OK")
</pallas_src>

<mosaic_0001>
module attributes {stable_mosaic.version = 11 : i64} {
  func.func @_k(%arg0: i32, %arg1: memref<8x128xf32, #tpu.memory_space<vmem>>, %arg2: memref<8x128xf32, #tpu.memory_space<vmem>>, %arg3: memref<8x128xf32, #tpu.memory_space<vmem>>) attributes {dimension_semantics = [#tpu.dimension_semantics<arbitrary>], iteration_bounds = array<i64: 1>, scalar_prefetch = 0 : i64, scratch_operands = 0 : i64, tpu.core_type = #tpu.core_type<tc>, window_params = [{pipeline_mode = #tpu.pipeline_mode<synchronous>, transform_indices = @transform_0, window_bounds = array<i64: 8, 128>}, {pipeline_mode = #tpu.pipeline_mode<synchronous>, transform_indices = @transform_1, window_bounds = array<i64: 8, 128>}, {pipeline_mode = #tpu.pipeline_mode<synchronous>, transform_indices = @transform_2, window_bounds = array<i64: 8, 128>}]} {
    %c0 = arith.constant 0 : index
    %c0_0 = arith.constant 0 : index
    %0 = vector.load %arg1[%c0, %c0_0] : memref<8x128xf32, #tpu.memory_space<vmem>>, vector<8x128xf32>
    %c0_1 = arith.constant 0 : index
    %c0_2 = arith.constant 0 : index
    %1 = vector.load %arg2[%c0_1, %c0_2] : memref<8x128xf32, #tpu.memory_space<vmem>>, vector<8x128xf32>
    %2 = arith.addf %0, %1 : vector<8x128xf32>
    %c0_3 = arith.constant 0 : index
    %c0_4 = arith.constant 0 : index
    %3 = vector.load %arg3[%c0_3, %c0_4] : memref<8x128xf32, #tpu.memory_space<vmem>>, vector<8x128xf32>
    tpu.vector_store %arg3[%c0_3, %c0_4], %2 {strides = array<i32>} : memref<8x128xf32, #tpu.memory_space<vmem>>, vector<8x128xf32>,
    return
  }
  func.func @transform_0(%arg0: i32) -> (i32, i32) {
    %c0_i32 = arith.constant 0 : i32
    %c0_i32_0 = arith.constant 0 : i32
    %c0_i32_1 = arith.constant 0 : i32
    return %c0_i32, %c0_i32_0 : i32, i32
  }
  func.func @transform_1(%arg0: i32) -> (i32, i32) {
    %c0_i32 = arith.constant 0 : i32
    %c0_i32_0 = arith.constant 0 : i32
    %c0_i32_1 = arith.constant 0 : i32
    return %c0_i32, %c0_i32_0 : i32, i32
  }
  func.func @transform_2(%arg0: i32) -> (i32, i32) {
    %c0_i32 = arith.constant 0 : i32
    %c0_i32_0 = arith.constant 0 : i32
    %c0_i32_1 = arith.constant 0 : i32
    return %c0_i32, %c0_i32_0 : i32, i32
  }
}

module attributes {stable_mosaic.version = 11 : i64} {
  func.func @_linear_kernel(%arg0: i32, %arg1: memref<8x192xf32, #tpu.memory_space<vmem>>, %arg2: memref<192x32xbf16, #tpu.memory_space<vmem>>, %arg3: memref<1x32xf32, #tpu.memory_space<vmem>>, %arg4: memref<8x32xf32, #tpu.memory_space<vmem>>) attributes {dimension_semantics = [#tpu.dimension_semantics<parallel>], iteration_bounds = array<i64: 1>, scalar_prefetch = 0 : i64, scratch_operands = 0 : i64, tpu.core_type = #tpu.core_type<tc>, window_params = [{transform_indices = @transform_0, window_bounds = array<i64: 8, 192>}, {pipeline_mode = #tpu.pipeline_mode<synchronous>, transform_indices = @transform_1, window_bounds = array<i64: 192, 32>}, {pipeline_mode = #tpu.pipeline_mode<synchronous>, transform_indices = @transform_2, window_bounds = array<i64: 1, 32>}, {transform_indices = @transform_3, window_bounds = array<i64: 8, 32>}]} {
    %c0 = arith.constant 0 : index
    %c0_0 = arith.constant 0 : index
    %0 = vector.load %arg1[%c0, %c0_0] : memref<8x192xf32, #tpu.memory_space<vmem>>, vector<8x192xf32>
    %1 = arith.truncf %0 : vector<8x192xf32> to vector<8x192xbf16>
    %c0_1 = arith.constant 0 : index
    %c0_2 = arith.constant 0 : index
    %2 = vector.load %arg2[%c0_1, %c0_2] : memref<192x32xbf16, #tpu.memory_space<vmem>>, vector<192x32xbf16>
    %cst = arith.constant dense<0.000000e+00> : vector<8x32xf32>
    %3 = tpu.matmul %1, %2, %cst {dimension_numbers = #tpu.dot_dimension_numbers<[1], [0], [0], [1], [0, 0, 1, 1], [], []>} : vector<8x192xbf16>, vector<192x32xbf16>, vector<8x32xf32> -> vector<8x32xf32>
    %c0_3 = arith.constant 0 : index
    %c0_4 = arith.constant 0 : index
    %4 = vector.load %arg3[%c0_3, %c0_4] : memref<1x32xf32, #tpu.memory_space<vmem>>, vector<1x32xf32>
    %5 = vector.broadcast %4 : vector<1x32xf32> to vector<8x32xf32>
    %6 = arith.addf %3, %5 : vector<8x32xf32>
    %c0_5 = arith.constant 0 : index
    %c0_6 = arith.constant 0 : index
    %7 = vector.load %arg4[%c0_5, %c0_6] : memref<8x32xf32, #tpu.memory_space<vmem>>, vector<8x32xf32>
    tpu.vector_store %arg4[%c0_5, %c0_6], %6 {strides = array<i32>} : memref<8x32xf32, #tpu.memory_space<vmem>>, vector<8x32xf32>,
    return
  }
  func.func @transform_0(%arg0: i32) -> (i32, i32) {
    %c0_i32 = arith.constant 0 : i32
    %c0_i32_0 = arith.constant 0 : i32
    return %arg0, %c0_i32 : i32, i32
  }
  func.func @transform_1(%arg0: i32) -> (i32, i32) {
    %c0_i32 = arith.constant 0 : i32
    %c0_i32_0 = arith.constant 0 : i32
    %c0_i32_1 = arith.constant 0 : i32
    return %c0_i32, %c0_i32_0 : i32, i32
  }
  func.func @transform_2(%arg0: i32) -> (i32, i32) {
    %c0_i32 = arith.constant 0 : i32
    %c0_i32_0 = arith.constant 0 : i32
    %c0_i32_1 = arith.constant 0 : i32
    return %c0_i32, %c0_i32_0 : i32, i32
  }
  func.func @transform_3(%arg0: i32) -> (i32, i32) {
    %c0_i32 = arith.constant 0 : i32
    %c0_i32_0 = arith.constant 0 : i32
    return %arg0, %c0_i32 : i32, i32
  }
}

module attributes {stable_mosaic.version = 11 : i64} {
  func.func @_block_kernel(%arg0: i32, %arg1: i32, %arg2: memref<1x8x32xf32, #tpu.memory_space<vmem>>, %arg3: memref<1x32xf32, #tpu.memory_space<vmem>>, %arg4: memref<1x32xf32, #tpu.memory_space<vmem>>, %arg5: memref<32x32xbf16, #tpu.memory_space<vmem>>, %arg6: memref<1x32xf32, #tpu.memory_space<vmem>>, %arg7: memref<32x32xbf16, #tpu.memory_space<vmem>>, %arg8: memref<1x32xf32, #tpu.memory_space<vmem>>, %arg9: memref<32x32xbf16, #tpu.memory_space<vmem>>, %arg10: memref<1x32xf32, #tpu.memory_space<vmem>>, %arg11: memref<32x32xbf16, #tpu.memory_space<vmem>>, %arg12: memref<1x32xf32, #tpu.memory_space<vmem>>, %arg13: memref<1x32xf32, #tpu.memory_space<vmem>>, %arg14: memref<1x32xf32, #tpu.memory_space<vmem>>, %arg15: memref<32x128xbf16, #tpu.memory_space<vmem>>, %arg16: memref<1x128xf32, #tpu.memory_space<vmem>>, %arg17: memref<128x32xbf16, #tpu.memory_space<vmem>>, %arg18: memref<1x32xf32, #tpu.memory_space<vmem>>, %arg19: memref<1x8x32xf32, #tpu.memory_space<vmem>>) attributes {dimension_semantics = [#tpu.dimension_semantics<parallel>, #tpu.dimension_semantics<parallel>], iteration_bounds = array<i64: 2, 1>, scalar_prefetch = 0 : i64, scratch_operands = 0 : i64, tpu.core_type = #tpu.core_type<tc>, window_params = [{transform_indices = @transform_0, window_bounds = array<i64: 1, 8, 32>}, {pipeline_mode = #tpu.pipeline_mode<synchronous>, transform_indices = @transform_1, window_bounds = array<i64: 1, 32>}, {pipeline_mode = #tpu.pipeline_mode<synchronous>, transform_indices = @transform_2, window_bounds = array<i64: 1, 32>}, {pipeline_mode = #tpu.pipeline_mode<synchronous>, transform_indices = @transform_3, window_bounds = array<i64: 32, 32>}, {pipeline_mode = #tpu.pipeline_mode<synchronous>, transform_indices = @transform_4, window_bounds = array<i64: 1, 32>}, {pipeline_mode = #tpu.pipeline_mode<synchronous>, transform_indices = @transform_5, window_bounds = array<i64: 32, 32>}, {pipeline_mode = #tpu.pipeline_mode<synchronous>, transform_indices = @transform_6, window_bounds = array<i64: 1, 32>}, {pipeline_mode = #tpu.pipeline_mode<synchronous>, transform_indices = @transform_7, window_bounds = array<i64: 32, 32>}, {pipeline_mode = #tpu.pipeline_mode<synchronous>, transform_indices = @transform_8, window_bounds = array<i64: 1, 32>}, {pipeline_mode = #tpu.pipeline_mode<synchronous>, transform_indices = @transform_9, window_bounds = array<i64: 32, 32>}, {pipeline_mode = #tpu.pipeline_mode<synchronous>, transform_indices = @transform_10, window_bounds = array<i64: 1, 32>}, {pipeline_mode = #tpu.pipeline_mode<synchronous>, transform_indices = @transform_11, window_bounds = array<i64: 1, 32>}, {pipeline_mode = #tpu.pipeline_mode<synchronous>, transform_indices = @transform_12, window_bounds = array<i64: 1, 32>}, {pipeline_mode = #tpu.pipeline_mode<synchronous>, transform_indices = @transform_13, window_bounds = array<i64: 32, 128>}, {pipeline_mode = #tpu.pipeline_mode<synchronous>, transform_indices = @transform_14, window_bounds = array<i64: 1, 128>}, {pipeline_mode = #tpu.pipeline_mode<synchronous>, transform_indices = @transform_15, window_bounds = array<i64: 128, 32>}, {pipeline_mode = #tpu.pipeline_mode<synchronous>, transform_indices = @transform_16, window_bounds = array<i64: 1, 32>}, {transform_indices = @transform_17, window_bounds = array<i64: 1, 8, 32>}]} {
    %c0 = arith.constant 0 : index
    %c0_0 = arith.constant 0 : index
    %c0_1 = arith.constant 0 : index
    %0 = vector.load %arg2[%c0, %c0_0, %c0_1] : memref<1x8x32xf32, #tpu.memory_space<vmem>>, vector<1x8x32xf32>
    %1 = vector.shape_cast %0 : vector<1x8x32xf32> to vector<8x32xf32>
    %cst = arith.constant dense<0.000000e+00> : vector<8xf32>
    %2 = vector.multi_reduction <add>, %1, %cst [1] : vector<8x32xf32> to vector<8xf32>
    %3 = vector.shape_cast %2 : vector<8xf32> to vector<8x1xf32>
    %cst_2 = arith.constant 3.200000e+01 : f32
    %4 = vector.broadcast %cst_2 : f32 to vector<8x1xf32>
    %5 = arith.divf %3, %4 : vector<8x1xf32>
    %6 = vector.broadcast %5 : vector<8x1xf32> to vector<8x32xf32>
    %7 = arith.subf %1, %6 : vector<8x32xf32>
    %8 = arith.mulf %7, %7 : vector<8x32xf32>
    %cst_3 = arith.constant dense<0.000000e+00> : vector<8xf32>
    %9 = vector.multi_reduction <add>, %8, %cst_3 [1] : vector<8x32xf32> to vector<8xf32>
    %10 = vector.shape_cast %9 : vector<8xf32> to vector<8x1xf32>
    %cst_4 = arith.constant 3.200000e+01 : f32
    %11 = vector.broadcast %cst_4 : f32 to vector<8x1xf32>
    %12 = arith.divf %10, %11 : vector<8x1xf32>
    %cst_5 = arith.constant 9.99999974E-6 : f32
    %13 = vector.broadcast %cst_5 : f32 to vector<8x1xf32>
    %14 = arith.addf %12, %13 : vector<8x1xf32>
    %15 = math.rsqrt %14 : vector<8x1xf32>
    %16 = vector.broadcast %15 : vector<8x1xf32> to vector<8x32xf32>
    %17 = arith.mulf %7, %16 : vector<8x32xf32>
    %c0_6 = arith.constant 0 : index
    %c0_7 = arith.constant 0 : index
    %18 = vector.load %arg3[%c0_6, %c0_7] : memref<1x32xf32, #tpu.memory_space<vmem>>, vector<1x32xf32>
    %19 = vector.broadcast %18 : vector<1x32xf32> to vector<8x32xf32>
    %20 = arith.mulf %17, %19 : vector<8x32xf32>
    %c0_8 = arith.constant 0 : index
    %c0_9 = arith.constant 0 : index
    %21 = vector.load %arg4[%c0_8, %c0_9] : memref<1x32xf32, #tpu.memory_space<vmem>>, vector<1x32xf32>
    %22 = vector.broadcast %21 : vector<1x32xf32> to vector<8x32xf32>
    %23 = arith.addf %20, %22 : vector<8x32xf32>
    %24 = arith.truncf %23 : vector<8x32xf32> to vector<8x32xbf16>
    %c0_10 = arith.constant 0 : index
    %c0_11 = arith.constant 0 : index
    %25 = vector.load %arg5[%c0_10, %c0_11] : memref<32x32xbf16, #tpu.memory_space<vmem>>, vector<32x32xbf16>
    %cst_12 = arith.constant dense<0.000000e+00> : vector<8x32xf32>
    %26 = tpu.matmul %24, %25, %cst_12 {dimension_numbers = #tpu.dot_dimension_numbers<[1], [0], [0], [1], [0, 0, 1, 1], [], []>} : vector<8x32xbf16>, vector<32x32xbf16>, vector<8x32xf32> -> vector<8x32xf32>
    %c0_13 = arith.constant 0 : index
    %c0_14 = arith.constant 0 : index
    %27 = vector.load %arg6[%c0_13, %c0_14] : memref<1x32xf32, #tpu.memory_space<vmem>>, vector<1x32xf32>
    %28 = vector.broadcast %27 : vector<1x32xf32> to vector<8x32xf32>
    %29 = arith.addf %26, %28 : vector<8x32xf32>
    %30 = arith.truncf %23 : vector<8x32xf32> to vector<8x32xbf16>
    %c0_15 = arith.constant 0 : index
    %c0_16 = arith.constant 0 : index
    %31 = vector.load %arg7[%c0_15, %c0_16] : memref<32x32xbf16, #tpu.memory_space<vmem>>, vector<32x32xbf16>
    %cst_17 = arith.constant dense<0.000000e+00> : vector<8x32xf32>
    %32 = tpu.matmul %30, %31, %cst_17 {dimension_numbers = #tpu.dot_dimension_numbers<[1], [0], [0], [1], [0, 0, 1, 1], [], []>} : vector<8x32xbf16>, vector<32x32xbf16>, vector<8x32xf32> -> vector<8x32xf32>
    %c0_18 = arith.constant 0 : index
    %c0_19 = arith.constant 0 : index
    %33 = vector.load %arg8[%c0_18, %c0_19] : memref<1x32xf32, #tpu.memory_space<vmem>>, vector<1x32xf32>
    %34 = vector.broadcast %33 : vector<1x32xf32> to vector<8x32xf32>
    %35 = arith.addf %32, %34 : vector<8x32xf32>
    %36 = arith.truncf %23 : vector<8x32xf32> to vector<8x32xbf16>
    %c0_20 = arith.constant 0 : index
    %c0_21 = arith.constant 0 : index
    %37 = vector.load %arg9[%c0_20, %c0_21] : memref<32x32xbf16, #tpu.memory_space<vmem>>, vector<32x32xbf16>
    %cst_22 = arith.constant dense<0.000000e+00> : vector<8x32xf32>
    %38 = tpu.matmul %36, %37, %cst_22 {dimension_numbers = #tpu.dot_dimension_numbers<[1], [0], [0], [1], [0, 0, 1, 1], [], []>} : vector<8x32xbf16>, vector<32x32xbf16>, vector<8x32xf32> -> vector<8x32xf32>
    %c0_23 = arith.constant 0 : index
    %c0_24 = arith.constant 0 : index
    %39 = vector.load %arg10[%c0_23, %c0_24] : memref<1x32xf32, #tpu.memory_space<vmem>>, vector<1x32xf32>
    %40 = vector.broadcast %39 : vector<1x32xf32> to vector<8x32xf32>
    %41 = arith.addf %38, %40 : vector<8x32xf32>
    %42 = arith.truncf %29 : vector<8x32xf32> to vector<8x32xbf16>
    %43 = vector.shape_cast %42 : vector<8x32xbf16> to vector<8x4x8xbf16>
    %44 = tpu.transpose %43, [1, 0, 2] : vector<8x4x8xbf16> -> vector<4x8x8xbf16>
    %45 = arith.truncf %35 : vector<8x32xf32> to vector<8x32xbf16>
    %46 = vector.shape_cast %45 : vector<8x32xbf16> to vector<8x4x8xbf16>
    %47 = tpu.transpose %46, [1, 0, 2] : vector<8x4x8xbf16> -> vector<4x8x8xbf16>
    %48 = arith.truncf %41 : vector<8x32xf32> to vector<8x32xbf16>
    %49 = vector.shape_cast %48 : vector<8x32xbf16> to vector<8x4x8xbf16>
    %50 = tpu.transpose %49, [1, 0, 2] : vector<8x4x8xbf16> -> vector<4x8x8xbf16>
    "tpu.trace_start"() <{level = 10 : i32, message = "hqd,hkd->hqk"}> : () -> ()
    %cst_25 = arith.constant dense<0.000000e+00> : vector<4x8x8xf32>
    %51 = tpu.matmul %44, %47, %cst_25 {dimension_numbers = #tpu.dot_dimension_numbers<[2], [2], [1], [1], [0, 0, 0, 1, 1, 1], [0], [0]>} : vector<4x8x8xbf16>, vector<4x8x8xbf16>, vector<4x8x8xf32> -> vector<4x8x8xf32>
    "tpu.trace_stop"() : () -> ()
    %cst_26 = arith.constant 0.353553385 : f32
    %52 = vector.broadcast %cst_26 : f32 to vector<4x8x8xf32>
    %53 = arith.mulf %51, %52 : vector<4x8x8xf32>
    %54 = tpu.iota {dimensions = array<i32: 2>} : vector<4x8x8xi32>
    %c5_i32 = arith.constant 5 : i32
    %55 = vector.broadcast %c5_i32 : i32 to vector<4x8x8xi32>
    %56 = arith.cmpi slt, %54, %55 : vector<4x8x8xi32>
    %cst_27 = arith.constant -1.000000e+30 : f32
    %57 = vector.broadcast %cst_27 : f32 to vector<4x8x8xf32>
    %58 = arith.select %56, %53, %57 : vector<4x8x8xi1>, vector<4x8x8xf32>
    %cst_28 = arith.constant dense<0xFF800000> : vector<4x8xf32>
    %59 = vector.multi_reduction <maximumf>, %58, %cst_28 [2] : vector<4x8x8xf32> to vector<4x8xf32>
    %60 = vector.shape_cast %59 : vector<4x8xf32> to vector<4x8x1xf32>
    %61 = vector.broadcast %60 : vector<4x8x1xf32> to vector<4x8x8xf32>
    %62 = arith.subf %58, %61 : vector<4x8x8xf32>
    %63 = math.exp %62 : vector<4x8x8xf32>
    %cst_29 = arith.constant dense<0.000000e+00> : vector<4x8xf32>
    %64 = vector.multi_reduction <add>, %63, %cst_29 [2] : vector<4x8x8xf32> to vector<4x8xf32>
    %65 = vector.shape_cast %64 : vector<4x8xf32> to vector<4x8x1xf32>
    %66 = tpu.reciprocal %65 {approx = true} : vector<4x8x1xf32> -> vector<4x8x1xf32>
    %67 = vector.broadcast %66 : vector<4x8x1xf32> to vector<4x8x8xf32>
    %68 = arith.mulf %63, %67 : vector<4x8x8xf32>
    %69 = arith.truncf %68 : vector<4x8x8xf32> to vector<4x8x8xbf16>
    "tpu.trace_start"() <{level = 10 : i32, message = "hqk,hkd->hqd"}> : () -> ()
    %cst_30 = arith.constant dense<0.000000e+00> : vector<4x8x8xf32>
    %70 = tpu.matmul %69, %50, %cst_30 {dimension_numbers = #tpu.dot_dimension_numbers<[2], [1], [1], [2], [0, 0, 0, 1, 1, 2], [0], [0]>} : vector<4x8x8xbf16>, vector<4x8x8xbf16>, vector<4x8x8xf32> -> vector<4x8x8xf32>
    "tpu.trace_stop"() : () -> ()
    %71 = tpu.transpose %70, [1, 0, 2] : vector<4x8x8xf32> -> vector<8x4x8xf32>
    %72 = vector.shape_cast %71 : vector<8x4x8xf32> to vector<8x32xf32>
    %73 = arith.truncf %72 : vector<8x32xf32> to vector<8x32xbf16>
    %c0_31 = arith.constant 0 : index
    %c0_32 = arith.constant 0 : index
    %74 = vector.load %arg11[%c0_31, %c0_32] : memref<32x32xbf16, #tpu.memory_space<vmem>>, vector<32x32xbf16>
    %cst_33 = arith.constant dense<0.000000e+00> : vector<8x32xf32>
    %75 = tpu.matmul %73, %74, %cst_33 {dimension_numbers = #tpu.dot_dimension_numbers<[1], [0], [0], [1], [0, 0, 1, 1], [], []>} : vector<8x32xbf16>, vector<32x32xbf16>, vector<8x32xf32> -> vector<8x32xf32>
    %c0_34 = arith.constant 0 : index
    %c0_35 = arith.constant 0 : index
    %76 = vector.load %arg12[%c0_34, %c0_35] : memref<1x32xf32, #tpu.memory_space<vmem>>, vector<1x32xf32>
    %77 = vector.broadcast %76 : vector<1x32xf32> to vector<8x32xf32>
    %78 = arith.addf %75, %77 : vector<8x32xf32>
    %79 = arith.addf %1, %78 : vector<8x32xf32>
    %cst_36 = arith.constant dense<0.000000e+00> : vector<8xf32>
    %80 = vector.multi_reduction <add>, %79, %cst_36 [1] : vector<8x32xf32> to vector<8xf32>
    %81 = vector.shape_cast %80 : vector<8xf32> to vector<8x1xf32>
    %cst_37 = arith.constant 3.200000e+01 : f32
    %82 = vector.broadcast %cst_37 : f32 to vector<8x1xf32>
    %83 = arith.divf %81, %82 : vector<8x1xf32>
    %84 = vector.broadcast %83 : vector<8x1xf32> to vector<8x32xf32>
    %85 = arith.subf %79, %84 : vector<8x32xf32>
    %86 = arith.mulf %85, %85 : vector<8x32xf32>
    %cst_38 = arith.constant dense<0.000000e+00> : vector<8xf32>
    %87 = vector.multi_reduction <add>, %86, %cst_38 [1] : vector<8x32xf32> to vector<8xf32>
    %88 = vector.shape_cast %87 : vector<8xf32> to vector<8x1xf32>
    %cst_39 = arith.constant 3.200000e+01 : f32
    %89 = vector.broadcast %cst_39 : f32 to vector<8x1xf32>
    %90 = arith.divf %88, %89 : vector<8x1xf32>
    %cst_40 = arith.constant 9.99999974E-6 : f32
    %91 = vector.broadcast %cst_40 : f32 to vector<8x1xf32>
    %92 = arith.addf %90, %91 : vector<8x1xf32>
    %93 = math.rsqrt %92 : vector<8x1xf32>
    %94 = vector.broadcast %93 : vector<8x1xf32> to vector<8x32xf32>
    %95 = arith.mulf %85, %94 : vector<8x32xf32>
    %c0_41 = arith.constant 0 : index
    %c0_42 = arith.constant 0 : index
    %96 = vector.load %arg13[%c0_41, %c0_42] : memref<1x32xf32, #tpu.memory_space<vmem>>, vector<1x32xf32>
    %97 = vector.broadcast %96 : vector<1x32xf32> to vector<8x32xf32>
    %98 = arith.mulf %95, %97 : vector<8x32xf32>
    %c0_43 = arith.constant 0 : index
    %c0_44 = arith.constant 0 : index
    %99 = vector.load %arg14[%c0_43, %c0_44] : memref<1x32xf32, #tpu.memory_space<vmem>>, vector<1x32xf32>
    %100 = vector.broadcast %99 : vector<1x32xf32> to vector<8x32xf32>
    %101 = arith.addf %98, %100 : vector<8x32xf32>
    %102 = arith.truncf %101 : vector<8x32xf32> to vector<8x32xbf16>
    %c0_45 = arith.constant 0 : index
    %c0_46 = arith.constant 0 : index
    %103 = vector.load %arg15[%c0_45, %c0_46] : memref<32x128xbf16, #tpu.memory_space<vmem>>, vector<32x128xbf16>
    %cst_47 = arith.constant dense<0.000000e+00> : vector<8x128xf32>
    %104 = tpu.matmul %102, %103, %cst_47 {dimension_numbers = #tpu.dot_dimension_numbers<[1], [0], [0], [1], [0, 0, 1, 1], [], []>} : vector<8x32xbf16>, vector<32x128xbf16>, vector<8x128xf32> -> vector<8x128xf32>
    %c0_48 = arith.constant 0 : index
    %c0_49 = arith.constant 0 : index
    %105 = vector.load %arg16[%c0_48, %c0_49] : memref<1x128xf32, #tpu.memory_space<vmem>>, vector<1x128xf32>
    %106 = vector.broadcast %105 : vector<1x128xf32> to vector<8x128xf32>
    %107 = arith.addf %104, %106 : vector<8x128xf32>
    %cst_50 = arith.constant 5.000000e-01 : f32
    %108 = vector.broadcast %cst_50 : f32 to vector<8x128xf32>
    %109 = arith.mulf %108, %107 : vector<8x128xf32>
    %cst_51 = arith.constant 0.707106769 : f32
    %110 = vector.broadcast %cst_51 : f32 to vector<8x128xf32>
    %111 = arith.mulf %107, %110 : vector<8x128xf32>
    %112 = math.erf %111 : vector<8x128xf32>
    %cst_52 = arith.constant 1.000000e+00 : f32
    %113 = vector.broadcast %cst_52 : f32 to vector<8x128xf32>
    %114 = arith.addf %113, %112 : vector<8x128xf32>
    %115 = arith.mulf %109, %114 : vector<8x128xf32>
    %116 = arith.truncf %115 : vector<8x128xf32> to vector<8x128xbf16>
    %c0_53 = arith.constant 0 : index
    %c0_54 = arith.constant 0 : index
    %117 = vector.load %arg17[%c0_53, %c0_54] : memref<128x32xbf16, #tpu.memory_space<vmem>>, vector<128x32xbf16>
    %cst_55 = arith.constant dense<0.000000e+00> : vector<8x32xf32>
    %118 = tpu.matmul %116, %117, %cst_55 {dimension_numbers = #tpu.dot_dimension_numbers<[1], [0], [0], [1], [0, 0, 1, 1], [], []>} : vector<8x128xbf16>, vector<128x32xbf16>, vector<8x32xf32> -> vector<8x32xf32>
    %c0_56 = arith.constant 0 : index
    %c0_57 = arith.constant 0 : index
    %119 = vector.load %arg18[%c0_56, %c0_57] : memref<1x32xf32, #tpu.memory_space<vmem>>, vector<1x32xf32>
    %120 = vector.broadcast %119 : vector<1x32xf32> to vector<8x32xf32>
    %121 = arith.addf %118, %120 : vector<8x32xf32>
    %122 = arith.addf %79, %121 : vector<8x32xf32>
    %c0_58 = arith.constant 0 : index
    %c0_59 = arith.constant 0 : index
    %c0_60 = arith.constant 0 : index
    %123 = vector.load %arg19[%c0_58, %c0_59, %c0_60] : memref<1x8x32xf32, #tpu.memory_space<vmem>>, vector<1x8x32xf32>
    %124 = vector.shape_cast %123 : vector<1x8x32xf32> to vector<8x32xf32>
    %125 = vector.shape_cast %122 : vector<8x32xf32> to vector<1x8x32xf32>
    tpu.vector_store %arg19[%c0_58, %c0_59, %c0_60], %125 {strides = array<i32>} : memref<1x8x32xf32, #tpu.memory_space<vmem>>, vector<1x8x32xf32>,
    return
  }
  func.func @transform_0(%arg0: i32, %arg1: i32) -> (i32, i32, i32) {
    %c0_i32 = arith.constant 0 : i32
    %c0_i32_0 = arith.constant 0 : i32
    %c0_i32_1 = arith.constant 0 : i32
    return %arg0, %c0_i32, %c0_i32_0 : i32, i32, i32
  }
  func.func @transform_1(%arg0: i32, %arg1: i32) -> (i32, i32) {
    %c0_i32 = arith.constant 0 : i32
    %c0_i32_0 = arith.constant 0 : i32
    %c0_i32_1 = arith.constant 0 : i32
    return %c0_i32, %c0_i32_0 : i32, i32
  }
  func.func @transform_2(%arg0: i32, %arg1: i32) -> (i32, i32) {
    %c0_i32 = arith.constant 0 : i32
    %c0_i32_0 = arith.constant 0 : i32
    %c0_i32_1 = arith.constant 0 : i32
    return %c0_i32, %c0_i32_0 : i32, i32
  }
  func.func @transform_3(%arg0: i32, %arg1: i32) -> (i32, i32) {
    %c0_i32 = arith.constant 0 : i32
    %c0_i32_0 = arith.constant 0 : i32
    %c0_i32_1 = arith.constant 0 : i32
    return %c0_i32, %c0_i32_0 : i32, i32
  }
  func.func @transform_4(%arg0: i32, %arg1: i32) -> (i32, i32) {
    %c0_i32 = arith.constant 0 : i32
    %c0_i32_0 = arith.constant 0 : i32
    %c0_i32_1 = arith.constant 0 : i32
    return %c0_i32, %c0_i32_0 : i32, i32
  }
  func.func @transform_5(%arg0: i32, %arg1: i32) -> (i32, i32) {
    %c0_i32 = arith.constant 0 : i32
    %c0_i32_0 = arith.constant 0 : i32
    %c0_i32_1 = arith.constant 0 : i32
    return %c0_i32, %c0_i32_0 : i32, i32
  }
  func.func @transform_6(%arg0: i32, %arg1: i32) -> (i32, i32) {
    %c0_i32 = arith.constant 0 : i32
    %c0_i32_0 = arith.constant 0 : i32
    %c0_i32_1 = arith.constant 0 : i32
    return %c0_i32, %c0_i32_0 : i32, i32
  }
  func.func @transform_7(%arg0: i32, %arg1: i32) -> (i32, i32) {
    %c0_i32 = arith.constant 0 : i32
    %c0_i32_0 = arith.constant 0 : i32
    %c0_i32_1 = arith.constant 0 : i32
    return %c0_i32, %c0_i32_0 : i32, i32
  }
  func.func @transform_8(%arg0: i32, %arg1: i32) -> (i32, i32) {
    %c0_i32 = arith.constant 0 : i32
    %c0_i32_0 = arith.constant 0 : i32
    %c0_i32_1 = arith.constant 0 : i32
    return %c0_i32, %c0_i32_0 : i32, i32
  }
  func.func @transform_9(%arg0: i32, %arg1: i32) -> (i32, i32) {
    %c0_i32 = arith.constant 0 : i32
    %c0_i32_0 = arith.constant 0 : i32
    %c0_i32_1 = arith.constant 0 : i32
    return %c0_i32, %c0_i32_0 : i32, i32
  }
  func.func @transform_10(%arg0: i32, %arg1: i32) -> (i32, i32) {
    %c0_i32 = arith.constant 0 : i32
    %c0_i32_0 = arith.constant 0 : i32
    %c0_i32_1 = arith.constant 0 : i32
    return %c0_i32, %c0_i32_0 : i32, i32
  }
  func.func @transform_11(%arg0: i32, %arg1: i32) -> (i32, i32) {
    %c0_i32 = arith.constant 0 : i32
    %c0_i32_0 = arith.constant 0 : i32
    %c0_i32_1 = arith.constant 0 : i32
    return %c0_i32, %c0_i32_0 : i32, i32
  }
  func.func @transform_12(%arg0: i32, %arg1: i32) -> (i32, i32) {
    %c0_i32 = arith.constant 0 : i32
    %c0_i32_0 = arith.constant 0 : i32
    %c0_i32_1 = arith.constant 0 : i32
    return %c0_i32, %c0_i32_0 : i32, i32
  }
  func.func @transform_13(%arg0: i32, %arg1: i32) -> (i32, i32) {
    %c0_i32 = arith.constant 0 : i32
    %c0_i32_0 = arith.constant 0 : i32
    %c0_i32_1 = arith.constant 0 : i32
    return %c0_i32, %c0_i32_0 : i32, i32
  }
  func.func @transform_14(%arg0: i32, %arg1: i32) -> (i32, i32) {
    %c0_i32 = arith.constant 0 : i32
    %c0_i32_0 = arith.constant 0 : i32
    %c0_i32_1 = arith.constant 0 : i32
    return %c0_i32, %c0_i32_0 : i32, i32
  }
  func.func @transform_15(%arg0: i32, %arg1: i32) -> (i32, i32) {
    %c0_i32 = arith.constant 0 : i32
    %c0_i32_0 = arith.constant 0 : i32
    %c0_i32_1 = arith.constant 0 : i32
    return %c0_i32, %c0_i32_0 : i32, i32
  }
  func.func @transform_16(%arg0: i32, %arg1: i32) -> (i32, i32) {
    %c0_i32 = arith.constant 0 : i32
    %c0_i32_0 = arith.constant 0 : i32
    %c0_i32_1 = arith.constant 0 : i32
    return %c0_i32, %c0_i32_0 : i32, i32
  }
  func.func @transform_17(%arg0: i32, %arg1: i32) -> (i32, i32, i32) {
    %c0_i32 = arith.constant 0 : i32
    %c0_i32_0 = arith.constant 0 : i32
    return %arg0, %arg1, %c0_i32 : i32, i32, i32
  }
}

module attributes {stable_mosaic.version = 11 : i64} {
  func.func @_block_kernel(%arg0: i32, %arg1: i32, %arg2: memref<1x8x32xf32, #tpu.memory_space<vmem>>, %arg3: memref<1x32xf32, #tpu.memory_space<vmem>>, %arg4: memref<1x32xf32, #tpu.memory_space<vmem>>, %arg5: memref<32x32xbf16, #tpu.memory_space<vmem>>, %arg6: memref<1x32xf32, #tpu.memory_space<vmem>>, %arg7: memref<32x32xbf16, #tpu.memory_space<vmem>>, %arg8: memref<1x32xf32, #tpu.memory_space<vmem>>, %arg9: memref<32x32xbf16, #tpu.memory_space<vmem>>, %arg10: memref<1x32xf32, #tpu.memory_space<vmem>>, %arg11: memref<32x32xbf16, #tpu.memory_space<vmem>>, %arg12: memref<1x32xf32, #tpu.memory_space<vmem>>, %arg13: memref<1x32xf32, #tpu.memory_space<vmem>>, %arg14: memref<1x32xf32, #tpu.memory_space<vmem>>, %arg15: memref<32x128xbf16, #tpu.memory_space<vmem>>, %arg16: memref<1x128xf32, #tpu.memory_space<vmem>>, %arg17: memref<128x32xbf16, #tpu.memory_space<vmem>>, %arg18: memref<1x32xf32, #tpu.memory_space<vmem>>, %arg19: memref<1x32xf32, #tpu.memory_space<vmem>>, %arg20: memref<1x32xf32, #tpu.memory_space<vmem>>, %arg21: memref<1x8x32xf32, #tpu.memory_space<vmem>>, %arg22: memref<1x8x32xf32, #tpu.memory_space<vmem>>) attributes {dimension_semantics = [#tpu.dimension_semantics<parallel>, #tpu.dimension_semantics<parallel>], iteration_bounds = array<i64: 2, 1>, scalar_prefetch = 0 : i64, scratch_operands = 0 : i64, tpu.core_type = #tpu.core_type<tc>, window_params = [{transform_indices = @transform_0, window_bounds = array<i64: 1, 8, 32>}, {pipeline_mode = #tpu.pipeline_mode<synchronous>, transform_indices = @transform_1, window_bounds = array<i64: 1, 32>}, {pipeline_mode = #tpu.pipeline_mode<synchronous>, transform_indices = @transform_2, window_bounds = array<i64: 1, 32>}, {pipeline_mode = #tpu.pipeline_mode<synchronous>, transform_indices = @transform_3, window_bounds = array<i64: 32, 32>}, {pipeline_mode = #tpu.pipeline_mode<synchronous>, transform_indices = @transform_4, window_bounds = array<i64: 1, 32>}, {pipeline_mode = #tpu.pipeline_mode<synchronous>, transform_indices = @transform_5, window_bounds = array<i64: 32, 32>}, {pipeline_mode = #tpu.pipeline_mode<synchronous>, transform_indices = @transform_6, window_bounds = array<i64: 1, 32>}, {pipeline_mode = #tpu.pipeline_mode<synchronous>, transform_indices = @transform_7, window_bounds = array<i64: 32, 32>}, {pipeline_mode = #tpu.pipeline_mode<synchronous>, transform_indices = @transform_8, window_bounds = array<i64: 1, 32>}, {pipeline_mode = #tpu.pipeline_mode<synchronous>, transform_indices = @transform_9, window_bounds = array<i64: 32, 32>}, {pipeline_mode = #tpu.pipeline_mode<synchronous>, transform_indices = @transform_10, window_bounds = array<i64: 1, 32>}, {pipeline_mode = #tpu.pipeline_mode<synchronous>, transform_indices = @transform_11, window_bounds = array<i64: 1, 32>}, {pipeline_mode = #tpu.pipeline_mode<synchronous>, transform_indices = @transform_12, window_bounds = array<i64: 1, 32>}, {pipeline_mode = #tpu.pipeline_mode<synchronous>, transform_indices = @transform_13, window_bounds = array<i64: 32, 128>}, {pipeline_mode = #tpu.pipeline_mode<synchronous>, transform_indices = @transform_14, window_bounds = array<i64: 1, 128>}, {pipeline_mode = #tpu.pipeline_mode<synchronous>, transform_indices = @transform_15, window_bounds = array<i64: 128, 32>}, {pipeline_mode = #tpu.pipeline_mode<synchronous>, transform_indices = @transform_16, window_bounds = array<i64: 1, 32>}, {pipeline_mode = #tpu.pipeline_mode<synchronous>, transform_indices = @transform_17, window_bounds = array<i64: 1, 32>}, {pipeline_mode = #tpu.pipeline_mode<synchronous>, transform_indices = @transform_18, window_bounds = array<i64: 1, 32>}, {transform_indices = @transform_19, window_bounds = array<i64: 1, 8, 32>}, {transform_indices = @transform_20, window_bounds = array<i64: 1, 8, 32>}]} {
    %c0 = arith.constant 0 : index
    %c0_0 = arith.constant 0 : index
    %c0_1 = arith.constant 0 : index
    %0 = vector.load %arg2[%c0, %c0_0, %c0_1] : memref<1x8x32xf32, #tpu.memory_space<vmem>>, vector<1x8x32xf32>
    %1 = vector.shape_cast %0 : vector<1x8x32xf32> to vector<8x32xf32>
    %cst = arith.constant dense<0.000000e+00> : vector<8xf32>
    %2 = vector.multi_reduction <add>, %1, %cst [1] : vector<8x32xf32> to vector<8xf32>
    %3 = vector.shape_cast %2 : vector<8xf32> to vector<8x1xf32>
    %cst_2 = arith.constant 3.200000e+01 : f32
    %4 = vector.broadcast %cst_2 : f32 to vector<8x1xf32>
    %5 = arith.divf %3, %4 : vector<8x1xf32>
    %6 = vector.broadcast %5 : vector<8x1xf32> to vector<8x32xf32>
    %7 = arith.subf %1, %6 : vector<8x32xf32>
    %8 = arith.mulf %7, %7 : vector<8x32xf32>
    %cst_3 = arith.constant dense<0.000000e+00> : vector<8xf32>
    %9 = vector.multi_reduction <add>, %8, %cst_3 [1] : vector<8x32xf32> to vector<8xf32>
    %10 = vector.shape_cast %9 : vector<8xf32> to vector<8x1xf32>
    %cst_4 = arith.constant 3.200000e+01 : f32
    %11 = vector.broadcast %cst_4 : f32 to vector<8x1xf32>
    %12 = arith.divf %10, %11 : vector<8x1xf32>
    %cst_5 = arith.constant 9.99999974E-6 : f32
    %13 = vector.broadcast %cst_5 : f32 to vector<8x1xf32>
    %14 = arith.addf %12, %13 : vector<8x1xf32>
    %15 = math.rsqrt %14 : vector<8x1xf32>
    %16 = vector.broadcast %15 : vector<8x1xf32> to vector<8x32xf32>
    %17 = arith.mulf %7, %16 : vector<8x32xf32>
    %c0_6 = arith.constant 0 : index
    %c0_7 = arith.constant 0 : index
    %18 = vector.load %arg3[%c0_6, %c0_7] : memref<1x32xf32, #tpu.memory_space<vmem>>, vector<1x32xf32>
    %19 = vector.broadcast %18 : vector<1x32xf32> to vector<8x32xf32>
    %20 = arith.mulf %17, %19 : vector<8x32xf32>
    %c0_8 = arith.constant 0 : index
    %c0_9 = arith.constant 0 : index
    %21 = vector.load %arg4[%c0_8, %c0_9] : memref<1x32xf32, #tpu.memory_space<vmem>>, vector<1x32xf32>
    %22 = vector.broadcast %21 : vector<1x32xf32> to vector<8x32xf32>
    %23 = arith.addf %20, %22 : vector<8x32xf32>
    %24 = arith.truncf %23 : vector<8x32xf32> to vector<8x32xbf16>
    %c0_10 = arith.constant 0 : index
    %c0_11 = arith.constant 0 : index
    %25 = vector.load %arg5[%c0_10, %c0_11] : memref<32x32xbf16, #tpu.memory_space<vmem>>, vector<32x32xbf16>
    %cst_12 = arith.constant dense<0.000000e+00> : vector<8x32xf32>
    %26 = tpu.matmul %24, %25, %cst_12 {dimension_numbers = #tpu.dot_dimension_numbers<[1], [0], [0], [1], [0, 0, 1, 1], [], []>} : vector<8x32xbf16>, vector<32x32xbf16>, vector<8x32xf32> -> vector<8x32xf32>
    %c0_13 = arith.constant 0 : index
    %c0_14 = arith.constant 0 : index
    %27 = vector.load %arg6[%c0_13, %c0_14] : memref<1x32xf32, #tpu.memory_space<vmem>>, vector<1x32xf32>
    %28 = vector.broadcast %27 : vector<1x32xf32> to vector<8x32xf32>
    %29 = arith.addf %26, %28 : vector<8x32xf32>
    %30 = arith.truncf %23 : vector<8x32xf32> to vector<8x32xbf16>
    %c0_15 = arith.constant 0 : index
    %c0_16 = arith.constant 0 : index
    %31 = vector.load %arg7[%c0_15, %c0_16] : memref<32x32xbf16, #tpu.memory_space<vmem>>, vector<32x32xbf16>
    %cst_17 = arith.constant dense<0.000000e+00> : vector<8x32xf32>
    %32 = tpu.matmul %30, %31, %cst_17 {dimension_numbers = #tpu.dot_dimension_numbers<[1], [0], [0], [1], [0, 0, 1, 1], [], []>} : vector<8x32xbf16>, vector<32x32xbf16>, vector<8x32xf32> -> vector<8x32xf32>
    %c0_18 = arith.constant 0 : index
    %c0_19 = arith.constant 0 : index
    %33 = vector.load %arg8[%c0_18, %c0_19] : memref<1x32xf32, #tpu.memory_space<vmem>>, vector<1x32xf32>
    %34 = vector.broadcast %33 : vector<1x32xf32> to vector<8x32xf32>
    %35 = arith.addf %32, %34 : vector<8x32xf32>
    %36 = arith.truncf %23 : vector<8x32xf32> to vector<8x32xbf16>
    %c0_20 = arith.constant 0 : index
    %c0_21 = arith.constant 0 : index
    %37 = vector.load %arg9[%c0_20, %c0_21] : memref<32x32xbf16, #tpu.memory_space<vmem>>, vector<32x32xbf16>
    %cst_22 = arith.constant dense<0.000000e+00> : vector<8x32xf32>
    %38 = tpu.matmul %36, %37, %cst_22 {dimension_numbers = #tpu.dot_dimension_numbers<[1], [0], [0], [1], [0, 0, 1, 1], [], []>} : vector<8x32xbf16>, vector<32x32xbf16>, vector<8x32xf32> -> vector<8x32xf32>
    %c0_23 = arith.constant 0 : index
    %c0_24 = arith.constant 0 : index
    %39 = vector.load %arg10[%c0_23, %c0_24] : memref<1x32xf32, #tpu.memory_space<vmem>>, vector<1x32xf32>
    %40 = vector.broadcast %39 : vector<1x32xf32> to vector<8x32xf32>
    %41 = arith.addf %38, %40 : vector<8x32xf32>
    %42 = arith.truncf %29 : vector<8x32xf32> to vector<8x32xbf16>
    %43 = vector.shape_cast %42 : vector<8x32xbf16> to vector<8x4x8xbf16>
    %44 = tpu.transpose %43, [1, 0, 2] : vector<8x4x8xbf16> -> vector<4x8x8xbf16>
    %45 = arith.truncf %35 : vector<8x32xf32> to vector<8x32xbf16>
    %46 = vector.shape_cast %45 : vector<8x32xbf16> to vector<8x4x8xbf16>
    %47 = tpu.transpose %46, [1, 0, 2] : vector<8x4x8xbf16> -> vector<4x8x8xbf16>
    %48 = arith.truncf %41 : vector<8x32xf32> to vector<8x32xbf16>
    %49 = vector.shape_cast %48 : vector<8x32xbf16> to vector<8x4x8xbf16>
    %50 = tpu.transpose %49, [1, 0, 2] : vector<8x4x8xbf16> -> vector<4x8x8xbf16>
    "tpu.trace_start"() <{level = 10 : i32, message = "hqd,hkd->hqk"}> : () -> ()
    %cst_25 = arith.constant dense<0.000000e+00> : vector<4x8x8xf32>
    %51 = tpu.matmul %44, %47, %cst_25 {dimension_numbers = #tpu.dot_dimension_numbers<[2], [2], [1], [1], [0, 0, 0, 1, 1, 1], [0], [0]>} : vector<4x8x8xbf16>, vector<4x8x8xbf16>, vector<4x8x8xf32> -> vector<4x8x8xf32>
    "tpu.trace_stop"() : () -> ()
    %cst_26 = arith.constant 0.353553385 : f32
    %52 = vector.broadcast %cst_26 : f32 to vector<4x8x8xf32>
    %53 = arith.mulf %51, %52 : vector<4x8x8xf32>
    %54 = tpu.iota {dimensions = array<i32: 2>} : vector<4x8x8xi32>
    %c5_i32 = arith.constant 5 : i32
    %55 = vector.broadcast %c5_i32 : i32 to vector<4x8x8xi32>
    %56 = arith.cmpi slt, %54, %55 : vector<4x8x8xi32>
    %cst_27 = arith.constant -1.000000e+30 : f32
    %57 = vector.broadcast %cst_27 : f32 to vector<4x8x8xf32>
    %58 = arith.select %56, %53, %57 : vector<4x8x8xi1>, vector<4x8x8xf32>
    %cst_28 = arith.constant dense<0xFF800000> : vector<4x8xf32>
    %59 = vector.multi_reduction <maximumf>, %58, %cst_28 [2] : vector<4x8x8xf32> to vector<4x8xf32>
    %60 = vector.shape_cast %59 : vector<4x8xf32> to vector<4x8x1xf32>
    %61 = vector.broadcast %60 : vector<4x8x1xf32> to vector<4x8x8xf32>
    %62 = arith.subf %58, %61 : vector<4x8x8xf32>
    %63 = math.exp %62 : vector<4x8x8xf32>
    %cst_29 = arith.constant dense<0.000000e+00> : vector<4x8xf32>
    %64 = vector.multi_reduction <add>, %63, %cst_29 [2] : vector<4x8x8xf32> to vector<4x8xf32>
    %65 = vector.shape_cast %64 : vector<4x8xf32> to vector<4x8x1xf32>
    %66 = tpu.reciprocal %65 {approx = true} : vector<4x8x1xf32> -> vector<4x8x1xf32>
    %67 = vector.broadcast %66 : vector<4x8x1xf32> to vector<4x8x8xf32>
    %68 = arith.mulf %63, %67 : vector<4x8x8xf32>
    %69 = arith.truncf %68 : vector<4x8x8xf32> to vector<4x8x8xbf16>
    "tpu.trace_start"() <{level = 10 : i32, message = "hqk,hkd->hqd"}> : () -> ()
    %cst_30 = arith.constant dense<0.000000e+00> : vector<4x8x8xf32>
    %70 = tpu.matmul %69, %50, %cst_30 {dimension_numbers = #tpu.dot_dimension_numbers<[2], [1], [1], [2], [0, 0, 0, 1, 1, 2], [0], [0]>} : vector<4x8x8xbf16>, vector<4x8x8xbf16>, vector<4x8x8xf32> -> vector<4x8x8xf32>
    "tpu.trace_stop"() : () -> ()
    %71 = tpu.transpose %70, [1, 0, 2] : vector<4x8x8xf32> -> vector<8x4x8xf32>
    %72 = vector.shape_cast %71 : vector<8x4x8xf32> to vector<8x32xf32>
    %73 = arith.truncf %72 : vector<8x32xf32> to vector<8x32xbf16>
    %c0_31 = arith.constant 0 : index
    %c0_32 = arith.constant 0 : index
    %74 = vector.load %arg11[%c0_31, %c0_32] : memref<32x32xbf16, #tpu.memory_space<vmem>>, vector<32x32xbf16>
    %cst_33 = arith.constant dense<0.000000e+00> : vector<8x32xf32>
    %75 = tpu.matmul %73, %74, %cst_33 {dimension_numbers = #tpu.dot_dimension_numbers<[1], [0], [0], [1], [0, 0, 1, 1], [], []>} : vector<8x32xbf16>, vector<32x32xbf16>, vector<8x32xf32> -> vector<8x32xf32>
    %c0_34 = arith.constant 0 : index
    %c0_35 = arith.constant 0 : index
    %76 = vector.load %arg12[%c0_34, %c0_35] : memref<1x32xf32, #tpu.memory_space<vmem>>, vector<1x32xf32>
    %77 = vector.broadcast %76 : vector<1x32xf32> to vector<8x32xf32>
    %78 = arith.addf %75, %77 : vector<8x32xf32>
    %79 = arith.addf %1, %78 : vector<8x32xf32>
    %cst_36 = arith.constant dense<0.000000e+00> : vector<8xf32>
    %80 = vector.multi_reduction <add>, %79, %cst_36 [1] : vector<8x32xf32> to vector<8xf32>
    %81 = vector.shape_cast %80 : vector<8xf32> to vector<8x1xf32>
    %cst_37 = arith.constant 3.200000e+01 : f32
    %82 = vector.broadcast %cst_37 : f32 to vector<8x1xf32>
    %83 = arith.divf %81, %82 : vector<8x1xf32>
    %84 = vector.broadcast %83 : vector<8x1xf32> to vector<8x32xf32>
    %85 = arith.subf %79, %84 : vector<8x32xf32>
    %86 = arith.mulf %85, %85 : vector<8x32xf32>
    %cst_38 = arith.constant dense<0.000000e+00> : vector<8xf32>
    %87 = vector.multi_reduction <add>, %86, %cst_38 [1] : vector<8x32xf32> to vector<8xf32>
    %88 = vector.shape_cast %87 : vector<8xf32> to vector<8x1xf32>
    %cst_39 = arith.constant 3.200000e+01 : f32
    %89 = vector.broadcast %cst_39 : f32 to vector<8x1xf32>
    %90 = arith.divf %88, %89 : vector<8x1xf32>
    %cst_40 = arith.constant 9.99999974E-6 : f32
    %91 = vector.broadcast %cst_40 : f32 to vector<8x1xf32>
    %92 = arith.addf %90, %91 : vector<8x1xf32>
    %93 = math.rsqrt %92 : vector<8x1xf32>
    %94 = vector.broadcast %93 : vector<8x1xf32> to vector<8x32xf32>
    %95 = arith.mulf %85, %94 : vector<8x32xf32>
    %c0_41 = arith.constant 0 : index
    %c0_42 = arith.constant 0 : index
    %96 = vector.load %arg13[%c0_41, %c0_42] : memref<1x32xf32, #tpu.memory_space<vmem>>, vector<1x32xf32>
    %97 = vector.broadcast %96 : vector<1x32xf32> to vector<8x32xf32>
    %98 = arith.mulf %95, %97 : vector<8x32xf32>
    %c0_43 = arith.constant 0 : index
    %c0_44 = arith.constant 0 : index
    %99 = vector.load %arg14[%c0_43, %c0_44] : memref<1x32xf32, #tpu.memory_space<vmem>>, vector<1x32xf32>
    %100 = vector.broadcast %99 : vector<1x32xf32> to vector<8x32xf32>
    %101 = arith.addf %98, %100 : vector<8x32xf32>
    %102 = arith.truncf %101 : vector<8x32xf32> to vector<8x32xbf16>
    %c0_45 = arith.constant 0 : index
    %c0_46 = arith.constant 0 : index
    %103 = vector.load %arg15[%c0_45, %c0_46] : memref<32x128xbf16, #tpu.memory_space<vmem>>, vector<32x128xbf16>
    %cst_47 = arith.constant dense<0.000000e+00> : vector<8x128xf32>
    %104 = tpu.matmul %102, %103, %cst_47 {dimension_numbers = #tpu.dot_dimension_numbers<[1], [0], [0], [1], [0, 0, 1, 1], [], []>} : vector<8x32xbf16>, vector<32x128xbf16>, vector<8x128xf32> -> vector<8x128xf32>
    %c0_48 = arith.constant 0 : index
    %c0_49 = arith.constant 0 : index
    %105 = vector.load %arg16[%c0_48, %c0_49] : memref<1x128xf32, #tpu.memory_space<vmem>>, vector<1x128xf32>
    %106 = vector.broadcast %105 : vector<1x128xf32> to vector<8x128xf32>
    %107 = arith.addf %104, %106 : vector<8x128xf32>
    %cst_50 = arith.constant 5.000000e-01 : f32
    %108 = vector.broadcast %cst_50 : f32 to vector<8x128xf32>
    %109 = arith.mulf %108, %107 : vector<8x128xf32>
    %cst_51 = arith.constant 0.707106769 : f32
    %110 = vector.broadcast %cst_51 : f32 to vector<8x128xf32>
    %111 = arith.mulf %107, %110 : vector<8x128xf32>
    %112 = math.erf %111 : vector<8x128xf32>
    %cst_52 = arith.constant 1.000000e+00 : f32
    %113 = vector.broadcast %cst_52 : f32 to vector<8x128xf32>
    %114 = arith.addf %113, %112 : vector<8x128xf32>
    %115 = arith.mulf %109, %114 : vector<8x128xf32>
    %116 = arith.truncf %115 : vector<8x128xf32> to vector<8x128xbf16>
    %c0_53 = arith.constant 0 : index
    %c0_54 = arith.constant 0 : index
    %117 = vector.load %arg17[%c0_53, %c0_54] : memref<128x32xbf16, #tpu.memory_space<vmem>>, vector<128x32xbf16>
    %cst_55 = arith.constant dense<0.000000e+00> : vector<8x32xf32>
    %118 = tpu.matmul %116, %117, %cst_55 {dimension_numbers = #tpu.dot_dimension_numbers<[1], [0], [0], [1], [0, 0, 1, 1], [], []>} : vector<8x128xbf16>, vector<128x32xbf16>, vector<8x32xf32> -> vector<8x32xf32>
    %c0_56 = arith.constant 0 : index
    %c0_57 = arith.constant 0 : index
    %119 = vector.load %arg18[%c0_56, %c0_57] : memref<1x32xf32, #tpu.memory_space<vmem>>, vector<1x32xf32>
    %120 = vector.broadcast %119 : vector<1x32xf32> to vector<8x32xf32>
    %121 = arith.addf %118, %120 : vector<8x32xf32>
    %122 = arith.addf %79, %121 : vector<8x32xf32>
    %c0_58 = arith.constant 0 : index
    %c0_59 = arith.constant 0 : index
    %c0_60 = arith.constant 0 : index
    %123 = vector.load %arg21[%c0_58, %c0_59, %c0_60] : memref<1x8x32xf32, #tpu.memory_space<vmem>>, vector<1x8x32xf32>
    %124 = vector.shape_cast %123 : vector<1x8x32xf32> to vector<8x32xf32>
    %125 = vector.shape_cast %122 : vector<8x32xf32> to vector<1x8x32xf32>
    tpu.vector_store %arg21[%c0_58, %c0_59, %c0_60], %125 {strides = array<i32>} : memref<1x8x32xf32, #tpu.memory_space<vmem>>, vector<1x8x32xf32>,
    %cst_61 = arith.constant dense<0.000000e+00> : vector<8xf32>
    %126 = vector.multi_reduction <add>, %122, %cst_61 [1] : vector<8x32xf32> to vector<8xf32>
    %127 = vector.shape_cast %126 : vector<8xf32> to vector<8x1xf32>
    %cst_62 = arith.constant 3.200000e+01 : f32
    %128 = vector.broadcast %cst_62 : f32 to vector<8x1xf32>
    %129 = arith.divf %127, %128 : vector<8x1xf32>
    %130 = vector.broadcast %129 : vector<8x1xf32> to vector<8x32xf32>
    %131 = arith.subf %122, %130 : vector<8x32xf32>
    %132 = arith.mulf %131, %131 : vector<8x32xf32>
    %cst_63 = arith.constant dense<0.000000e+00> : vector<8xf32>
    %133 = vector.multi_reduction <add>, %132, %cst_63 [1] : vector<8x32xf32> to vector<8xf32>
    %134 = vector.shape_cast %133 : vector<8xf32> to vector<8x1xf32>
    %cst_64 = arith.constant 3.200000e+01 : f32
    %135 = vector.broadcast %cst_64 : f32 to vector<8x1xf32>
    %136 = arith.divf %134, %135 : vector<8x1xf32>
    %cst_65 = arith.constant 9.99999974E-6 : f32
    %137 = vector.broadcast %cst_65 : f32 to vector<8x1xf32>
    %138 = arith.addf %136, %137 : vector<8x1xf32>
    %139 = math.rsqrt %138 : vector<8x1xf32>
    %140 = vector.broadcast %139 : vector<8x1xf32> to vector<8x32xf32>
    %141 = arith.mulf %131, %140 : vector<8x32xf32>
    %c0_66 = arith.constant 0 : index
    %c0_67 = arith.constant 0 : index
    %142 = vector.load %arg19[%c0_66, %c0_67] : memref<1x32xf32, #tpu.memory_space<vmem>>, vector<1x32xf32>
    %143 = vector.broadcast %142 : vector<1x32xf32> to vector<8x32xf32>
    %144 = arith.mulf %141, %143 : vector<8x32xf32>
    %c0_68 = arith.constant 0 : index
    %c0_69 = arith.constant 0 : index
    %145 = vector.load %arg20[%c0_68, %c0_69] : memref<1x32xf32, #tpu.memory_space<vmem>>, vector<1x32xf32>
    %146 = vector.broadcast %145 : vector<1x32xf32> to vector<8x32xf32>
    %147 = arith.addf %144, %146 : vector<8x32xf32>
    %c0_70 = arith.constant 0 : index
    %c0_71 = arith.constant 0 : index
    %c0_72 = arith.constant 0 : index
    %148 = vector.load %arg22[%c0_70, %c0_71, %c0_72] : memref<1x8x32xf32, #tpu.memory_space<vmem>>, vector<1x8x32xf32>
    %149 = vector.shape_cast %148 : vector<1x8x32xf32> to vector<8x32xf32>
    %150 = vector.shape_cast %147 : vector<8x32xf32> to vector<1x8x32xf32>
    tpu.vector_store %arg22[%c0_70, %c0_71, %c0_72], %150 {strides = array<i32>} : memref<1x8x32xf32, #tpu.memory_space<vmem>>, vector<1x8x32xf32>,
    return
  }
  func.func @transform_0(%arg0: i32, %arg1: i32) -> (i32, i32, i32) {
    %c0_i32 = arith.constant 0 : i32
    %c0_i32_0 = arith.constant 0 : i32
    %c0_i32_1 = arith.constant 0 : i32
    return %arg0, %c0_i32, %c0_i32_0 : i32, i32, i32
  }
  func.func @transform_1(%arg0: i32, %arg1: i32) -> (i32, i32) {
    %c0_i32 = arith.constant 0 : i32
    %c0_i32_0 = arith.constant 0 : i32
    %c0_i32_1 = arith.constant 0 : i32
    return %c0_i32, %c0_i32_0 : i32, i32
  }
  func.func @transform_2(%arg0: i32, %arg1: i32) -> (i32, i32) {
    %c0_i32 = arith.constant 0 : i32
    %c0_i32_0 = arith.constant 0 : i32
    %c0_i32_1 = arith.constant 0 : i32
    return %c0_i32, %c0_i32_0 : i32, i32
  }
  func.func @transform_3(%arg0: i32, %arg1: i32) -> (i32, i32) {
    %c0_i32 = arith.constant 0 : i32
    %c0_i32_0 = arith.constant 0 : i32
    %c0_i32_1 = arith.constant 0 : i32
    return %c0_i32, %c0_i32_0 : i32, i32
  }
  func.func @transform_4(%arg0: i32, %arg1: i32) -> (i32, i32) {
    %c0_i32 = arith.constant 0 : i32
    %c0_i32_0 = arith.constant 0 : i32
    %c0_i32_1 = arith.constant 0 : i32
    return %c0_i32, %c0_i32_0 : i32, i32
  }
  func.func @transform_5(%arg0: i32, %arg1: i32) -> (i32, i32) {
    %c0_i32 = arith.constant 0 : i32
    %c0_i32_0 = arith.constant 0 : i32
    %c0_i32_1 = arith.constant 0 : i32
    return %c0_i32, %c0_i32_0 : i32, i32
  }
  func.func @transform_6(%arg0: i32, %arg1: i32) -> (i32, i32) {
    %c0_i32 = arith.constant 0 : i32
    %c0_i32_0 = arith.constant 0 : i32
    %c0_i32_1 = arith.constant 0 : i32
    return %c0_i32, %c0_i32_0 : i32, i32
  }
  func.func @transform_7(%arg0: i32, %arg1: i32) -> (i32, i32) {
    %c0_i32 = arith.constant 0 : i32
    %c0_i32_0 = arith.constant 0 : i32
    %c0_i32_1 = arith.constant 0 : i32
    return %c0_i32, %c0_i32_0 : i32, i32
  }
  func.func @transform_8(%arg0: i32, %arg1: i32) -> (i32, i32) {
    %c0_i32 = arith.constant 0 : i32
    %c0_i32_0 = arith.constant 0 : i32
    %c0_i32_1 = arith.constant 0 : i32
    return %c0_i32, %c0_i32_0 : i32, i32
  }
  func.func @transform_9(%arg0: i32, %arg1: i32) -> (i32, i32) {
    %c0_i32 = arith.constant 0 : i32
    %c0_i32_0 = arith.constant 0 : i32
    %c0_i32_1 = arith.constant 0 : i32
    return %c0_i32, %c0_i32_0 : i32, i32
  }
  func.func @transform_10(%arg0: i32, %arg1: i32) -> (i32, i32) {
    %c0_i32 = arith.constant 0 : i32
    %c0_i32_0 = arith.constant 0 : i32
    %c0_i32_1 = arith.constant 0 : i32
    return %c0_i32, %c0_i32_0 : i32, i32
  }
  func.func @transform_11(%arg0: i32, %arg1: i32) -> (i32, i32) {
    %c0_i32 = arith.constant 0 : i32
    %c0_i32_0 = arith.constant 0 : i32
    %c0_i32_1 = arith.constant 0 : i32
    return %c0_i32, %c0_i32_0 : i32, i32
  }
  func.func @transform_12(%arg0: i32, %arg1: i32) -> (i32, i32) {
    %c0_i32 = arith.constant 0 : i32
    %c0_i32_0 = arith.constant 0 : i32
    %c0_i32_1 = arith.constant 0 : i32
    return %c0_i32, %c0_i32_0 : i32, i32
  }
  func.func @transform_13(%arg0: i32, %arg1: i32) -> (i32, i32) {
    %c0_i32 = arith.constant 0 : i32
    %c0_i32_0 = arith.constant 0 : i32
    %c0_i32_1 = arith.constant 0 : i32
    return %c0_i32, %c0_i32_0 : i32, i32
  }
  func.func @transform_14(%arg0: i32, %arg1: i32) -> (i32, i32) {
    %c0_i32 = arith.constant 0 : i32
    %c0_i32_0 = arith.constant 0 : i32
    %c0_i32_1 = arith.constant 0 : i32
    return %c0_i32, %c0_i32_0 : i32, i32
  }
  func.func @transform_15(%arg0: i32, %arg1: i32) -> (i32, i32) {
    %c0_i32 = arith.constant 0 : i32
    %c0_i32_0 = arith.constant 0 : i32
    %c0_i32_1 = arith.constant 0 : i32
    return %c0_i32, %c0_i32_0 : i32, i32
  }
  func.func @transform_16(%arg0: i32, %arg1: i32) -> (i32, i32) {
    %c0_i32 = arith.constant 0 : i32
    %c0_i32_0 = arith.constant 0 : i32
    %c0_i32_1 = arith.constant 0 : i32
    return %c0_i32, %c0_i32_0 : i32, i32
  }
  func.func @transform_17(%arg0: i32, %arg1: i32) -> (i32, i32) {
    %c0_i32 = arith.constant 0 : i32
    %c0_i32_0 = arith.constant 0 : i32
    %c0_i32_1 = arith.constant 0 : i32
    return %c0_i32, %c0_i32_0 : i32, i32
  }
  func.func @transform_18(%arg0: i32, %arg1: i32) -> (i32, i32) {
    %c0_i32 = arith.constant 0 : i32
    %c0_i32_0 = arith.constant 0 : i32
    %c0_i32_1 = arith.constant 0 : i32
    return %c0_i32, %c0_i32_0 : i32, i32
  }
  func.func @transform_19(%arg0: i32, %arg1: i32) -> (i32, i32, i32) {
    %c0_i32 = arith.constant 0 : i32
    %c0_i32_0 = arith.constant 0 : i32
    return %arg0, %arg1, %c0_i32 : i32, i32, i32
  }
  func.func @transform_20(%arg0: i32, %arg1: i32) -> (i32, i32, i32) {
    %c0_i32 = arith.constant 0 : i32
    %c0_i32_0 = arith.constant 0 : i32
    return %arg0, %arg1, %c0_i32 : i32, i32, i32
  }
}

module attributes {stable_mosaic.version = 11 : i64} {
  func.func @_block_kernel(%arg0: i32, %arg1: i32, %arg2: memref<1x8x32xf32, #tpu.memory_space<vmem>>, %arg3: memref<1x32xf32, #tpu.memory_space<vmem>>, %arg4: memref<1x32xf32, #tpu.memory_space<vmem>>, %arg5: memref<32x32xbf16, #tpu.memory_space<vmem>>, %arg6: memref<1x32xf32, #tpu.memory_space<vmem>>, %arg7: memref<32x32xbf16, #tpu.memory_space<vmem>>, %arg8: memref<1x32xf32, #tpu.memory_space<vmem>>, %arg9: memref<32x32xbf16, #tpu.memory_space<vmem>>, %arg10: memref<1x32xf32, #tpu.memory_space<vmem>>, %arg11: memref<32x32xbf16, #tpu.memory_space<vmem>>, %arg12: memref<1x32xf32, #tpu.memory_space<vmem>>, %arg13: memref<1x32xf32, #tpu.memory_space<vmem>>, %arg14: memref<1x32xf32, #tpu.memory_space<vmem>>, %arg15: memref<32x128xbf16, #tpu.memory_space<vmem>>, %arg16: memref<1x128xf32, #tpu.memory_space<vmem>>, %arg17: memref<128x32xbf16, #tpu.memory_space<vmem>>, %arg18: memref<1x32xf32, #tpu.memory_space<vmem>>, %arg19: memref<1x8x32xf32, #tpu.memory_space<vmem>>) attributes {dimension_semantics = [#tpu.dimension_semantics<parallel>, #tpu.dimension_semantics<parallel>], iteration_bounds = array<i64: 2, 1>, scalar_prefetch = 0 : i64, scratch_operands = 0 : i64, tpu.core_type = #tpu.core_type<tc>, window_params = [{transform_indices = @transform_0, window_bounds = array<i64: 1, 8, 32>}, {pipeline_mode = #tpu.pipeline_mode<synchronous>, transform_indices = @transform_1, window_bounds = array<i64: 1, 32>}, {pipeline_mode = #tpu.pipeline_mode<synchronous>, transform_indices = @transform_2, window_bounds = array<i64: 1, 32>}, {pipeline_mode = #tpu.pipeline_mode<synchronous>, transform_indices = @transform_3, window_bounds = array<i64: 32, 32>}, {pipeline_mode = #tpu.pipeline_mode<synchronous>, transform_indices = @transform_4, window_bounds = array<i64: 1, 32>}, {pipeline_mode = #tpu.pipeline_mode<synchronous>, transform_indices = @transform_5, window_bounds = array<i64: 32, 32>}, {pipeline_mode = #tpu.pipeline_mode<synchronous>, transform_indices = @transform_6, window_bounds = array<i64: 1, 32>}, {pipeline_mode = #tpu.pipeline_mode<synchronous>, transform_indices = @transform_7, window_bounds = array<i64: 32, 32>}, {pipeline_mode = #tpu.pipeline_mode<synchronous>, transform_indices = @transform_8, window_bounds = array<i64: 1, 32>}, {pipeline_mode = #tpu.pipeline_mode<synchronous>, transform_indices = @transform_9, window_bounds = array<i64: 32, 32>}, {pipeline_mode = #tpu.pipeline_mode<synchronous>, transform_indices = @transform_10, window_bounds = array<i64: 1, 32>}, {pipeline_mode = #tpu.pipeline_mode<synchronous>, transform_indices = @transform_11, window_bounds = array<i64: 1, 32>}, {pipeline_mode = #tpu.pipeline_mode<synchronous>, transform_indices = @transform_12, window_bounds = array<i64: 1, 32>}, {pipeline_mode = #tpu.pipeline_mode<synchronous>, transform_indices = @transform_13, window_bounds = array<i64: 32, 128>}, {pipeline_mode = #tpu.pipeline_mode<synchronous>, transform_indices = @transform_14, window_bounds = array<i64: 1, 128>}, {pipeline_mode = #tpu.pipeline_mode<synchronous>, transform_indices = @transform_15, window_bounds = array<i64: 128, 32>}, {pipeline_mode = #tpu.pipeline_mode<synchronous>, transform_indices = @transform_16, window_bounds = array<i64: 1, 32>}, {transform_indices = @transform_17, window_bounds = array<i64: 1, 8, 32>}]} {
    %c0 = arith.constant 0 : index
    %c0_0 = arith.constant 0 : index
    %c0_1 = arith.constant 0 : index
    %0 = vector.load %arg2[%c0, %c0_0, %c0_1] : memref<1x8x32xf32, #tpu.memory_space<vmem>>, vector<1x8x32xf32>
    %1 = vector.shape_cast %0 : vector<1x8x32xf32> to vector<8x32xf32>
    %cst = arith.constant dense<0.000000e+00> : vector<8xf32>
    %2 = vector.multi_reduction <add>, %1, %cst [1] : vector<8x32xf32> to vector<8xf32>
    %3 = vector.shape_cast %2 : vector<8xf32> to vector<8x1xf32>
    %cst_2 = arith.constant 3.200000e+01 : f32
    %4 = vector.broadcast %cst_2 : f32 to vector<8x1xf32>
    %5 = arith.divf %3, %4 : vector<8x1xf32>
    %6 = vector.broadcast %5 : vector<8x1xf32> to vector<8x32xf32>
    %7 = arith.subf %1, %6 : vector<8x32xf32>
    %8 = arith.mulf %7, %7 : vector<8x32xf32>
    %cst_3 = arith.constant dense<0.000000e+00> : vector<8xf32>
    %9 = vector.multi_reduction <add>, %8, %cst_3 [1] : vector<8x32xf32> to vector<8xf32>
    %10 = vector.shape_cast %9 : vector<8xf32> to vector<8x1xf32>
    %cst_4 = arith.constant 3.200000e+01 : f32
    %11 = vector.broadcast %cst_4 : f32 to vector<8x1xf32>
    %12 = arith.divf %10, %11 : vector<8x1xf32>
    %cst_5 = arith.constant 9.99999974E-6 : f32
    %13 = vector.broadcast %cst_5 : f32 to vector<8x1xf32>
    %14 = arith.addf %12, %13 : vector<8x1xf32>
    %15 = math.rsqrt %14 : vector<8x1xf32>
    %16 = vector.broadcast %15 : vector<8x1xf32> to vector<8x32xf32>
    %17 = arith.mulf %7, %16 : vector<8x32xf32>
    %c0_6 = arith.constant 0 : index
    %c0_7 = arith.constant 0 : index
    %18 = vector.load %arg3[%c0_6, %c0_7] : memref<1x32xf32, #tpu.memory_space<vmem>>, vector<1x32xf32>
    %19 = vector.broadcast %18 : vector<1x32xf32> to vector<8x32xf32>
    %20 = arith.mulf %17, %19 : vector<8x32xf32>
    %c0_8 = arith.constant 0 : index
    %c0_9 = arith.constant 0 : index
    %21 = vector.load %arg4[%c0_8, %c0_9] : memref<1x32xf32, #tpu.memory_space<vmem>>, vector<1x32xf32>
    %22 = vector.broadcast %21 : vector<1x32xf32> to vector<8x32xf32>
    %23 = arith.addf %20, %22 : vector<8x32xf32>
    %24 = arith.truncf %23 : vector<8x32xf32> to vector<8x32xbf16>
    %c0_10 = arith.constant 0 : index
    %c0_11 = arith.constant 0 : index
    %25 = vector.load %arg5[%c0_10, %c0_11] : memref<32x32xbf16, #tpu.memory_space<vmem>>, vector<32x32xbf16>
    %cst_12 = arith.constant dense<0.000000e+00> : vector<8x32xf32>
    %26 = tpu.matmul %24, %25, %cst_12 {dimension_numbers = #tpu.dot_dimension_numbers<[1], [0], [0], [1], [0, 0, 1, 1], [], []>} : vector<8x32xbf16>, vector<32x32xbf16>, vector<8x32xf32> -> vector<8x32xf32>
    %c0_13 = arith.constant 0 : index
    %c0_14 = arith.constant 0 : index
    %27 = vector.load %arg6[%c0_13, %c0_14] : memref<1x32xf32, #tpu.memory_space<vmem>>, vector<1x32xf32>
    %28 = vector.broadcast %27 : vector<1x32xf32> to vector<8x32xf32>
    %29 = arith.addf %26, %28 : vector<8x32xf32>
    %30 = arith.truncf %23 : vector<8x32xf32> to vector<8x32xbf16>
    %c0_15 = arith.constant 0 : index
    %c0_16 = arith.constant 0 : index
    %31 = vector.load %arg7[%c0_15, %c0_16] : memref<32x32xbf16, #tpu.memory_space<vmem>>, vector<32x32xbf16>
    %cst_17 = arith.constant dense<0.000000e+00> : vector<8x32xf32>
    %32 = tpu.matmul %30, %31, %cst_17 {dimension_numbers = #tpu.dot_dimension_numbers<[1], [0], [0], [1], [0, 0, 1, 1], [], []>} : vector<8x32xbf16>, vector<32x32xbf16>, vector<8x32xf32> -> vector<8x32xf32>
    %c0_18 = arith.constant 0 : index
    %c0_19 = arith.constant 0 : index
    %33 = vector.load %arg8[%c0_18, %c0_19] : memref<1x32xf32, #tpu.memory_space<vmem>>, vector<1x32xf32>
    %34 = vector.broadcast %33 : vector<1x32xf32> to vector<8x32xf32>
    %35 = arith.addf %32, %34 : vector<8x32xf32>
    %36 = arith.truncf %23 : vector<8x32xf32> to vector<8x32xbf16>
    %c0_20 = arith.constant 0 : index
    %c0_21 = arith.constant 0 : index
    %37 = vector.load %arg9[%c0_20, %c0_21] : memref<32x32xbf16, #tpu.memory_space<vmem>>, vector<32x32xbf16>
    %cst_22 = arith.constant dense<0.000000e+00> : vector<8x32xf32>
    %38 = tpu.matmul %36, %37, %cst_22 {dimension_numbers = #tpu.dot_dimension_numbers<[1], [0], [0], [1], [0, 0, 1, 1], [], []>} : vector<8x32xbf16>, vector<32x32xbf16>, vector<8x32xf32> -> vector<8x32xf32>
    %c0_23 = arith.constant 0 : index
    %c0_24 = arith.constant 0 : index
    %39 = vector.load %arg10[%c0_23, %c0_24] : memref<1x32xf32, #tpu.memory_space<vmem>>, vector<1x32xf32>
    %40 = vector.broadcast %39 : vector<1x32xf32> to vector<8x32xf32>
    %41 = arith.addf %38, %40 : vector<8x32xf32>
    %42 = arith.truncf %29 : vector<8x32xf32> to vector<8x32xbf16>
    %43 = vector.shape_cast %42 : vector<8x32xbf16> to vector<8x4x8xbf16>
    %44 = tpu.transpose %43, [1, 0, 2] : vector<8x4x8xbf16> -> vector<4x8x8xbf16>
    %45 = arith.truncf %35 : vector<8x32xf32> to vector<8x32xbf16>
    %46 = vector.shape_cast %45 : vector<8x32xbf16> to vector<8x4x8xbf16>
    %47 = tpu.transpose %46, [1, 0, 2] : vector<8x4x8xbf16> -> vector<4x8x8xbf16>
    %48 = arith.truncf %41 : vector<8x32xf32> to vector<8x32xbf16>
    %49 = vector.shape_cast %48 : vector<8x32xbf16> to vector<8x4x8xbf16>
    %50 = tpu.transpose %49, [1, 0, 2] : vector<8x4x8xbf16> -> vector<4x8x8xbf16>
    "tpu.trace_start"() <{level = 10 : i32, message = "hqd,hkd->hqk"}> : () -> ()
    %cst_25 = arith.constant dense<0.000000e+00> : vector<4x8x8xf32>
    %51 = tpu.matmul %44, %47, %cst_25 {dimension_numbers = #tpu.dot_dimension_numbers<[2], [2], [1], [1], [0, 0, 0, 1, 1, 1], [0], [0]>} : vector<4x8x8xbf16>, vector<4x8x8xbf16>, vector<4x8x8xf32> -> vector<4x8x8xf32>
    "tpu.trace_stop"() : () -> ()
    %cst_26 = arith.constant 0.353553385 : f32
    %52 = vector.broadcast %cst_26 : f32 to vector<4x8x8xf32>
    %53 = arith.mulf %51, %52 : vector<4x8x8xf32>
    %54 = tpu.iota {dimensions = array<i32: 2>} : vector<4x8x8xi32>
    %c5_i32 = arith.constant 5 : i32
    %55 = vector.broadcast %c5_i32 : i32 to vector<4x8x8xi32>
    %56 = arith.cmpi slt, %54, %55 : vector<4x8x8xi32>
    %cst_27 = arith.constant -1.000000e+30 : f32
    %57 = vector.broadcast %cst_27 : f32 to vector<4x8x8xf32>
    %58 = arith.select %56, %53, %57 : vector<4x8x8xi1>, vector<4x8x8xf32>
    %cst_28 = arith.constant dense<0xFF800000> : vector<4x8xf32>
    %59 = vector.multi_reduction <maximumf>, %58, %cst_28 [2] : vector<4x8x8xf32> to vector<4x8xf32>
    %60 = vector.shape_cast %59 : vector<4x8xf32> to vector<4x8x1xf32>
    %61 = vector.broadcast %60 : vector<4x8x1xf32> to vector<4x8x8xf32>
    %62 = arith.subf %58, %61 : vector<4x8x8xf32>
    %63 = math.exp %62 : vector<4x8x8xf32>
    %cst_29 = arith.constant dense<0.000000e+00> : vector<4x8xf32>
    %64 = vector.multi_reduction <add>, %63, %cst_29 [2] : vector<4x8x8xf32> to vector<4x8xf32>
    %65 = vector.shape_cast %64 : vector<4x8xf32> to vector<4x8x1xf32>
    %66 = tpu.reciprocal %65 {approx = true} : vector<4x8x1xf32> -> vector<4x8x1xf32>
    %67 = vector.broadcast %66 : vector<4x8x1xf32> to vector<4x8x8xf32>
    %68 = arith.mulf %63, %67 : vector<4x8x8xf32>
    %69 = arith.truncf %68 : vector<4x8x8xf32> to vector<4x8x8xbf16>
    "tpu.trace_start"() <{level = 10 : i32, message = "hqk,hkd->hqd"}> : () -> ()
    %cst_30 = arith.constant dense<0.000000e+00> : vector<4x8x8xf32>
    %70 = tpu.matmul %69, %50, %cst_30 {dimension_numbers = #tpu.dot_dimension_numbers<[2], [1], [1], [2], [0, 0, 0, 1, 1, 2], [0], [0]>} : vector<4x8x8xbf16>, vector<4x8x8xbf16>, vector<4x8x8xf32> -> vector<4x8x8xf32>
    "tpu.trace_stop"() : () -> ()
    %71 = tpu.transpose %70, [1, 0, 2] : vector<4x8x8xf32> -> vector<8x4x8xf32>
    %72 = vector.shape_cast %71 : vector<8x4x8xf32> to vector<8x32xf32>
    %73 = arith.truncf %72 : vector<8x32xf32> to vector<8x32xbf16>
    %c0_31 = arith.constant 0 : index
    %c0_32 = arith.constant 0 : index
    %74 = vector.load %arg11[%c0_31, %c0_32] : memref<32x32xbf16, #tpu.memory_space<vmem>>, vector<32x32xbf16>
    %cst_33 = arith.constant dense<0.000000e+00> : vector<8x32xf32>
    %75 = tpu.matmul %73, %74, %cst_33 {dimension_numbers = #tpu.dot_dimension_numbers<[1], [0], [0], [1], [0, 0, 1, 1], [], []>} : vector<8x32xbf16>, vector<32x32xbf16>, vector<8x32xf32> -> vector<8x32xf32>
    %c0_34 = arith.constant 0 : index
    %c0_35 = arith.constant 0 : index
    %76 = vector.load %arg12[%c0_34, %c0_35] : memref<1x32xf32, #tpu.memory_space<vmem>>, vector<1x32xf32>
    %77 = vector.broadcast %76 : vector<1x32xf32> to vector<8x32xf32>
    %78 = arith.addf %75, %77 : vector<8x32xf32>
    %79 = arith.addf %1, %78 : vector<8x32xf32>
    %cst_36 = arith.constant dense<0.000000e+00> : vector<8xf32>
    %80 = vector.multi_reduction <add>, %79, %cst_36 [1] : vector<8x32xf32> to vector<8xf32>
    %81 = vector.shape_cast %80 : vector<8xf32> to vector<8x1xf32>
    %cst_37 = arith.constant 3.200000e+01 : f32
    %82 = vector.broadcast %cst_37 : f32 to vector<8x1xf32>
    %83 = arith.divf %81, %82 : vector<8x1xf32>
    %84 = vector.broadcast %83 : vector<8x1xf32> to vector<8x32xf32>
    %85 = arith.subf %79, %84 : vector<8x32xf32>
    %86 = arith.mulf %85, %85 : vector<8x32xf32>
    %cst_38 = arith.constant dense<0.000000e+00> : vector<8xf32>
    %87 = vector.multi_reduction <add>, %86, %cst_38 [1] : vector<8x32xf32> to vector<8xf32>
    %88 = vector.shape_cast %87 : vector<8xf32> to vector<8x1xf32>
    %cst_39 = arith.constant 3.200000e+01 : f32
    %89 = vector.broadcast %cst_39 : f32 to vector<8x1xf32>
    %90 = arith.divf %88, %89 : vector<8x1xf32>
    %cst_40 = arith.constant 9.99999974E-6 : f32
    %91 = vector.broadcast %cst_40 : f32 to vector<8x1xf32>
    %92 = arith.addf %90, %91 : vector<8x1xf32>
    %93 = math.rsqrt %92 : vector<8x1xf32>
    %94 = vector.broadcast %93 : vector<8x1xf32> to vector<8x32xf32>
    %95 = arith.mulf %85, %94 : vector<8x32xf32>
    %c0_41 = arith.constant 0 : index
    %c0_42 = arith.constant 0 : index
    %96 = vector.load %arg13[%c0_41, %c0_42] : memref<1x32xf32, #tpu.memory_space<vmem>>, vector<1x32xf32>
    %97 = vector.broadcast %96 : vector<1x32xf32> to vector<8x32xf32>
    %98 = arith.mulf %95, %97 : vector<8x32xf32>
    %c0_43 = arith.constant 0 : index
    %c0_44 = arith.constant 0 : index
    %99 = vector.load %arg14[%c0_43, %c0_44] : memref<1x32xf32, #tpu.memory_space<vmem>>, vector<1x32xf32>
    %100 = vector.broadcast %99 : vector<1x32xf32> to vector<8x32xf32>
    %101 = arith.addf %98, %100 : vector<8x32xf32>
    %102 = arith.truncf %101 : vector<8x32xf32> to vector<8x32xbf16>
    %c0_45 = arith.constant 0 : index
    %c0_46 = arith.constant 0 : index
    %103 = vector.load %arg15[%c0_45, %c0_46] : memref<32x128xbf16, #tpu.memory_space<vmem>>, vector<32x128xbf16>
    %cst_47 = arith.constant dense<0.000000e+00> : vector<8x128xf32>
    %104 = tpu.matmul %102, %103, %cst_47 {dimension_numbers = #tpu.dot_dimension_numbers<[1], [0], [0], [1], [0, 0, 1, 1], [], []>} : vector<8x32xbf16>, vector<32x128xbf16>, vector<8x128xf32> -> vector<8x128xf32>
    %c0_48 = arith.constant 0 : index
    %c0_49 = arith.constant 0 : index
    %105 = vector.load %arg16[%c0_48, %c0_49] : memref<1x128xf32, #tpu.memory_space<vmem>>, vector<1x128xf32>
    %106 = vector.broadcast %105 : vector<1x128xf32> to vector<8x128xf32>
    %107 = arith.addf %104, %106 : vector<8x128xf32>
    %cst_50 = arith.constant 5.000000e-01 : f32
    %108 = vector.broadcast %cst_50 : f32 to vector<8x128xf32>
    %109 = arith.mulf %108, %107 : vector<8x128xf32>
    %cst_51 = arith.constant 0.707106769 : f32
    %110 = vector.broadcast %cst_51 : f32 to vector<8x128xf32>
    %111 = arith.mulf %107, %110 : vector<8x128xf32>
    %112 = math.erf %111 : vector<8x128xf32>
    %cst_52 = arith.constant 1.000000e+00 : f32
    %113 = vector.broadcast %cst_52 : f32 to vector<8x128xf32>
    %114 = arith.addf %113, %112 : vector<8x128xf32>
    %115 = arith.mulf %109, %114 : vector<8x128xf32>
    %116 = arith.truncf %115 : vector<8x128xf32> to vector<8x128xbf16>
    %c0_53 = arith.constant 0 : index
    %c0_54 = arith.constant 0 : index
    %117 = vector.load %arg17[%c0_53, %c0_54] : memref<128x32xbf16, #tpu.memory_space<vmem>>, vector<128x32xbf16>
    %cst_55 = arith.constant dense<0.000000e+00> : vector<8x32xf32>
    %118 = tpu.matmul %116, %117, %cst_55 {dimension_numbers = #tpu.dot_dimension_numbers<[1], [0], [0], [1], [0, 0, 1, 1], [], []>} : vector<8x128xbf16>, vector<128x32xbf16>, vector<8x32xf32> -> vector<8x32xf32>
    %c0_56 = arith.constant 0 : index
    %c0_57 = arith.constant 0 : index
    %119 = vector.load %arg18[%c0_56, %c0_57] : memref<1x32xf32, #tpu.memory_space<vmem>>, vector<1x32xf32>
    %120 = vector.broadcast %119 : vector<1x32xf32> to vector<8x32xf32>
    %121 = arith.addf %118, %120 : vector<8x32xf32>
    %122 = arith.addf %79, %121 : vector<8x32xf32>
    %c0_58 = arith.constant 0 : index
    %c0_59 = arith.constant 0 : index
    %c0_60 = arith.constant 0 : index
    %123 = vector.load %arg19[%c0_58, %c0_59, %c0_60] : memref<1x8x32xf32, #tpu.memory_space<vmem>>, vector<1x8x32xf32>
    %124 = vector.shape_cast %123 : vector<1x8x32xf32> to vector<8x32xf32>
    %125 = vector.shape_cast %122 : vector<8x32xf32> to vector<1x8x32xf32>
    tpu.vector_store %arg19[%c0_58, %c0_59, %c0_60], %125 {strides = array<i32>} : memref<1x8x32xf32, #tpu.memory_space<vmem>>, vector<1x8x32xf32>,
    return
  }
  func.func @transform_0(%arg0: i32, %arg1: i32) -> (i32, i32, i32) {
    %c0_i32 = arith.constant 0 : i32
    %c0_i32_0 = arith.constant 0 : i32
    %c0_i32_1 = arith.constant 0 : i32
    return %arg0, %c0_i32, %c0_i32_0 : i32, i32, i32
  }
  func.func @transform_1(%arg0: i32, %arg1: i32) -> (i32, i32) {
    %c0_i32 = arith.constant 0 : i32
    %c0_i32_0 = arith.constant 0 : i32
    %c0_i32_1 = arith.constant 0 : i32
    return %c0_i32, %c0_i32_0 : i32, i32
  }
  func.func @transform_2(%arg0: i32, %arg1: i32) -> (i32, i32) {
    %c0_i32 = arith.constant 0 : i32
    %c0_i32_0 = arith.constant 0 : i32
    %c0_i32_1 = arith.constant 0 : i32
    return %c0_i32, %c0_i32_0 : i32, i32
  }
  func.func @transform_3(%arg0: i32, %arg1: i32) -> (i32, i32) {
    %c0_i32 = arith.constant 0 : i32
    %c0_i32_0 = arith.constant 0 : i32
    %c0_i32_1 = arith.constant 0 : i32
    return %c0_i32, %c0_i32_0 : i32, i32
  }
  func.func @transform_4(%arg0: i32, %arg1: i32) -> (i32, i32) {
    %c0_i32 = arith.constant 0 : i32
    %c0_i32_0 = arith.constant 0 : i32
    %c0_i32_1 = arith.constant 0 : i32
    return %c0_i32, %c0_i32_0 : i32, i32
  }
  func.func @transform_5(%arg0: i32, %arg1: i32) -> (i32, i32) {
    %c0_i32 = arith.constant 0 : i32
    %c0_i32_0 = arith.constant 0 : i32
    %c0_i32_1 = arith.constant 0 : i32
    return %c0_i32, %c0_i32_0 : i32, i32
  }
  func.func @transform_6(%arg0: i32, %arg1: i32) -> (i32, i32) {
    %c0_i32 = arith.constant 0 : i32
    %c0_i32_0 = arith.constant 0 : i32
    %c0_i32_1 = arith.constant 0 : i32
    return %c0_i32, %c0_i32_0 : i32, i32
  }
  func.func @transform_7(%arg0: i32, %arg1: i32) -> (i32, i32) {
    %c0_i32 = arith.constant 0 : i32
    %c0_i32_0 = arith.constant 0 : i32
    %c0_i32_1 = arith.constant 0 : i32
    return %c0_i32, %c0_i32_0 : i32, i32
  }
  func.func @transform_8(%arg0: i32, %arg1: i32) -> (i32, i32) {
    %c0_i32 = arith.constant 0 : i32
    %c0_i32_0 = arith.constant 0 : i32
    %c0_i32_1 = arith.constant 0 : i32
    return %c0_i32, %c0_i32_0 : i32, i32
  }
  func.func @transform_9(%arg0: i32, %arg1: i32) -> (i32, i32) {
    %c0_i32 = arith.constant 0 : i32
    %c0_i32_0 = arith.constant 0 : i32
    %c0_i32_1 = arith.constant 0 : i32
    return %c0_i32, %c0_i32_0 : i32, i32
  }
  func.func @transform_10(%arg0: i32, %arg1: i32) -> (i32, i32) {
    %c0_i32 = arith.constant 0 : i32
    %c0_i32_0 = arith.constant 0 : i32
    %c0_i32_1 = arith.constant 0 : i32
    return %c0_i32, %c0_i32_0 : i32, i32
  }
  func.func @transform_11(%arg0: i32, %arg1: i32) -> (i32, i32) {
    %c0_i32 = arith.constant 0 : i32
    %c0_i32_0 = arith.constant 0 : i32
    %c0_i32_1 = arith.constant 0 : i32
    return %c0_i32, %c0_i32_0 : i32, i32
  }
  func.func @transform_12(%arg0: i32, %arg1: i32) -> (i32, i32) {
    %c0_i32 = arith.constant 0 : i32
    %c0_i32_0 = arith.constant 0 : i32
    %c0_i32_1 = arith.constant 0 : i32
    return %c0_i32, %c0_i32_0 : i32, i32
  }
  func.func @transform_13(%arg0: i32, %arg1: i32) -> (i32, i32) {
    %c0_i32 = arith.constant 0 : i32
    %c0_i32_0 = arith.constant 0 : i32
    %c0_i32_1 = arith.constant 0 : i32
    return %c0_i32, %c0_i32_0 : i32, i32
  }
  func.func @transform_14(%arg0: i32, %arg1: i32) -> (i32, i32) {
    %c0_i32 = arith.constant 0 : i32
    %c0_i32_0 = arith.constant 0 : i32
    %c0_i32_1 = arith.constant 0 : i32
    return %c0_i32, %c0_i32_0 : i32, i32
  }
  func.func @transform_15(%arg0: i32, %arg1: i32) -> (i32, i32) {
    %c0_i32 = arith.constant 0 : i32
    %c0_i32_0 = arith.constant 0 : i32
    %c0_i32_1 = arith.constant 0 : i32
    return %c0_i32, %c0_i32_0 : i32, i32
  }
  func.func @transform_16(%arg0: i32, %arg1: i32) -> (i32, i32) {
    %c0_i32 = arith.constant 0 : i32
    %c0_i32_0 = arith.constant 0 : i32
    %c0_i32_1 = arith.constant 0 : i32
    return %c0_i32, %c0_i32_0 : i32, i32
  }
  func.func @transform_17(%arg0: i32, %arg1: i32) -> (i32, i32, i32) {
    %c0_i32 = arith.constant 0 : i32
    %c0_i32_0 = arith.constant 0 : i32
    return %arg0, %arg1, %c0_i32 : i32, i32, i32
  }
}

module attributes {stable_mosaic.version = 11 : i64} {
  func.func @_block_kernel(%arg0: i32, %arg1: i32, %arg2: memref<1x8x32xf32, #tpu.memory_space<vmem>>, %arg3: memref<1x32xf32, #tpu.memory_space<vmem>>, %arg4: memref<1x32xf32, #tpu.memory_space<vmem>>, %arg5: memref<32x32xbf16, #tpu.memory_space<vmem>>, %arg6: memref<1x32xf32, #tpu.memory_space<vmem>>, %arg7: memref<32x32xbf16, #tpu.memory_space<vmem>>, %arg8: memref<1x32xf32, #tpu.memory_space<vmem>>, %arg9: memref<32x32xbf16, #tpu.memory_space<vmem>>, %arg10: memref<1x32xf32, #tpu.memory_space<vmem>>, %arg11: memref<32x32xbf16, #tpu.memory_space<vmem>>, %arg12: memref<1x32xf32, #tpu.memory_space<vmem>>, %arg13: memref<1x32xf32, #tpu.memory_space<vmem>>, %arg14: memref<1x32xf32, #tpu.memory_space<vmem>>, %arg15: memref<32x128xbf16, #tpu.memory_space<vmem>>, %arg16: memref<1x128xf32, #tpu.memory_space<vmem>>, %arg17: memref<128x32xbf16, #tpu.memory_space<vmem>>, %arg18: memref<1x32xf32, #tpu.memory_space<vmem>>, %arg19: memref<1x32xf32, #tpu.memory_space<vmem>>, %arg20: memref<1x32xf32, #tpu.memory_space<vmem>>, %arg21: memref<1x8x32xf32, #tpu.memory_space<vmem>>, %arg22: memref<1x2x8x8xf32, #tpu.memory_space<vmem>>, %arg23: memref<1x8x32xf32, #tpu.memory_space<vmem>>) attributes {dimension_semantics = [#tpu.dimension_semantics<parallel>, #tpu.dimension_semantics<parallel>], iteration_bounds = array<i64: 2, 1>, scalar_prefetch = 0 : i64, scratch_operands = 0 : i64, tpu.core_type = #tpu.core_type<tc>, window_params = [{transform_indices = @transform_0, window_bounds = array<i64: 1, 8, 32>}, {pipeline_mode = #tpu.pipeline_mode<synchronous>, transform_indices = @transform_1, window_bounds = array<i64: 1, 32>}, {pipeline_mode = #tpu.pipeline_mode<synchronous>, transform_indices = @transform_2, window_bounds = array<i64: 1, 32>}, {pipeline_mode = #tpu.pipeline_mode<synchronous>, transform_indices = @transform_3, window_bounds = array<i64: 32, 32>}, {pipeline_mode = #tpu.pipeline_mode<synchronous>, transform_indices = @transform_4, window_bounds = array<i64: 1, 32>}, {pipeline_mode = #tpu.pipeline_mode<synchronous>, transform_indices = @transform_5, window_bounds = array<i64: 32, 32>}, {pipeline_mode = #tpu.pipeline_mode<synchronous>, transform_indices = @transform_6, window_bounds = array<i64: 1, 32>}, {pipeline_mode = #tpu.pipeline_mode<synchronous>, transform_indices = @transform_7, window_bounds = array<i64: 32, 32>}, {pipeline_mode = #tpu.pipeline_mode<synchronous>, transform_indices = @transform_8, window_bounds = array<i64: 1, 32>}, {pipeline_mode = #tpu.pipeline_mode<synchronous>, transform_indices = @transform_9, window_bounds = array<i64: 32, 32>}, {pipeline_mode = #tpu.pipeline_mode<synchronous>, transform_indices = @transform_10, window_bounds = array<i64: 1, 32>}, {pipeline_mode = #tpu.pipeline_mode<synchronous>, transform_indices = @transform_11, window_bounds = array<i64: 1, 32>}, {pipeline_mode = #tpu.pipeline_mode<synchronous>, transform_indices = @transform_12, window_bounds = array<i64: 1, 32>}, {pipeline_mode = #tpu.pipeline_mode<synchronous>, transform_indices = @transform_13, window_bounds = array<i64: 32, 128>}, {pipeline_mode = #tpu.pipeline_mode<synchronous>, transform_indices = @transform_14, window_bounds = array<i64: 1, 128>}, {pipeline_mode = #tpu.pipeline_mode<synchronous>, transform_indices = @transform_15, window_bounds = array<i64: 128, 32>}, {pipeline_mode = #tpu.pipeline_mode<synchronous>, transform_indices = @transform_16, window_bounds = array<i64: 1, 32>}, {pipeline_mode = #tpu.pipeline_mode<synchronous>, transform_indices = @transform_17, window_bounds = array<i64: 1, 32>}, {pipeline_mode = #tpu.pipeline_mode<synchronous>, transform_indices = @transform_18, window_bounds = array<i64: 1, 32>}, {transform_indices = @transform_19, window_bounds = array<i64: 1, 8, 32>}, {transform_indices = @transform_20, window_bounds = array<i64: 1, 2, 8, 8>}, {transform_indices = @transform_21, window_bounds = array<i64: 1, 8, 32>}]} {
    %c0 = arith.constant 0 : index
    %c0_0 = arith.constant 0 : index
    %c0_1 = arith.constant 0 : index
    %0 = vector.load %arg2[%c0, %c0_0, %c0_1] : memref<1x8x32xf32, #tpu.memory_space<vmem>>, vector<1x8x32xf32>
    %1 = vector.shape_cast %0 : vector<1x8x32xf32> to vector<8x32xf32>
    %cst = arith.constant dense<0.000000e+00> : vector<8xf32>
    %2 = vector.multi_reduction <add>, %1, %cst [1] : vector<8x32xf32> to vector<8xf32>
    %3 = vector.shape_cast %2 : vector<8xf32> to vector<8x1xf32>
    %cst_2 = arith.constant 3.200000e+01 : f32
    %4 = vector.broadcast %cst_2 : f32 to vector<8x1xf32>
    %5 = arith.divf %3, %4 : vector<8x1xf32>
    %6 = vector.broadcast %5 : vector<8x1xf32> to vector<8x32xf32>
    %7 = arith.subf %1, %6 : vector<8x32xf32>
    %8 = arith.mulf %7, %7 : vector<8x32xf32>
    %cst_3 = arith.constant dense<0.000000e+00> : vector<8xf32>
    %9 = vector.multi_reduction <add>, %8, %cst_3 [1] : vector<8x32xf32> to vector<8xf32>
    %10 = vector.shape_cast %9 : vector<8xf32> to vector<8x1xf32>
    %cst_4 = arith.constant 3.200000e+01 : f32
    %11 = vector.broadcast %cst_4 : f32 to vector<8x1xf32>
    %12 = arith.divf %10, %11 : vector<8x1xf32>
    %cst_5 = arith.constant 9.99999974E-6 : f32
    %13 = vector.broadcast %cst_5 : f32 to vector<8x1xf32>
    %14 = arith.addf %12, %13 : vector<8x1xf32>
    %15 = math.rsqrt %14 : vector<8x1xf32>
    %16 = vector.broadcast %15 : vector<8x1xf32> to vector<8x32xf32>
    %17 = arith.mulf %7, %16 : vector<8x32xf32>
    %c0_6 = arith.constant 0 : index
    %c0_7 = arith.constant 0 : index
    %18 = vector.load %arg3[%c0_6, %c0_7] : memref<1x32xf32, #tpu.memory_space<vmem>>, vector<1x32xf32>
    %19 = vector.broadcast %18 : vector<1x32xf32> to vector<8x32xf32>
    %20 = arith.mulf %17, %19 : vector<8x32xf32>
    %c0_8 = arith.constant 0 : index
    %c0_9 = arith.constant 0 : index
    %21 = vector.load %arg4[%c0_8, %c0_9] : memref<1x32xf32, #tpu.memory_space<vmem>>, vector<1x32xf32>
    %22 = vector.broadcast %21 : vector<1x32xf32> to vector<8x32xf32>
    %23 = arith.addf %20, %22 : vector<8x32xf32>
    %24 = arith.truncf %23 : vector<8x32xf32> to vector<8x32xbf16>
    %c0_10 = arith.constant 0 : index
    %c0_11 = arith.constant 0 : index
    %25 = vector.load %arg5[%c0_10, %c0_11] : memref<32x32xbf16, #tpu.memory_space<vmem>>, vector<32x32xbf16>
    %cst_12 = arith.constant dense<0.000000e+00> : vector<8x32xf32>
    %26 = tpu.matmul %24, %25, %cst_12 {dimension_numbers = #tpu.dot_dimension_numbers<[1], [0], [0], [1], [0, 0, 1, 1], [], []>} : vector<8x32xbf16>, vector<32x32xbf16>, vector<8x32xf32> -> vector<8x32xf32>
    %c0_13 = arith.constant 0 : index
    %c0_14 = arith.constant 0 : index
    %27 = vector.load %arg6[%c0_13, %c0_14] : memref<1x32xf32, #tpu.memory_space<vmem>>, vector<1x32xf32>
    %28 = vector.broadcast %27 : vector<1x32xf32> to vector<8x32xf32>
    %29 = arith.addf %26, %28 : vector<8x32xf32>
    %30 = arith.truncf %23 : vector<8x32xf32> to vector<8x32xbf16>
    %c0_15 = arith.constant 0 : index
    %c0_16 = arith.constant 0 : index
    %31 = vector.load %arg7[%c0_15, %c0_16] : memref<32x32xbf16, #tpu.memory_space<vmem>>, vector<32x32xbf16>
    %cst_17 = arith.constant dense<0.000000e+00> : vector<8x32xf32>
    %32 = tpu.matmul %30, %31, %cst_17 {dimension_numbers = #tpu.dot_dimension_numbers<[1], [0], [0], [1], [0, 0, 1, 1], [], []>} : vector<8x32xbf16>, vector<32x32xbf16>, vector<8x32xf32> -> vector<8x32xf32>
    %c0_18 = arith.constant 0 : index
    %c0_19 = arith.constant 0 : index
    %33 = vector.load %arg8[%c0_18, %c0_19] : memref<1x32xf32, #tpu.memory_space<vmem>>, vector<1x32xf32>
    %34 = vector.broadcast %33 : vector<1x32xf32> to vector<8x32xf32>
    %35 = arith.addf %32, %34 : vector<8x32xf32>
    %36 = arith.truncf %23 : vector<8x32xf32> to vector<8x32xbf16>
    %c0_20 = arith.constant 0 : index
    %c0_21 = arith.constant 0 : index
    %37 = vector.load %arg9[%c0_20, %c0_21] : memref<32x32xbf16, #tpu.memory_space<vmem>>, vector<32x32xbf16>
    %cst_22 = arith.constant dense<0.000000e+00> : vector<8x32xf32>
    %38 = tpu.matmul %36, %37, %cst_22 {dimension_numbers = #tpu.dot_dimension_numbers<[1], [0], [0], [1], [0, 0, 1, 1], [], []>} : vector<8x32xbf16>, vector<32x32xbf16>, vector<8x32xf32> -> vector<8x32xf32>
    %c0_23 = arith.constant 0 : index
    %c0_24 = arith.constant 0 : index
    %39 = vector.load %arg10[%c0_23, %c0_24] : memref<1x32xf32, #tpu.memory_space<vmem>>, vector<1x32xf32>
    %40 = vector.broadcast %39 : vector<1x32xf32> to vector<8x32xf32>
    %41 = arith.addf %38, %40 : vector<8x32xf32>
    %42 = arith.truncf %29 : vector<8x32xf32> to vector<8x32xbf16>
    %43 = vector.shape_cast %42 : vector<8x32xbf16> to vector<8x2x16xbf16>
    %44 = tpu.transpose %43, [1, 0, 2] : vector<8x2x16xbf16> -> vector<2x8x16xbf16>
    %45 = arith.truncf %35 : vector<8x32xf32> to vector<8x32xbf16>
    %46 = vector.shape_cast %45 : vector<8x32xbf16> to vector<8x2x16xbf16>
    %47 = tpu.transpose %46, [1, 0, 2] : vector<8x2x16xbf16> -> vector<2x8x16xbf16>
    %48 = arith.truncf %41 : vector<8x32xf32> to vector<8x32xbf16>
    %49 = vector.shape_cast %48 : vector<8x32xbf16> to vector<8x2x16xbf16>
    %50 = tpu.transpose %49, [1, 0, 2] : vector<8x2x16xbf16> -> vector<2x8x16xbf16>
    "tpu.trace_start"() <{level = 10 : i32, message = "hqd,hkd->hqk"}> : () -> ()
    %cst_25 = arith.constant dense<0.000000e+00> : vector<2x8x8xf32>
    %51 = tpu.matmul %44, %47, %cst_25 {dimension_numbers = #tpu.dot_dimension_numbers<[2], [2], [1], [1], [0, 0, 0, 1, 1, 1], [0], [0]>} : vector<2x8x16xbf16>, vector<2x8x16xbf16>, vector<2x8x8xf32> -> vector<2x8x8xf32>
    "tpu.trace_stop"() : () -> ()
    %cst_26 = arith.constant 2.500000e-01 : f32
    %52 = vector.broadcast %cst_26 : f32 to vector<2x8x8xf32>
    %53 = arith.mulf %51, %52 : vector<2x8x8xf32>
    %54 = tpu.iota {dimensions = array<i32: 2>} : vector<2x8x8xi32>
    %c5_i32 = arith.constant 5 : i32
    %55 = vector.broadcast %c5_i32 : i32 to vector<2x8x8xi32>
    %56 = arith.cmpi slt, %54, %55 : vector<2x8x8xi32>
    %cst_27 = arith.constant -1.000000e+30 : f32
    %57 = vector.broadcast %cst_27 : f32 to vector<2x8x8xf32>
    %58 = arith.select %56, %53, %57 : vector<2x8x8xi1>, vector<2x8x8xf32>
    %cst_28 = arith.constant dense<0xFF800000> : vector<2x8xf32>
    %59 = vector.multi_reduction <maximumf>, %58, %cst_28 [2] : vector<2x8x8xf32> to vector<2x8xf32>
    %60 = vector.shape_cast %59 : vector<2x8xf32> to vector<2x8x1xf32>
    %61 = vector.broadcast %60 : vector<2x8x1xf32> to vector<2x8x8xf32>
    %62 = arith.subf %58, %61 : vector<2x8x8xf32>
    %63 = math.exp %62 : vector<2x8x8xf32>
    %cst_29 = arith.constant dense<0.000000e+00> : vector<2x8xf32>
    %64 = vector.multi_reduction <add>, %63, %cst_29 [2] : vector<2x8x8xf32> to vector<2x8xf32>
    %65 = vector.shape_cast %64 : vector<2x8xf32> to vector<2x8x1xf32>
    %66 = vector.broadcast %65 : vector<2x8x1xf32> to vector<2x8x8xf32>
    %67 = arith.divf %63, %66 : vector<2x8x8xf32>
    %c0_30 = arith.constant 0 : index
    %c0_31 = arith.constant 0 : index
    %c0_32 = arith.constant 0 : index
    %c0_33 = arith.constant 0 : index
    %68 = vector.load %arg22[%c0_30, %c0_31, %c0_32, %c0_33] : memref<1x2x8x8xf32, #tpu.memory_space<vmem>>, vector<1x2x8x8xf32>
    %69 = vector.shape_cast %68 : vector<1x2x8x8xf32> to vector<2x8x8xf32>
    %70 = vector.shape_cast %67 : vector<2x8x8xf32> to vector<1x2x8x8xf32>
    tpu.vector_store %arg22[%c0_30, %c0_31, %c0_32, %c0_33], %70 {strides = array<i32>} : memref<1x2x8x8xf32, #tpu.memory_space<vmem>>, vector<1x2x8x8xf32>,
    %71 = arith.truncf %67 : vector<2x8x8xf32> to vector<2x8x8xbf16>
    "tpu.trace_start"() <{level = 10 : i32, message = "hqk,hkd->hqd"}> : () -> ()
    %cst_34 = arith.constant dense<0.000000e+00> : vector<2x8x16xf32>
    %72 = tpu.matmul %71, %50, %cst_34 {dimension_numbers = #tpu.dot_dimension_numbers<[2], [1], [1], [2], [0, 0, 0, 1, 1, 2], [0], [0]>} : vector<2x8x8xbf16>, vector<2x8x16xbf16>, vector<2x8x16xf32> -> vector<2x8x16xf32>
    "tpu.trace_stop"() : () -> ()
    %73 = tpu.transpose %72, [1, 0, 2] : vector<2x8x16xf32> -> vector<8x2x16xf32>
    %74 = vector.shape_cast %73 : vector<8x2x16xf32> to vector<8x32xf32>
    %75 = arith.truncf %74 : vector<8x32xf32> to vector<8x32xbf16>
    %c0_35 = arith.constant 0 : index
    %c0_36 = arith.constant 0 : index
    %76 = vector.load %arg11[%c0_35, %c0_36] : memref<32x32xbf16, #tpu.memory_space<vmem>>, vector<32x32xbf16>
    %cst_37 = arith.constant dense<0.000000e+00> : vector<8x32xf32>
    %77 = tpu.matmul %75, %76, %cst_37 {dimension_numbers = #tpu.dot_dimension_numbers<[1], [0], [0], [1], [0, 0, 1, 1], [], []>} : vector<8x32xbf16>, vector<32x32xbf16>, vector<8x32xf32> -> vector<8x32xf32>
    %c0_38 = arith.constant 0 : index
    %c0_39 = arith.constant 0 : index
    %78 = vector.load %arg12[%c0_38, %c0_39] : memref<1x32xf32, #tpu.memory_space<vmem>>, vector<1x32xf32>
    %79 = vector.broadcast %78 : vector<1x32xf32> to vector<8x32xf32>
    %80 = arith.addf %77, %79 : vector<8x32xf32>
    %81 = arith.addf %1, %80 : vector<8x32xf32>
    %cst_40 = arith.constant dense<0.000000e+00> : vector<8xf32>
    %82 = vector.multi_reduction <add>, %81, %cst_40 [1] : vector<8x32xf32> to vector<8xf32>
    %83 = vector.shape_cast %82 : vector<8xf32> to vector<8x1xf32>
    %cst_41 = arith.constant 3.200000e+01 : f32
    %84 = vector.broadcast %cst_41 : f32 to vector<8x1xf32>
    %85 = arith.divf %83, %84 : vector<8x1xf32>
    %86 = vector.broadcast %85 : vector<8x1xf32> to vector<8x32xf32>
    %87 = arith.subf %81, %86 : vector<8x32xf32>
    %88 = arith.mulf %87, %87 : vector<8x32xf32>
    %cst_42 = arith.constant dense<0.000000e+00> : vector<8xf32>
    %89 = vector.multi_reduction <add>, %88, %cst_42 [1] : vector<8x32xf32> to vector<8xf32>
    %90 = vector.shape_cast %89 : vector<8xf32> to vector<8x1xf32>
    %cst_43 = arith.constant 3.200000e+01 : f32
    %91 = vector.broadcast %cst_43 : f32 to vector<8x1xf32>
    %92 = arith.divf %90, %91 : vector<8x1xf32>
    %cst_44 = arith.constant 9.99999974E-6 : f32
    %93 = vector.broadcast %cst_44 : f32 to vector<8x1xf32>
    %94 = arith.addf %92, %93 : vector<8x1xf32>
    %95 = math.rsqrt %94 : vector<8x1xf32>
    %96 = vector.broadcast %95 : vector<8x1xf32> to vector<8x32xf32>
    %97 = arith.mulf %87, %96 : vector<8x32xf32>
    %c0_45 = arith.constant 0 : index
    %c0_46 = arith.constant 0 : index
    %98 = vector.load %arg13[%c0_45, %c0_46] : memref<1x32xf32, #tpu.memory_space<vmem>>, vector<1x32xf32>
    %99 = vector.broadcast %98 : vector<1x32xf32> to vector<8x32xf32>
    %100 = arith.mulf %97, %99 : vector<8x32xf32>
    %c0_47 = arith.constant 0 : index
    %c0_48 = arith.constant 0 : index
    %101 = vector.load %arg14[%c0_47, %c0_48] : memref<1x32xf32, #tpu.memory_space<vmem>>, vector<1x32xf32>
    %102 = vector.broadcast %101 : vector<1x32xf32> to vector<8x32xf32>
    %103 = arith.addf %100, %102 : vector<8x32xf32>
    %104 = arith.truncf %103 : vector<8x32xf32> to vector<8x32xbf16>
    %c0_49 = arith.constant 0 : index
    %c0_50 = arith.constant 0 : index
    %105 = vector.load %arg15[%c0_49, %c0_50] : memref<32x128xbf16, #tpu.memory_space<vmem>>, vector<32x128xbf16>
    %cst_51 = arith.constant dense<0.000000e+00> : vector<8x128xf32>
    %106 = tpu.matmul %104, %105, %cst_51 {dimension_numbers = #tpu.dot_dimension_numbers<[1], [0], [0], [1], [0, 0, 1, 1], [], []>} : vector<8x32xbf16>, vector<32x128xbf16>, vector<8x128xf32> -> vector<8x128xf32>
    %c0_52 = arith.constant 0 : index
    %c0_53 = arith.constant 0 : index
    %107 = vector.load %arg16[%c0_52, %c0_53] : memref<1x128xf32, #tpu.memory_space<vmem>>, vector<1x128xf32>
    %108 = vector.broadcast %107 : vector<1x128xf32> to vector<8x128xf32>
    %109 = arith.addf %106, %108 : vector<8x128xf32>
    %cst_54 = arith.constant 5.000000e-01 : f32
    %110 = vector.broadcast %cst_54 : f32 to vector<8x128xf32>
    %111 = arith.mulf %110, %109 : vector<8x128xf32>
    %cst_55 = arith.constant 0.707106769 : f32
    %112 = vector.broadcast %cst_55 : f32 to vector<8x128xf32>
    %113 = arith.mulf %109, %112 : vector<8x128xf32>
    %114 = math.erf %113 : vector<8x128xf32>
    %cst_56 = arith.constant 1.000000e+00 : f32
    %115 = vector.broadcast %cst_56 : f32 to vector<8x128xf32>
    %116 = arith.addf %115, %114 : vector<8x128xf32>
    %117 = arith.mulf %111, %116 : vector<8x128xf32>
    %118 = arith.truncf %117 : vector<8x128xf32> to vector<8x128xbf16>
    %c0_57 = arith.constant 0 : index
    %c0_58 = arith.constant 0 : index
    %119 = vector.load %arg17[%c0_57, %c0_58] : memref<128x32xbf16, #tpu.memory_space<vmem>>, vector<128x32xbf16>
    %cst_59 = arith.constant dense<0.000000e+00> : vector<8x32xf32>
    %120 = tpu.matmul %118, %119, %cst_59 {dimension_numbers = #tpu.dot_dimension_numbers<[1], [0], [0], [1], [0, 0, 1, 1], [], []>} : vector<8x128xbf16>, vector<128x32xbf16>, vector<8x32xf32> -> vector<8x32xf32>
    %c0_60 = arith.constant 0 : index
    %c0_61 = arith.constant 0 : index
    %121 = vector.load %arg18[%c0_60, %c0_61] : memref<1x32xf32, #tpu.memory_space<vmem>>, vector<1x32xf32>
    %122 = vector.broadcast %121 : vector<1x32xf32> to vector<8x32xf32>
    %123 = arith.addf %120, %122 : vector<8x32xf32>
    %124 = arith.addf %81, %123 : vector<8x32xf32>
    %c0_62 = arith.constant 0 : index
    %c0_63 = arith.constant 0 : index
    %c0_64 = arith.constant 0 : index
    %125 = vector.load %arg21[%c0_62, %c0_63, %c0_64] : memref<1x8x32xf32, #tpu.memory_space<vmem>>, vector<1x8x32xf32>
    %126 = vector.shape_cast %125 : vector<1x8x32xf32> to vector<8x32xf32>
    %127 = vector.shape_cast %124 : vector<8x32xf32> to vector<1x8x32xf32>
    tpu.vector_store %arg21[%c0_62, %c0_63, %c0_64], %127 {strides = array<i32>} : memref<1x8x32xf32, #tpu.memory_space<vmem>>, vector<1x8x32xf32>,
    %cst_65 = arith.constant dense<0.000000e+00> : vector<8xf32>
    %128 = vector.multi_reduction <add>, %124, %cst_65 [1] : vector<8x32xf32> to vector<8xf32>
    %129 = vector.shape_cast %128 : vector<8xf32> to vector<8x1xf32>
    %cst_66 = arith.constant 3.200000e+01 : f32
    %130 = vector.broadcast %cst_66 : f32 to vector<8x1xf32>
    %131 = arith.divf %129, %130 : vector<8x1xf32>
    %132 = vector.broadcast %131 : vector<8x1xf32> to vector<8x32xf32>
    %133 = arith.subf %124, %132 : vector<8x32xf32>
    %134 = arith.mulf %133, %133 : vector<8x32xf32>
    %cst_67 = arith.constant dense<0.000000e+00> : vector<8xf32>
    %135 = vector.multi_reduction <add>, %134, %cst_67 [1] : vector<8x32xf32> to vector<8xf32>
    %136 = vector.shape_cast %135 : vector<8xf32> to vector<8x1xf32>
    %cst_68 = arith.constant 3.200000e+01 : f32
    %137 = vector.broadcast %cst_68 : f32 to vector<8x1xf32>
    %138 = arith.divf %136, %137 : vector<8x1xf32>
    %cst_69 = arith.constant 9.99999974E-6 : f32
    %139 = vector.broadcast %cst_69 : f32 to vector<8x1xf32>
    %140 = arith.addf %138, %139 : vector<8x1xf32>
    %141 = math.rsqrt %140 : vector<8x1xf32>
    %142 = vector.broadcast %141 : vector<8x1xf32> to vector<8x32xf32>
    %143 = arith.mulf %133, %142 : vector<8x32xf32>
    %c0_70 = arith.constant 0 : index
    %c0_71 = arith.constant 0 : index
    %144 = vector.load %arg19[%c0_70, %c0_71] : memref<1x32xf32, #tpu.memory_space<vmem>>, vector<1x32xf32>
    %145 = vector.broadcast %144 : vector<1x32xf32> to vector<8x32xf32>
    %146 = arith.mulf %143, %145 : vector<8x32xf32>
    %c0_72 = arith.constant 0 : index
    %c0_73 = arith.constant 0 : index
    %147 = vector.load %arg20[%c0_72, %c0_73] : memref<1x32xf32, #tpu.memory_space<vmem>>, vector<1x32xf32>
    %148 = vector.broadcast %147 : vector<1x32xf32> to vector<8x32xf32>
    %149 = arith.addf %146, %148 : vector<8x32xf32>
    %c0_74 = arith.constant 0 : index
    %c0_75 = arith.constant 0 : index
    %c0_76 = arith.constant 0 : index
    %150 = vector.load %arg23[%c0_74, %c0_75, %c0_76] : memref<1x8x32xf32, #tpu.memory_space<vmem>>, vector<1x8x32xf32>
    %151 = vector.shape_cast %150 : vector<1x8x32xf32> to vector<8x32xf32>
    %152 = vector.shape_cast %149 : vector<8x32xf32> to vector<1x8x32xf32>
    tpu.vector_store %arg23[%c0_74, %c0_75, %c0_76], %152 {strides = array<i32>} : memref<1x8x32xf32, #tpu.memory_space<vmem>>, vector<1x8x32xf32>,
    return
  }
  func.func @transform_0(%arg0: i32, %arg1: i32) -> (i32, i32, i32) {
    %c0_i32 = arith.constant 0 : i32
    %c0_i32_0 = arith.constant 0 : i32
    %c0_i32_1 = arith.constant 0 : i32
    return %arg0, %c0_i32, %c0_i32_0 : i32, i32, i32
  }
  func.func @transform_1(%arg0: i32, %arg1: i32) -> (i32, i32) {
    %c0_i32 = arith.constant 0 : i32
    %c0_i32_0 = arith.constant 0 : i32
    %c0_i32_1 = arith.constant 0 : i32
    return %c0_i32, %c0_i32_0 : i32, i32
  }
  func.func @transform_2(%arg0: i32, %arg1: i32) -> (i32, i32) {
    %c0_i32 = arith.constant 0 : i32
    %c0_i32_0 = arith.constant 0 : i32
    %c0_i32_1 = arith.constant 0 : i32
    return %c0_i32, %c0_i32_0 : i32, i32
  }
  func.func @transform_3(%arg0: i32, %arg1: i32) -> (i32, i32) {
    %c0_i32 = arith.constant 0 : i32
    %c0_i32_0 = arith.constant 0 : i32
    %c0_i32_1 = arith.constant 0 : i32
    return %c0_i32, %c0_i32_0 : i32, i32
  }
  func.func @transform_4(%arg0: i32, %arg1: i32) -> (i32, i32) {
    %c0_i32 = arith.constant 0 : i32
    %c0_i32_0 = arith.constant 0 : i32
    %c0_i32_1 = arith.constant 0 : i32
    return %c0_i32, %c0_i32_0 : i32, i32
  }
  func.func @transform_5(%arg0: i32, %arg1: i32) -> (i32, i32) {
    %c0_i32 = arith.constant 0 : i32
    %c0_i32_0 = arith.constant 0 : i32
    %c0_i32_1 = arith.constant 0 : i32
    return %c0_i32, %c0_i32_0 : i32, i32
  }
  func.func @transform_6(%arg0: i32, %arg1: i32) -> (i32, i32) {
    %c0_i32 = arith.constant 0 : i32
    %c0_i32_0 = arith.constant 0 : i32
    %c0_i32_1 = arith.constant 0 : i32
    return %c0_i32, %c0_i32_0 : i32, i32
  }
  func.func @transform_7(%arg0: i32, %arg1: i32) -> (i32, i32) {
    %c0_i32 = arith.constant 0 : i32
    %c0_i32_0 = arith.constant 0 : i32
    %c0_i32_1 = arith.constant 0 : i32
    return %c0_i32, %c0_i32_0 : i32, i32
  }
  func.func @transform_8(%arg0: i32, %arg1: i32) -> (i32, i32) {
    %c0_i32 = arith.constant 0 : i32
    %c0_i32_0 = arith.constant 0 : i32
    %c0_i32_1 = arith.constant 0 : i32
    return %c0_i32, %c0_i32_0 : i32, i32
  }
  func.func @transform_9(%arg0: i32, %arg1: i32) -> (i32, i32) {
    %c0_i32 = arith.constant 0 : i32
    %c0_i32_0 = arith.constant 0 : i32
    %c0_i32_1 = arith.constant 0 : i32
    return %c0_i32, %c0_i32_0 : i32, i32
  }
  func.func @transform_10(%arg0: i32, %arg1: i32) -> (i32, i32) {
    %c0_i32 = arith.constant 0 : i32
    %c0_i32_0 = arith.constant 0 : i32
    %c0_i32_1 = arith.constant 0 : i32
    return %c0_i32, %c0_i32_0 : i32, i32
  }
  func.func @transform_11(%arg0: i32, %arg1: i32) -> (i32, i32) {
    %c0_i32 = arith.constant 0 : i32
    %c0_i32_0 = arith.constant 0 : i32
    %c0_i32_1 = arith.constant 0 : i32
    return %c0_i32, %c0_i32_0 : i32, i32
  }
  func.func @transform_12(%arg0: i32, %arg1: i32) -> (i32, i32) {
    %c0_i32 = arith.constant 0 : i32
    %c0_i32_0 = arith.constant 0 : i32
    %c0_i32_1 = arith.constant 0 : i32
    return %c0_i32, %c0_i32_0 : i32, i32
  }
  func.func @transform_13(%arg0: i32, %arg1: i32) -> (i32, i32) {
    %c0_i32 = arith.constant 0 : i32
    %c0_i32_0 = arith.constant 0 : i32
    %c0_i32_1 = arith.constant 0 : i32
    return %c0_i32, %c0_i32_0 : i32, i32
  }
  func.func @transform_14(%arg0: i32, %arg1: i32) -> (i32, i32) {
    %c0_i32 = arith.constant 0 : i32
    %c0_i32_0 = arith.constant 0 : i32
    %c0_i32_1 = arith.constant 0 : i32
    return %c0_i32, %c0_i32_0 : i32, i32
  }
  func.func @transform_15(%arg0: i32, %arg1: i32) -> (i32, i32) {
    %c0_i32 = arith.constant 0 : i32
    %c0_i32_0 = arith.constant 0 : i32
    %c0_i32_1 = arith.constant 0 : i32
    return %c0_i32, %c0_i32_0 : i32, i32
  }
  func.func @transform_16(%arg0: i32, %arg1: i32) -> (i32, i32) {
    %c0_i32 = arith.constant 0 : i32
    %c0_i32_0 = arith.constant 0 : i32
    %c0_i32_1 = arith.constant 0 : i32
    return %c0_i32, %c0_i32_0 : i32, i32
  }
  func.func @transform_17(%arg0: i32, %arg1: i32) -> (i32, i32) {
    %c0_i32 = arith.constant 0 : i32
    %c0_i32_0 = arith.constant 0 : i32
    %c0_i32_1 = arith.constant 0 : i32
    return %c0_i32, %c0_i32_0 : i32, i32
  }
  func.func @transform_18(%arg0: i32, %arg1: i32) -> (i32, i32) {
    %c0_i32 = arith.constant 0 : i32
    %c0_i32_0 = arith.constant 0 : i32
    %c0_i32_1 = arith.constant 0 : i32
    return %c0_i32, %c0_i32_0 : i32, i32
  }
  func.func @transform_19(%arg0: i32, %arg1: i32) -> (i32, i32, i32) {
    %c0_i32 = arith.constant 0 : i32
    %c0_i32_0 = arith.constant 0 : i32
    return %arg0, %arg1, %c0_i32 : i32, i32, i32
  }
  func.func @transform_20(%arg0: i32, %arg1: i32) -> (i32, i32, i32, i32) {
    %c0_i32 = arith.constant 0 : i32
    %c0_i32_0 = arith.constant 0 : i32
    %c0_i32_1 = arith.constant 0 : i32
    return %arg0, %c0_i32, %arg1, %c0_i32_0 : i32, i32, i32, i32
  }
  func.func @transform_21(%arg0: i32, %arg1: i32) -> (i32, i32, i32) {
    %c0_i32 = arith.constant 0 : i32
    %c0_i32_0 = arith.constant 0 : i32
    return %arg0, %arg1, %c0_i32 : i32, i32, i32
  }
}

</mosaic_0001>

<llo_original>
// kernel: tpu_custom_call.1
$region0: #{tpu_custom_call.1}
  #allocation0 [shape = 'u32[]', space=smem, size = 0x4, offset = 0x4, fixed_abs, tag = 'smem constant byte address 0x4 - core index']
  #allocation1 [shape = 'u32[72,128]{1,0:T(1,128)}', space=vmem, size = 0x9000, scoped, tag = 'internal scratch']
  %s0 = inlined_call_operand.hbm [shape: f32[8,128], index: 0, kind: input, shape index: {}]
  %s1 = inlined_call_operand.hbm [shape: f32[8,128], index: 1, kind: input, shape index: {}]
  %s2 = inlined_call_operand.hbm [shape: f32[8,128], index: 2, kind: output, shape index: {}]
  %s3 = sld [smem:[#allocation0]]
  $region26: #{tpu_custom_call.1} parent=0
    _
  %s5 = ssub.s32 1, %s3
  %s6 = scalar_select 0, %s5, %s3
  $region1: #{tpu_custom_call.1} parent=0
    #allocation2 [shape = 'u8[4096]{0}', space=vmem, size = 0x1000, scoped, tag = 'input window, operand 0, single buffered']
    #allocation3 [shape = 's32[1]{0}', space=sflag, size = 0x4, scoped, tag = 'scoped memory for tpu_custom_call.1']
    #allocation4 [shape = 's32[1]{0}', space=sflag, size = 0x4, scoped, tag = 'scoped memory for tpu_custom_call.1']
    #allocation5 [shape = 'u8[4096]{0}', space=vmem, size = 0x1000, scoped, tag = 'input window, operand 1, single buffered']
    #allocation6 [shape = 's32[1]{0}', space=sflag, size = 0x4, scoped, tag = 'scoped memory for tpu_custom_call.1']
    #allocation7 [shape = 'u8[4096]{0}', space=vmem, size = 0x1000, scoped, tag = 'output window, operand 0, single buffered']
    %7 = vsyncpa [#allocation3], 0
    %8 = vsyncpa [#allocation6], 0
    %9 = vsyncpa [#allocation4], 0
    // Predicated region
    $region2: #{tpu_custom_call.1} parent=1 // pred_check
      _
    $region3: #{tpu_custom_call.1} parent=1 // pred_check_branch
      %11 = sbr.rel (0) target = $region5
    $region4: #{tpu_custom_call.1} parent=1 // pred_region
      %13 = vsyncadd [#allocation3], 0
      %s15 = sshll.u32 %s0, 4
      %s16 = int_to_ptr.hbm [resolvable:$true] %s15
      %s17 = sshll.u32 [#allocation2], 4
      %s18 = int_to_ptr.vmem [resolvable:$true] %s17
      %20 = dma.hbm_to_vmem [thread:$0]  %s16, 128, %s18, [#allocation3]
    $region5: #{tpu_custom_call.1} parent=1 // pred_fallthru
      _
    // Predicated region
    $region6: #{tpu_custom_call.1} parent=1 // pred_check
      _
    $region7: #{tpu_custom_call.1} parent=1 // pred_check_branch
      %22 = sbr.rel (0) target = $region9
    $region8: #{tpu_custom_call.1} parent=1 // pred_region
      %24 = vsyncadd [#allocation6], 0
      %s26 = sshll.u32 %s1, 4
      %s27 = int_to_ptr.hbm [resolvable:$true] %s26
      %s28 = sshll.u32 [#allocation5], 4
      %s29 = int_to_ptr.vmem [resolvable:$true] %s28
      %31 = dma.hbm_to_vmem [thread:$0]  %s27, 128, %s29, [#allocation6]
    $region9: #{tpu_custom_call.1} parent=1 // pred_fallthru
      _
    // Predicated region
    $region10: #{tpu_custom_call.1} parent=1 // pred_check
      _
    $region11: #{tpu_custom_call.1} parent=1 // pred_check_branch
      %33 = sbr.rel (0) target = $region13
    $region12: #{tpu_custom_call.1} parent=1 // pred_region
      %35 = dma.done [#allocation3], 128
    $region13: #{tpu_custom_call.1} parent=1 // pred_fallthru
      _
    // Predicated region
    $region14: #{tpu_custom_call.1} parent=1 // pred_check
      _
    $region15: #{tpu_custom_call.1} parent=1 // pred_check_branch
      %37 = sbr.rel (0) target = $region17
    $region16: #{tpu_custom_call.1} parent=1 // pred_region
      %39 = dma.done [#allocation6], 128
    $region17: #{tpu_custom_call.1} parent=1 // pred_fallthru
      _
    %v40 = vld [vmem:[#allocation2] sm:$0xff]
    %v41 = vld [vmem:[#allocation5] sm:$0xff]
    %v42 = vadd.f32 %v40, %v41
    %43 = vst [vmem:[#allocation7] sm:$0xff] %v42
    // Predicated region
    $region18: #{tpu_custom_call.1} parent=1 // pred_check
      _
    $region19: #{tpu_custom_call.1} parent=1 // pred_check_branch
      %45 = sbr.rel (0) target = $region21
    $region20: #{tpu_custom_call.1} parent=1 // pred_region
      %47 = vsyncadd [#allocation4], 0
      %s49 = sshll.u32 [#allocation7], 4
      %s50 = int_to_ptr.vmem [resolvable:$true] %s49
      %s51 = sshll.u32 %s2, 4
      %s52 = int_to_ptr.hbm [resolvable:$true] %s51
      %54 = dma.vmem_to_hbm [thread:$0]  %s50, 128, %s52, [#allocation4]
    $region21: #{tpu_custom_call.1} parent=1 // pred_fallthru
      _
    // Predicated region
    $region22: #{tpu_custom_call.1} parent=1 // pred_check
      _
    $region23: #{tpu_custom_call.1} parent=1 // pred_check_branch
      %56 = sbr.rel (0) target = $region25
    $region24: #{tpu_custom_call.1} parent=1 // pred_region
      %58 = dma.done [#allocation4], 128
    $region25: #{tpu_custom_call.1} parent=1 // pred_fallthru
      _
    %59 = vsyncpa [#allocation3], 1
    %60 = vsyncpa [#allocation6], 1
    %61 = vsyncpa [#allocation4], 1

// kernel: _lambda_.9
$region0: #{_lambda_.9}
  #allocation0 [shape = 'u32[]', space=smem, size = 0x4, offset = 0x4, fixed_abs, tag = 'smem constant byte address 0x4 - core index']
  #allocation1 [shape = 'u32[72,128]{1,0:T(1,128)}', space=vmem, size = 0x9000, scoped, tag = 'internal scratch']
  %s0 = inlined_call_operand.vmem [shape: f32[8,192], index: 0, kind: input, shape index: {}]
  %s1 = inlined_call_operand.vmem [shape: bf16[192,32], index: 1, kind: input, shape index: {}]
  %s2 = inlined_call_operand.vmem [shape: f32[1,32], index: 2, kind: input, shape index: {}]
  %s3 = inlined_call_operand.vmem [shape: f32[8,32], index: 3, kind: output, shape index: {}]
  %s4 = sld [smem:[#allocation0]]
  $region22: #{_lambda_.9} parent=0
    _
  %s6 = ssub.s32 1, %s4
  %s7 = scalar_select 0, %s6, %s4
  // Predicated region
  $region2: #{_lambda_.9} parent=0 // pred_check
    _
  $region3: #{_lambda_.9} parent=0 // pred_check_branch
    %9 = sbr.rel (0) target = $region5
  $region4: #{_lambda_.9} parent=0 // pred_region
    _
  $region5: #{_lambda_.9} parent=0 // pred_fallthru
    _
  // Predicated region
  $region6: #{_lambda_.9} parent=0 // pred_check
    _
  $region7: #{_lambda_.9} parent=0 // pred_check_branch
    %11 = sbr.rel (0) target = $region9
  $region8: #{_lambda_.9} parent=0 // pred_region
    _
  $region9: #{_lambda_.9} parent=0 // pred_fallthru
    _
  // Predicated region
  $region10: #{_lambda_.9} parent=0 // pred_check
    _
  $region11: #{_lambda_.9} parent=0 // pred_check_branch
    %13 = sbr.rel (0) target = $region13
  $region12: #{_lambda_.9} parent=0 // pred_region
    _
  $region13: #{_lambda_.9} parent=0 // pred_fallthru
    _
  %v15 = vld [vmem:[%s0] sm:$0xff]
  %v16 = vld [vmem:[%s0 + $0x8] sm:$0xff]
  %v17 = vpack.c.bf16 %v15, %v15
  %v18 = vpack.c.bf16 %v16, %v16
  %v19 = vld [vmem:[%s1] sm:$0xf]
  %v20 = vld [vmem:[%s1 + $0x4] sm:$0xf]
  %v21 = vld [vmem:[%s1 + $0x8] sm:$0xf]
  %v22 = vld [vmem:[%s1 + $0xc] sm:$0xf]
  %v23 = vld [vmem:[%s1 + $0x10] sm:$0xf]
  %v24 = vld [vmem:[%s1 + $0x14] sm:$0xf]
  %v25 = vld [vmem:[%s1 + $0x18] sm:$0xf]
  %v26 = vld [vmem:[%s1 + $0x1c] sm:$0xf]
  %v27 = vld [vmem:[%s1 + $0x20] sm:$0xf]
  %v28 = vld [vmem:[%s1 + $0x24] sm:$0xf]
  %v29 = vld [vmem:[%s1 + $0x28] sm:$0xf]
  %v30 = vld [vmem:[%s1 + $0x2c] sm:$0xf]
  %v31 = vld [vmem:[%s1 + $0x30] sm:$0xf]
  %v32 = vld [vmem:[%s1 + $0x34] sm:$0xf]
  %v33 = vld [vmem:[%s1 + $0x38] sm:$0xf]
  %v34 = vld [vmem:[%s1 + $0x3c] sm:$0xf]
  %v35 = vld [vmem:[%s1 + $0x40] sm:$0xf]
  %v36 = vld [vmem:[%s1 + $0x44] sm:$0xf]
  %v37 = vld [vmem:[%s1 + $0x48] sm:$0xf]
  %v38 = vld [vmem:[%s1 + $0x4c] sm:$0xf]
  %v39 = vld [vmem:[%s1 + $0x50] sm:$0xf]
  %v40 = vld [vmem:[%s1 + $0x54] sm:$0xf]
  %v41 = vld [vmem:[%s1 + $0x58] sm:$0xf]
  %v42 = vld [vmem:[%s1 + $0x5c] sm:$0xf]
  %v43 = vld [vmem:[%s2] sm:$0x1]
  %v45 = vperm.slane %v43, 0
  %v71 = vunpack.c.l.b16 %v19
  %v72 = vunpack.c.l.b16 %v20
  %v73 = vunpack.c.l.b16 %v21
  %v74 = vunpack.c.l.b16 %v22
  %v75 = vunpack.c.l.b16 %v23
  %v76 = vunpack.c.l.b16 %v24
  %v77 = vunpack.c.l.b16 %v25
  %v78 = vunpack.c.l.b16 %v26
  %v79 = vunpack.c.l.b16 %v27
  %v80 = vunpack.c.l.b16 %v28
  %v81 = vunpack.c.l.b16 %v29
  %v82 = vunpack.c.l.b16 %v30
  %v83 = vunpack.c.l.b16 %v31
  %v84 = vunpack.c.l.b16 %v32
  %v85 = vunpack.c.l.b16 %v33
  %v86 = vunpack.c.l.b16 %v34
  %v87 = vunpack.c.l.b16 %v35
  %v88 = vunpack.c.l.b16 %v36
  %v89 = vunpack.c.l.b16 %v37
  %v90 = vunpack.c.l.b16 %v38
  %v91 = vunpack.c.l.b16 %v39
  %v92 = vunpack.c.l.b16 %v40
  %v93 = vunpack.c.l.b16 %v41
  %v94 = vunpack.c.l.b16 %v42
  %v95 = vpack.c.b16 %v72, %v71
  %v96 = vpack.c.b16 %v74, %v73
  %v97 = vpack.c.b16 %v76, %v75
  %v98 = vpack.c.b16 %v78, %v77
  %v99 = vpack.c.b16 %v80, %v79
  %v100 = vpack.c.b16 %v82, %v81
  %v101 = vpack.c.b16 %v84, %v83
  %v102 = vpack.c.b16 %v86, %v85
  %v103 = vpack.c.b16 %v88, %v87
  %v104 = vpack.c.b16 %v90, %v89
  %v105 = vpack.c.b16 %v92, %v91
  %v106 = vpack.c.b16 %v94, %v93
  %vm119 = vcmask 523264
  %v121 = vsel %vm119, %v18, 0
  %123 = vmatpush.bf16.msra.mxu0 %v102
  %124 = vmatpush.bf16.msra.mxu0 %v101
  %125 = vmatpush.bf16.msra.mxu0 %v100
  %126 = vmatpush.bf16.msra.mxu0 %v99
  %127 = vmatpush.bf16.msra.mxu0 %v98
  %128 = vmatpush.bf16.msra.mxu0 %v97
  %129 = vmatpush.bf16.msra.mxu0 %v96
  %130 = vmatpush.bf16.msra.mxu0 %v95
  %131 = vmatmul.bf16.gmra.mxu0 %v17
  %v132 = vpop.f32.mrf.mxu0
  %v133 = vadd.f32 %v45, %v132
  %v134 = vpop.f32.mrf.mxu0
  %135 = vdwg.mxu0
  %136 = vmatpush.bf16.msra.mxu0 0
  %137 = vmatpush.bf16.msra.mxu0 0
  %138 = vmatpush.bf16.msra.mxu0 0
  %139 = vmatpush.bf16.msra.mxu0 0
  %140 = vmatpush.bf16.msra.mxu0 %v106
  %141 = vmatpush.bf16.msra.mxu0 %v105
  %142 = vmatpush.bf16.msra.mxu0 %v104
  %143 = vmatpush.bf16.msra.mxu0 %v103
  %144 = vmatmul.bf16.gmra.mxu0 %v121
  %v145 = vpop.f32.mrf.mxu0
  %v146 = vadd.f32 %v133, %v145
  %v147 = vpop.f32.mrf.mxu0
  %148 = vdwg.mxu0
  %vm149 = vcmask 261120
  %150 = vst.msk [vmem:[%s3] sm:$0xff] %vm149, %v146
  // Predicated region
  $region14: #{_lambda_.9} parent=0 // pred_check
    _
  $region15: #{_lambda_.9} parent=0 // pred_check_branch
    %152 = sbr.rel (0) target = $region17
  $region16: #{_lambda_.9} parent=0 // pred_region
    _
  $region17: #{_lambda_.9} parent=0 // pred_fallthru
    _
  // Predicated region
  $region18: #{_lambda_.9} parent=0 // pred_check
    _
  $region19: #{_lambda_.9} parent=0 // pred_check_branch
    %154 = sbr.rel (0) target = $region21
  $region20: #{_lambda_.9} parent=0 // pred_region
    _
  $region21: #{_lambda_.9} parent=0 // pred_fallthru
    _

// kernel: _lambda_.16
$region0: #{_lambda_.16}
  #allocation0 [shape = 'u32[]', space=smem, size = 0x4, offset = 0x4, fixed_abs, tag = 'smem constant byte address 0x4 - core index']
  #allocation1 [shape = 'u32[72,128]{1,0:T(1,128)}', space=vmem, size = 0x9000, scoped, tag = 'internal scratch']
  %s0 = inlined_call_operand.vmem [shape: f32[2,8,32], index: 0, kind: input, shape index: {}, may-alias: {0,19}]
  %s1 = inlined_call_operand.vmem [shape: f32[1,32], index: 1, kind: input, shape index: {}, may-alias: {1,11,17}]
  %s2 = inlined_call_operand.vmem [shape: f32[1,32], index: 2, kind: input, shape index: {}, may-alias: {2,4,6,8,10,12,16,18}]
  %s3 = inlined_call_operand.vmem [shape: bf16[32,32], index: 3, kind: input, shape index: {}]
  %s4 = inlined_call_operand.vmem [shape: f32[1,32], index: 4, kind: input, shape index: {}, may-alias: {2,4,6,8,10,12,16,18}]
  %s5 = inlined_call_operand.vmem [shape: bf16[32,32], index: 5, kind: input, shape index: {}]
  %s6 = inlined_call_operand.vmem [shape: f32[1,32], index: 6, kind: input, shape index: {}, may-alias: {2,4,6,8,10,12,16,18}]
  %s7 = inlined_call_operand.vmem [shape: bf16[32,32], index: 7, kind: input, shape index: {}]
  %s8 = inlined_call_operand.vmem [shape: f32[1,32], index: 8, kind: input, shape index: {}, may-alias: {2,4,6,8,10,12,16,18}]
  %s9 = inlined_call_operand.vmem [shape: bf16[32,32], index: 9, kind: input, shape index: {}]
  %s10 = inlined_call_operand.vmem [shape: f32[1,32], index: 10, kind: input, shape index: {}, may-alias: {2,4,6,8,10,12,16,18}]
  %s11 = inlined_call_operand.vmem [shape: f32[1,32], index: 11, kind: input, shape index: {}, may-alias: {1,11,17}]
  %s12 = inlined_call_operand.vmem [shape: f32[1,32], index: 12, kind: input, shape index: {}, may-alias: {2,4,6,8,10,12,16,18}]
  %s13 = inlined_call_operand.vmem [shape: bf16[32,128], index: 13, kind: input, shape index: {}]
  %s14 = inlined_call_operand.vmem [shape: f32[1,128], index: 14, kind: input, shape index: {}]
  %s15 = inlined_call_operand.vmem [shape: bf16[128,32], index: 15, kind: input, shape index: {}]
  %s16 = inlined_call_operand.vmem [shape: f32[1,32], index: 16, kind: input, shape index: {}, may-alias: {2,4,6,8,10,12,16,18}]
  %s17 = inlined_call_operand.vmem [shape: f32[1,32], index: 17, kind: input, shape index: {}, may-alias: {1,11,17}]
  %s18 = inlined_call_operand.vmem [shape: f32[1,32], index: 18, kind: input, shape index: {}, may-alias: {2,4,6,8,10,12,16,18}]
  %s19 = inlined_call_operand.vmem [shape: f32[2,8,32], index: 19, kind: output, shape index: {0}, may-alias: {0,19}]
  %s20 = inlined_call_operand.vmem [shape: f32[2,8,32], index: 20, kind: output, shape index: {1}]
  %21 = xla_tuple %s19, %s20
  %s22 = sld [smem:[#allocation0]]
  $region117: #{_lambda_.16} parent=0
    _
  %s24 = ssub.s32 1, %s22
  %s25 = scalar_select 0, %s24, %s22
  loop: start=0, step=1, limit=4
  $region2: #{_lambda_.16} parent=0 // loop_pre_header
    _
  $region3: #{_lambda_.16} parent=0 // loop_header
    %s27 = sphi 0, %s31
    %p28 = scmp.ge.s32.totalorder %s27, 4
    %s34 = sphi 0, %s46
    %s35 = sphi 0, %s42
    %s36 = sphi 0, %s34
    %s37 = sphi 0, %s35
    %s38 = sphi 0, %s36
    %s39 = sphi 0, %s37
    %s49 = sphi 0, %s51
    %s52 = sphi 0, %s49
    %s53 = sphi 0, %s52
    %s69 = sphi 0, %s53
    %s73 = sphi 0, %s73
    %s75 = sphi 0, %s73
    %s76 = sphi 0, %s75
    %s90 = sphi 0, %s76
    %s94 = sphi 0, %s94
    %s96 = sphi 0, %s94
    %s97 = sphi 0, %s96
    %s111 = sphi 0, %s97
    %s115 = sphi 0, %s115
    %s117 = sphi 0, %s115
    %s118 = sphi 0, %s117
    %s132 = sphi 0, %s118
    %s136 = sphi 0, %s136
    %s138 = sphi 0, %s136
    %s139 = sphi 0, %s138
    %s153 = sphi 0, %s139
    %s157 = sphi 0, %s157
    %s159 = sphi 0, %s157
    %s160 = sphi 0, %s159
    %s174 = sphi 0, %s160
    %s178 = sphi 0, %s178
    %s180 = sphi 0, %s178
    %s181 = sphi 0, %s180
    %s195 = sphi 0, %s181
    %s199 = sphi 0, %s199
    %s201 = sphi 0, %s199
    %s202 = sphi 0, %s201
    %s216 = sphi 0, %s202
    %s220 = sphi 0, %s220
    %s222 = sphi 0, %s220
    %s223 = sphi 0, %s222
    %s237 = sphi 0, %s223
    %s241 = sphi 0, %s241
    %s243 = sphi 0, %s241
    %s244 = sphi 0, %s243
    %s258 = sphi 0, %s244
    %s262 = sphi 0, %s262
    %s264 = sphi 0, %s262
    %s265 = sphi 0, %s264
    %s279 = sphi 0, %s265
    %s283 = sphi 0, %s283
    %s285 = sphi 0, %s283
    %s286 = sphi 0, %s285
    %s300 = sphi 0, %s286
    %s304 = sphi 0, %s304
    %s306 = sphi 0, %s304
    %s307 = sphi 0, %s306
    %s321 = sphi 0, %s307
    %s325 = sphi 0, %s325
    %s327 = sphi 0, %s325
    %s328 = sphi 0, %s327
    %s342 = sphi 0, %s328
    %s346 = sphi 0, %s346
    %s348 = sphi 0, %s346
    %s349 = sphi 0, %s348
    %s363 = sphi 0, %s349
    %s367 = sphi 0, %s367
    %s369 = sphi 0, %s367
    %s370 = sphi 0, %s369
    %s384 = sphi 0, %s370
    %s388 = sphi 0, %s388
    %s390 = sphi 0, %s388
    %s391 = sphi 0, %s390
    %s405 = sphi 0, %s391
    %s409 = sphi 0, %s409
    %s411 = sphi 0, %s409
    %s412 = sphi 0, %s411
    %s426 = sphi 0, %s412
    %s430 = sphi 0, %s430
    %s432 = sphi 0, %s430
    %s433 = sphi 0, %s432
    %s447 = sphi 0, %s433
    %s455 = sphi 0, %s457
    %s458 = sphi 0, %s455
    %s459 = sphi 0, %s458
    %s475 = sphi 0, %s459
    %s483 = sphi 0, %s485
    %s486 = sphi 0, %s483
    %s487 = sphi 0, %s486
    %s503 = sphi 0, %s487
  $region4: #{_lambda_.16} parent=0 // loop_header_branch
    %30 = sbr.rel (%p28) target = $region8
  $region5: #{_lambda_.16} parent=0 // loop_body
    %s32 = ssub.s32 %s27, 1
    %s33 = ssub.s32 %s27, 2
    %s40 = sadd.s32 1, %s35
    %p41 = scmp.ge.s32.totalorder %s40, 1
    %s42 = scalar_select %p41, 0, %s40
    %s43 = sadd.s32 1, %s34
    %s44 = scalar_select %p41, %s43, %s34
    %p45 = scmp.ge.s32.totalorder %s44, 2
    %s46 = scalar_select %p45, 0, %s44
    %s47 = ssub.s32 %s34, %s46
    %p48 = scmp.eq.s32.totalorder %s47, 0
    %s50 = sadd.s32 %s49, 1
    %s51 = scalar_select %p48, %s49, %s50
    %p54 = pneg %p48
    %p55 = scmp.eq.s32.totalorder %s27, 1
    %p56 = por %p54, %p55
    %p57 = scmp.ne.s32.totalorder %s49, %s52
    %p58 = scmp.eq.s32.totalorder %s27, 0
    %p59 = por %p57, %p58
    %p60 = scmp.ne.s32.totalorder %s49, %s52
    %p61 = scmp.eq.s32.totalorder %s32, 1
    %p62 = por %p60, %p61
    %p63 = scmp.ne.s32.totalorder %s52, %s53
    %p64 = scmp.eq.s32.totalorder %s32, 0
    %p65 = por %p63, %p64
    %p66 = scmp.ne.s32.totalorder %s52, %s53
    %p67 = scmp.eq.s32.totalorder %s33, 1
    %p68 = por %p66, %p67
    %p70 = scmp.ne.s32.totalorder %s53, %s69
    %p71 = scmp.eq.s32.totalorder %s33, 0
    %p72 = por %p70, %p71
    %s74 = sadd.s32 %s73, 1
    %p77 = scmp.eq.s32.totalorder %s27, 1
    %p78 = scmp.ne.s32.totalorder %s73, %s75
    %p79 = scmp.eq.s32.totalorder %s27, 0
    %p80 = por %p78, %p79
    %p81 = scmp.ne.s32.totalorder %s73, %s75
    %p82 = scmp.eq.s32.totalorder %s32, 1
    %p83 = por %p81, %p82
    %p84 = scmp.ne.s32.totalorder %s75, %s76
    %p85 = scmp.eq.s32.totalorder %s32, 0
    %p86 = por %p84, %p85
    %p87 = scmp.ne.s32.totalorder %s75, %s76
    %p88 = scmp.eq.s32.totalorder %s33, 1
    %p89 = por %p87, %p88
    %p91 = scmp.ne.s32.totalorder %s76, %s90
    %p92 = scmp.eq.s32.totalorder %s33, 0
    %p93 = por %p91, %p92
    %s95 = sadd.s32 %s94, 1
    %p98 = scmp.eq.s32.totalorder %s27, 1
    %p99 = scmp.ne.s32.totalorder %s94, %s96
    %p100 = scmp.eq.s32.totalorder %s27, 0
    %p101 = por %p99, %p100
    %p102 = scmp.ne.s32.totalorder %s94, %s96
    %p103 = scmp.eq.s32.totalorder %s32, 1
    %p104 = por %p102, %p103
    %p105 = scmp.ne.s32.totalorder %s96, %s97
    %p106 = scmp.eq.s32.totalorder %s32, 0
    %p107 = por %p105, %p106
    %p108 = scmp.ne.s32.totalorder %s96, %s97
    %p109 = scmp.eq.s32.totalorder %s33, 1
    %p110 = por %p108, %p109
    %p112 = scmp.ne.s32.totalorder %s97, %s111
    %p113 = scmp.eq.s32.totalorder %s33, 0
    %p114 = por %p112, %p113
    %s116 = sadd.s32 %s115, 1
    %p119 = scmp.eq.s32.totalorder %s27, 1
    %p120 = scmp.ne.s32.totalorder %s115, %s117
    %p121 = scmp.eq.s32.totalorder %s27, 0
    %p122 = por %p120, %p121
    %p123 = scmp.ne.s32.totalorder %s115, %s117
    %p124 = scmp.eq.s32.totalorder %s32, 1
    %p125 = por %p123, %p124
    %p126 = scmp.ne.s32.totalorder %s117, %s118
    %p127 = scmp.eq.s32.totalorder %s32, 0
    %p128 = por %p126, %p127
    %p129 = scmp.ne.s32.totalorder %s117, %s118
    %p130 = scmp.eq.s32.totalorder %s33, 1
    %p131 = por %p129, %p130
    %p133 = scmp.ne.s32.totalorder %s118, %s132
    %p134 = scmp.eq.s32.totalorder %s33, 0
    %p135 = por %p133, %p134
    %s137 = sadd.s32 %s136, 1
    %p140 = scmp.eq.s32.totalorder %s27, 1
    %p141 = scmp.ne.s32.totalorder %s136, %s138
    %p142 = scmp.eq.s32.totalorder %s27, 0
    %p143 = por %p141, %p142
    %p144 = scmp.ne.s32.totalorder %s136, %s138
    %p145 = scmp.eq.s32.totalorder %s32, 1
    %p146 = por %p144, %p145
    %p147 = scmp.ne.s32.totalorder %s138, %s139
    %p148 = scmp.eq.s32.totalorder %s32, 0
    %p149 = por %p147, %p148
    %p150 = scmp.ne.s32.totalorder %s138, %s139
    %p151 = scmp.eq.s32.totalorder %s33, 1
    %p152 = por %p150, %p151
    %p154 = scmp.ne.s32.totalorder %s139, %s153
    %p155 = scmp.eq.s32.totalorder %s33, 0
    %p156 = por %p154, %p155
    %s158 = sadd.s32 %s157, 1
    %p161 = scmp.eq.s32.totalorder %s27, 1
    %p162 = scmp.ne.s32.totalorder %s157, %s159
    %p163 = scmp.eq.s32.totalorder %s27, 0
    %p164 = por %p162, %p163
    %p165 = scmp.ne.s32.totalorder %s157, %s159
    %p166 = scmp.eq.s32.totalorder %s32, 1
    %p167 = por %p165, %p166
    %p168 = scmp.ne.s32.totalorder %s159, %s160
    %p169 = scmp.eq.s32.totalorder %s32, 0
    %p170 = por %p168, %p169
    %p171 = scmp.ne.s32.totalorder %s159, %s160
    %p172 = scmp.eq.s32.totalorder %s33, 1
    %p173 = por %p171, %p172
    %p175 = scmp.ne.s32.totalorder %s160, %s174
    %p176 = scmp.eq.s32.totalorder %s33, 0
    %p177 = por %p175, %p176
    %s179 = sadd.s32 %s178, 1
    %p182 = scmp.eq.s32.totalorder %s27, 1
    %p183 = scmp.ne.s32.totalorder %s178, %s180
    %p184 = scmp.eq.s32.totalorder %s27, 0
    %p185 = por %p183, %p184
    %p186 = scmp.ne.s32.totalorder %s178, %s180
    %p187 = scmp.eq.s32.totalorder %s32, 1
    %p188 = por %p186, %p187
    %p189 = scmp.ne.s32.totalorder %s180, %s181
    %p190 = scmp.eq.s32.totalorder %s32, 0
    %p191 = por %p189, %p190
    %p192 = scmp.ne.s32.totalorder %s180, %s181
    %p193 = scmp.eq.s32.totalorder %s33, 1
    %p194 = por %p192, %p193
    %p196 = scmp.ne.s32.totalorder %s181, %s195
    %p197 = scmp.eq.s32.totalorder %s33, 0
    %p198 = por %p196, %p197
    %s200 = sadd.s32 %s199, 1
    %p203 = scmp.eq.s32.totalorder %s27, 1
    %p204 = scmp.ne.s32.totalorder %s199, %s201
    %p205 = scmp.eq.s32.totalorder %s27, 0
    %p206 = por %p204, %p205
    %p207 = scmp.ne.s32.totalorder %s199, %s201
    %p208 = scmp.eq.s32.totalorder %s32, 1
    %p209 = por %p207, %p208
    %p210 = scmp.ne.s32.totalorder %s201, %s202
    %p211 = scmp.eq.s32.totalorder %s32, 0
    %p212 = por %p210, %p211
    %p213 = scmp.ne.s32.totalorder %s201, %s202
    %p214 = scmp.eq.s32.totalorder %s33, 1
    %p215 = por %p213, %p214
    %p217 = scmp.ne.s32.totalorder %s202, %s216
    %p218 = scmp.eq.s32.totalorder %s33, 0
    %p219 = por %p217, %p218
    %s221 = sadd.s32 %s220, 1
    %p224 = scmp.eq.s32.totalorder %s27, 1
    %p225 = scmp.ne.s32.totalorder %s220, %s222
    %p226 = scmp.eq.s32.totalorder %s27, 0
    %p227 = por %p225, %p226
    %p228 = scmp.ne.s32.totalorder %s220, %s222
    %p229 = scmp.eq.s32.totalorder %s32, 1
    %p230 = por %p228, %p229
    %p231 = scmp.ne.s32.totalorder %s222, %s223
    %p232 = scmp.eq.s32.totalorder %s32, 0
    %p233 = por %p231, %p232
    %p234 = scmp.ne.s32.totalorder %s222, %s223
    %p235 = scmp.eq.s32.totalorder %s33, 1
    %p236 = por %p234, %p235
    %p238 = scmp.ne.s32.totalorder %s223, %s237
    %p239 = scmp.eq.s32.totalorder %s33, 0
    %p240 = por %p238, %p239
    %s242 = sadd.s32 %s241, 1
    %p245 = scmp.eq.s32.totalorder %s27, 1
    %p246 = scmp.ne.s32.totalorder %s241, %s243
    %p247 = scmp.eq.s32.totalorder %s27, 0
    %p248 = por %p246, %p247
    %p249 = scmp.ne.s32.totalorder %s241, %s243
    %p250 = scmp.eq.s32.totalorder %s32, 1
    %p251 = por %p249, %p250
    %p252 = scmp.ne.s32.totalorder %s243, %s244
    %p253 = scmp.eq.s32.totalorder %s32, 0
    %p254 = por %p252, %p253
    %p255 = scmp.ne.s32.totalorder %s243, %s244
    %p256 = scmp.eq.s32.totalorder %s33, 1
    %p257 = por %p255, %p256
    %p259 = scmp.ne.s32.totalorder %s244, %s258
    %p260 = scmp.eq.s32.totalorder %s33, 0
    %p261 = por %p259, %p260
    %s263 = sadd.s32 %s262, 1
    %p266 = scmp.eq.s32.totalorder %s27, 1
    %p267 = scmp.ne.s32.totalorder %s262, %s264
    %p268 = scmp.eq.s32.totalorder %s27, 0
    %p269 = por %p267, %p268
    %p270 = scmp.ne.s32.totalorder %s262, %s264
    %p271 = scmp.eq.s32.totalorder %s32, 1
    %p272 = por %p270, %p271
    %p273 = scmp.ne.s32.totalorder %s264, %s265
    %p274 = scmp.eq.s32.totalorder %s32, 0
    %p275 = por %p273, %p274
    %p276 = scmp.ne.s32.totalorder %s264, %s265
    %p277 = scmp.eq.s32.totalorder %s33, 1
    %p278 = por %p276, %p277
    %p280 = scmp.ne.s32.totalorder %s265, %s279
    %p281 = scmp.eq.s32.totalorder %s33, 0
    %p282 = por %p280, %p281
    %s284 = sadd.s32 %s283, 1
    %p287 = scmp.eq.s32.totalorder %s27, 1
    %p288 = scmp.ne.s32.totalorder %s283, %s285
    %p289 = scmp.eq.s32.totalorder %s27, 0
    %p290 = por %p288, %p289
    %p291 = scmp.ne.s32.totalorder %s283, %s285
    %p292 = scmp.eq.s32.totalorder %s32, 1
    %p293 = por %p291, %p292
    %p294 = scmp.ne.s32.totalorder %s285, %s286
    %p295 = scmp.eq.s32.totalorder %s32, 0
    %p296 = por %p294, %p295
    %p297 = scmp.ne.s32.totalorder %s285, %s286
    %p298 = scmp.eq.s32.totalorder %s33, 1
    %p299 = por %p297, %p298
    %p301 = scmp.ne.s32.totalorder %s286, %s300
    %p302 = scmp.eq.s32.totalorder %s33, 0
    %p303 = por %p301, %p302
    %s305 = sadd.s32 %s304, 1
    %p308 = scmp.eq.s32.totalorder %s27, 1
    %p309 = scmp.ne.s32.totalorder %s304, %s306
    %p310 = scmp.eq.s32.totalorder %s27, 0
    %p311 = por %p309, %p310
    %p312 = scmp.ne.s32.totalorder %s304, %s306
    %p313 = scmp.eq.s32.totalorder %s32, 1
    %p314 = por %p312, %p313
    %p315 = scmp.ne.s32.totalorder %s306, %s307
    %p316 = scmp.eq.s32.totalorder %s32, 0
    %p317 = por %p315, %p316
    %p318 = scmp.ne.s32.totalorder %s306, %s307
    %p319 = scmp.eq.s32.totalorder %s33, 1
    %p320 = por %p318, %p319
    %p322 = scmp.ne.s32.totalorder %s307, %s321
    %p323 = scmp.eq.s32.totalorder %s33, 0
    %p324 = por %p322, %p323
    %s326 = sadd.s32 %s325, 1
    %p329 = scmp.eq.s32.totalorder %s27, 1
    %p330 = scmp.ne.s32.totalorder %s325, %s327
    %p331 = scmp.eq.s32.totalorder %s27, 0
    %p332 = por %p330, %p331
    %p333 = scmp.ne.s32.totalorder %s325, %s327
    %p334 = scmp.eq.s32.totalorder %s32, 1
    %p335 = por %p333, %p334
    %p336 = scmp.ne.s32.totalorder %s327, %s328
    %p337 = scmp.eq.s32.totalorder %s32, 0
    %p338 = por %p336, %p337
    %p339 = scmp.ne.s32.totalorder %s327, %s328
    %p340 = scmp.eq.s32.totalorder %s33, 1
    %p341 = por %p339, %p340
    %p343 = scmp.ne.s32.totalorder %s328, %s342
    %p344 = scmp.eq.s32.totalorder %s33, 0
    %p345 = por %p343, %p344
    %s347 = sadd.s32 %s346, 1
    %p350 = scmp.eq.s32.totalorder %s27, 1
    %p351 = scmp.ne.s32.totalorder %s346, %s348
    %p352 = scmp.eq.s32.totalorder %s27, 0
    %p353 = por %p351, %p352
    %p354 = scmp.ne.s32.totalorder %s346, %s348
    %p355 = scmp.eq.s32.totalorder %s32, 1
    %p356 = por %p354, %p355
    %p357 = scmp.ne.s32.totalorder %s348, %s349
    %p358 = scmp.eq.s32.totalorder %s32, 0
    %p359 = por %p357, %p358
    %p360 = scmp.ne.s32.totalorder %s348, %s349
    %p361 = scmp.eq.s32.totalorder %s33, 1
    %p362 = por %p360, %p361
    %p364 = scmp.ne.s32.totalorder %s349, %s363
    %p365 = scmp.eq.s32.totalorder %s33, 0
    %p366 = por %p364, %p365
    %s368 = sadd.s32 %s367, 1
    %p371 = scmp.eq.s32.totalorder %s27, 1
    %p372 = scmp.ne.s32.totalorder %s367, %s369
    %p373 = scmp.eq.s32.totalorder %s27, 0
    %p374 = por %p372, %p373
    %p375 = scmp.ne.s32.totalorder %s367, %s369
    %p376 = scmp.eq.s32.totalorder %s32, 1
    %p377 = por %p375, %p376
    %p378 = scmp.ne.s32.totalorder %s369, %s370
    %p379 = scmp.eq.s32.totalorder %s32, 0
    %p380 = por %p378, %p379
    %p381 = scmp.ne.s32.totalorder %s369, %s370
    %p382 = scmp.eq.s32.totalorder %s33, 1
    %p383 = por %p381, %p382
    %p385 = scmp.ne.s32.totalorder %s370, %s384
    %p386 = scmp.eq.s32.totalorder %s33, 0
    %p387 = por %p385, %p386
    %s389 = sadd.s32 %s388, 1
    %p392 = scmp.eq.s32.totalorder %s27, 1
    %p393 = scmp.ne.s32.totalorder %s388, %s390
    %p394 = scmp.eq.s32.totalorder %s27, 0
    %p395 = por %p393, %p394
    %p396 = scmp.ne.s32.totalorder %s388, %s390
    %p397 = scmp.eq.s32.totalorder %s32, 1
    %p398 = por %p396, %p397
    %p399 = scmp.ne.s32.totalorder %s390, %s391
    %p400 = scmp.eq.s32.totalorder %s32, 0
    %p401 = por %p399, %p400
    %p402 = scmp.ne.s32.totalorder %s390, %s391
    %p403 = scmp.eq.s32.totalorder %s33, 1
    %p404 = por %p402, %p403
    %p406 = scmp.ne.s32.totalorder %s391, %s405
    %p407 = scmp.eq.s32.totalorder %s33, 0
    %p408 = por %p406, %p407
    %s410 = sadd.s32 %s409, 1
    %p413 = scmp.eq.s32.totalorder %s27, 1
    %p414 = scmp.ne.s32.totalorder %s409, %s411
    %p415 = scmp.eq.s32.totalorder %s27, 0
    %p416 = por %p414, %p415
    %p417 = scmp.ne.s32.totalorder %s409, %s411
    %p418 = scmp.eq.s32.totalorder %s32, 1
    %p419 = por %p417, %p418
    %p420 = scmp.ne.s32.totalorder %s411, %s412
    %p421 = scmp.eq.s32.totalorder %s32, 0
    %p422 = por %p420, %p421
    %p423 = scmp.ne.s32.totalorder %s411, %s412
    %p424 = scmp.eq.s32.totalorder %s33, 1
    %p425 = por %p423, %p424
    %p427 = scmp.ne.s32.totalorder %s412, %s426
    %p428 = scmp.eq.s32.totalorder %s33, 0
    %p429 = por %p427, %p428
    %s431 = sadd.s32 %s430, 1
    %p434 = scmp.eq.s32.totalorder %s27, 1
    %p435 = scmp.ne.s32.totalorder %s430, %s432
    %p436 = scmp.eq.s32.totalorder %s27, 0
    %p437 = por %p435, %p436
    %p438 = scmp.ne.s32.totalorder %s430, %s432
    %p439 = scmp.eq.s32.totalorder %s32, 1
    %p440 = por %p438, %p439
    %p441 = scmp.ne.s32.totalorder %s432, %s433
    %p442 = scmp.eq.s32.totalorder %s32, 0
    %p443 = por %p441, %p442
    %p444 = scmp.ne.s32.totalorder %s432, %s433
    %p445 = scmp.eq.s32.totalorder %s33, 1
    %p446 = por %p444, %p445
    %p448 = scmp.ne.s32.totalorder %s433, %s447
    %p449 = scmp.eq.s32.totalorder %s33, 0
    %p450 = por %p448, %p449
    %s451 = ssub.s32 %s34, %s46
    %s452 = ssub.s32 %s35, %s42
    %s453 = sor.u32 %s451, %s452
    %p454 = scmp.eq.s32.totalorder %s453, 0
    %s456 = sadd.s32 %s455, 1
    %s457 = scalar_select %p454, %s455, %s456
    %p460 = pneg %p454
    %p461 = scmp.eq.s32.totalorder %s27, 1
    %p462 = por %p460, %p461
    %p463 = scmp.ne.s32.totalorder %s455, %s458
    %p464 = scmp.eq.s32.totalorder %s27, 0
    %p465 = por %p463, %p464
    %p466 = scmp.ne.s32.totalorder %s455, %s458
    %p467 = scmp.eq.s32.totalorder %s32, 1
    %p468 = por %p466, %p467
    %p469 = scmp.ne.s32.totalorder %s458, %s459
    %p470 = scmp.eq.s32.totalorder %s32, 0
    %p471 = por %p469, %p470
    %p472 = scmp.ne.s32.totalorder %s458, %s459
    %p473 = scmp.eq.s32.totalorder %s33, 1
    %p474 = por %p472, %p473
    %p476 = scmp.ne.s32.totalorder %s459, %s475
    %p477 = scmp.eq.s32.totalorder %s33, 0
    %p478 = por %p476, %p477
    %s479 = ssub.s32 %s34, %s46
    %s480 = ssub.s32 %s35, %s42
    %s481 = sor.u32 %s479, %s480
    %p482 = scmp.eq.s32.totalorder %s481, 0
    %s484 = sadd.s32 %s483, 1
    %s485 = scalar_select %p482, %s483, %s484
    %p488 = pneg %p482
    %p489 = scmp.eq.s32.totalorder %s27, 1
    %p490 = por %p488, %p489
    %p491 = scmp.ne.s32.totalorder %s483, %s486
    %p492 = scmp.eq.s32.totalorder %s27, 0
    %p493 = por %p491, %p492
    %p494 = scmp.ne.s32.totalorder %s483, %s486
    %p495 = scmp.eq.s32.totalorder %s32, 1
    %p496 = por %p494, %p495
    %p497 = scmp.ne.s32.totalorder %s486, %s487
    %p498 = scmp.eq.s32.totalorder %s32, 0
    %p499 = por %p497, %p498
    %p500 = scmp.ne.s32.totalorder %s486, %s487
    %p501 = scmp.eq.s32.totalorder %s33, 1
    %p502 = por %p500, %p501
    %p504 = scmp.ne.s32.totalorder %s487, %s503
    %p505 = scmp.eq.s32.totalorder %s33, 0
    %p506 = por %p504, %p505
    %p507 = scmp.le.s32.totalorder 1, %s27
    %p508 = scmp.lt.s32.totalorder %s27, 3
    %p509 = pnand %p507, %p508
    %p510 = pneg %p509
    // Predicated region
    $region9: #{_lambda_.16} parent=5 // pred_check
      _
    $region10: #{_lambda_.16} parent=5 // pred_check_branch
      %512 = sbr.rel (%p509) target = $region12
    $region11: #{_lambda_.16} parent=5 // pred_region
      %s513 = ssub.s32 %s27, 1
      // Predicated region
      $region13: #{_lambda_.16} parent=11 // pred_check
        %p514 = pneg %p86
      $region14: #{_lambda_.16} parent=11 // pred_check_branch
        %516 = sbr.rel (%p514) target = $region16
      $region15: #{_lambda_.16} parent=11 // pred_region
        _
      $region16: #{_lambda_.16} parent=11 // pred_fallthru
        _
      // Predicated region
      $region17: #{_lambda_.16} parent=11 // pred_check
        %p517 = pneg %p107
      $region18: #{_lambda_.16} parent=11 // pred_check_branch
        %519 = sbr.rel (%p517) target = $region20
      $region19: #{_lambda_.16} parent=11 // pred_region
        _
      $region20: #{_lambda_.16} parent=11 // pred_fallthru
        _
      // Predicated region
      $region21: #{_lambda_.16} parent=11 // pred_check
        %p520 = pneg %p128
      $region22: #{_lambda_.16} parent=11 // pred_check_branch
        %522 = sbr.rel (%p520) target = $region24
      $region23: #{_lambda_.16} parent=11 // pred_region
        _
      $region24: #{_lambda_.16} parent=11 // pred_fallthru
        _
      // Predicated region
      $region25: #{_lambda_.16} parent=11 // pred_check
        %p523 = pneg %p149
      $region26: #{_lambda_.16} parent=11 // pred_check_branch
        %525 = sbr.rel (%p523) target = $region28
      $region27: #{_lambda_.16} parent=11 // pred_region
        _
      $region28: #{_lambda_.16} parent=11 // pred_fallthru
        _
      // Predicated region
      $region29: #{_lambda_.16} parent=11 // pred_check
        %p526 = pneg %p170
      $region30: #{_lambda_.16} parent=11 // pred_check_branch
        %528 = sbr.rel (%p526) target = $region32
      $region31: #{_lambda_.16} parent=11 // pred_region
        _
      $region32: #{_lambda_.16} parent=11 // pred_fallthru
        _
      // Predicated region
      $region33: #{_lambda_.16} parent=11 // pred_check
        %p529 = pneg %p191
      $region34: #{_lambda_.16} parent=11 // pred_check_branch
        %531 = sbr.rel (%p529) target = $region36
      $region35: #{_lambda_.16} parent=11 // pred_region
        _
      $region36: #{_lambda_.16} parent=11 // pred_fallthru
        _
      // Predicated region
      $region37: #{_lambda_.16} parent=11 // pred_check
        %p532 = pneg %p212
      $region38: #{_lambda_.16} parent=11 // pred_check_branch
        %534 = sbr.rel (%p532) target = $region40
      $region39: #{_lambda_.16} parent=11 // pred_region
        _
      $region40: #{_lambda_.16} parent=11 // pred_fallthru
        _
      // Predicated region
      $region41: #{_lambda_.16} parent=11 // pred_check
        %p535 = pneg %p233
      $region42: #{_lambda_.16} parent=11 // pred_check_branch
        %537 = sbr.rel (%p535) target = $region44
      $region43: #{_lambda_.16} parent=11 // pred_region
        _
      $region44: #{_lambda_.16} parent=11 // pred_fallthru
        _
      // Predicated region
      $region45: #{_lambda_.16} parent=11 // pred_check
        %p538 = pneg %p254
      $region46: #{_lambda_.16} parent=11 // pred_check_branch
        %540 = sbr.rel (%p538) target = $region48
      $region47: #{_lambda_.16} parent=11 // pred_region
        _
      $region48: #{_lambda_.16} parent=11 // pred_fallthru
        _
      // Predicated region
      $region49: #{_lambda_.16} parent=11 // pred_check
        %p541 = pneg %p275
      $region50: #{_lambda_.16} parent=11 // pred_check_branch
        %543 = sbr.rel (%p541) target = $region52
      $region51: #{_lambda_.16} parent=11 // pred_region
        _
      $region52: #{_lambda_.16} parent=11 // pred_fallthru
        _
      // Predicated region
      $region53: #{_lambda_.16} parent=11 // pred_check
        %p544 = pneg %p296
      $region54: #{_lambda_.16} parent=11 // pred_check_branch
        %546 = sbr.rel (%p544) target = $region56
      $region55: #{_lambda_.16} parent=11 // pred_region
        _
      $region56: #{_lambda_.16} parent=11 // pred_fallthru
        _
      // Predicated region
      $region57: #{_lambda_.16} parent=11 // pred_check
        %p547 = pneg %p317
      $region58: #{_lambda_.16} parent=11 // pred_check_branch
        %549 = sbr.rel (%p547) target = $region60
      $region59: #{_lambda_.16} parent=11 // pred_region
        _
      $region60: #{_lambda_.16} parent=11 // pred_fallthru
        _
      // Predicated region
      $region61: #{_lambda_.16} parent=11 // pred_check
        %p550 = pneg %p338
      $region62: #{_lambda_.16} parent=11 // pred_check_branch
        %552 = sbr.rel (%p550) target = $region64
      $region63: #{_lambda_.16} parent=11 // pred_region
        _
      $region64: #{_lambda_.16} parent=11 // pred_fallthru
        _
      // Predicated region
      $region65: #{_lambda_.16} parent=11 // pred_check
        %p553 = pneg %p359
      $region66: #{_lambda_.16} parent=11 // pred_check_branch
        %555 = sbr.rel (%p553) target = $region68
      $region67: #{_lambda_.16} parent=11 // pred_region
        _
      $region68: #{_lambda_.16} parent=11 // pred_fallthru
        _
      // Predicated region
      $region69: #{_lambda_.16} parent=11 // pred_check
        %p556 = pneg %p380
      $region70: #{_lambda_.16} parent=11 // pred_check_branch
        %558 = sbr.rel (%p556) target = $region72
      $region71: #{_lambda_.16} parent=11 // pred_region
        _
      $region72: #{_lambda_.16} parent=11 // pred_fallthru
        _
      // Predicated region
      $region73: #{_lambda_.16} parent=11 // pred_check
        %p559 = pneg %p401
      $region74: #{_lambda_.16} parent=11 // pred_check_branch
        %561 = sbr.rel (%p559) target = $region76
      $region75: #{_lambda_.16} parent=11 // pred_region
        _
      $region76: #{_lambda_.16} parent=11 // pred_fallthru
        _
      // Predicated region
      $region77: #{_lambda_.16} parent=11 // pred_check
        %p562 = pneg %p422
      $region78: #{_lambda_.16} parent=11 // pred_check_branch
        %564 = sbr.rel (%p562) target = $region80
      $region79: #{_lambda_.16} parent=11 // pred_region
        _
      $region80: #{_lambda_.16} parent=11 // pred_fallthru
        _
      // Predicated region
      $region81: #{_lambda_.16} parent=11 // pred_check
        %p565 = pneg %p443
      $region82: #{_lambda_.16} parent=11 // pred_check_branch
        %567 = sbr.rel (%p565) target = $region84
      $region83: #{_lambda_.16} parent=11 // pred_region
        _
      $region84: #{_lambda_.16} parent=11 // pred_fallthru
        _
    $region12: #{_lambda_.16} parent=5 // pred_fallthru
      _
    %p568 = scmp.lt.s32.totalorder %s27, 2
    // Predicated region
    $region85: #{_lambda_.16} parent=5 // pred_check
      %p569 = pneg %p568
    $region86: #{_lambda_.16} parent=5 // pred_check_branch
      %571 = sbr.rel (%p569) target = $region88
    $region87: #{_lambda_.16} parent=5 // pred_region
      // Predicated region
      $region89: #{_lambda_.16} parent=87 // pred_check
        %p572 = pneg %p59
      $region90: #{_lambda_.16} parent=87 // pred_check_branch
        %574 = sbr.rel (%p572) target = $region92
      $region91: #{_lambda_.16} parent=87 // pred_region
        %p575 = scmp.lt.s32.totalorder %s34, 1
        %s576 = scalar_select %p575, %s34, 1
        %s577 = smul.addr %s576, 8
        %s578 = scalar_lea.vmem %s0, %s577
      $region92: #{_lambda_.16} parent=87 // pred_fallthru
        _
    $region88: #{_lambda_.16} parent=5 // pred_fallthru
      _
    %p579 = scmp.le.s32.totalorder 1, %s27
    %p580 = scmp.lt.s32.totalorder %s27, 3
    %p581 = pnand %p579, %p580
    %p582 = pneg %p581
    // Predicated region
    $region93: #{_lambda_.16} parent=5 // pred_check
      _
    $region94: #{_lambda_.16} parent=5 // pred_check_branch
      %584 = sbr.rel (%p581) target = $region96
    $region95: #{_lambda_.16} parent=5 // pred_region
      %s585 = ssub.s32 %s27, 1
      %p586 = scmp.lt.s32.totalorder %s36, 1
      %s587 = scalar_select %p586, %s36, 1
      %s588 = smul.addr %s587, 8
      %s589 = scalar_lea.vmem %s0, %s588
      %p590 = pneg %p65
      %p591 = pneg %p62
      %p592 = pneg %p86
      %p593 = pneg %p83
      %p594 = pneg %p107
      %p595 = pneg %p104
      %p596 = pneg %p128
      %p597 = pneg %p125
      %p598 = pneg %p149
      %p599 = pneg %p146
      %p600 = pneg %p170
      %p601 = pneg %p167
      %p602 = pneg %p191
      %p603 = pneg %p188
      %p604 = pneg %p212
      %p605 = pneg %p209
      %p606 = pneg %p233
      %p607 = pneg %p230
      %p608 = pneg %p254
      %p609 = pneg %p251
      %p610 = pneg %p275
      %p611 = pneg %p272
      %p612 = pneg %p296
      %p613 = pneg %p293
      %p614 = pneg %p317
      %p615 = pneg %p314
      %p616 = pneg %p338
      %p617 = pneg %p335
      %p618 = pneg %p359
      %p619 = pneg %p356
      %p620 = pneg %p380
      %p621 = pneg %p377
      %p622 = pneg %p401
      %p623 = pneg %p398
      %p624 = pneg %p422
      %p625 = pneg %p419
      %p626 = pneg %p443
      %p627 = pneg %p440
      %p628 = pneg %p471
      %p629 = pneg %p468
      %p630 = scmp.lt.s32.totalorder %s36, 1
      %s631 = scalar_select %p630, %s36, 1
      %p632 = scmp.lt.s32.totalorder %s37, 0
      %s633 = scalar_select %p632, %s37, 0
      %s634 = sadd.s32 %s633, %s631
      %s635 = smul.addr %s634, 8
      %s636 = scalar_lea.vmem %s19, %s635
      %p637 = pneg %p499
      %p638 = pneg %p496
      %p639 = scmp.lt.s32.totalorder %s36, 1
      %s640 = scalar_select %p639, %s36, 1
      %p641 = scmp.lt.s32.totalorder %s37, 0
      %s642 = scalar_select %p641, %s37, 0
      %s643 = sadd.s32 %s642, %s640
      %s644 = smul.addr %s643, 8
      %s645 = scalar_lea.vmem %s20, %s644
      %p646 = scmp.lt.s32.totalorder %s36, 1
      %s647 = scalar_select %p646, %s36, 1
      %s648 = smul.addr %s647, 8
      %s649 = scalar_lea.vmem %s0, %s648
      %p650 = scmp.lt.s32.totalorder %s36, 1
      %s651 = scalar_select %p650, %s36, 1
      %p652 = scmp.lt.s32.totalorder %s37, 0
      %s653 = scalar_select %p652, %s37, 0
      %s654 = sadd.s32 %s653, %s651
      %s655 = smul.addr %s654, 8
      %s656 = scalar_lea.vmem %s19, %s655
      %p657 = scmp.lt.s32.totalorder %s36, 1
      %s658 = scalar_select %p657, %s36, 1
      %p659 = scmp.lt.s32.totalorder %s37, 0
      %s660 = scalar_select %p659, %s37, 0
      %s661 = sadd.s32 %s660, %s658
      %s662 = smul.addr %s661, 8
      %s663 = scalar_lea.vmem %s20, %s662
      %v665 = vld [vmem:[%s649] sm:$0xff]
      %vm666 = vcmask 261120
      %v667 = vsel %vm666, %v665, 0.0
      %668 = vadd.xlane.f32.xlu0 %v667
      %v669 = vpop.xlane.xlu0 %668
      %v670 = vrcp.pop 32.0
      %v671 = vmul.f32 32.0, %v670
      %v672 = vsub.f32 1.0, %v671
      %v673 = vmul.f32 %v670, %v672
      %v674 = vadd.f32 %v670, %v673
      %vm675 = vweird.f32 %v670
      %v676 = vsel %vm675, %v670, %v674
      %v677 = vmul.f32 %v669, %v676
      %v678 = vsub.f32 %v665, %v677
      %v679 = vmul.f32 %v678, %v678
      %v680 = vsel %vm666, %v679, 0.0
      %681 = vadd.xlane.f32.xlu0 %v680
      %v682 = vpop.xlane.xlu0 %681
      %v683 = vmul.f32 %v682, %v676
      %v684 = vadd.f32 %v683, 1e-05
      %v685 = vrsqrt.pop %v684
      %v686 = vmul.f32 %v685, %v684
      %v687 = vmul.f32 %v686, %v685
      %v688 = vmul.f32 0.5, %v687
      %v689 = vsub.f32 1.5, %v688
      %v690 = vmul.f32 %v685, %v689
      %vm691 = vweird.f32 %v684
      %vm692 = vweird.f32 %v685
      %vm693 = vmor %vm691, %vm692
      %v694 = vsel %vm693, %v685, %v690
      %v695 = vmul.f32 %v678, %v694
      %v696 = vld [vmem:[%s1] sm:$0x1]
      %v698 = vperm.slane %v696, 0
      %v700 = vmul.f32 %v695, %v698
      %v701 = vld [vmem:[%s2] sm:$0x1]
      %v703 = vperm.slane %v701, 0
      %v705 = vadd.f32 %v700, %v703
      %v706 = vpack.c.bf16 %v705, %v705
      %v707 = vld [vmem:[%s3] sm:$0xf]
      %v708 = vld [vmem:[%s3 + $0x4] sm:$0xf]
      %v709 = vld [vmem:[%s3 + $0x8] sm:$0xf]
      %v710 = vld [vmem:[%s3 + $0xc] sm:$0xf]
      %v711 = vld [vmem:[%s4] sm:$0x1]
      %v713 = vperm.slane %v711, 0
      %v719 = vunpack.c.l.b16 %v707
      %v720 = vunpack.c.l.b16 %v708
      %v721 = vunpack.c.l.b16 %v709
      %v722 = vunpack.c.l.b16 %v710
      %v723 = vpack.c.b16 %v720, %v719
      %v724 = vpack.c.b16 %v722, %v721
      %v728 = vsel %vm666, %v706, 0
      %730 = vmatpush.bf16.msra.mxu0 0
      %731 = vmatpush.bf16.msra.mxu0 0
      %732 = vmatpush.bf16.msra.mxu0 0
      %733 = vmatpush.bf16.msra.mxu0 0
      %734 = vmatpush.bf16.msra.mxu0 0
      %735 = vmatpush.bf16.msra.mxu0 0
      %736 = vmatpush.bf16.msra.mxu0 %v724
      %737 = vmatpush.bf16.msra.mxu0 %v723
      %738 = vmatmul.bf16.gmra.mxu0 %v728
      %v739 = vpop.f32.mrf.mxu0
      %v740 = vadd.f32 %v713, %v739
      %v741 = vpop.f32.mrf.mxu0
      %742 = vdwg.mxu0
      %v743 = vld [vmem:[%s5] sm:$0xf]
      %v744 = vld [vmem:[%s5 + $0x4] sm:$0xf]
      %v745 = vld [vmem:[%s5 + $0x8] sm:$0xf]
      %v746 = vld [vmem:[%s5 + $0xc] sm:$0xf]
      %v747 = vld [vmem:[%s6] sm:$0x1]
      %v749 = vperm.slane %v747, 0
      %v755 = vunpack.c.l.b16 %v743
      %v756 = vunpack.c.l.b16 %v744
      %v757 = vunpack.c.l.b16 %v745
      %v758 = vunpack.c.l.b16 %v746
      %v759 = vpack.c.b16 %v756, %v755
      %v760 = vpack.c.b16 %v758, %v757
      %763 = vmatpush.bf16.msra.mxu0 0
      %764 = vmatpush.bf16.msra.mxu0 0
      %765 = vmatpush.bf16.msra.mxu0 0
      %766 = vmatpush.bf16.msra.mxu0 0
      %767 = vmatpush.bf16.msra.mxu0 0
      %768 = vmatpush.bf16.msra.mxu0 0
      %769 = vmatpush.bf16.msra.mxu0 %v760
      %770 = vmatpush.bf16.msra.mxu0 %v759
      %771 = vmatmul.bf16.gmra.mxu0 %v728
      %v772 = vpop.f32.mrf.mxu0
      %v773 = vadd.f32 %v749, %v772
      %v774 = vpop.f32.mrf.mxu0
      %775 = vdwg.mxu0
      %v776 = vld [vmem:[%s7] sm:$0xf]
      %v777 = vld [vmem:[%s7 + $0x4] sm:$0xf]
      %v778 = vld [vmem:[%s7 + $0x8] sm:$0xf]
      %v779 = vld [vmem:[%s7 + $0xc] sm:$0xf]
      %v780 = vld [vmem:[%s8] sm:$0x1]
      %v782 = vperm.slane %v780, 0
      %v788 = vunpack.c.l.b16 %v776
      %v789 = vunpack.c.l.b16 %v777
      %v790 = vunpack.c.l.b16 %v778
      %v791 = vunpack.c.l.b16 %v779
      %v792 = vpack.c.b16 %v789, %v788
      %v793 = vpack.c.b16 %v791, %v790
      %796 = vmatpush.bf16.msra.mxu0 0
      %797 = vmatpush.bf16.msra.mxu0 0
      %798 = vmatpush.bf16.msra.mxu0 0
      %799 = vmatpush.bf16.msra.mxu0 0
      %800 = vmatpush.bf16.msra.mxu0 0
      %801 = vmatpush.bf16.msra.mxu0 0
      %802 = vmatpush.bf16.msra.mxu0 %v793
      %803 = vmatpush.bf16.msra.mxu0 %v792
      %804 = vmatmul.bf16.gmra.mxu0 %v728
      %v805 = vpop.f32.mrf.mxu0
      %v806 = vadd.f32 %v782, %v805
      %v807 = vpop.f32.mrf.mxu0
      %808 = vdwg.mxu0
      %v809 = vpack.c.bf16 %v740, %v740
      %811 = vrot.lane.b32.xlu0 %v809, 120
      %v812 = vpop.permute.xlu0 %811
      %813 = vrot.lane.b32.xlu0 %v809, 112
      %v814 = vpop.permute.xlu0 %813
      %815 = vrot.lane.b32.xlu0 %v809, 104
      %v816 = vpop.permute.xlu0 %815
      %v819 = vpack.i.b16 %v812, %v809
      %v820 = vshrl.u32 %v809, 16
      %v821 = vshrl.u32 %v812, 16
      %v822 = vpack.i.b16 %v821, %v820
      %v825 = vpack.i.b16 %v816, %v814
      %v826 = vshrl.u32 %v814, 16
      %v827 = vshrl.u32 %v816, 16
      %v828 = vpack.i.b16 %v827, %v826
      %v831 = vunpack.c.l.s4 1983009808
      %v832 = vunpack.c.0.s8 %v831
      %v833 = vperm.slane %v819, %v832
      %v836 = vunpack.c.l.s4 1983009808
      %v837 = vunpack.c.0.s8 %v836
      %v838 = vperm.slane %v825, %v837
      %v839 = vrot.slane %v838, 4
      %vm840 = vcmask 1047556
      %v841 = vsel %vm840, %v839, %v833
      %v842 = vrot.slane %v833, 4
      %v843 = vsel %vm840, %v838, %v842
      %v845 = vunpack.c.l.s4 1934713408
      %v846 = vunpack.c.0.s8 %v845
      %v847 = vperm.slane %v841, %v846
      %v849 = vunpack.c.l.s4 1934713408
      %v850 = vunpack.c.0.s8 %v849
      %v851 = vperm.slane %v843, %v850
      %v852 = vrot.slane %v847, 4
      %v853 = vsel %vm840, 0, %v852
      %v854 = vrot.slane %v851, 4
      %v855 = vsel %vm840, 0, %v854
      %v858 = vunpack.c.l.s4 1983009808
      %v859 = vunpack.c.0.s8 %v858
      %v860 = vperm.slane %v822, %v859
      %v863 = vunpack.c.l.s4 1983009808
      %v864 = vunpack.c.0.s8 %v863
      %v865 = vperm.slane %v828, %v864
      %v866 = vrot.slane %v865, 4
      %v867 = vsel %vm840, %v866, %v860
      %v868 = vrot.slane %v860, 4
      %v869 = vsel %vm840, %v865, %v868
      %v871 = vunpack.c.l.s4 1934713408
      %v872 = vunpack.c.0.s8 %v871
      %v873 = vperm.slane %v867, %v872
      %v875 = vunpack.c.l.s4 1934713408
      %v876 = vunpack.c.0.s8 %v875
      %v877 = vperm.slane %v869, %v876
      %v878 = vrot.slane %v873, 4
      %v879 = vsel %vm840, 0, %v878
      %v880 = vrot.slane %v877, 4
      %v881 = vsel %vm840, 0, %v880
      %v882 = vsel %vm840, %v854, %v847
      %v884 = vunpack.c.l.s4 1983009808
      %v885 = vunpack.c.0.s8 %v884
      %v886 = vperm.slane %v882, %v885
      %v887 = vrot.slane %v855, 4
      %v888 = vsel %vm840, %v887, %v853
      %v890 = vunpack.c.l.s4 1983009808
      %v891 = vunpack.c.0.s8 %v890
      %v892 = vperm.slane %v888, %v891
      %v893 = vrot.slane %v892, 4
      %v894 = vsel %vm840, %v893, %v886
      %v896 = vunpack.c.l.s4 1934713408
      %v897 = vunpack.c.0.s8 %v896
      %v898 = vperm.slane %v894, %v897
      %v899 = vrot.slane %v898, 4
      %v900 = vsel %vm840, 0, %v899
      %v901 = vsel %vm840, %v880, %v873
      %v903 = vunpack.c.l.s4 1983009808
      %v904 = vunpack.c.0.s8 %v903
      %v905 = vperm.slane %v901, %v904
      %v906 = vrot.slane %v881, 4
      %v907 = vsel %vm840, %v906, %v879
      %v909 = vunpack.c.l.s4 1983009808
      %v910 = vunpack.c.0.s8 %v909
      %v911 = vperm.slane %v907, %v910
      %v912 = vrot.slane %v911, 4
      %v913 = vsel %vm840, %v912, %v905
      %v915 = vunpack.c.l.s4 1934713408
      %v916 = vunpack.c.0.s8 %v915
      %v917 = vperm.slane %v913, %v916
      %v918 = vrot.slane %v917, 4
      %v919 = vsel %vm840, 0, %v918
      %v922 = vpack.i.b16 %v917, %v898
      %v923 = vshrl.u32 %v898, 16
      %v924 = vshrl.u32 %v917, 16
      %v925 = vpack.i.b16 %v924, %v923
      %v928 = vpack.i.b16 %v919, %v900
      %v929 = vshrl.u32 %v900, 16
      %v930 = vshrl.u32 %v919, 16
      %v931 = vpack.i.b16 %v930, %v929
      %v932 = vpack.c.bf16 %v773, %v773
      %934 = vrot.lane.b32.xlu0 %v932, 120
      %v935 = vpop.permute.xlu0 %934
      %936 = vrot.lane.b32.xlu0 %v932, 112
      %v937 = vpop.permute.xlu0 %936
      %938 = vrot.lane.b32.xlu0 %v932, 104
      %v939 = vpop.permute.xlu0 %938
      %v942 = vpack.i.b16 %v935, %v932
      %v943 = vshrl.u32 %v932, 16
      %v944 = vshrl.u32 %v935, 16
      %v945 = vpack.i.b16 %v944, %v943
      %v948 = vpack.i.b16 %v939, %v937
      %v949 = vshrl.u32 %v937, 16
      %v950 = vshrl.u32 %v939, 16
      %v951 = vpack.i.b16 %v950, %v949
      %v954 = vunpack.c.l.s4 1983009808
      %v955 = vunpack.c.0.s8 %v954
      %v956 = vperm.slane %v942, %v955
      %v959 = vunpack.c.l.s4 1983009808
      %v960 = vunpack.c.0.s8 %v959
      %v961 = vperm.slane %v948, %v960
      %v962 = vrot.slane %v961, 4
      %v963 = vsel %vm840, %v962, %v956
      %v964 = vrot.slane %v956, 4
      %v965 = vsel %vm840, %v961, %v964
      %v967 = vunpack.c.l.s4 1934713408
      %v968 = vunpack.c.0.s8 %v967
      %v969 = vperm.slane %v963, %v968
      %v971 = vunpack.c.l.s4 1934713408
      %v972 = vunpack.c.0.s8 %v971
      %v973 = vperm.slane %v965, %v972
      %v974 = vrot.slane %v969, 4
      %v975 = vsel %vm840, 0, %v974
      %v976 = vrot.slane %v973, 4
      %v977 = vsel %vm840, 0, %v976
      %v980 = vunpack.c.l.s4 1983009808
      %v981 = vunpack.c.0.s8 %v980
      %v982 = vperm.slane %v945, %v981
      %v985 = vunpack.c.l.s4 1983009808
      %v986 = vunpack.c.0.s8 %v985
      %v987 = vperm.slane %v951, %v986
      %v988 = vrot.slane %v987, 4
      %v989 = vsel %vm840, %v988, %v982
      %v990 = vrot.slane %v982, 4
      %v991 = vsel %vm840, %v987, %v990
      %v993 = vunpack.c.l.s4 1934713408
      %v994 = vunpack.c.0.s8 %v993
      %v995 = vperm.slane %v989, %v994
      %v997 = vunpack.c.l.s4 1934713408
      %v998 = vunpack.c.0.s8 %v997
      %v999 = vperm.slane %v991, %v998
      %v1000 = vrot.slane %v995, 4
      %v1001 = vsel %vm840, 0, %v1000
      %v1002 = vrot.slane %v999, 4
      %v1003 = vsel %vm840, 0, %v1002
      %v1004 = vsel %vm840, %v976, %v969
      %v1006 = vunpack.c.l.s4 1983009808
      %v1007 = vunpack.c.0.s8 %v1006
      %v1008 = vperm.slane %v1004, %v1007
      %v1009 = vrot.slane %v977, 4
      %v1010 = vsel %vm840, %v1009, %v975
      %v1012 = vunpack.c.l.s4 1983009808
      %v1013 = vunpack.c.0.s8 %v1012
      %v1014 = vperm.slane %v1010, %v1013
      %v1015 = vrot.slane %v1014, 4
      %v1016 = vsel %vm840, %v1015, %v1008
      %v1018 = vunpack.c.l.s4 1934713408
      %v1019 = vunpack.c.0.s8 %v1018
      %v1020 = vperm.slane %v1016, %v1019
      %v1021 = vrot.slane %v1020, 4
      %v1022 = vsel %vm840, 0, %v1021
      %v1023 = vsel %vm840, %v1002, %v995
      %v1025 = vunpack.c.l.s4 1983009808
      %v1026 = vunpack.c.0.s8 %v1025
      %v1027 = vperm.slane %v1023, %v1026
      %v1028 = vrot.slane %v1003, 4
      %v1029 = vsel %vm840, %v1028, %v1001
      %v1031 = vunpack.c.l.s4 1983009808
      %v1032 = vunpack.c.0.s8 %v1031
      %v1033 = vperm.slane %v1029, %v1032
      %v1034 = vrot.slane %v1033, 4
      %v1035 = vsel %vm840, %v1034, %v1027
      %v1037 = vunpack.c.l.s4 1934713408
      %v1038 = vunpack.c.0.s8 %v1037
      %v1039 = vperm.slane %v1035, %v1038
      %v1040 = vrot.slane %v1039, 4
      %v1041 = vsel %vm840, 0, %v1040
      %v1044 = vpack.i.b16 %v1039, %v1020
      %v1045 = vshrl.u32 %v1020, 16
      %v1046 = vshrl.u32 %v1039, 16
      %v1047 = vpack.i.b16 %v1046, %v1045
      %v1050 = vpack.i.b16 %v1041, %v1022
      %v1051 = vshrl.u32 %v1022, 16
      %v1052 = vshrl.u32 %v1041, 16
      %v1053 = vpack.i.b16 %v1052, %v1051
      %v1054 = vpack.c.bf16 %v806, %v806
      %1056 = vrot.lane.b32.xlu0 %v1054, 120
      %v1057 = vpop.permute.xlu0 %1056
      %1058 = vrot.lane.b32.xlu0 %v1054, 112
      %v1059 = vpop.permute.xlu0 %1058
      %1060 = vrot.lane.b32.xlu0 %v1054, 104
      %v1061 = vpop.permute.xlu0 %1060
      %v1064 = vpack.i.b16 %v1057, %v1054
      %v1065 = vshrl.u32 %v1054, 16
      %v1066 = vshrl.u32 %v1057, 16
      %v1067 = vpack.i.b16 %v1066, %v1065
      %v1070 = vpack.i.b16 %v1061, %v1059
      %v1071 = vshrl.u32 %v1059, 16
      %v1072 = vshrl.u32 %v1061, 16
      %v1073 = vpack.i.b16 %v1072, %v1071
      %v1076 = vunpack.c.l.s4 1983009808
      %v1077 = vunpack.c.0.s8 %v1076
      %v1078 = vperm.slane %v1064, %v1077
      %v1081 = vunpack.c.l.s4 1983009808
      %v1082 = vunpack.c.0.s8 %v1081
      %v1083 = vperm.slane %v1070, %v1082
      %v1084 = vrot.slane %v1083, 4
      %v1085 = vsel %vm840, %v1084, %v1078
      %v1086 = vrot.slane %v1078, 4
      %v1087 = vsel %vm840, %v1083, %v1086
      %v1089 = vunpack.c.l.s4 1934713408
      %v1090 = vunpack.c.0.s8 %v1089
      %v1091 = vperm.slane %v1085, %v1090
      %v1093 = vunpack.c.l.s4 1934713408
      %v1094 = vunpack.c.0.s8 %v1093
      %v1095 = vperm.slane %v1087, %v1094
      %v1096 = vrot.slane %v1091, 4
      %v1097 = vsel %vm840, 0, %v1096
      %v1098 = vrot.slane %v1095, 4
      %v1099 = vsel %vm840, 0, %v1098
      %v1102 = vunpack.c.l.s4 1983009808
      %v1103 = vunpack.c.0.s8 %v1102
      %v1104 = vperm.slane %v1067, %v1103
      %v1107 = vunpack.c.l.s4 1983009808
      %v1108 = vunpack.c.0.s8 %v1107
      %v1109 = vperm.slane %v1073, %v1108
      %v1110 = vrot.slane %v1109, 4
      %v1111 = vsel %vm840, %v1110, %v1104
      %v1112 = vrot.slane %v1104, 4
      %v1113 = vsel %vm840, %v1109, %v1112
      %v1115 = vunpack.c.l.s4 1934713408
      %v1116 = vunpack.c.0.s8 %v1115
      %v1117 = vperm.slane %v1111, %v1116
      %v1119 = vunpack.c.l.s4 1934713408
      %v1120 = vunpack.c.0.s8 %v1119
      %v1121 = vperm.slane %v1113, %v1120
      %v1122 = vrot.slane %v1117, 4
      %v1123 = vsel %vm840, 0, %v1122
      %v1124 = vrot.slane %v1121, 4
      %v1125 = vsel %vm840, 0, %v1124
      %v1126 = vsel %vm840, %v1098, %v1091
      %v1128 = vunpack.c.l.s4 1983009808
      %v1129 = vunpack.c.0.s8 %v1128
      %v1130 = vperm.slane %v1126, %v1129
      %v1131 = vrot.slane %v1099, 4
      %v1132 = vsel %vm840, %v1131, %v1097
      %v1134 = vunpack.c.l.s4 1983009808
      %v1135 = vunpack.c.0.s8 %v1134
      %v1136 = vperm.slane %v1132, %v1135
      %v1137 = vrot.slane %v1136, 4
      %v1138 = vsel %vm840, %v1137, %v1130
      %v1140 = vunpack.c.l.s4 1934713408
      %v1141 = vunpack.c.0.s8 %v1140
      %v1142 = vperm.slane %v1138, %v1141
      %v1143 = vrot.slane %v1142, 4
      %v1144 = vsel %vm840, 0, %v1143
      %v1145 = vsel %vm840, %v1124, %v1117
      %v1147 = vunpack.c.l.s4 1983009808
      %v1148 = vunpack.c.0.s8 %v1147
      %v1149 = vperm.slane %v1145, %v1148
      %v1150 = vrot.slane %v1125, 4
      %v1151 = vsel %vm840, %v1150, %v1123
      %v1153 = vunpack.c.l.s4 1983009808
      %v1154 = vunpack.c.0.s8 %v1153
      %v1155 = vperm.slane %v1151, %v1154
      %v1156 = vrot.slane %v1155, 4
      %v1157 = vsel %vm840, %v1156, %v1149
      %v1159 = vunpack.c.l.s4 1934713408
      %v1160 = vunpack.c.0.s8 %v1159
      %v1161 = vperm.slane %v1157, %v1160
      %v1162 = vrot.slane %v1161, 4
      %v1163 = vsel %vm840, 0, %v1162
      %v1166 = vpack.i.b16 %v1161, %v1142
      %v1167 = vshrl.u32 %v1142, 16
      %v1168 = vshrl.u32 %v1161, 16
      %v1169 = vpack.i.b16 %v1168, %v1167
      %v1172 = vpack.i.b16 %v1163, %v1144
      %v1173 = vshrl.u32 %v1144, 16
      %v1174 = vshrl.u32 %v1163, 16
      %v1175 = vpack.i.b16 %v1174, %v1173
      %vm1176 = vcmask 64512
      %v1178 = vsel %vm1176, %v922, 0
      %v1181 = vsel %vm1176, %v1044, 0
      %1183 = vmatpush.bf16.xpose.msra.mxu0 0
      %1184 = vmatpush.bf16.xpose.msra.mxu0 0
      %1185 = vmatpush.bf16.xpose.msra.mxu0 0
      %1186 = vmatpush.bf16.xpose.msra.mxu0 0
      %1187 = vmatpush.bf16.xpose.msra.mxu0 0
      %1188 = vmatpush.bf16.xpose.msra.mxu0 0
      %1189 = vmatpush.bf16.xpose.msra.mxu0 0
      %1190 = vmatpush.bf16.xpose.msra.mxu0 %v1181
      %1191 = vmatmul.bf16.gmra.mxu0 %v1178
      %v1192 = vpop.f32.mrf.mxu0
      %v1193 = vadd.f32 0.0, %v1192
      %v1194 = vpop.f32.mrf.mxu0
      %1195 = vdwg.mxu0
      %v1197 = vsel %vm1176, %v925, 0
      %v1200 = vsel %vm1176, %v1047, 0
      %1202 = vmatpush.bf16.xpose.msra.mxu0 0
      %1203 = vmatpush.bf16.xpose.msra.mxu0 0
      %1204 = vmatpush.bf16.xpose.msra.mxu0 0
      %1205 = vmatpush.bf16.xpose.msra.mxu0 0
      %1206 = vmatpush.bf16.xpose.msra.mxu0 0
      %1207 = vmatpush.bf16.xpose.msra.mxu0 0
      %1208 = vmatpush.bf16.xpose.msra.mxu0 0
      %1209 = vmatpush.bf16.xpose.msra.mxu0 %v1200
      %1210 = vmatmul.bf16.gmra.mxu0 %v1197
      %v1211 = vpop.f32.mrf.mxu0
      %v1212 = vadd.f32 0.0, %v1211
      %v1213 = vpop.f32.mrf.mxu0
      %1214 = vdwg.mxu0
      %v1216 = vsel %vm1176, %v928, 0
      %v1219 = vsel %vm1176, %v1050, 0
      %1221 = vmatpush.bf16.xpose.msra.mxu0 0
      %1222 = vmatpush.bf16.xpose.msra.mxu0 0
      %1223 = vmatpush.bf16.xpose.msra.mxu0 0
      %1224 = vmatpush.bf16.xpose.msra.mxu0 0
      %1225 = vmatpush.bf16.xpose.msra.mxu0 0
      %1226 = vmatpush.bf16.xpose.msra.mxu0 0
      %1227 = vmatpush.bf16.xpose.msra.mxu0 0
      %1228 = vmatpush.bf16.xpose.msra.mxu0 %v1219
      %1229 = vmatmul.bf16.gmra.mxu0 %v1216
      %v1230 = vpop.f32.mrf.mxu0
      %v1231 = vadd.f32 0.0, %v1230
      %v1232 = vpop.f32.mrf.mxu0
      %1233 = vdwg.mxu0
      %v1235 = vsel %vm1176, %v931, 0
      %v1238 = vsel %vm1176, %v1053, 0
      %1240 = vmatpush.bf16.xpose.msra.mxu0 0
      %1241 = vmatpush.bf16.xpose.msra.mxu0 0
      %1242 = vmatpush.bf16.xpose.msra.mxu0 0
      %1243 = vmatpush.bf16.xpose.msra.mxu0 0
      %1244 = vmatpush.bf16.xpose.msra.mxu0 0
      %1245 = vmatpush.bf16.xpose.msra.mxu0 0
      %1246 = vmatpush.bf16.xpose.msra.mxu0 0
      %1247 = vmatpush.bf16.xpose.msra.mxu0 %v1238
      %1248 = vmatmul.bf16.gmra.mxu0 %v1235
      %v1249 = vpop.f32.mrf.mxu0
      %v1250 = vadd.f32 0.0, %v1249
      %v1251 = vpop.f32.mrf.mxu0
      %1252 = vdwg.mxu0
      %v1253 = vmul.f32 %v1193, 0.35355338
      %v1254 = vmul.f32 %v1212, 0.35355338
      %v1255 = vmul.f32 %v1231, 0.35355338
      %v1256 = vmul.f32 %v1250, 0.35355338
      %v1257 = vlaneseq
      %v1258 = vand.u32 %v1257, 127
      %vm1259 = vcmp.lt.s32.totalorder %v1258, 5
      %v1260 = vsel %vm1259, %v1253, -1e+30
      %v1261 = vsel %vm1259, %v1254, -1e+30
      %v1262 = vsel %vm1259, %v1255, -1e+30
      %v1263 = vsel %vm1259, %v1256, -1e+30
      %v1264 = vsel %vm1176, %v1260, -inf
      %1265 = vmax.xlane.f32.xlu0 %v1264
      %v1266 = vpop.xlane.xlu0 %1265
      %v1267 = vsel %vm1176, %v1261, -inf
      %1268 = vmax.xlane.f32.xlu0 %v1267
      %v1269 = vpop.xlane.xlu0 %1268
      %v1270 = vsel %vm1176, %v1262, -inf
      %1271 = vmax.xlane.f32.xlu0 %v1270
      %v1272 = vpop.xlane.xlu0 %1271
      %v1273 = vsel %vm1176, %v1263, -inf
      %1274 = vmax.xlane.f32.xlu0 %v1273
      %v1275 = vpop.xlane.xlu0 %1274
      %v1276 = vsub.f32 %v1260, %v1266
      %v1277 = vsub.f32 %v1261, %v1269
      %v1278 = vsub.f32 %v1262, %v1272
      %v1279 = vsub.f32 %v1263, %v1275
      %v1280 = vmul.f32 %v1276, 1.442695
      %v1281 = vpow.pop %v1280
      %v1282 = vmul.f32 %v1277, 1.442695
      %v1283 = vpow.pop %v1282
      %v1284 = vmul.f32 %v1278, 1.442695
      %v1285 = vpow.pop %v1284
      %v1286 = vmul.f32 %v1279, 1.442695
      %v1287 = vpow.pop %v1286
      %v1288 = vsel %vm1176, %v1281, 0.0
      %1289 = vadd.xlane.f32.xlu0 %v1288
      %v1290 = vpop.xlane.xlu0 %1289
      %v1291 = vsel %vm1176, %v1283, 0.0
      %1292 = vadd.xlane.f32.xlu0 %v1291
      %v1293 = vpop.xlane.xlu0 %1292
      %v1294 = vsel %vm1176, %v1285, 0.0
      %1295 = vadd.xlane.f32.xlu0 %v1294
      %v1296 = vpop.xlane.xlu0 %1295
      %v1297 = vsel %vm1176, %v1287, 0.0
      %1298 = vadd.xlane.f32.xlu0 %v1297
      %v1299 = vpop.xlane.xlu0 %1298
      %v1300 = vrcp.pop %v1290
      %v1301 = vrcp.pop %v1293
      %v1302 = vrcp.pop %v1296
      %v1303 = vrcp.pop %v1299
      %v1304 = vmul.f32 %v1281, %v1300
      %v1305 = vmul.f32 %v1283, %v1301
      %v1306 = vmul.f32 %v1285, %v1302
      %v1307 = vmul.f32 %v1287, %v1303
      %v1308 = vpack.c.bf16 %v1304, %v1304
      %v1309 = vpack.c.bf16 %v1305, %v1305
      %v1310 = vpack.c.bf16 %v1306, %v1306
      %v1311 = vpack.c.bf16 %v1307, %v1307
      %v1313 = vsel %vm1176, %v1308, 0
      %vm1315 = vcmask 1043456
      %v1317 = vsel %vm1315, %v1166, 0
      %1319 = vmatpush.bf16.msra.mxu0 0
      %1320 = vmatpush.bf16.msra.mxu0 0
      %1321 = vmatpush.bf16.msra.mxu0 0
      %1322 = vmatpush.bf16.msra.mxu0 0
      %1323 = vmatpush.bf16.msra.mxu0 0
      %1324 = vmatpush.bf16.msra.mxu0 0
      %1325 = vmatpush.bf16.msra.mxu0 0
      %1326 = vmatpush.bf16.msra.mxu0 %v1317
      %1327 = vmatmul.bf16.gmra.mxu0 %v1313
      %v1328 = vpop.f32.mrf.mxu0
      %v1329 = vadd.f32 0.0, %v1328
      %v1330 = vpop.f32.mrf.mxu0
      %1331 = vdwg.mxu0
      %v1333 = vsel %vm1176, %v1309, 0
      %v1336 = vsel %vm1315, %v1169, 0
      %1338 = vmatpush.bf16.msra.mxu0 0
      %1339 = vmatpush.bf16.msra.mxu0 0
      %1340 = vmatpush.bf16.msra.mxu0 0
      %1341 = vmatpush.bf16.msra.mxu0 0
      %1342 = vmatpush.bf16.msra.mxu0 0
      %1343 = vmatpush.bf16.msra.mxu0 0
      %1344 = vmatpush.bf16.msra.mxu0 0
      %1345 = vmatpush.bf16.msra.mxu0 %v1336
      %1346 = vmatmul.bf16.gmra.mxu0 %v1333
      %v1347 = vpop.f32.mrf.mxu0
      %v1348 = vadd.f32 0.0, %v1347
      %v1349 = vpop.f32.mrf.mxu0
      %1350 = vdwg.mxu0
      %v1352 = vsel %vm1176, %v1310, 0
      %v1355 = vsel %vm1315, %v1172, 0
      %1357 = vmatpush.bf16.msra.mxu0 0
      %1358 = vmatpush.bf16.msra.mxu0 0
      %1359 = vmatpush.bf16.msra.mxu0 0
      %1360 = vmatpush.bf16.msra.mxu0 0
      %1361 = vmatpush.bf16.msra.mxu0 0
      %1362 = vmatpush.bf16.msra.mxu0 0
      %1363 = vmatpush.bf16.msra.mxu0 0
      %1364 = vmatpush.bf16.msra.mxu0 %v1355
      %1365 = vmatmul.bf16.gmra.mxu0 %v1352
      %v1366 = vpop.f32.mrf.mxu0
      %v1367 = vadd.f32 0.0, %v1366
      %v1368 = vpop.f32.mrf.mxu0
      %1369 = vdwg.mxu0
      %v1371 = vsel %vm1176, %v1311, 0
      %v1374 = vsel %vm1315, %v1175, 0
      %1376 = vmatpush.bf16.msra.mxu0 0
      %1377 = vmatpush.bf16.msra.mxu0 0
      %1378 = vmatpush.bf16.msra.mxu0 0
      %1379 = vmatpush.bf16.msra.mxu0 0
      %1380 = vmatpush.bf16.msra.mxu0 0
      %1381 = vmatpush.bf16.msra.mxu0 0
      %1382 = vmatpush.bf16.msra.mxu0 0
      %1383 = vmatpush.bf16.msra.mxu0 %v1374
      %1384 = vmatmul.bf16.gmra.mxu0 %v1371
      %v1385 = vpop.f32.mrf.mxu0
      %v1386 = vadd.f32 0.0, %v1385
      %v1387 = vpop.f32.mrf.mxu0
      %1388 = vdwg.mxu0
      %v1389 = vrot.slane %v1367, 4
      %vm1390 = vcmask 1047556
      %v1391 = vsel %vm1390, %v1389, %v1329
      %v1392 = vrot.slane %v1329, 4
      %v1393 = vsel %vm1390, %v1367, %v1392
      %v1395 = vunpack.c.l.s4 1983009808
      %v1396 = vunpack.c.0.s8 %v1395
      %v1397 = vperm.slane %v1391, %v1396
      %v1399 = vunpack.c.l.s4 1983009808
      %v1400 = vunpack.c.0.s8 %v1399
      %v1401 = vperm.slane %v1393, %v1400
      %v1402 = vrot.slane %v1386, 4
      %v1403 = vsel %vm1390, %v1402, %v1348
      %v1404 = vrot.slane %v1348, 4
      %v1405 = vsel %vm1390, %v1386, %v1404
      %v1407 = vunpack.c.l.s4 1983009808
      %v1408 = vunpack.c.0.s8 %v1407
      %v1409 = vperm.slane %v1403, %v1408
      %v1411 = vunpack.c.l.s4 1983009808
      %v1412 = vunpack.c.0.s8 %v1411
      %v1413 = vperm.slane %v1405, %v1412
      %v1414 = vrot.slane %v1409, 4
      %v1415 = vsel %vm1390, %v1414, %v1397
      %v1416 = vrot.slane %v1397, 4
      %v1417 = vsel %vm1390, %v1409, %v1416
      %v1419 = vunpack.c.l.s4 1934713408
      %v1420 = vunpack.c.0.s8 %v1419
      %v1421 = vperm.slane %v1415, %v1420
      %v1423 = vunpack.c.l.s4 1934713408
      %v1424 = vunpack.c.0.s8 %v1423
      %v1425 = vperm.slane %v1417, %v1424
      %v1426 = vrot.slane %v1413, 4
      %v1427 = vsel %vm1390, %v1426, %v1401
      %v1428 = vrot.slane %v1401, 4
      %v1429 = vsel %vm1390, %v1413, %v1428
      %v1431 = vunpack.c.l.s4 1934713408
      %v1432 = vunpack.c.0.s8 %v1431
      %v1433 = vperm.slane %v1427, %v1432
      %v1435 = vunpack.c.l.s4 1934713408
      %v1436 = vunpack.c.0.s8 %v1435
      %v1437 = vperm.slane %v1429, %v1436
      %v1438 = vrot.slane %v1421, 4
      %v1439 = vsel %vm1390, 0.0, %v1438
      %v1440 = vrot.slane %v1425, 4
      %v1441 = vsel %vm1390, 0.0, %v1440
      %v1442 = vrot.slane %v1433, 4
      %v1443 = vsel %vm1390, 0.0, %v1442
      %v1444 = vrot.slane %v1437, 4
      %v1445 = vsel %vm1390, 0.0, %v1444
      %v1446 = vsel %vm1390, %v1440, %v1421
      %v1448 = vunpack.c.l.s4 1983009808
      %v1449 = vunpack.c.0.s8 %v1448
      %v1450 = vperm.slane %v1446, %v1449
      %v1451 = vrot.slane %v1441, 4
      %v1452 = vsel %vm1390, %v1451, %v1439
      %v1454 = vunpack.c.l.s4 1983009808
      %v1455 = vunpack.c.0.s8 %v1454
      %v1456 = vperm.slane %v1452, %v1455
      %v1457 = vsel %vm1390, %v1444, %v1433
      %v1459 = vunpack.c.l.s4 1983009808
      %v1460 = vunpack.c.0.s8 %v1459
      %v1461 = vperm.slane %v1457, %v1460
      %v1462 = vrot.slane %v1445, 4
      %v1463 = vsel %vm1390, %v1462, %v1443
      %v1465 = vunpack.c.l.s4 1983009808
      %v1466 = vunpack.c.0.s8 %v1465
      %v1467 = vperm.slane %v1463, %v1466
      %v1468 = vrot.slane %v1456, 4
      %v1469 = vsel %vm1390, %v1468, %v1450
      %v1470 = vrot.slane %v1450, 4
      %v1471 = vsel %vm1390, %v1456, %v1470
      %v1473 = vunpack.c.l.s4 1934713408
      %v1474 = vunpack.c.0.s8 %v1473
      %v1475 = vperm.slane %v1469, %v1474
      %v1477 = vunpack.c.l.s4 1934713408
      %v1478 = vunpack.c.0.s8 %v1477
      %v1479 = vperm.slane %v1471, %v1478
      %v1480 = vrot.slane %v1467, 4
      %v1481 = vsel %vm1390, %v1480, %v1461
      %v1482 = vrot.slane %v1461, 4
      %v1483 = vsel %vm1390, %v1467, %v1482
      %v1485 = vunpack.c.l.s4 1934713408
      %v1486 = vunpack.c.0.s8 %v1485
      %v1487 = vperm.slane %v1481, %v1486
      %v1489 = vunpack.c.l.s4 1934713408
      %v1490 = vunpack.c.0.s8 %v1489
      %v1491 = vperm.slane %v1483, %v1490
      %v1492 = vrot.slane %v1487, 4
      %v1493 = vsel %vm1390, %v1492, %v1475
      %v1494 = vrot.slane %v1475, 4
      %v1495 = vsel %vm1390, %v1487, %v1494
      %v1496 = vrot.slane %v1491, 4
      %v1497 = vsel %vm1390, %v1496, %v1479
      %v1498 = vrot.slane %v1479, 4
      %v1499 = vsel %vm1390, %v1491, %v1498
      %1501 = vrot.lane.b32.xlu0 %v1495, 8
      %v1502 = vpop.permute.xlu0 %1501
      %1505 = vrot.lane.b32.xlu0 %v1497, 16
      %v1506 = vpop.permute.xlu0 %1505
      %1509 = vrot.lane.b32.xlu0 %v1499, 24
      %v1510 = vpop.permute.xlu0 %1509
      %v1512 = vsel %vm1176, %v1493, %v1502
      %vm1513 = vcmask 130048
      %v1514 = vsel %vm1513, %v1512, %v1506
      %vm1515 = vcmask 195584
      %v1516 = vsel %vm1515, %v1514, %v1510
      %v1517 = vpack.c.bf16 %v1516, %v1516
      %v1518 = vld [vmem:[%s9] sm:$0xf]
      %v1519 = vld [vmem:[%s9 + $0x4] sm:$0xf]
      %v1520 = vld [vmem:[%s9 + $0x8] sm:$0xf]
      %v1521 = vld [vmem:[%s9 + $0xc] sm:$0xf]
      %v1522 = vld [vmem:[%s10] sm:$0x1]
      %v1524 = vperm.slane %v1522, 0
      %v1530 = vunpack.c.l.b16 %v1518
      %v1531 = vunpack.c.l.b16 %v1519
      %v1532 = vunpack.c.l.b16 %v1520
      %v1533 = vunpack.c.l.b16 %v1521
      %v1534 = vpack.c.b16 %v1531, %v1530
      %v1535 = vpack.c.b16 %v1533, %v1532
      %v1539 = vsel %vm666, %v1517, 0
      %1541 = vmatpush.bf16.msra.mxu0 0
      %1542 = vmatpush.bf16.msra.mxu0 0
      %1543 = vmatpush.bf16.msra.mxu0 0
      %1544 = vmatpush.bf16.msra.mxu0 0
      %1545 = vmatpush.bf16.msra.mxu0 0
      %1546 = vmatpush.bf16.msra.mxu0 0
      %1547 = vmatpush.bf16.msra.mxu0 %v1535
      %1548 = vmatpush.bf16.msra.mxu0 %v1534
      %1549 = vmatmul.bf16.gmra.mxu0 %v1539
      %v1550 = vpop.f32.mrf.mxu0
      %v1551 = vadd.f32 %v1524, %v1550
      %v1552 = vpop.f32.mrf.mxu0
      %1553 = vdwg.mxu0
      %v1554 = vadd.f32 %v665, %v1551
      %v1555 = vsel %vm666, %v1554, 0.0
      %1556 = vadd.xlane.f32.xlu0 %v1555
      %v1557 = vpop.xlane.xlu0 %1556
      %v1558 = vmul.f32 %v1557, %v676
      %v1559 = vsub.f32 %v1554, %v1558
      %v1560 = vmul.f32 %v1559, %v1559
      %v1561 = vsel %vm666, %v1560, 0.0
      %1562 = vadd.xlane.f32.xlu0 %v1561
      %v1563 = vpop.xlane.xlu0 %1562
      %v1564 = vmul.f32 %v1563, %v676
      %v1565 = vadd.f32 %v1564, 1e-05
      %v1566 = vrsqrt.pop %v1565
      %v1567 = vmul.f32 %v1566, %v1565
      %v1568 = vmul.f32 %v1567, %v1566
      %v1569 = vmul.f32 0.5, %v1568
      %v1570 = vsub.f32 1.5, %v1569
      %v1571 = vmul.f32 %v1566, %v1570
      %vm1572 = vweird.f32 %v1565
      %vm1573 = vweird.f32 %v1566
      %vm1574 = vmor %vm1572, %vm1573
      %v1575 = vsel %vm1574, %v1566, %v1571
      %v1576 = vmul.f32 %v1559, %v1575
      %v1577 = vld [vmem:[%s11] sm:$0x1]
      %v1579 = vperm.slane %v1577, 0
      %v1581 = vmul.f32 %v1576, %v1579
      %v1582 = vld [vmem:[%s12] sm:$0x1]
      %v1584 = vperm.slane %v1582, 0
      %v1586 = vadd.f32 %v1581, %v1584
      %v1587 = vpack.c.bf16 %v1586, %v1586
      %v1588 = vld [vmem:[%s13] sm:$0xf]
      %v1589 = vld [vmem:[%s13 + $0x4] sm:$0xf]
      %v1590 = vld [vmem:[%s13 + $0x8] sm:$0xf]
      %v1591 = vld [vmem:[%s13 + $0xc] sm:$0xf]
      %v1592 = vld [vmem:[%s14] sm:$0x1]
      %v1594 = vperm.slane %v1592, 0
      %v1600 = vunpack.c.l.b16 %v1588
      %v1601 = vunpack.c.l.b16 %v1589
      %v1602 = vunpack.c.l.b16 %v1590
      %v1603 = vunpack.c.l.b16 %v1591
      %v1604 = vpack.c.b16 %v1601, %v1600
      %v1605 = vpack.c.b16 %v1603, %v1602
      %v1609 = vsel %vm666, %v1587, 0
      %1611 = vmatpush.bf16.msra.mxu0 0
      %1612 = vmatpush.bf16.msra.mxu0 0
      %1613 = vmatpush.bf16.msra.mxu0 0
      %1614 = vmatpush.bf16.msra.mxu0 0
      %1615 = vmatpush.bf16.msra.mxu0 0
      %1616 = vmatpush.bf16.msra.mxu0 0
      %1617 = vmatpush.bf16.msra.mxu0 %v1605
      %1618 = vmatpush.bf16.msra.mxu0 %v1604
      %1619 = vmatmul.bf16.gmra.mxu0 %v1609
      %v1620 = vpop.f32.mrf.mxu0
      %v1621 = vadd.f32 %v1594, %v1620
      %v1622 = vpop.f32.mrf.mxu0
      %1623 = vdwg.mxu0
      %v1624 = vmul.f32 %v1621, 0.5
      %v1625 = vmul.f32 %v1621, 0.70710677
      %v1626 = vmul.f32 %v1625, %v1625
      %v1627 = vmin.f32 16.0, %v1626
      %v1628 = vmul.f32 %v1627, 2.1237322e-06
      %v1629 = vadd.f32 %v1628, 0.00028619796
      %v1630 = vmul.f32 %v1627, %v1629
      %v1631 = vadd.f32 %v1630, 0.0036580483
      %v1632 = vmul.f32 %v1627, %v1631
      %v1633 = vadd.f32 %v1632, 0.05243302
      %v1634 = vmul.f32 %v1627, %v1633
      %v1635 = vadd.f32 %v1634, 0.18741608
      %v1636 = vmul.f32 %v1627, %v1635
      %v1637 = vadd.f32 %v1636, 1.1283791
      %v1638 = vmul.f32 %v1625, %v1637
      %v1639 = vmul.f32 %v1627, 3.8918573e-05
      %v1640 = vadd.f32 %v1639, 0.001143296
      %v1641 = vmul.f32 %v1627, %v1640
      %v1642 = vadd.f32 %v1641, 0.014752088
      %v1643 = vmul.f32 %v1627, %v1642
      %v1644 = vadd.f32 %v1643, 0.112945676
      %v1645 = vmul.f32 %v1627, %v1644
      %v1646 = vadd.f32 %v1645, 0.4994258
      %v1647 = vmul.f32 %v1627, %v1646
      %v1648 = vadd.f32 %v1647, 1.0
      %v1649 = vrcp.pop %v1648
      %v1650 = vmul.f32 %v1648, %v1649
      %v1651 = vsub.f32 1.0, %v1650
      %v1652 = vmul.f32 %v1649, %v1651
      %v1653 = vadd.f32 %v1649, %v1652
      %vm1654 = vweird.f32 %v1648
      %vm1655 = vweird.f32 %v1649
      %vm1656 = vmor %vm1654, %vm1655
      %v1657 = vsel %vm1656, %v1649, %v1653
      %v1658 = vand.u32 2147483647, %v1648
      %vm1659 = vcmp.eq.f32.partialorder %v1658, 8.507059e+37
      %v1660 = vand.u32 %v1648, 2147483648
      %v1661 = vor.u32 1.1754944e-38, %v1660
      %v1662 = vsel %vm1659, %v1661, %v1657
      %v1663 = vmul.f32 %v1638, %v1662
      %v1664 = vmin.f32 %v1663, 1.0
      %v1665 = vmax.f32 %v1664, -1.0
      %v1666 = vadd.f32 %v1665, 1.0
      %v1667 = vmul.f32 %v1624, %v1666
      %v1668 = vpack.c.bf16 %v1667, %v1667
      %v1669 = vld [vmem:[%s15] sm:$0xf]
      %v1670 = vld [vmem:[%s15 + $0x4] sm:$0xf]
      %v1671 = vld [vmem:[%s15 + $0x8] sm:$0xf]
      %v1672 = vld [vmem:[%s15 + $0xc] sm:$0xf]
      %v1673 = vld [vmem:[%s15 + $0x10] sm:$0xf]
      %v1674 = vld [vmem:[%s15 + $0x14] sm:$0xf]
      %v1675 = vld [vmem:[%s15 + $0x18] sm:$0xf]
      %v1676 = vld [vmem:[%s15 + $0x1c] sm:$0xf]
      %v1677 = vld [vmem:[%s15 + $0x20] sm:$0xf]
      %v1678 = vld [vmem:[%s15 + $0x24] sm:$0xf]
      %v1679 = vld [vmem:[%s15 + $0x28] sm:$0xf]
      %v1680 = vld [vmem:[%s15 + $0x2c] sm:$0xf]
      %v1681 = vld [vmem:[%s15 + $0x30] sm:$0xf]
      %v1682 = vld [vmem:[%s15 + $0x34] sm:$0xf]
      %v1683 = vld [vmem:[%s15 + $0x38] sm:$0xf]
      %v1684 = vld [vmem:[%s15 + $0x3c] sm:$0xf]
      %v1685 = vld [vmem:[%s16] sm:$0x1]
      %v1687 = vperm.slane %v1685, 0
      %v1705 = vunpack.c.l.b16 %v1669
      %v1706 = vunpack.c.l.b16 %v1670
      %v1707 = vunpack.c.l.b16 %v1671
      %v1708 = vunpack.c.l.b16 %v1672
      %v1709 = vunpack.c.l.b16 %v1673
      %v1710 = vunpack.c.l.b16 %v1674
      %v1711 = vunpack.c.l.b16 %v1675
      %v1712 = vunpack.c.l.b16 %v1676
      %v1713 = vunpack.c.l.b16 %v1677
      %v1714 = vunpack.c.l.b16 %v1678
      %v1715 = vunpack.c.l.b16 %v1679
      %v1716 = vunpack.c.l.b16 %v1680
      %v1717 = vunpack.c.l.b16 %v1681
      %v1718 = vunpack.c.l.b16 %v1682
      %v1719 = vunpack.c.l.b16 %v1683
      %v1720 = vunpack.c.l.b16 %v1684
      %v1721 = vpack.c.b16 %v1706, %v1705
      %v1722 = vpack.c.b16 %v1708, %v1707
      %v1723 = vpack.c.b16 %v1710, %v1709
      %v1724 = vpack.c.b16 %v1712, %v1711
      %v1725 = vpack.c.b16 %v1714, %v1713
      %v1726 = vpack.c.b16 %v1716, %v1715
      %v1727 = vpack.c.b16 %v1718, %v1717
      %v1728 = vpack.c.b16 %v1720, %v1719
      %1737 = vmatpush.bf16.msra.mxu0 %v1728
      %1738 = vmatpush.bf16.msra.mxu0 %v1727
      %1739 = vmatpush.bf16.msra.mxu0 %v1726
      %1740 = vmatpush.bf16.msra.mxu0 %v1725
      %1741 = vmatpush.bf16.msra.mxu0 %v1724
      %1742 = vmatpush.bf16.msra.mxu0 %v1723
      %1743 = vmatpush.bf16.msra.mxu0 %v1722
      %1744 = vmatpush.bf16.msra.mxu0 %v1721
      %1745 = vmatmul.bf16.gmra.mxu0 %v1668
      %v1746 = vpop.f32.mrf.mxu0
      %v1747 = vadd.f32 %v1687, %v1746
      %v1748 = vpop.f32.mrf.mxu0
      %1749 = vdwg.mxu0
      %v1750 = vadd.f32 %v1554, %v1747
      %1751 = vst.msk [vmem:[%s656] sm:$0xff] %vm666, %v1750
      %v1752 = vsel %vm666, %v1750, 0.0
      %1753 = vadd.xlane.f32.xlu0 %v1752
      %v1754 = vpop.xlane.xlu0 %1753
      %v1755 = vmul.f32 %v1754, %v676
      %v1756 = vsub.f32 %v1750, %v1755
      %v1757 = vmul.f32 %v1756, %v1756
      %v1758 = vsel %vm666, %v1757, 0.0
      %1759 = vadd.xlane.f32.xlu0 %v1758
      %v1760 = vpop.xlane.xlu0 %1759
      %v1761 = vmul.f32 %v1760, %v676
      %v1762 = vadd.f32 %v1761, 1e-05
      %v1763 = vrsqrt.pop %v1762
      %v1764 = vmul.f32 %v1763, %v1762
      %v1765 = vmul.f32 %v1764, %v1763
      %v1766 = vmul.f32 0.5, %v1765
      %v1767 = vsub.f32 1.5, %v1766
      %v1768 = vmul.f32 %v1763, %v1767
      %vm1769 = vweird.f32 %v1762
      %vm1770 = vweird.f32 %v1763
      %vm1771 = vmor %vm1769, %vm1770
      %v1772 = vsel %vm1771, %v1763, %v1768
      %v1773 = vmul.f32 %v1756, %v1772
      %v1774 = vld [vmem:[%s17] sm:$0x1]
      %v1776 = vperm.slane %v1774, 0
      %v1778 = vmul.f32 %v1773, %v1776
      %v1779 = vld [vmem:[%s18] sm:$0x1]
      %v1781 = vperm.slane %v1779, 0
      %v1783 = vadd.f32 %v1778, %v1781
      %1784 = vst.msk [vmem:[%s663] sm:$0xff] %vm666, %v1783
      %p1785 = scmp.lt.s32.totalorder %s36, 1
      %s1786 = scalar_select %p1785, %s36, 1
      %p1787 = scmp.lt.s32.totalorder %s37, 0
      %s1788 = scalar_select %p1787, %s37, 0
      %s1789 = sadd.s32 %s1788, %s1786
      %s1790 = smul.addr %s1789, 8
      %s1791 = scalar_lea.vmem %s19, %s1790
      %p1792 = scmp.lt.s32.totalorder %s36, 1
      %s1793 = scalar_select %p1792, %s36, 1
      %p1794 = scmp.lt.s32.totalorder %s37, 0
      %s1795 = scalar_select %p1794, %s37, 0
      %s1796 = sadd.s32 %s1795, %s1793
      %s1797 = smul.addr %s1796, 8
      %s1798 = scalar_lea.vmem %s20, %s1797
      // Predicated region
      $region97: #{_lambda_.16} parent=95 // pred_check
        %p1799 = pneg %p468
      $region98: #{_lambda_.16} parent=95 // pred_check_branch
        %1801 = sbr.rel (%p1799) target = $region100
      $region99: #{_lambda_.16} parent=95 // pred_region
        _
      $region100: #{_lambda_.16} parent=95 // pred_fallthru
        _
      // Predicated region
      $region101: #{_lambda_.16} parent=95 // pred_check
        %p1802 = pneg %p496
      $region102: #{_lambda_.16} parent=95 // pred_check_branch
        %1804 = sbr.rel (%p1802) target = $region104
      $region103: #{_lambda_.16} parent=95 // pred_region
        _
      $region104: #{_lambda_.16} parent=95 // pred_fallthru
        _
    $region96: #{_lambda_.16} parent=5 // pred_fallthru
      _
    %p1805 = scmp.le.s32.totalorder 2, %s27
    // Predicated region
    $region105: #{_lambda_.16} parent=5 // pred_check
      %p1806 = pneg %p1805
    $region106: #{_lambda_.16} parent=5 // pred_check_branch
      %1808 = sbr.rel (%p1806) target = $region108
    $region107: #{_lambda_.16} parent=5 // pred_region
      %s1809 = ssub.s32 %s27, 2
      // Predicated region
      $region109: #{_lambda_.16} parent=107 // pred_check
        %p1810 = pneg %p474
      $region110: #{_lambda_.16} parent=107 // pred_check_branch
        %1812 = sbr.rel (%p1810) target = $region112
      $region111: #{_lambda_.16} parent=107 // pred_region
        %p1813 = scmp.lt.s32.totalorder %s38, 1
        %s1814 = scalar_select %p1813, %s38, 1
        %p1815 = scmp.lt.s32.totalorder %s39, 0
        %s1816 = scalar_select %p1815, %s39, 0
        %s1817 = sadd.s32 %s1816, %s1814
        %s1818 = smul.addr %s1817, 8
        %s1819 = scalar_lea.vmem %s19, %s1818
      $region112: #{_lambda_.16} parent=107 // pred_fallthru
        _
      // Predicated region
      $region113: #{_lambda_.16} parent=107 // pred_check
        %p1820 = pneg %p502
      $region114: #{_lambda_.16} parent=107 // pred_check_branch
        %1822 = sbr.rel (%p1820) target = $region116
      $region115: #{_lambda_.16} parent=107 // pred_region
        %p1823 = scmp.lt.s32.totalorder %s38, 1
        %s1824 = scalar_select %p1823, %s38, 1
        %p1825 = scmp.lt.s32.totalorder %s39, 0
        %s1826 = scalar_select %p1825, %s39, 0
        %s1827 = sadd.s32 %s1826, %s1824
        %s1828 = smul.addr %s1827, 8
        %s1829 = scalar_lea.vmem %s20, %s1828
      $region116: #{_lambda_.16} parent=107 // pred_fallthru
        _
    $region108: #{_lambda_.16} parent=5 // pred_fallthru
      _
  $region6: #{_lambda_.16} parent=0 // loop_footer
    %s31 = sadd.s32 1, %s27
  $region7: #{_lambda_.16} parent=0 // loop_footer_branch
    %26 = sbr.rel target = $region3
  $region8: #{_lambda_.16} parent=0 // loop_exit
    _

// kernel: _lambda_.11
$region0: #{_lambda_.11}
  #allocation0 [shape = 'u32[]', space=smem, size = 0x4, offset = 0x4, fixed_abs, tag = 'smem constant byte address 0x4 - core index']
  #allocation1 [shape = 'u32[72,128]{1,0:T(1,128)}', space=vmem, size = 0x9000, scoped, tag = 'internal scratch']
  %s0 = inlined_call_operand.vmem [shape: f32[2,8,32], index: 0, kind: input, shape index: {}, may-alias: {0,17}]
  %s1 = inlined_call_operand.vmem [shape: f32[1,32], index: 1, kind: input, shape index: {}, may-alias: {1,11}]
  %s2 = inlined_call_operand.vmem [shape: f32[1,32], index: 2, kind: input, shape index: {}, may-alias: {2,4,6,8,10,12,16}]
  %s3 = inlined_call_operand.vmem [shape: bf16[32,32], index: 3, kind: input, shape index: {}]
  %s4 = inlined_call_operand.vmem [shape: f32[1,32], index: 4, kind: input, shape index: {}, may-alias: {2,4,6,8,10,12,16}]
  %s5 = inlined_call_operand.vmem [shape: bf16[32,32], index: 5, kind: input, shape index: {}]
  %s6 = inlined_call_operand.vmem [shape: f32[1,32], index: 6, kind: input, shape index: {}, may-alias: {2,4,6,8,10,12,16}]
  %s7 = inlined_call_operand.vmem [shape: bf16[32,32], index: 7, kind: input, shape index: {}]
  %s8 = inlined_call_operand.vmem [shape: f32[1,32], index: 8, kind: input, shape index: {}, may-alias: {2,4,6,8,10,12,16}]
  %s9 = inlined_call_operand.vmem [shape: bf16[32,32], index: 9, kind: input, shape index: {}]
  %s10 = inlined_call_operand.vmem [shape: f32[1,32], index: 10, kind: input, shape index: {}, may-alias: {2,4,6,8,10,12,16}]
  %s11 = inlined_call_operand.vmem [shape: f32[1,32], index: 11, kind: input, shape index: {}, may-alias: {1,11}]
  %s12 = inlined_call_operand.vmem [shape: f32[1,32], index: 12, kind: input, shape index: {}, may-alias: {2,4,6,8,10,12,16}]
  %s13 = inlined_call_operand.vmem [shape: bf16[32,128], index: 13, kind: input, shape index: {}]
  %s14 = inlined_call_operand.vmem [shape: f32[1,128], index: 14, kind: input, shape index: {}]
  %s15 = inlined_call_operand.vmem [shape: bf16[128,32], index: 15, kind: input, shape index: {}]
  %s16 = inlined_call_operand.vmem [shape: f32[1,32], index: 16, kind: input, shape index: {}, may-alias: {2,4,6,8,10,12,16}]
  %s17 = inlined_call_operand.vmem [shape: f32[2,8,32], index: 17, kind: output, shape index: {}, may-alias: {0,17}]
  %s18 = sld [smem:[#allocation0]]
  $region101: #{_lambda_.11} parent=0
    _
  %s20 = ssub.s32 1, %s18
  %s21 = scalar_select 0, %s20, %s18
  loop: start=0, step=1, limit=4
  $region2: #{_lambda_.11} parent=0 // loop_pre_header
    _
  $region3: #{_lambda_.11} parent=0 // loop_header
    %s23 = sphi 0, %s27
    %p24 = scmp.ge.s32.totalorder %s23, 4
    %s30 = sphi 0, %s42
    %s31 = sphi 0, %s38
    %s32 = sphi 0, %s30
    %s33 = sphi 0, %s31
    %s34 = sphi 0, %s32
    %s35 = sphi 0, %s33
    %s45 = sphi 0, %s47
    %s48 = sphi 0, %s45
    %s49 = sphi 0, %s48
    %s65 = sphi 0, %s49
    %s69 = sphi 0, %s69
    %s71 = sphi 0, %s69
    %s72 = sphi 0, %s71
    %s86 = sphi 0, %s72
    %s90 = sphi 0, %s90
    %s92 = sphi 0, %s90
    %s93 = sphi 0, %s92
    %s107 = sphi 0, %s93
    %s111 = sphi 0, %s111
    %s113 = sphi 0, %s111
    %s114 = sphi 0, %s113
    %s128 = sphi 0, %s114
    %s132 = sphi 0, %s132
    %s134 = sphi 0, %s132
    %s135 = sphi 0, %s134
    %s149 = sphi 0, %s135
    %s153 = sphi 0, %s153
    %s155 = sphi 0, %s153
    %s156 = sphi 0, %s155
    %s170 = sphi 0, %s156
    %s174 = sphi 0, %s174
    %s176 = sphi 0, %s174
    %s177 = sphi 0, %s176
    %s191 = sphi 0, %s177
    %s195 = sphi 0, %s195
    %s197 = sphi 0, %s195
    %s198 = sphi 0, %s197
    %s212 = sphi 0, %s198
    %s216 = sphi 0, %s216
    %s218 = sphi 0, %s216
    %s219 = sphi 0, %s218
    %s233 = sphi 0, %s219
    %s237 = sphi 0, %s237
    %s239 = sphi 0, %s237
    %s240 = sphi 0, %s239
    %s254 = sphi 0, %s240
    %s258 = sphi 0, %s258
    %s260 = sphi 0, %s258
    %s261 = sphi 0, %s260
    %s275 = sphi 0, %s261
    %s279 = sphi 0, %s279
    %s281 = sphi 0, %s279
    %s282 = sphi 0, %s281
    %s296 = sphi 0, %s282
    %s300 = sphi 0, %s300
    %s302 = sphi 0, %s300
    %s303 = sphi 0, %s302
    %s317 = sphi 0, %s303
    %s321 = sphi 0, %s321
    %s323 = sphi 0, %s321
    %s324 = sphi 0, %s323
    %s338 = sphi 0, %s324
    %s342 = sphi 0, %s342
    %s344 = sphi 0, %s342
    %s345 = sphi 0, %s344
    %s359 = sphi 0, %s345
    %s363 = sphi 0, %s363
    %s365 = sphi 0, %s363
    %s366 = sphi 0, %s365
    %s380 = sphi 0, %s366
    %s384 = sphi 0, %s384
    %s386 = sphi 0, %s384
    %s387 = sphi 0, %s386
    %s401 = sphi 0, %s387
    %s409 = sphi 0, %s411
    %s412 = sphi 0, %s409
    %s413 = sphi 0, %s412
    %s429 = sphi 0, %s413
  $region4: #{_lambda_.11} parent=0 // loop_header_branch
    %26 = sbr.rel (%p24) target = $region8
  $region5: #{_lambda_.11} parent=0 // loop_body
    %s28 = ssub.s32 %s23, 1
    %s29 = ssub.s32 %s23, 2
    %s36 = sadd.s32 1, %s31
    %p37 = scmp.ge.s32.totalorder %s36, 1
    %s38 = scalar_select %p37, 0, %s36
    %s39 = sadd.s32 1, %s30
    %s40 = scalar_select %p37, %s39, %s30
    %p41 = scmp.ge.s32.totalorder %s40, 2
    %s42 = scalar_select %p41, 0, %s40
    %s43 = ssub.s32 %s30, %s42
    %p44 = scmp.eq.s32.totalorder %s43, 0
    %s46 = sadd.s32 %s45, 1
    %s47 = scalar_select %p44, %s45, %s46
    %p50 = pneg %p44
    %p51 = scmp.eq.s32.totalorder %s23, 1
    %p52 = por %p50, %p51
    %p53 = scmp.ne.s32.totalorder %s45, %s48
    %p54 = scmp.eq.s32.totalorder %s23, 0
    %p55 = por %p53, %p54
    %p56 = scmp.ne.s32.totalorder %s45, %s48
    %p57 = scmp.eq.s32.totalorder %s28, 1
    %p58 = por %p56, %p57
    %p59 = scmp.ne.s32.totalorder %s48, %s49
    %p60 = scmp.eq.s32.totalorder %s28, 0
    %p61 = por %p59, %p60
    %p62 = scmp.ne.s32.totalorder %s48, %s49
    %p63 = scmp.eq.s32.totalorder %s29, 1
    %p64 = por %p62, %p63
    %p66 = scmp.ne.s32.totalorder %s49, %s65
    %p67 = scmp.eq.s32.totalorder %s29, 0
    %p68 = por %p66, %p67
    %s70 = sadd.s32 %s69, 1
    %p73 = scmp.eq.s32.totalorder %s23, 1
    %p74 = scmp.ne.s32.totalorder %s69, %s71
    %p75 = scmp.eq.s32.totalorder %s23, 0
    %p76 = por %p74, %p75
    %p77 = scmp.ne.s32.totalorder %s69, %s71
    %p78 = scmp.eq.s32.totalorder %s28, 1
    %p79 = por %p77, %p78
    %p80 = scmp.ne.s32.totalorder %s71, %s72
    %p81 = scmp.eq.s32.totalorder %s28, 0
    %p82 = por %p80, %p81
    %p83 = scmp.ne.s32.totalorder %s71, %s72
    %p84 = scmp.eq.s32.totalorder %s29, 1
    %p85 = por %p83, %p84
    %p87 = scmp.ne.s32.totalorder %s72, %s86
    %p88 = scmp.eq.s32.totalorder %s29, 0
    %p89 = por %p87, %p88
    %s91 = sadd.s32 %s90, 1
    %p94 = scmp.eq.s32.totalorder %s23, 1
    %p95 = scmp.ne.s32.totalorder %s90, %s92
    %p96 = scmp.eq.s32.totalorder %s23, 0
    %p97 = por %p95, %p96
    %p98 = scmp.ne.s32.totalorder %s90, %s92
    %p99 = scmp.eq.s32.totalorder %s28, 1
    %p100 = por %p98, %p99
    %p101 = scmp.ne.s32.totalorder %s92, %s93
    %p102 = scmp.eq.s32.totalorder %s28, 0
    %p103 = por %p101, %p102
    %p104 = scmp.ne.s32.totalorder %s92, %s93
    %p105 = scmp.eq.s32.totalorder %s29, 1
    %p106 = por %p104, %p105
    %p108 = scmp.ne.s32.totalorder %s93, %s107
    %p109 = scmp.eq.s32.totalorder %s29, 0
    %p110 = por %p108, %p109
    %s112 = sadd.s32 %s111, 1
    %p115 = scmp.eq.s32.totalorder %s23, 1
    %p116 = scmp.ne.s32.totalorder %s111, %s113
    %p117 = scmp.eq.s32.totalorder %s23, 0
    %p118 = por %p116, %p117
    %p119 = scmp.ne.s32.totalorder %s111, %s113
    %p120 = scmp.eq.s32.totalorder %s28, 1
    %p121 = por %p119, %p120
    %p122 = scmp.ne.s32.totalorder %s113, %s114
    %p123 = scmp.eq.s32.totalorder %s28, 0
    %p124 = por %p122, %p123
    %p125 = scmp.ne.s32.totalorder %s113, %s114
    %p126 = scmp.eq.s32.totalorder %s29, 1
    %p127 = por %p125, %p126
    %p129 = scmp.ne.s32.totalorder %s114, %s128
    %p130 = scmp.eq.s32.totalorder %s29, 0
    %p131 = por %p129, %p130
    %s133 = sadd.s32 %s132, 1
    %p136 = scmp.eq.s32.totalorder %s23, 1
    %p137 = scmp.ne.s32.totalorder %s132, %s134
    %p138 = scmp.eq.s32.totalorder %s23, 0
    %p139 = por %p137, %p138
    %p140 = scmp.ne.s32.totalorder %s132, %s134
    %p141 = scmp.eq.s32.totalorder %s28, 1
    %p142 = por %p140, %p141
    %p143 = scmp.ne.s32.totalorder %s134, %s135
    %p144 = scmp.eq.s32.totalorder %s28, 0
    %p145 = por %p143, %p144
    %p146 = scmp.ne.s32.totalorder %s134, %s135
    %p147 = scmp.eq.s32.totalorder %s29, 1
    %p148 = por %p146, %p147
    %p150 = scmp.ne.s32.totalorder %s135, %s149
    %p151 = scmp.eq.s32.totalorder %s29, 0
    %p152 = por %p150, %p151
    %s154 = sadd.s32 %s153, 1
    %p157 = scmp.eq.s32.totalorder %s23, 1
    %p158 = scmp.ne.s32.totalorder %s153, %s155
    %p159 = scmp.eq.s32.totalorder %s23, 0
    %p160 = por %p158, %p159
    %p161 = scmp.ne.s32.totalorder %s153, %s155
    %p162 = scmp.eq.s32.totalorder %s28, 1
    %p163 = por %p161, %p162
    %p164 = scmp.ne.s32.totalorder %s155, %s156
    %p165 = scmp.eq.s32.totalorder %s28, 0
    %p166 = por %p164, %p165
    %p167 = scmp.ne.s32.totalorder %s155, %s156
    %p168 = scmp.eq.s32.totalorder %s29, 1
    %p169 = por %p167, %p168
    %p171 = scmp.ne.s32.totalorder %s156, %s170
    %p172 = scmp.eq.s32.totalorder %s29, 0
    %p173 = por %p171, %p172
    %s175 = sadd.s32 %s174, 1
    %p178 = scmp.eq.s32.totalorder %s23, 1
    %p179 = scmp.ne.s32.totalorder %s174, %s176
    %p180 = scmp.eq.s32.totalorder %s23, 0
    %p181 = por %p179, %p180
    %p182 = scmp.ne.s32.totalorder %s174, %s176
    %p183 = scmp.eq.s32.totalorder %s28, 1
    %p184 = por %p182, %p183
    %p185 = scmp.ne.s32.totalorder %s176, %s177
    %p186 = scmp.eq.s32.totalorder %s28, 0
    %p187 = por %p185, %p186
    %p188 = scmp.ne.s32.totalorder %s176, %s177
    %p189 = scmp.eq.s32.totalorder %s29, 1
    %p190 = por %p188, %p189
    %p192 = scmp.ne.s32.totalorder %s177, %s191
    %p193 = scmp.eq.s32.totalorder %s29, 0
    %p194 = por %p192, %p193
    %s196 = sadd.s32 %s195, 1
    %p199 = scmp.eq.s32.totalorder %s23, 1
    %p200 = scmp.ne.s32.totalorder %s195, %s197
    %p201 = scmp.eq.s32.totalorder %s23, 0
    %p202 = por %p200, %p201
    %p203 = scmp.ne.s32.totalorder %s195, %s197
    %p204 = scmp.eq.s32.totalorder %s28, 1
    %p205 = por %p203, %p204
    %p206 = scmp.ne.s32.totalorder %s197, %s198
    %p207 = scmp.eq.s32.totalorder %s28, 0
    %p208 = por %p206, %p207
    %p209 = scmp.ne.s32.totalorder %s197, %s198
    %p210 = scmp.eq.s32.totalorder %s29, 1
    %p211 = por %p209, %p210
    %p213 = scmp.ne.s32.totalorder %s198, %s212
    %p214 = scmp.eq.s32.totalorder %s29, 0
    %p215 = por %p213, %p214
    %s217 = sadd.s32 %s216, 1
    %p220 = scmp.eq.s32.totalorder %s23, 1
    %p221 = scmp.ne.s32.totalorder %s216, %s218
    %p222 = scmp.eq.s32.totalorder %s23, 0
    %p223 = por %p221, %p222
    %p224 = scmp.ne.s32.totalorder %s216, %s218
    %p225 = scmp.eq.s32.totalorder %s28, 1
    %p226 = por %p224, %p225
    %p227 = scmp.ne.s32.totalorder %s218, %s219
    %p228 = scmp.eq.s32.totalorder %s28, 0
    %p229 = por %p227, %p228
    %p230 = scmp.ne.s32.totalorder %s218, %s219
    %p231 = scmp.eq.s32.totalorder %s29, 1
    %p232 = por %p230, %p231
    %p234 = scmp.ne.s32.totalorder %s219, %s233
    %p235 = scmp.eq.s32.totalorder %s29, 0
    %p236 = por %p234, %p235
    %s238 = sadd.s32 %s237, 1
    %p241 = scmp.eq.s32.totalorder %s23, 1
    %p242 = scmp.ne.s32.totalorder %s237, %s239
    %p243 = scmp.eq.s32.totalorder %s23, 0
    %p244 = por %p242, %p243
    %p245 = scmp.ne.s32.totalorder %s237, %s239
    %p246 = scmp.eq.s32.totalorder %s28, 1
    %p247 = por %p245, %p246
    %p248 = scmp.ne.s32.totalorder %s239, %s240
    %p249 = scmp.eq.s32.totalorder %s28, 0
    %p250 = por %p248, %p249
    %p251 = scmp.ne.s32.totalorder %s239, %s240
    %p252 = scmp.eq.s32.totalorder %s29, 1
    %p253 = por %p251, %p252
    %p255 = scmp.ne.s32.totalorder %s240, %s254
    %p256 = scmp.eq.s32.totalorder %s29, 0
    %p257 = por %p255, %p256
    %s259 = sadd.s32 %s258, 1
    %p262 = scmp.eq.s32.totalorder %s23, 1
    %p263 = scmp.ne.s32.totalorder %s258, %s260
    %p264 = scmp.eq.s32.totalorder %s23, 0
    %p265 = por %p263, %p264
    %p266 = scmp.ne.s32.totalorder %s258, %s260
    %p267 = scmp.eq.s32.totalorder %s28, 1
    %p268 = por %p266, %p267
    %p269 = scmp.ne.s32.totalorder %s260, %s261
    %p270 = scmp.eq.s32.totalorder %s28, 0
    %p271 = por %p269, %p270
    %p272 = scmp.ne.s32.totalorder %s260, %s261
    %p273 = scmp.eq.s32.totalorder %s29, 1
    %p274 = por %p272, %p273
    %p276 = scmp.ne.s32.totalorder %s261, %s275
    %p277 = scmp.eq.s32.totalorder %s29, 0
    %p278 = por %p276, %p277
    %s280 = sadd.s32 %s279, 1
    %p283 = scmp.eq.s32.totalorder %s23, 1
    %p284 = scmp.ne.s32.totalorder %s279, %s281
    %p285 = scmp.eq.s32.totalorder %s23, 0
    %p286 = por %p284, %p285
    %p287 = scmp.ne.s32.totalorder %s279, %s281
    %p288 = scmp.eq.s32.totalorder %s28, 1
    %p289 = por %p287, %p288
    %p290 = scmp.ne.s32.totalorder %s281, %s282
    %p291 = scmp.eq.s32.totalorder %s28, 0
    %p292 = por %p290, %p291
    %p293 = scmp.ne.s32.totalorder %s281, %s282
    %p294 = scmp.eq.s32.totalorder %s29, 1
    %p295 = por %p293, %p294
    %p297 = scmp.ne.s32.totalorder %s282, %s296
    %p298 = scmp.eq.s32.totalorder %s29, 0
    %p299 = por %p297, %p298
    %s301 = sadd.s32 %s300, 1
    %p304 = scmp.eq.s32.totalorder %s23, 1
    %p305 = scmp.ne.s32.totalorder %s300, %s302
    %p306 = scmp.eq.s32.totalorder %s23, 0
    %p307 = por %p305, %p306
    %p308 = scmp.ne.s32.totalorder %s300, %s302
    %p309 = scmp.eq.s32.totalorder %s28, 1
    %p310 = por %p308, %p309
    %p311 = scmp.ne.s32.totalorder %s302, %s303
    %p312 = scmp.eq.s32.totalorder %s28, 0
    %p313 = por %p311, %p312
    %p314 = scmp.ne.s32.totalorder %s302, %s303
    %p315 = scmp.eq.s32.totalorder %s29, 1
    %p316 = por %p314, %p315
    %p318 = scmp.ne.s32.totalorder %s303, %s317
    %p319 = scmp.eq.s32.totalorder %s29, 0
    %p320 = por %p318, %p319
    %s322 = sadd.s32 %s321, 1
    %p325 = scmp.eq.s32.totalorder %s23, 1
    %p326 = scmp.ne.s32.totalorder %s321, %s323
    %p327 = scmp.eq.s32.totalorder %s23, 0
    %p328 = por %p326, %p327
    %p329 = scmp.ne.s32.totalorder %s321, %s323
    %p330 = scmp.eq.s32.totalorder %s28, 1
    %p331 = por %p329, %p330
    %p332 = scmp.ne.s32.totalorder %s323, %s324
    %p333 = scmp.eq.s32.totalorder %s28, 0
    %p334 = por %p332, %p333
    %p335 = scmp.ne.s32.totalorder %s323, %s324
    %p336 = scmp.eq.s32.totalorder %s29, 1
    %p337 = por %p335, %p336
    %p339 = scmp.ne.s32.totalorder %s324, %s338
    %p340 = scmp.eq.s32.totalorder %s29, 0
    %p341 = por %p339, %p340
    %s343 = sadd.s32 %s342, 1
    %p346 = scmp.eq.s32.totalorder %s23, 1
    %p347 = scmp.ne.s32.totalorder %s342, %s344
    %p348 = scmp.eq.s32.totalorder %s23, 0
    %p349 = por %p347, %p348
    %p350 = scmp.ne.s32.totalorder %s342, %s344
    %p351 = scmp.eq.s32.totalorder %s28, 1
    %p352 = por %p350, %p351
    %p353 = scmp.ne.s32.totalorder %s344, %s345
    %p354 = scmp.eq.s32.totalorder %s28, 0
    %p355 = por %p353, %p354
    %p356 = scmp.ne.s32.totalorder %s344, %s345
    %p357 = scmp.eq.s32.totalorder %s29, 1
    %p358 = por %p356, %p357
    %p360 = scmp.ne.s32.totalorder %s345, %s359
    %p361 = scmp.eq.s32.totalorder %s29, 0
    %p362 = por %p360, %p361
    %s364 = sadd.s32 %s363, 1
    %p367 = scmp.eq.s32.totalorder %s23, 1
    %p368 = scmp.ne.s32.totalorder %s363, %s365
    %p369 = scmp.eq.s32.totalorder %s23, 0
    %p370 = por %p368, %p369
    %p371 = scmp.ne.s32.totalorder %s363, %s365
    %p372 = scmp.eq.s32.totalorder %s28, 1
    %p373 = por %p371, %p372
    %p374 = scmp.ne.s32.totalorder %s365, %s366
    %p375 = scmp.eq.s32.totalorder %s28, 0
    %p376 = por %p374, %p375
    %p377 = scmp.ne.s32.totalorder %s365, %s366
    %p378 = scmp.eq.s32.totalorder %s29, 1
    %p379 = por %p377, %p378
    %p381 = scmp.ne.s32.totalorder %s366, %s380
    %p382 = scmp.eq.s32.totalorder %s29, 0
    %p383 = por %p381, %p382
    %s385 = sadd.s32 %s384, 1
    %p388 = scmp.eq.s32.totalorder %s23, 1
    %p389 = scmp.ne.s32.totalorder %s384, %s386
    %p390 = scmp.eq.s32.totalorder %s23, 0
    %p391 = por %p389, %p390
    %p392 = scmp.ne.s32.totalorder %s384, %s386
    %p393 = scmp.eq.s32.totalorder %s28, 1
    %p394 = por %p392, %p393
    %p395 = scmp.ne.s32.totalorder %s386, %s387
    %p396 = scmp.eq.s32.totalorder %s28, 0
    %p397 = por %p395, %p396
    %p398 = scmp.ne.s32.totalorder %s386, %s387
    %p399 = scmp.eq.s32.totalorder %s29, 1
    %p400 = por %p398, %p399
    %p402 = scmp.ne.s32.totalorder %s387, %s401
    %p403 = scmp.eq.s32.totalorder %s29, 0
    %p404 = por %p402, %p403
    %s405 = ssub.s32 %s30, %s42
    %s406 = ssub.s32 %s31, %s38
    %s407 = sor.u32 %s405, %s406
    %p408 = scmp.eq.s32.totalorder %s407, 0
    %s410 = sadd.s32 %s409, 1
    %s411 = scalar_select %p408, %s409, %s410
    %p414 = pneg %p408
    %p415 = scmp.eq.s32.totalorder %s23, 1
    %p416 = por %p414, %p415
    %p417 = scmp.ne.s32.totalorder %s409, %s412
    %p418 = scmp.eq.s32.totalorder %s23, 0
    %p419 = por %p417, %p418
    %p420 = scmp.ne.s32.totalorder %s409, %s412
    %p421 = scmp.eq.s32.totalorder %s28, 1
    %p422 = por %p420, %p421
    %p423 = scmp.ne.s32.totalorder %s412, %s413
    %p424 = scmp.eq.s32.totalorder %s28, 0
    %p425 = por %p423, %p424
    %p426 = scmp.ne.s32.totalorder %s412, %s413
    %p427 = scmp.eq.s32.totalorder %s29, 1
    %p428 = por %p426, %p427
    %p430 = scmp.ne.s32.totalorder %s413, %s429
    %p431 = scmp.eq.s32.totalorder %s29, 0
    %p432 = por %p430, %p431
    %p433 = scmp.le.s32.totalorder 1, %s23
    %p434 = scmp.lt.s32.totalorder %s23, 3
    %p435 = pnand %p433, %p434
    %p436 = pneg %p435
    // Predicated region
    $region9: #{_lambda_.11} parent=5 // pred_check
      _
    $region10: #{_lambda_.11} parent=5 // pred_check_branch
      %438 = sbr.rel (%p435) target = $region12
    $region11: #{_lambda_.11} parent=5 // pred_region
      %s439 = ssub.s32 %s23, 1
      // Predicated region
      $region13: #{_lambda_.11} parent=11 // pred_check
        %p440 = pneg %p82
      $region14: #{_lambda_.11} parent=11 // pred_check_branch
        %442 = sbr.rel (%p440) target = $region16
      $region15: #{_lambda_.11} parent=11 // pred_region
        _
      $region16: #{_lambda_.11} parent=11 // pred_fallthru
        _
      // Predicated region
      $region17: #{_lambda_.11} parent=11 // pred_check
        %p443 = pneg %p103
      $region18: #{_lambda_.11} parent=11 // pred_check_branch
        %445 = sbr.rel (%p443) target = $region20
      $region19: #{_lambda_.11} parent=11 // pred_region
        _
      $region20: #{_lambda_.11} parent=11 // pred_fallthru
        _
      // Predicated region
      $region21: #{_lambda_.11} parent=11 // pred_check
        %p446 = pneg %p124
      $region22: #{_lambda_.11} parent=11 // pred_check_branch
        %448 = sbr.rel (%p446) target = $region24
      $region23: #{_lambda_.11} parent=11 // pred_region
        _
      $region24: #{_lambda_.11} parent=11 // pred_fallthru
        _
      // Predicated region
      $region25: #{_lambda_.11} parent=11 // pred_check
        %p449 = pneg %p145
      $region26: #{_lambda_.11} parent=11 // pred_check_branch
        %451 = sbr.rel (%p449) target = $region28
      $region27: #{_lambda_.11} parent=11 // pred_region
        _
      $region28: #{_lambda_.11} parent=11 // pred_fallthru
        _
      // Predicated region
      $region29: #{_lambda_.11} parent=11 // pred_check
        %p452 = pneg %p166
      $region30: #{_lambda_.11} parent=11 // pred_check_branch
        %454 = sbr.rel (%p452) target = $region32
      $region31: #{_lambda_.11} parent=11 // pred_region
        _
      $region32: #{_lambda_.11} parent=11 // pred_fallthru
        _
      // Predicated region
      $region33: #{_lambda_.11} parent=11 // pred_check
        %p455 = pneg %p187
      $region34: #{_lambda_.11} parent=11 // pred_check_branch
        %457 = sbr.rel (%p455) target = $region36
      $region35: #{_lambda_.11} parent=11 // pred_region
        _
      $region36: #{_lambda_.11} parent=11 // pred_fallthru
        _
      // Predicated region
      $region37: #{_lambda_.11} parent=11 // pred_check
        %p458 = pneg %p208
      $region38: #{_lambda_.11} parent=11 // pred_check_branch
        %460 = sbr.rel (%p458) target = $region40
      $region39: #{_lambda_.11} parent=11 // pred_region
        _
      $region40: #{_lambda_.11} parent=11 // pred_fallthru
        _
      // Predicated region
      $region41: #{_lambda_.11} parent=11 // pred_check
        %p461 = pneg %p229
      $region42: #{_lambda_.11} parent=11 // pred_check_branch
        %463 = sbr.rel (%p461) target = $region44
      $region43: #{_lambda_.11} parent=11 // pred_region
        _
      $region44: #{_lambda_.11} parent=11 // pred_fallthru
        _
      // Predicated region
      $region45: #{_lambda_.11} parent=11 // pred_check
        %p464 = pneg %p250
      $region46: #{_lambda_.11} parent=11 // pred_check_branch
        %466 = sbr.rel (%p464) target = $region48
      $region47: #{_lambda_.11} parent=11 // pred_region
        _
      $region48: #{_lambda_.11} parent=11 // pred_fallthru
        _
      // Predicated region
      $region49: #{_lambda_.11} parent=11 // pred_check
        %p467 = pneg %p271
      $region50: #{_lambda_.11} parent=11 // pred_check_branch
        %469 = sbr.rel (%p467) target = $region52
      $region51: #{_lambda_.11} parent=11 // pred_region
        _
      $region52: #{_lambda_.11} parent=11 // pred_fallthru
        _
      // Predicated region
      $region53: #{_lambda_.11} parent=11 // pred_check
        %p470 = pneg %p292
      $region54: #{_lambda_.11} parent=11 // pred_check_branch
        %472 = sbr.rel (%p470) target = $region56
      $region55: #{_lambda_.11} parent=11 // pred_region
        _
      $region56: #{_lambda_.11} parent=11 // pred_fallthru
        _
      // Predicated region
      $region57: #{_lambda_.11} parent=11 // pred_check
        %p473 = pneg %p313
      $region58: #{_lambda_.11} parent=11 // pred_check_branch
        %475 = sbr.rel (%p473) target = $region60
      $region59: #{_lambda_.11} parent=11 // pred_region
        _
      $region60: #{_lambda_.11} parent=11 // pred_fallthru
        _
      // Predicated region
      $region61: #{_lambda_.11} parent=11 // pred_check
        %p476 = pneg %p334
      $region62: #{_lambda_.11} parent=11 // pred_check_branch
        %478 = sbr.rel (%p476) target = $region64
      $region63: #{_lambda_.11} parent=11 // pred_region
        _
      $region64: #{_lambda_.11} parent=11 // pred_fallthru
        _
      // Predicated region
      $region65: #{_lambda_.11} parent=11 // pred_check
        %p479 = pneg %p355
      $region66: #{_lambda_.11} parent=11 // pred_check_branch
        %481 = sbr.rel (%p479) target = $region68
      $region67: #{_lambda_.11} parent=11 // pred_region
        _
      $region68: #{_lambda_.11} parent=11 // pred_fallthru
        _
      // Predicated region
      $region69: #{_lambda_.11} parent=11 // pred_check
        %p482 = pneg %p376
      $region70: #{_lambda_.11} parent=11 // pred_check_branch
        %484 = sbr.rel (%p482) target = $region72
      $region71: #{_lambda_.11} parent=11 // pred_region
        _
      $region72: #{_lambda_.11} parent=11 // pred_fallthru
        _
      // Predicated region
      $region73: #{_lambda_.11} parent=11 // pred_check
        %p485 = pneg %p397
      $region74: #{_lambda_.11} parent=11 // pred_check_branch
        %487 = sbr.rel (%p485) target = $region76
      $region75: #{_lambda_.11} parent=11 // pred_region
        _
      $region76: #{_lambda_.11} parent=11 // pred_fallthru
        _
    $region12: #{_lambda_.11} parent=5 // pred_fallthru
      _
    %p488 = scmp.lt.s32.totalorder %s23, 2
    // Predicated region
    $region77: #{_lambda_.11} parent=5 // pred_check
      %p489 = pneg %p488
    $region78: #{_lambda_.11} parent=5 // pred_check_branch
      %491 = sbr.rel (%p489) target = $region80
    $region79: #{_lambda_.11} parent=5 // pred_region
      // Predicated region
      $region81: #{_lambda_.11} parent=79 // pred_check
        %p492 = pneg %p55
      $region82: #{_lambda_.11} parent=79 // pred_check_branch
        %494 = sbr.rel (%p492) target = $region84
      $region83: #{_lambda_.11} parent=79 // pred_region
        %p495 = scmp.lt.s32.totalorder %s30, 1
        %s496 = scalar_select %p495, %s30, 1
        %s497 = smul.addr %s496, 8
        %s498 = scalar_lea.vmem %s0, %s497
      $region84: #{_lambda_.11} parent=79 // pred_fallthru
        _
    $region80: #{_lambda_.11} parent=5 // pred_fallthru
      _
    %p499 = scmp.le.s32.totalorder 1, %s23
    %p500 = scmp.lt.s32.totalorder %s23, 3
    %p501 = pnand %p499, %p500
    %p502 = pneg %p501
    // Predicated region
    $region85: #{_lambda_.11} parent=5 // pred_check
      _
    $region86: #{_lambda_.11} parent=5 // pred_check_branch
      %504 = sbr.rel (%p501) target = $region88
    $region87: #{_lambda_.11} parent=5 // pred_region
      %s505 = ssub.s32 %s23, 1
      %p506 = scmp.lt.s32.totalorder %s32, 1
      %s507 = scalar_select %p506, %s32, 1
      %s508 = smul.addr %s507, 8
      %s509 = scalar_lea.vmem %s0, %s508
      %p510 = pneg %p61
      %p511 = pneg %p58
      %p512 = pneg %p82
      %p513 = pneg %p79
      %p514 = pneg %p103
      %p515 = pneg %p100
      %p516 = pneg %p124
      %p517 = pneg %p121
      %p518 = pneg %p145
      %p519 = pneg %p142
      %p520 = pneg %p166
      %p521 = pneg %p163
      %p522 = pneg %p187
      %p523 = pneg %p184
      %p524 = pneg %p208
      %p525 = pneg %p205
      %p526 = pneg %p229
      %p527 = pneg %p226
      %p528 = pneg %p250
      %p529 = pneg %p247
      %p530 = pneg %p271
      %p531 = pneg %p268
      %p532 = pneg %p292
      %p533 = pneg %p289
      %p534 = pneg %p313
      %p535 = pneg %p310
      %p536 = pneg %p334
      %p537 = pneg %p331
      %p538 = pneg %p355
      %p539 = pneg %p352
      %p540 = pneg %p376
      %p541 = pneg %p373
      %p542 = pneg %p397
      %p543 = pneg %p394
      %p544 = pneg %p425
      %p545 = pneg %p422
      %p546 = scmp.lt.s32.totalorder %s32, 1
      %s547 = scalar_select %p546, %s32, 1
      %p548 = scmp.lt.s32.totalorder %s33, 0
      %s549 = scalar_select %p548, %s33, 0
      %s550 = sadd.s32 %s549, %s547
      %s551 = smul.addr %s550, 8
      %s552 = scalar_lea.vmem %s17, %s551
      %p553 = scmp.lt.s32.totalorder %s32, 1
      %s554 = scalar_select %p553, %s32, 1
      %s555 = smul.addr %s554, 8
      %s556 = scalar_lea.vmem %s0, %s555
      %p557 = scmp.lt.s32.totalorder %s32, 1
      %s558 = scalar_select %p557, %s32, 1
      %p559 = scmp.lt.s32.totalorder %s33, 0
      %s560 = scalar_select %p559, %s33, 0
      %s561 = sadd.s32 %s560, %s558
      %s562 = smul.addr %s561, 8
      %s563 = scalar_lea.vmem %s17, %s562
      %v565 = vld [vmem:[%s556] sm:$0xff]
      %vm566 = vcmask 261120
      %v567 = vsel %vm566, %v565, 0.0
      %568 = vadd.xlane.f32.xlu0 %v567
      %v569 = vpop.xlane.xlu0 %568
      %v570 = vrcp.pop 32.0
      %v571 = vmul.f32 32.0, %v570
      %v572 = vsub.f32 1.0, %v571
      %v573 = vmul.f32 %v570, %v572
      %v574 = vadd.f32 %v570, %v573
      %vm575 = vweird.f32 %v570
      %v576 = vsel %vm575, %v570, %v574
      %v577 = vmul.f32 %v569, %v576
      %v578 = vsub.f32 %v565, %v577
      %v579 = vmul.f32 %v578, %v578
      %v580 = vsel %vm566, %v579, 0.0
      %581 = vadd.xlane.f32.xlu0 %v580
      %v582 = vpop.xlane.xlu0 %581
      %v583 = vmul.f32 %v582, %v576
      %v584 = vadd.f32 %v583, 1e-05
      %v585 = vrsqrt.pop %v584
      %v586 = vmul.f32 %v585, %v584
      %v587 = vmul.f32 %v586, %v585
      %v588 = vmul.f32 0.5, %v587
      %v589 = vsub.f32 1.5, %v588
      %v590 = vmul.f32 %v585, %v589
      %vm591 = vweird.f32 %v584
      %vm592 = vweird.f32 %v585
      %vm593 = vmor %vm591, %vm592
      %v594 = vsel %vm593, %v585, %v590
      %v595 = vmul.f32 %v578, %v594
      %v596 = vld [vmem:[%s1] sm:$0x1]
      %v598 = vperm.slane %v596, 0
      %v600 = vmul.f32 %v595, %v598
      %v601 = vld [vmem:[%s2] sm:$0x1]
      %v603 = vperm.slane %v601, 0
      %v605 = vadd.f32 %v600, %v603
      %v606 = vpack.c.bf16 %v605, %v605
      %v607 = vld [vmem:[%s3] sm:$0xf]
      %v608 = vld [vmem:[%s3 + $0x4] sm:$0xf]
      %v609 = vld [vmem:[%s3 + $0x8] sm:$0xf]
      %v610 = vld [vmem:[%s3 + $0xc] sm:$0xf]
      %v611 = vld [vmem:[%s4] sm:$0x1]
      %v613 = vperm.slane %v611, 0
      %v619 = vunpack.c.l.b16 %v607
      %v620 = vunpack.c.l.b16 %v608
      %v621 = vunpack.c.l.b16 %v609
      %v622 = vunpack.c.l.b16 %v610
      %v623 = vpack.c.b16 %v620, %v619
      %v624 = vpack.c.b16 %v622, %v621
      %v628 = vsel %vm566, %v606, 0
      %630 = vmatpush.bf16.msra.mxu0 0
      %631 = vmatpush.bf16.msra.mxu0 0
      %632 = vmatpush.bf16.msra.mxu0 0
      %633 = vmatpush.bf16.msra.mxu0 0
      %634 = vmatpush.bf16.msra.mxu0 0
      %635 = vmatpush.bf16.msra.mxu0 0
      %636 = vmatpush.bf16.msra.mxu0 %v624
      %637 = vmatpush.bf16.msra.mxu0 %v623
      %638 = vmatmul.bf16.gmra.mxu0 %v628
      %v639 = vpop.f32.mrf.mxu0
      %v640 = vadd.f32 %v613, %v639
      %v641 = vpop.f32.mrf.mxu0
      %642 = vdwg.mxu0
      %v643 = vld [vmem:[%s5] sm:$0xf]
      %v644 = vld [vmem:[%s5 + $0x4] sm:$0xf]
      %v645 = vld [vmem:[%s5 + $0x8] sm:$0xf]
      %v646 = vld [vmem:[%s5 + $0xc] sm:$0xf]
      %v647 = vld [vmem:[%s6] sm:$0x1]
      %v649 = vperm.slane %v647, 0
      %v655 = vunpack.c.l.b16 %v643
      %v656 = vunpack.c.l.b16 %v644
      %v657 = vunpack.c.l.b16 %v645
      %v658 = vunpack.c.l.b16 %v646
      %v659 = vpack.c.b16 %v656, %v655
      %v660 = vpack.c.b16 %v658, %v657
      %663 = vmatpush.bf16.msra.mxu0 0
      %664 = vmatpush.bf16.msra.mxu0 0
      %665 = vmatpush.bf16.msra.mxu0 0
      %666 = vmatpush.bf16.msra.mxu0 0
      %667 = vmatpush.bf16.msra.mxu0 0
      %668 = vmatpush.bf16.msra.mxu0 0
      %669 = vmatpush.bf16.msra.mxu0 %v660
      %670 = vmatpush.bf16.msra.mxu0 %v659
      %671 = vmatmul.bf16.gmra.mxu0 %v628
      %v672 = vpop.f32.mrf.mxu0
      %v673 = vadd.f32 %v649, %v672
      %v674 = vpop.f32.mrf.mxu0
      %675 = vdwg.mxu0
      %v676 = vld [vmem:[%s7] sm:$0xf]
      %v677 = vld [vmem:[%s7 + $0x4] sm:$0xf]
      %v678 = vld [vmem:[%s7 + $0x8] sm:$0xf]
      %v679 = vld [vmem:[%s7 + $0xc] sm:$0xf]
      %v680 = vld [vmem:[%s8] sm:$0x1]
      %v682 = vperm.slane %v680, 0
      %v688 = vunpack.c.l.b16 %v676
      %v689 = vunpack.c.l.b16 %v677
      %v690 = vunpack.c.l.b16 %v678
      %v691 = vunpack.c.l.b16 %v679
      %v692 = vpack.c.b16 %v689, %v688
      %v693 = vpack.c.b16 %v691, %v690
      %696 = vmatpush.bf16.msra.mxu0 0
      %697 = vmatpush.bf16.msra.mxu0 0
      %698 = vmatpush.bf16.msra.mxu0 0
      %699 = vmatpush.bf16.msra.mxu0 0
      %700 = vmatpush.bf16.msra.mxu0 0
      %701 = vmatpush.bf16.msra.mxu0 0
      %702 = vmatpush.bf16.msra.mxu0 %v693
      %703 = vmatpush.bf16.msra.mxu0 %v692
      %704 = vmatmul.bf16.gmra.mxu0 %v628
      %v705 = vpop.f32.mrf.mxu0
      %v706 = vadd.f32 %v682, %v705
      %v707 = vpop.f32.mrf.mxu0
      %708 = vdwg.mxu0
      %v709 = vpack.c.bf16 %v640, %v640
      %711 = vrot.lane.b32.xlu0 %v709, 120
      %v712 = vpop.permute.xlu0 %711
      %713 = vrot.lane.b32.xlu0 %v709, 112
      %v714 = vpop.permute.xlu0 %713
      %715 = vrot.lane.b32.xlu0 %v709, 104
      %v716 = vpop.permute.xlu0 %715
      %v719 = vpack.i.b16 %v712, %v709
      %v720 = vshrl.u32 %v709, 16
      %v721 = vshrl.u32 %v712, 16
      %v722 = vpack.i.b16 %v721, %v720
      %v725 = vpack.i.b16 %v716, %v714
      %v726 = vshrl.u32 %v714, 16
      %v727 = vshrl.u32 %v716, 16
      %v728 = vpack.i.b16 %v727, %v726
      %v731 = vunpack.c.l.s4 1983009808
      %v732 = vunpack.c.0.s8 %v731
      %v733 = vperm.slane %v719, %v732
      %v736 = vunpack.c.l.s4 1983009808
      %v737 = vunpack.c.0.s8 %v736
      %v738 = vperm.slane %v725, %v737
      %v739 = vrot.slane %v738, 4
      %vm740 = vcmask 1047556
      %v741 = vsel %vm740, %v739, %v733
      %v742 = vrot.slane %v733, 4
      %v743 = vsel %vm740, %v738, %v742
      %v745 = vunpack.c.l.s4 1934713408
      %v746 = vunpack.c.0.s8 %v745
      %v747 = vperm.slane %v741, %v746
      %v749 = vunpack.c.l.s4 1934713408
      %v750 = vunpack.c.0.s8 %v749
      %v751 = vperm.slane %v743, %v750
      %v752 = vrot.slane %v747, 4
      %v753 = vsel %vm740, 0, %v752
      %v754 = vrot.slane %v751, 4
      %v755 = vsel %vm740, 0, %v754
      %v758 = vunpack.c.l.s4 1983009808
      %v759 = vunpack.c.0.s8 %v758
      %v760 = vperm.slane %v722, %v759
      %v763 = vunpack.c.l.s4 1983009808
      %v764 = vunpack.c.0.s8 %v763
      %v765 = vperm.slane %v728, %v764
      %v766 = vrot.slane %v765, 4
      %v767 = vsel %vm740, %v766, %v760
      %v768 = vrot.slane %v760, 4
      %v769 = vsel %vm740, %v765, %v768
      %v771 = vunpack.c.l.s4 1934713408
      %v772 = vunpack.c.0.s8 %v771
      %v773 = vperm.slane %v767, %v772
      %v775 = vunpack.c.l.s4 1934713408
      %v776 = vunpack.c.0.s8 %v775
      %v777 = vperm.slane %v769, %v776
      %v778 = vrot.slane %v773, 4
      %v779 = vsel %vm740, 0, %v778
      %v780 = vrot.slane %v777, 4
      %v781 = vsel %vm740, 0, %v780
      %v782 = vsel %vm740, %v754, %v747
      %v784 = vunpack.c.l.s4 1983009808
      %v785 = vunpack.c.0.s8 %v784
      %v786 = vperm.slane %v782, %v785
      %v787 = vrot.slane %v755, 4
      %v788 = vsel %vm740, %v787, %v753
      %v790 = vunpack.c.l.s4 1983009808
      %v791 = vunpack.c.0.s8 %v790
      %v792 = vperm.slane %v788, %v791
      %v793 = vrot.slane %v792, 4
      %v794 = vsel %vm740, %v793, %v786
      %v796 = vunpack.c.l.s4 1934713408
      %v797 = vunpack.c.0.s8 %v796
      %v798 = vperm.slane %v794, %v797
      %v799 = vrot.slane %v798, 4
      %v800 = vsel %vm740, 0, %v799
      %v801 = vsel %vm740, %v780, %v773
      %v803 = vunpack.c.l.s4 1983009808
      %v804 = vunpack.c.0.s8 %v803
      %v805 = vperm.slane %v801, %v804
      %v806 = vrot.slane %v781, 4
      %v807 = vsel %vm740, %v806, %v779
      %v809 = vunpack.c.l.s4 1983009808
      %v810 = vunpack.c.0.s8 %v809
      %v811 = vperm.slane %v807, %v810
      %v812 = vrot.slane %v811, 4
      %v813 = vsel %vm740, %v812, %v805
      %v815 = vunpack.c.l.s4 1934713408
      %v816 = vunpack.c.0.s8 %v815
      %v817 = vperm.slane %v813, %v816
      %v818 = vrot.slane %v817, 4
      %v819 = vsel %vm740, 0, %v818
      %v822 = vpack.i.b16 %v817, %v798
      %v823 = vshrl.u32 %v798, 16
      %v824 = vshrl.u32 %v817, 16
      %v825 = vpack.i.b16 %v824, %v823
      %v828 = vpack.i.b16 %v819, %v800
      %v829 = vshrl.u32 %v800, 16
      %v830 = vshrl.u32 %v819, 16
      %v831 = vpack.i.b16 %v830, %v829
      %v832 = vpack.c.bf16 %v673, %v673
      %834 = vrot.lane.b32.xlu0 %v832, 120
      %v835 = vpop.permute.xlu0 %834
      %836 = vrot.lane.b32.xlu0 %v832, 112
      %v837 = vpop.permute.xlu0 %836
      %838 = vrot.lane.b32.xlu0 %v832, 104
      %v839 = vpop.permute.xlu0 %838
      %v842 = vpack.i.b16 %v835, %v832
      %v843 = vshrl.u32 %v832, 16
      %v844 = vshrl.u32 %v835, 16
      %v845 = vpack.i.b16 %v844, %v843
      %v848 = vpack.i.b16 %v839, %v837
      %v849 = vshrl.u32 %v837, 16
      %v850 = vshrl.u32 %v839, 16
      %v851 = vpack.i.b16 %v850, %v849
      %v854 = vunpack.c.l.s4 1983009808
      %v855 = vunpack.c.0.s8 %v854
      %v856 = vperm.slane %v842, %v855
      %v859 = vunpack.c.l.s4 1983009808
      %v860 = vunpack.c.0.s8 %v859
      %v861 = vperm.slane %v848, %v860
      %v862 = vrot.slane %v861, 4
      %v863 = vsel %vm740, %v862, %v856
      %v864 = vrot.slane %v856, 4
      %v865 = vsel %vm740, %v861, %v864
      %v867 = vunpack.c.l.s4 1934713408
      %v868 = vunpack.c.0.s8 %v867
      %v869 = vperm.slane %v863, %v868
      %v871 = vunpack.c.l.s4 1934713408
      %v872 = vunpack.c.0.s8 %v871
      %v873 = vperm.slane %v865, %v872
      %v874 = vrot.slane %v869, 4
      %v875 = vsel %vm740, 0, %v874
      %v876 = vrot.slane %v873, 4
      %v877 = vsel %vm740, 0, %v876
      %v880 = vunpack.c.l.s4 1983009808
      %v881 = vunpack.c.0.s8 %v880
      %v882 = vperm.slane %v845, %v881
      %v885 = vunpack.c.l.s4 1983009808
      %v886 = vunpack.c.0.s8 %v885
      %v887 = vperm.slane %v851, %v886
      %v888 = vrot.slane %v887, 4
      %v889 = vsel %vm740, %v888, %v882
      %v890 = vrot.slane %v882, 4
      %v891 = vsel %vm740, %v887, %v890
      %v893 = vunpack.c.l.s4 1934713408
      %v894 = vunpack.c.0.s8 %v893
      %v895 = vperm.slane %v889, %v894
      %v897 = vunpack.c.l.s4 1934713408
      %v898 = vunpack.c.0.s8 %v897
      %v899 = vperm.slane %v891, %v898
      %v900 = vrot.slane %v895, 4
      %v901 = vsel %vm740, 0, %v900
      %v902 = vrot.slane %v899, 4
      %v903 = vsel %vm740, 0, %v902
      %v904 = vsel %vm740, %v876, %v869
      %v906 = vunpack.c.l.s4 1983009808
      %v907 = vunpack.c.0.s8 %v906
      %v908 = vperm.slane %v904, %v907
      %v909 = vrot.slane %v877, 4
      %v910 = vsel %vm740, %v909, %v875
      %v912 = vunpack.c.l.s4 1983009808
      %v913 = vunpack.c.0.s8 %v912
      %v914 = vperm.slane %v910, %v913
      %v915 = vrot.slane %v914, 4
      %v916 = vsel %vm740, %v915, %v908
      %v918 = vunpack.c.l.s4 1934713408
      %v919 = vunpack.c.0.s8 %v918
      %v920 = vperm.slane %v916, %v919
      %v921 = vrot.slane %v920, 4
      %v922 = vsel %vm740, 0, %v921
      %v923 = vsel %vm740, %v902, %v895
      %v925 = vunpack.c.l.s4 1983009808
      %v926 = vunpack.c.0.s8 %v925
      %v927 = vperm.slane %v923, %v926
      %v928 = vrot.slane %v903, 4
      %v929 = vsel %vm740, %v928, %v901
      %v931 = vunpack.c.l.s4 1983009808
      %v932 = vunpack.c.0.s8 %v931
      %v933 = vperm.slane %v929, %v932
      %v934 = vrot.slane %v933, 4
      %v935 = vsel %vm740, %v934, %v927
      %v937 = vunpack.c.l.s4 1934713408
      %v938 = vunpack.c.0.s8 %v937
      %v939 = vperm.slane %v935, %v938
      %v940 = vrot.slane %v939, 4
      %v941 = vsel %vm740, 0, %v940
      %v944 = vpack.i.b16 %v939, %v920
      %v945 = vshrl.u32 %v920, 16
      %v946 = vshrl.u32 %v939, 16
      %v947 = vpack.i.b16 %v946, %v945
      %v950 = vpack.i.b16 %v941, %v922
      %v951 = vshrl.u32 %v922, 16
      %v952 = vshrl.u32 %v941, 16
      %v953 = vpack.i.b16 %v952, %v951
      %v954 = vpack.c.bf16 %v706, %v706
      %956 = vrot.lane.b32.xlu0 %v954, 120
      %v957 = vpop.permute.xlu0 %956
      %958 = vrot.lane.b32.xlu0 %v954, 112
      %v959 = vpop.permute.xlu0 %958
      %960 = vrot.lane.b32.xlu0 %v954, 104
      %v961 = vpop.permute.xlu0 %960
      %v964 = vpack.i.b16 %v957, %v954
      %v965 = vshrl.u32 %v954, 16
      %v966 = vshrl.u32 %v957, 16
      %v967 = vpack.i.b16 %v966, %v965
      %v970 = vpack.i.b16 %v961, %v959
      %v971 = vshrl.u32 %v959, 16
      %v972 = vshrl.u32 %v961, 16
      %v973 = vpack.i.b16 %v972, %v971
      %v976 = vunpack.c.l.s4 1983009808
      %v977 = vunpack.c.0.s8 %v976
      %v978 = vperm.slane %v964, %v977
      %v981 = vunpack.c.l.s4 1983009808
      %v982 = vunpack.c.0.s8 %v981
      %v983 = vperm.slane %v970, %v982
      %v984 = vrot.slane %v983, 4
      %v985 = vsel %vm740, %v984, %v978
      %v986 = vrot.slane %v978, 4
      %v987 = vsel %vm740, %v983, %v986
      %v989 = vunpack.c.l.s4 1934713408
      %v990 = vunpack.c.0.s8 %v989
      %v991 = vperm.slane %v985, %v990
      %v993 = vunpack.c.l.s4 1934713408
      %v994 = vunpack.c.0.s8 %v993
      %v995 = vperm.slane %v987, %v994
      %v996 = vrot.slane %v991, 4
      %v997 = vsel %vm740, 0, %v996
      %v998 = vrot.slane %v995, 4
      %v999 = vsel %vm740, 0, %v998
      %v1002 = vunpack.c.l.s4 1983009808
      %v1003 = vunpack.c.0.s8 %v1002
      %v1004 = vperm.slane %v967, %v1003
      %v1007 = vunpack.c.l.s4 1983009808
      %v1008 = vunpack.c.0.s8 %v1007
      %v1009 = vperm.slane %v973, %v1008
      %v1010 = vrot.slane %v1009, 4
      %v1011 = vsel %vm740, %v1010, %v1004
      %v1012 = vrot.slane %v1004, 4
      %v1013 = vsel %vm740, %v1009, %v1012
      %v1015 = vunpack.c.l.s4 1934713408
      %v1016 = vunpack.c.0.s8 %v1015
      %v1017 = vperm.slane %v1011, %v1016
      %v1019 = vunpack.c.l.s4 1934713408
      %v1020 = vunpack.c.0.s8 %v1019
      %v1021 = vperm.slane %v1013, %v1020
      %v1022 = vrot.slane %v1017, 4
      %v1023 = vsel %vm740, 0, %v1022
      %v1024 = vrot.slane %v1021, 4
      %v1025 = vsel %vm740, 0, %v1024
      %v1026 = vsel %vm740, %v998, %v991
      %v1028 = vunpack.c.l.s4 1983009808
      %v1029 = vunpack.c.0.s8 %v1028
      %v1030 = vperm.slane %v1026, %v1029
      %v1031 = vrot.slane %v999, 4
      %v1032 = vsel %vm740, %v1031, %v997
      %v1034 = vunpack.c.l.s4 1983009808
      %v1035 = vunpack.c.0.s8 %v1034
      %v1036 = vperm.slane %v1032, %v1035
      %v1037 = vrot.slane %v1036, 4
      %v1038 = vsel %vm740, %v1037, %v1030
      %v1040 = vunpack.c.l.s4 1934713408
      %v1041 = vunpack.c.0.s8 %v1040
      %v1042 = vperm.slane %v1038, %v1041
      %v1043 = vrot.slane %v1042, 4
      %v1044 = vsel %vm740, 0, %v1043
      %v1045 = vsel %vm740, %v1024, %v1017
      %v1047 = vunpack.c.l.s4 1983009808
      %v1048 = vunpack.c.0.s8 %v1047
      %v1049 = vperm.slane %v1045, %v1048
      %v1050 = vrot.slane %v1025, 4
      %v1051 = vsel %vm740, %v1050, %v1023
      %v1053 = vunpack.c.l.s4 1983009808
      %v1054 = vunpack.c.0.s8 %v1053
      %v1055 = vperm.slane %v1051, %v1054
      %v1056 = vrot.slane %v1055, 4
      %v1057 = vsel %vm740, %v1056, %v1049
      %v1059 = vunpack.c.l.s4 1934713408
      %v1060 = vunpack.c.0.s8 %v1059
      %v1061 = vperm.slane %v1057, %v1060
      %v1062 = vrot.slane %v1061, 4
      %v1063 = vsel %vm740, 0, %v1062
      %v1066 = vpack.i.b16 %v1061, %v1042
      %v1067 = vshrl.u32 %v1042, 16
      %v1068 = vshrl.u32 %v1061, 16
      %v1069 = vpack.i.b16 %v1068, %v1067
      %v1072 = vpack.i.b16 %v1063, %v1044
      %v1073 = vshrl.u32 %v1044, 16
      %v1074 = vshrl.u32 %v1063, 16
      %v1075 = vpack.i.b16 %v1074, %v1073
      %vm1076 = vcmask 64512
      %v1078 = vsel %vm1076, %v822, 0
      %v1081 = vsel %vm1076, %v944, 0
      %1083 = vmatpush.bf16.xpose.msra.mxu0 0
      %1084 = vmatpush.bf16.xpose.msra.mxu0 0
      %1085 = vmatpush.bf16.xpose.msra.mxu0 0
      %1086 = vmatpush.bf16.xpose.msra.mxu0 0
      %1087 = vmatpush.bf16.xpose.msra.mxu0 0
      %1088 = vmatpush.bf16.xpose.msra.mxu0 0
      %1089 = vmatpush.bf16.xpose.msra.mxu0 0
      %1090 = vmatpush.bf16.xpose.msra.mxu0 %v1081
      %1091 = vmatmul.bf16.gmra.mxu0 %v1078
      %v1092 = vpop.f32.mrf.mxu0
      %v1093 = vadd.f32 0.0, %v1092
      %v1094 = vpop.f32.mrf.mxu0
      %1095 = vdwg.mxu0
      %v1097 = vsel %vm1076, %v825, 0
      %v1100 = vsel %vm1076, %v947, 0
      %1102 = vmatpush.bf16.xpose.msra.mxu0 0
      %1103 = vmatpush.bf16.xpose.msra.mxu0 0
      %1104 = vmatpush.bf16.xpose.msra.mxu0 0
      %1105 = vmatpush.bf16.xpose.msra.mxu0 0
      %1106 = vmatpush.bf16.xpose.msra.mxu0 0
      %1107 = vmatpush.bf16.xpose.msra.mxu0 0
      %1108 = vmatpush.bf16.xpose.msra.mxu0 0
      %1109 = vmatpush.bf16.xpose.msra.mxu0 %v1100
      %1110 = vmatmul.bf16.gmra.mxu0 %v1097
      %v1111 = vpop.f32.mrf.mxu0
      %v1112 = vadd.f32 0.0, %v1111
      %v1113 = vpop.f32.mrf.mxu0
      %1114 = vdwg.mxu0
      %v1116 = vsel %vm1076, %v828, 0
      %v1119 = vsel %vm1076, %v950, 0
      %1121 = vmatpush.bf16.xpose.msra.mxu0 0
      %1122 = vmatpush.bf16.xpose.msra.mxu0 0
      %1123 = vmatpush.bf16.xpose.msra.mxu0 0
      %1124 = vmatpush.bf16.xpose.msra.mxu0 0
      %1125 = vmatpush.bf16.xpose.msra.mxu0 0
      %1126 = vmatpush.bf16.xpose.msra.mxu0 0
      %1127 = vmatpush.bf16.xpose.msra.mxu0 0
      %1128 = vmatpush.bf16.xpose.msra.mxu0 %v1119
      %1129 = vmatmul.bf16.gmra.mxu0 %v1116
      %v1130 = vpop.f32.mrf.mxu0
      %v1131 = vadd.f32 0.0, %v1130
      %v1132 = vpop.f32.mrf.mxu0
      %1133 = vdwg.mxu0
      %v1135 = vsel %vm1076, %v831, 0
      %v1138 = vsel %vm1076, %v953, 0
      %1140 = vmatpush.bf16.xpose.msra.mxu0 0
      %1141 = vmatpush.bf16.xpose.msra.mxu0 0
      %1142 = vmatpush.bf16.xpose.msra.mxu0 0
      %1143 = vmatpush.bf16.xpose.msra.mxu0 0
      %1144 = vmatpush.bf16.xpose.msra.mxu0 0
      %1145 = vmatpush.bf16.xpose.msra.mxu0 0
      %1146 = vmatpush.bf16.xpose.msra.mxu0 0
      %1147 = vmatpush.bf16.xpose.msra.mxu0 %v1138
      %1148 = vmatmul.bf16.gmra.mxu0 %v1135
      %v1149 = vpop.f32.mrf.mxu0
      %v1150 = vadd.f32 0.0, %v1149
      %v1151 = vpop.f32.mrf.mxu0
      %1152 = vdwg.mxu0
      %v1153 = vmul.f32 %v1093, 0.35355338
      %v1154 = vmul.f32 %v1112, 0.35355338
      %v1155 = vmul.f32 %v1131, 0.35355338
      %v1156 = vmul.f32 %v1150, 0.35355338
      %v1157 = vlaneseq
      %v1158 = vand.u32 %v1157, 127
      %vm1159 = vcmp.lt.s32.totalorder %v1158, 5
      %v1160 = vsel %vm1159, %v1153, -1e+30
      %v1161 = vsel %vm1159, %v1154, -1e+30
      %v1162 = vsel %vm1159, %v1155, -1e+30
      %v1163 = vsel %vm1159, %v1156, -1e+30
      %v1164 = vsel %vm1076, %v1160, -inf
      %1165 = vmax.xlane.f32.xlu0 %v1164
      %v1166 = vpop.xlane.xlu0 %1165
      %v1167 = vsel %vm1076, %v1161, -inf
      %1168 = vmax.xlane.f32.xlu0 %v1167
      %v1169 = vpop.xlane.xlu0 %1168
      %v1170 = vsel %vm1076, %v1162, -inf
      %1171 = vmax.xlane.f32.xlu0 %v1170
      %v1172 = vpop.xlane.xlu0 %1171
      %v1173 = vsel %vm1076, %v1163, -inf
      %1174 = vmax.xlane.f32.xlu0 %v1173
      %v1175 = vpop.xlane.xlu0 %1174
      %v1176 = vsub.f32 %v1160, %v1166
      %v1177 = vsub.f32 %v1161, %v1169
      %v1178 = vsub.f32 %v1162, %v1172
      %v1179 = vsub.f32 %v1163, %v1175
      %v1180 = vmul.f32 %v1176, 1.442695
      %v1181 = vpow.pop %v1180
      %v1182 = vmul.f32 %v1177, 1.442695
      %v1183 = vpow.pop %v1182
      %v1184 = vmul.f32 %v1178, 1.442695
      %v1185 = vpow.pop %v1184
      %v1186 = vmul.f32 %v1179, 1.442695
      %v1187 = vpow.pop %v1186
      %v1188 = vsel %vm1076, %v1181, 0.0
      %1189 = vadd.xlane.f32.xlu0 %v1188
      %v1190 = vpop.xlane.xlu0 %1189
      %v1191 = vsel %vm1076, %v1183, 0.0
      %1192 = vadd.xlane.f32.xlu0 %v1191
      %v1193 = vpop.xlane.xlu0 %1192
      %v1194 = vsel %vm1076, %v1185, 0.0
      %1195 = vadd.xlane.f32.xlu0 %v1194
      %v1196 = vpop.xlane.xlu0 %1195
      %v1197 = vsel %vm1076, %v1187, 0.0
      %1198 = vadd.xlane.f32.xlu0 %v1197
      %v1199 = vpop.xlane.xlu0 %1198
      %v1200 = vrcp.pop %v1190
      %v1201 = vrcp.pop %v1193
      %v1202 = vrcp.pop %v1196
      %v1203 = vrcp.pop %v1199
      %v1204 = vmul.f32 %v1181, %v1200
      %v1205 = vmul.f32 %v1183, %v1201
      %v1206 = vmul.f32 %v1185, %v1202
      %v1207 = vmul.f32 %v1187, %v1203
      %v1208 = vpack.c.bf16 %v1204, %v1204
      %v1209 = vpack.c.bf16 %v1205, %v1205
      %v1210 = vpack.c.bf16 %v1206, %v1206
      %v1211 = vpack.c.bf16 %v1207, %v1207
      %v1213 = vsel %vm1076, %v1208, 0
      %vm1215 = vcmask 1043456
      %v1217 = vsel %vm1215, %v1066, 0
      %1219 = vmatpush.bf16.msra.mxu0 0
      %1220 = vmatpush.bf16.msra.mxu0 0
      %1221 = vmatpush.bf16.msra.mxu0 0
      %1222 = vmatpush.bf16.msra.mxu0 0
      %1223 = vmatpush.bf16.msra.mxu0 0
      %1224 = vmatpush.bf16.msra.mxu0 0
      %1225 = vmatpush.bf16.msra.mxu0 0
      %1226 = vmatpush.bf16.msra.mxu0 %v1217
      %1227 = vmatmul.bf16.gmra.mxu0 %v1213
      %v1228 = vpop.f32.mrf.mxu0
      %v1229 = vadd.f32 0.0, %v1228
      %v1230 = vpop.f32.mrf.mxu0
      %1231 = vdwg.mxu0
      %v1233 = vsel %vm1076, %v1209, 0
      %v1236 = vsel %vm1215, %v1069, 0
      %1238 = vmatpush.bf16.msra.mxu0 0
      %1239 = vmatpush.bf16.msra.mxu0 0
      %1240 = vmatpush.bf16.msra.mxu0 0
      %1241 = vmatpush.bf16.msra.mxu0 0
      %1242 = vmatpush.bf16.msra.mxu0 0
      %1243 = vmatpush.bf16.msra.mxu0 0
      %1244 = vmatpush.bf16.msra.mxu0 0
      %1245 = vmatpush.bf16.msra.mxu0 %v1236
      %1246 = vmatmul.bf16.gmra.mxu0 %v1233
      %v1247 = vpop.f32.mrf.mxu0
      %v1248 = vadd.f32 0.0, %v1247
      %v1249 = vpop.f32.mrf.mxu0
      %1250 = vdwg.mxu0
      %v1252 = vsel %vm1076, %v1210, 0
      %v1255 = vsel %vm1215, %v1072, 0
      %1257 = vmatpush.bf16.msra.mxu0 0
      %1258 = vmatpush.bf16.msra.mxu0 0
      %1259 = vmatpush.bf16.msra.mxu0 0
      %1260 = vmatpush.bf16.msra.mxu0 0
      %1261 = vmatpush.bf16.msra.mxu0 0
      %1262 = vmatpush.bf16.msra.mxu0 0
      %1263 = vmatpush.bf16.msra.mxu0 0
      %1264 = vmatpush.bf16.msra.mxu0 %v1255
      %1265 = vmatmul.bf16.gmra.mxu0 %v1252
      %v1266 = vpop.f32.mrf.mxu0
      %v1267 = vadd.f32 0.0, %v1266
      %v1268 = vpop.f32.mrf.mxu0
      %1269 = vdwg.mxu0
      %v1271 = vsel %vm1076, %v1211, 0
      %v1274 = vsel %vm1215, %v1075, 0
      %1276 = vmatpush.bf16.msra.mxu0 0
      %1277 = vmatpush.bf16.msra.mxu0 0
      %1278 = vmatpush.bf16.msra.mxu0 0
      %1279 = vmatpush.bf16.msra.mxu0 0
      %1280 = vmatpush.bf16.msra.mxu0 0
      %1281 = vmatpush.bf16.msra.mxu0 0
      %1282 = vmatpush.bf16.msra.mxu0 0
      %1283 = vmatpush.bf16.msra.mxu0 %v1274
      %1284 = vmatmul.bf16.gmra.mxu0 %v1271
      %v1285 = vpop.f32.mrf.mxu0
      %v1286 = vadd.f32 0.0, %v1285
      %v1287 = vpop.f32.mrf.mxu0
      %1288 = vdwg.mxu0
      %v1289 = vrot.slane %v1267, 4
      %vm1290 = vcmask 1047556
      %v1291 = vsel %vm1290, %v1289, %v1229
      %v1292 = vrot.slane %v1229, 4
      %v1293 = vsel %vm1290, %v1267, %v1292
      %v1295 = vunpack.c.l.s4 1983009808
      %v1296 = vunpack.c.0.s8 %v1295
      %v1297 = vperm.slane %v1291, %v1296
      %v1299 = vunpack.c.l.s4 1983009808
      %v1300 = vunpack.c.0.s8 %v1299
      %v1301 = vperm.slane %v1293, %v1300
      %v1302 = vrot.slane %v1286, 4
      %v1303 = vsel %vm1290, %v1302, %v1248
      %v1304 = vrot.slane %v1248, 4
      %v1305 = vsel %vm1290, %v1286, %v1304
      %v1307 = vunpack.c.l.s4 1983009808
      %v1308 = vunpack.c.0.s8 %v1307
      %v1309 = vperm.slane %v1303, %v1308
      %v1311 = vunpack.c.l.s4 1983009808
      %v1312 = vunpack.c.0.s8 %v1311
      %v1313 = vperm.slane %v1305, %v1312
      %v1314 = vrot.slane %v1309, 4
      %v1315 = vsel %vm1290, %v1314, %v1297
      %v1316 = vrot.slane %v1297, 4
      %v1317 = vsel %vm1290, %v1309, %v1316
      %v1319 = vunpack.c.l.s4 1934713408
      %v1320 = vunpack.c.0.s8 %v1319
      %v1321 = vperm.slane %v1315, %v1320
      %v1323 = vunpack.c.l.s4 1934713408
      %v1324 = vunpack.c.0.s8 %v1323
      %v1325 = vperm.slane %v1317, %v1324
      %v1326 = vrot.slane %v1313, 4
      %v1327 = vsel %vm1290, %v1326, %v1301
      %v1328 = vrot.slane %v1301, 4
      %v1329 = vsel %vm1290, %v1313, %v1328
      %v1331 = vunpack.c.l.s4 1934713408
      %v1332 = vunpack.c.0.s8 %v1331
      %v1333 = vperm.slane %v1327, %v1332
      %v1335 = vunpack.c.l.s4 1934713408
      %v1336 = vunpack.c.0.s8 %v1335
      %v1337 = vperm.slane %v1329, %v1336
      %v1338 = vrot.slane %v1321, 4
      %v1339 = vsel %vm1290, 0.0, %v1338
      %v1340 = vrot.slane %v1325, 4
      %v1341 = vsel %vm1290, 0.0, %v1340
      %v1342 = vrot.slane %v1333, 4
      %v1343 = vsel %vm1290, 0.0, %v1342
      %v1344 = vrot.slane %v1337, 4
      %v1345 = vsel %vm1290, 0.0, %v1344
      %v1346 = vsel %vm1290, %v1340, %v1321
      %v1348 = vunpack.c.l.s4 1983009808
      %v1349 = vunpack.c.0.s8 %v1348
      %v1350 = vperm.slane %v1346, %v1349
      %v1351 = vrot.slane %v1341, 4
      %v1352 = vsel %vm1290, %v1351, %v1339
      %v1354 = vunpack.c.l.s4 1983009808
      %v1355 = vunpack.c.0.s8 %v1354
      %v1356 = vperm.slane %v1352, %v1355
      %v1357 = vsel %vm1290, %v1344, %v1333
      %v1359 = vunpack.c.l.s4 1983009808
      %v1360 = vunpack.c.0.s8 %v1359
      %v1361 = vperm.slane %v1357, %v1360
      %v1362 = vrot.slane %v1345, 4
      %v1363 = vsel %vm1290, %v1362, %v1343
      %v1365 = vunpack.c.l.s4 1983009808
      %v1366 = vunpack.c.0.s8 %v1365
      %v1367 = vperm.slane %v1363, %v1366
      %v1368 = vrot.slane %v1356, 4
      %v1369 = vsel %vm1290, %v1368, %v1350
      %v1370 = vrot.slane %v1350, 4
      %v1371 = vsel %vm1290, %v1356, %v1370
      %v1373 = vunpack.c.l.s4 1934713408
      %v1374 = vunpack.c.0.s8 %v1373
      %v1375 = vperm.slane %v1369, %v1374
      %v1377 = vunpack.c.l.s4 1934713408
      %v1378 = vunpack.c.0.s8 %v1377
      %v1379 = vperm.slane %v1371, %v1378
      %v1380 = vrot.slane %v1367, 4
      %v1381 = vsel %vm1290, %v1380, %v1361
      %v1382 = vrot.slane %v1361, 4
      %v1383 = vsel %vm1290, %v1367, %v1382
      %v1385 = vunpack.c.l.s4 1934713408
      %v1386 = vunpack.c.0.s8 %v1385
      %v1387 = vperm.slane %v1381, %v1386
      %v1389 = vunpack.c.l.s4 1934713408
      %v1390 = vunpack.c.0.s8 %v1389
      %v1391 = vperm.slane %v1383, %v1390
      %v1392 = vrot.slane %v1387, 4
      %v1393 = vsel %vm1290, %v1392, %v1375
      %v1394 = vrot.slane %v1375, 4
      %v1395 = vsel %vm1290, %v1387, %v1394
      %v1396 = vrot.slane %v1391, 4
      %v1397 = vsel %vm1290, %v1396, %v1379
      %v1398 = vrot.slane %v1379, 4
      %v1399 = vsel %vm1290, %v1391, %v1398
      %1401 = vrot.lane.b32.xlu0 %v1395, 8
      %v1402 = vpop.permute.xlu0 %1401
      %1405 = vrot.lane.b32.xlu0 %v1397, 16
      %v1406 = vpop.permute.xlu0 %1405
      %1409 = vrot.lane.b32.xlu0 %v1399, 24
      %v1410 = vpop.permute.xlu0 %1409
      %v1412 = vsel %vm1076, %v1393, %v1402
      %vm1413 = vcmask 130048
      %v1414 = vsel %vm1413, %v1412, %v1406
      %vm1415 = vcmask 195584
      %v1416 = vsel %vm1415, %v1414, %v1410
      %v1417 = vpack.c.bf16 %v1416, %v1416
      %v1418 = vld [vmem:[%s9] sm:$0xf]
      %v1419 = vld [vmem:[%s9 + $0x4] sm:$0xf]
      %v1420 = vld [vmem:[%s9 + $0x8] sm:$0xf]
      %v1421 = vld [vmem:[%s9 + $0xc] sm:$0xf]
      %v1422 = vld [vmem:[%s10] sm:$0x1]
      %v1424 = vperm.slane %v1422, 0
      %v1430 = vunpack.c.l.b16 %v1418
      %v1431 = vunpack.c.l.b16 %v1419
      %v1432 = vunpack.c.l.b16 %v1420
      %v1433 = vunpack.c.l.b16 %v1421
      %v1434 = vpack.c.b16 %v1431, %v1430
      %v1435 = vpack.c.b16 %v1433, %v1432
      %v1439 = vsel %vm566, %v1417, 0
      %1441 = vmatpush.bf16.msra.mxu0 0
      %1442 = vmatpush.bf16.msra.mxu0 0
      %1443 = vmatpush.bf16.msra.mxu0 0
      %1444 = vmatpush.bf16.msra.mxu0 0
      %1445 = vmatpush.bf16.msra.mxu0 0
      %1446 = vmatpush.bf16.msra.mxu0 0
      %1447 = vmatpush.bf16.msra.mxu0 %v1435
      %1448 = vmatpush.bf16.msra.mxu0 %v1434
      %1449 = vmatmul.bf16.gmra.mxu0 %v1439
      %v1450 = vpop.f32.mrf.mxu0
      %v1451 = vadd.f32 %v1424, %v1450
      %v1452 = vpop.f32.mrf.mxu0
      %1453 = vdwg.mxu0
      %v1454 = vadd.f32 %v565, %v1451
      %v1455 = vsel %vm566, %v1454, 0.0
      %1456 = vadd.xlane.f32.xlu0 %v1455
      %v1457 = vpop.xlane.xlu0 %1456
      %v1458 = vmul.f32 %v1457, %v576
      %v1459 = vsub.f32 %v1454, %v1458
      %v1460 = vmul.f32 %v1459, %v1459
      %v1461 = vsel %vm566, %v1460, 0.0
      %1462 = vadd.xlane.f32.xlu0 %v1461
      %v1463 = vpop.xlane.xlu0 %1462
      %v1464 = vmul.f32 %v1463, %v576
      %v1465 = vadd.f32 %v1464, 1e-05
      %v1466 = vrsqrt.pop %v1465
      %v1467 = vmul.f32 %v1466, %v1465
      %v1468 = vmul.f32 %v1467, %v1466
      %v1469 = vmul.f32 0.5, %v1468
      %v1470 = vsub.f32 1.5, %v1469
      %v1471 = vmul.f32 %v1466, %v1470
      %vm1472 = vweird.f32 %v1465
      %vm1473 = vweird.f32 %v1466
      %vm1474 = vmor %vm1472, %vm1473
      %v1475 = vsel %vm1474, %v1466, %v1471
      %v1476 = vmul.f32 %v1459, %v1475
      %v1477 = vld [vmem:[%s11] sm:$0x1]
      %v1479 = vperm.slane %v1477, 0
      %v1481 = vmul.f32 %v1476, %v1479
      %v1482 = vld [vmem:[%s12] sm:$0x1]
      %v1484 = vperm.slane %v1482, 0
      %v1486 = vadd.f32 %v1481, %v1484
      %v1487 = vpack.c.bf16 %v1486, %v1486
      %v1488 = vld [vmem:[%s13] sm:$0xf]
      %v1489 = vld [vmem:[%s13 + $0x4] sm:$0xf]
      %v1490 = vld [vmem:[%s13 + $0x8] sm:$0xf]
      %v1491 = vld [vmem:[%s13 + $0xc] sm:$0xf]
      %v1492 = vld [vmem:[%s14] sm:$0x1]
      %v1494 = vperm.slane %v1492, 0
      %v1500 = vunpack.c.l.b16 %v1488
      %v1501 = vunpack.c.l.b16 %v1489
      %v1502 = vunpack.c.l.b16 %v1490
      %v1503 = vunpack.c.l.b16 %v1491
      %v1504 = vpack.c.b16 %v1501, %v1500
      %v1505 = vpack.c.b16 %v1503, %v1502
      %v1509 = vsel %vm566, %v1487, 0
      %1511 = vmatpush.bf16.msra.mxu0 0
      %1512 = vmatpush.bf16.msra.mxu0 0
      %1513 = vmatpush.bf16.msra.mxu0 0
      %1514 = vmatpush.bf16.msra.mxu0 0
      %1515 = vmatpush.bf16.msra.mxu0 0
      %1516 = vmatpush.bf16.msra.mxu0 0
      %1517 = vmatpush.bf16.msra.mxu0 %v1505
      %1518 = vmatpush.bf16.msra.mxu0 %v1504
      %1519 = vmatmul.bf16.gmra.mxu0 %v1509
      %v1520 = vpop.f32.mrf.mxu0
      %v1521 = vadd.f32 %v1494, %v1520
      %v1522 = vpop.f32.mrf.mxu0
      %1523 = vdwg.mxu0
      %v1524 = vmul.f32 %v1521, 0.5
      %v1525 = vmul.f32 %v1521, 0.70710677
      %v1526 = vmul.f32 %v1525, %v1525
      %v1527 = vmin.f32 16.0, %v1526
      %v1528 = vmul.f32 %v1527, 2.1237322e-06
      %v1529 = vadd.f32 %v1528, 0.00028619796
      %v1530 = vmul.f32 %v1527, %v1529
      %v1531 = vadd.f32 %v1530, 0.0036580483
      %v1532 = vmul.f32 %v1527, %v1531
      %v1533 = vadd.f32 %v1532, 0.05243302
      %v1534 = vmul.f32 %v1527, %v1533
      %v1535 = vadd.f32 %v1534, 0.18741608
      %v1536 = vmul.f32 %v1527, %v1535
      %v1537 = vadd.f32 %v1536, 1.1283791
      %v1538 = vmul.f32 %v1525, %v1537
      %v1539 = vmul.f32 %v1527, 3.8918573e-05
      %v1540 = vadd.f32 %v1539, 0.001143296
      %v1541 = vmul.f32 %v1527, %v1540
      %v1542 = vadd.f32 %v1541, 0.014752088
      %v1543 = vmul.f32 %v1527, %v1542
      %v1544 = vadd.f32 %v1543, 0.112945676
      %v1545 = vmul.f32 %v1527, %v1544
      %v1546 = vadd.f32 %v1545, 0.4994258
      %v1547 = vmul.f32 %v1527, %v1546
      %v1548 = vadd.f32 %v1547, 1.0
      %v1549 = vrcp.pop %v1548
      %v1550 = vmul.f32 %v1548, %v1549
      %v1551 = vsub.f32 1.0, %v1550
      %v1552 = vmul.f32 %v1549, %v1551
      %v1553 = vadd.f32 %v1549, %v1552
      %vm1554 = vweird.f32 %v1548
      %vm1555 = vweird.f32 %v1549
      %vm1556 = vmor %vm1554, %vm1555
      %v1557 = vsel %vm1556, %v1549, %v1553
      %v1558 = vand.u32 2147483647, %v1548
      %vm1559 = vcmp.eq.f32.partialorder %v1558, 8.507059e+37
      %v1560 = vand.u32 %v1548, 2147483648
      %v1561 = vor.u32 1.1754944e-38, %v1560
      %v1562 = vsel %vm1559, %v1561, %v1557
      %v1563 = vmul.f32 %v1538, %v1562
      %v1564 = vmin.f32 %v1563, 1.0
      %v1565 = vmax.f32 %v1564, -1.0
      %v1566 = vadd.f32 %v1565, 1.0
      %v1567 = vmul.f32 %v1524, %v1566
      %v1568 = vpack.c.bf16 %v1567, %v1567
      %v1569 = vld [vmem:[%s15] sm:$0xf]
      %v1570 = vld [vmem:[%s15 + $0x4] sm:$0xf]
      %v1571 = vld [vmem:[%s15 + $0x8] sm:$0xf]
      %v1572 = vld [vmem:[%s15 + $0xc] sm:$0xf]
      %v1573 = vld [vmem:[%s15 + $0x10] sm:$0xf]
      %v1574 = vld [vmem:[%s15 + $0x14] sm:$0xf]
      %v1575 = vld [vmem:[%s15 + $0x18] sm:$0xf]
      %v1576 = vld [vmem:[%s15 + $0x1c] sm:$0xf]
      %v1577 = vld [vmem:[%s15 + $0x20] sm:$0xf]
      %v1578 = vld [vmem:[%s15 + $0x24] sm:$0xf]
      %v1579 = vld [vmem:[%s15 + $0x28] sm:$0xf]
      %v1580 = vld [vmem:[%s15 + $0x2c] sm:$0xf]
      %v1581 = vld [vmem:[%s15 + $0x30] sm:$0xf]
      %v1582 = vld [vmem:[%s15 + $0x34] sm:$0xf]
      %v1583 = vld [vmem:[%s15 + $0x38] sm:$0xf]
      %v1584 = vld [vmem:[%s15 + $0x3c] sm:$0xf]
      %v1585 = vld [vmem:[%s16] sm:$0x1]
      %v1587 = vperm.slane %v1585, 0
      %v1605 = vunpack.c.l.b16 %v1569
      %v1606 = vunpack.c.l.b16 %v1570
      %v1607 = vunpack.c.l.b16 %v1571
      %v1608 = vunpack.c.l.b16 %v1572
      %v1609 = vunpack.c.l.b16 %v1573
      %v1610 = vunpack.c.l.b16 %v1574
      %v1611 = vunpack.c.l.b16 %v1575
      %v1612 = vunpack.c.l.b16 %v1576
      %v1613 = vunpack.c.l.b16 %v1577
      %v1614 = vunpack.c.l.b16 %v1578
      %v1615 = vunpack.c.l.b16 %v1579
      %v1616 = vunpack.c.l.b16 %v1580
      %v1617 = vunpack.c.l.b16 %v1581
      %v1618 = vunpack.c.l.b16 %v1582
      %v1619 = vunpack.c.l.b16 %v1583
      %v1620 = vunpack.c.l.b16 %v1584
      %v1621 = vpack.c.b16 %v1606, %v1605
      %v1622 = vpack.c.b16 %v1608, %v1607
      %v1623 = vpack.c.b16 %v1610, %v1609
      %v1624 = vpack.c.b16 %v1612, %v1611
      %v1625 = vpack.c.b16 %v1614, %v1613
      %v1626 = vpack.c.b16 %v1616, %v1615
      %v1627 = vpack.c.b16 %v1618, %v1617
      %v1628 = vpack.c.b16 %v1620, %v1619
      %1637 = vmatpush.bf16.msra.mxu0 %v1628
      %1638 = vmatpush.bf16.msra.mxu0 %v1627
      %1639 = vmatpush.bf16.msra.mxu0 %v1626
      %1640 = vmatpush.bf16.msra.mxu0 %v1625
      %1641 = vmatpush.bf16.msra.mxu0 %v1624
      %1642 = vmatpush.bf16.msra.mxu0 %v1623
      %1643 = vmatpush.bf16.msra.mxu0 %v1622
      %1644 = vmatpush.bf16.msra.mxu0 %v1621
      %1645 = vmatmul.bf16.gmra.mxu0 %v1568
      %v1646 = vpop.f32.mrf.mxu0
      %v1647 = vadd.f32 %v1587, %v1646
      %v1648 = vpop.f32.mrf.mxu0
      %1649 = vdwg.mxu0
      %v1650 = vadd.f32 %v1454, %v1647
      %1651 = vst.msk [vmem:[%s563] sm:$0xff] %vm566, %v1650
      %p1652 = scmp.lt.s32.totalorder %s32, 1
      %s1653 = scalar_select %p1652, %s32, 1
      %p1654 = scmp.lt.s32.totalorder %s33, 0
      %s1655 = scalar_select %p1654, %s33, 0
      %s1656 = sadd.s32 %s1655, %s1653
      %s1657 = smul.addr %s1656, 8
      %s1658 = scalar_lea.vmem %s17, %s1657
      // Predicated region
      $region89: #{_lambda_.11} parent=87 // pred_check
        %p1659 = pneg %p422
      $region90: #{_lambda_.11} parent=87 // pred_check_branch
        %1661 = sbr.rel (%p1659) target = $region92
      $region91: #{_lambda_.11} parent=87 // pred_region
        _
      $region92: #{_lambda_.11} parent=87 // pred_fallthru
        _
    $region88: #{_lambda_.11} parent=5 // pred_fallthru
      _
    %p1662 = scmp.le.s32.totalorder 2, %s23
    // Predicated region
    $region93: #{_lambda_.11} parent=5 // pred_check
      %p1663 = pneg %p1662
    $region94: #{_lambda_.11} parent=5 // pred_check_branch
      %1665 = sbr.rel (%p1663) target = $region96
    $region95: #{_lambda_.11} parent=5 // pred_region
      %s1666 = ssub.s32 %s23, 2
      // Predicated region
      $region97: #{_lambda_.11} parent=95 // pred_check
        %p1667 = pneg %p428
      $region98: #{_lambda_.11} parent=95 // pred_check_branch
        %1669 = sbr.rel (%p1667) target = $region100
      $region99: #{_lambda_.11} parent=95 // pred_region
        %p1670 = scmp.lt.s32.totalorder %s34, 1
        %s1671 = scalar_select %p1670, %s34, 1
        %p1672 = scmp.lt.s32.totalorder %s35, 0
        %s1673 = scalar_select %p1672, %s35, 0
        %s1674 = sadd.s32 %s1673, %s1671
        %s1675 = smul.addr %s1674, 8
        %s1676 = scalar_lea.vmem %s17, %s1675
      $region100: #{_lambda_.11} parent=95 // pred_fallthru
        _
    $region96: #{_lambda_.11} parent=5 // pred_fallthru
      _
  $region6: #{_lambda_.11} parent=0 // loop_footer
    %s27 = sadd.s32 1, %s23
  $region7: #{_lambda_.11} parent=0 // loop_footer_branch
    %22 = sbr.rel target = $region3
  $region8: #{_lambda_.11} parent=0 // loop_exit
    _

// kernel: _lambda_.10
$region0: #{_lambda_.10}
  #allocation0 [shape = 'u32[]', space=smem, size = 0x4, offset = 0x4, fixed_abs, tag = 'smem constant byte address 0x4 - core index']
  #allocation1 [shape = 'u32[72,128]{1,0:T(1,128)}', space=vmem, size = 0x9000, scoped, tag = 'internal scratch']
  %s0 = inlined_call_operand.vmem [shape: f32[2,8,32], index: 0, kind: input, shape index: {}, may-alias: {0,17}]
  %s1 = inlined_call_operand.vmem [shape: f32[1,32], index: 1, kind: input, shape index: {}, may-alias: {1,11}]
  %s2 = inlined_call_operand.vmem [shape: f32[1,32], index: 2, kind: input, shape index: {}, may-alias: {2,4,6,8,10,12,16}]
  %s3 = inlined_call_operand.vmem [shape: bf16[32,32], index: 3, kind: input, shape index: {}]
  %s4 = inlined_call_operand.vmem [shape: f32[1,32], index: 4, kind: input, shape index: {}, may-alias: {2,4,6,8,10,12,16}]
  %s5 = inlined_call_operand.vmem [shape: bf16[32,32], index: 5, kind: input, shape index: {}]
  %s6 = inlined_call_operand.vmem [shape: f32[1,32], index: 6, kind: input, shape index: {}, may-alias: {2,4,6,8,10,12,16}]
  %s7 = inlined_call_operand.vmem [shape: bf16[32,32], index: 7, kind: input, shape index: {}]
  %s8 = inlined_call_operand.vmem [shape: f32[1,32], index: 8, kind: input, shape index: {}, may-alias: {2,4,6,8,10,12,16}]
  %s9 = inlined_call_operand.vmem [shape: bf16[32,32], index: 9, kind: input, shape index: {}]
  %s10 = inlined_call_operand.vmem [shape: f32[1,32], index: 10, kind: input, shape index: {}, may-alias: {2,4,6,8,10,12,16}]
  %s11 = inlined_call_operand.vmem [shape: f32[1,32], index: 11, kind: input, shape index: {}, may-alias: {1,11}]
  %s12 = inlined_call_operand.vmem [shape: f32[1,32], index: 12, kind: input, shape index: {}, may-alias: {2,4,6,8,10,12,16}]
  %s13 = inlined_call_operand.hbm [shape: bf16[32,128], index: 13, kind: input, shape index: {}]
  %s14 = inlined_call_operand.vmem [shape: f32[1,128], index: 14, kind: input, shape index: {}]
  %s15 = inlined_call_operand.vmem [shape: bf16[128,32], index: 15, kind: input, shape index: {}]
  %s16 = inlined_call_operand.vmem [shape: f32[1,32], index: 16, kind: input, shape index: {}, may-alias: {2,4,6,8,10,12,16}]
  %s17 = inlined_call_operand.vmem [shape: f32[2,8,32], index: 17, kind: output, shape index: {}, may-alias: {0,17}]
  %s18 = sld [smem:[#allocation0]]
  $region105: #{_lambda_.10} parent=0
    _
  %s20 = ssub.s32 1, %s18
  %s21 = scalar_select 0, %s20, %s18
  $region1: #{_lambda_.10} parent=0
    #allocation2 [shape = 'u8[8192]{0}', space=vmem, size = 0x2000, scoped, tag = 'input window, operand 13, single buffered']
    #allocation3 [shape = 's32[2]{0}', space=sflag, size = 0x8, scoped, tag = 'scoped memory for _lambda_.10']
    %22 = vsyncpa [#allocation3], 0
    loop: start=0, step=1, limit=4
    $region2: #{_lambda_.10} parent=1 // loop_pre_header
      _
    $region3: #{_lambda_.10} parent=1 // loop_header
      %s24 = sphi 0, %s28
      %p25 = scmp.ge.s32.totalorder %s24, 4
      %s31 = sphi 0, %s43
      %s32 = sphi 0, %s39
      %s33 = sphi 0, %s31
      %s34 = sphi 0, %s32
      %s35 = sphi 0, %s33
      %s36 = sphi 0, %s34
      %s46 = sphi 0, %s48
      %s49 = sphi 0, %s46
      %s50 = sphi 0, %s49
      %s66 = sphi 0, %s50
      %s70 = sphi 0, %s70
      %s72 = sphi 0, %s70
      %s73 = sphi 0, %s72
      %s87 = sphi 0, %s73
      %s91 = sphi 0, %s91
      %s93 = sphi 0, %s91
      %s94 = sphi 0, %s93
      %s108 = sphi 0, %s94
      %s112 = sphi 0, %s112
      %s114 = sphi 0, %s112
      %s115 = sphi 0, %s114
      %s129 = sphi 0, %s115
      %s133 = sphi 0, %s133
      %s135 = sphi 0, %s133
      %s136 = sphi 0, %s135
      %s150 = sphi 0, %s136
      %s154 = sphi 0, %s154
      %s156 = sphi 0, %s154
      %s157 = sphi 0, %s156
      %s171 = sphi 0, %s157
      %s175 = sphi 0, %s175
      %s177 = sphi 0, %s175
      %s178 = sphi 0, %s177
      %s192 = sphi 0, %s178
      %s196 = sphi 0, %s196
      %s198 = sphi 0, %s196
      %s199 = sphi 0, %s198
      %s213 = sphi 0, %s199
      %s217 = sphi 0, %s217
      %s219 = sphi 0, %s217
      %s220 = sphi 0, %s219
      %s234 = sphi 0, %s220
      %s238 = sphi 0, %s238
      %s240 = sphi 0, %s238
      %s241 = sphi 0, %s240
      %s255 = sphi 0, %s241
      %s259 = sphi 0, %s259
      %s261 = sphi 0, %s259
      %s262 = sphi 0, %s261
      %s276 = sphi 0, %s262
      %s280 = sphi 0, %s280
      %s282 = sphi 0, %s280
      %s283 = sphi 0, %s282
      %s297 = sphi 0, %s283
      %s301 = sphi 0, %s301
      %s303 = sphi 0, %s301
      %s304 = sphi 0, %s303
      %s318 = sphi 0, %s304
      %s322 = sphi 0, %s322
      %s324 = sphi 0, %s322
      %s325 = sphi 0, %s324
      %s339 = sphi 0, %s325
      %s343 = sphi 0, %s343
      %s345 = sphi 0, %s343
      %s346 = sphi 0, %s345
      %s360 = sphi 0, %s346
      %s364 = sphi 0, %s364
      %s366 = sphi 0, %s364
      %s367 = sphi 0, %s366
      %s381 = sphi 0, %s367
      %s385 = sphi 0, %s385
      %s387 = sphi 0, %s385
      %s388 = sphi 0, %s387
      %s402 = sphi 0, %s388
      %s410 = sphi 0, %s412
      %s413 = sphi 0, %s410
      %s414 = sphi 0, %s413
      %s430 = sphi 0, %s414
    $region4: #{_lambda_.10} parent=1 // loop_header_branch
      %27 = sbr.rel (%p25) target = $region8
    $region5: #{_lambda_.10} parent=1 // loop_body
      %s29 = ssub.s32 %s24, 1
      %s30 = ssub.s32 %s24, 2
      %s37 = sadd.s32 1, %s32
      %p38 = scmp.ge.s32.totalorder %s37, 1
      %s39 = scalar_select %p38, 0, %s37
      %s40 = sadd.s32 1, %s31
      %s41 = scalar_select %p38, %s40, %s31
      %p42 = scmp.ge.s32.totalorder %s41, 2
      %s43 = scalar_select %p42, 0, %s41
      %s44 = ssub.s32 %s31, %s43
      %p45 = scmp.eq.s32.totalorder %s44, 0
      %s47 = sadd.s32 %s46, 1
      %s48 = scalar_select %p45, %s46, %s47
      %p51 = pneg %p45
      %p52 = scmp.eq.s32.totalorder %s24, 1
      %p53 = por %p51, %p52
      %p54 = scmp.ne.s32.totalorder %s46, %s49
      %p55 = scmp.eq.s32.totalorder %s24, 0
      %p56 = por %p54, %p55
      %p57 = scmp.ne.s32.totalorder %s46, %s49
      %p58 = scmp.eq.s32.totalorder %s29, 1
      %p59 = por %p57, %p58
      %p60 = scmp.ne.s32.totalorder %s49, %s50
      %p61 = scmp.eq.s32.totalorder %s29, 0
      %p62 = por %p60, %p61
      %p63 = scmp.ne.s32.totalorder %s49, %s50
      %p64 = scmp.eq.s32.totalorder %s30, 1
      %p65 = por %p63, %p64
      %p67 = scmp.ne.s32.totalorder %s50, %s66
      %p68 = scmp.eq.s32.totalorder %s30, 0
      %p69 = por %p67, %p68
      %s71 = sadd.s32 %s70, 1
      %p74 = scmp.eq.s32.totalorder %s24, 1
      %p75 = scmp.ne.s32.totalorder %s70, %s72
      %p76 = scmp.eq.s32.totalorder %s24, 0
      %p77 = por %p75, %p76
      %p78 = scmp.ne.s32.totalorder %s70, %s72
      %p79 = scmp.eq.s32.totalorder %s29, 1
      %p80 = por %p78, %p79
      %p81 = scmp.ne.s32.totalorder %s72, %s73
      %p82 = scmp.eq.s32.totalorder %s29, 0
      %p83 = por %p81, %p82
      %p84 = scmp.ne.s32.totalorder %s72, %s73
      %p85 = scmp.eq.s32.totalorder %s30, 1
      %p86 = por %p84, %p85
      %p88 = scmp.ne.s32.totalorder %s73, %s87
      %p89 = scmp.eq.s32.totalorder %s30, 0
      %p90 = por %p88, %p89
      %s92 = sadd.s32 %s91, 1
      %p95 = scmp.eq.s32.totalorder %s24, 1
      %p96 = scmp.ne.s32.totalorder %s91, %s93
      %p97 = scmp.eq.s32.totalorder %s24, 0
      %p98 = por %p96, %p97
      %p99 = scmp.ne.s32.totalorder %s91, %s93
      %p100 = scmp.eq.s32.totalorder %s29, 1
      %p101 = por %p99, %p100
      %p102 = scmp.ne.s32.totalorder %s93, %s94
      %p103 = scmp.eq.s32.totalorder %s29, 0
      %p104 = por %p102, %p103
      %p105 = scmp.ne.s32.totalorder %s93, %s94
      %p106 = scmp.eq.s32.totalorder %s30, 1
      %p107 = por %p105, %p106
      %p109 = scmp.ne.s32.totalorder %s94, %s108
      %p110 = scmp.eq.s32.totalorder %s30, 0
      %p111 = por %p109, %p110
      %s113 = sadd.s32 %s112, 1
      %p116 = scmp.eq.s32.totalorder %s24, 1
      %p117 = scmp.ne.s32.totalorder %s112, %s114
      %p118 = scmp.eq.s32.totalorder %s24, 0
      %p119 = por %p117, %p118
      %p120 = scmp.ne.s32.totalorder %s112, %s114
      %p121 = scmp.eq.s32.totalorder %s29, 1
      %p122 = por %p120, %p121
      %p123 = scmp.ne.s32.totalorder %s114, %s115
      %p124 = scmp.eq.s32.totalorder %s29, 0
      %p125 = por %p123, %p124
      %p126 = scmp.ne.s32.totalorder %s114, %s115
      %p127 = scmp.eq.s32.totalorder %s30, 1
      %p128 = por %p126, %p127
      %p130 = scmp.ne.s32.totalorder %s115, %s129
      %p131 = scmp.eq.s32.totalorder %s30, 0
      %p132 = por %p130, %p131
      %s134 = sadd.s32 %s133, 1
      %p137 = scmp.eq.s32.totalorder %s24, 1
      %p138 = scmp.ne.s32.totalorder %s133, %s135
      %p139 = scmp.eq.s32.totalorder %s24, 0
      %p140 = por %p138, %p139
      %p141 = scmp.ne.s32.totalorder %s133, %s135
      %p142 = scmp.eq.s32.totalorder %s29, 1
      %p143 = por %p141, %p142
      %p144 = scmp.ne.s32.totalorder %s135, %s136
      %p145 = scmp.eq.s32.totalorder %s29, 0
      %p146 = por %p144, %p145
      %p147 = scmp.ne.s32.totalorder %s135, %s136
      %p148 = scmp.eq.s32.totalorder %s30, 1
      %p149 = por %p147, %p148
      %p151 = scmp.ne.s32.totalorder %s136, %s150
      %p152 = scmp.eq.s32.totalorder %s30, 0
      %p153 = por %p151, %p152
      %s155 = sadd.s32 %s154, 1
      %p158 = scmp.eq.s32.totalorder %s24, 1
      %p159 = scmp.ne.s32.totalorder %s154, %s156
      %p160 = scmp.eq.s32.totalorder %s24, 0
      %p161 = por %p159, %p160
      %p162 = scmp.ne.s32.totalorder %s154, %s156
      %p163 = scmp.eq.s32.totalorder %s29, 1
      %p164 = por %p162, %p163
      %p165 = scmp.ne.s32.totalorder %s156, %s157
      %p166 = scmp.eq.s32.totalorder %s29, 0
      %p167 = por %p165, %p166
      %p168 = scmp.ne.s32.totalorder %s156, %s157
      %p169 = scmp.eq.s32.totalorder %s30, 1
      %p170 = por %p168, %p169
      %p172 = scmp.ne.s32.totalorder %s157, %s171
      %p173 = scmp.eq.s32.totalorder %s30, 0
      %p174 = por %p172, %p173
      %s176 = sadd.s32 %s175, 1
      %p179 = scmp.eq.s32.totalorder %s24, 1
      %p180 = scmp.ne.s32.totalorder %s175, %s177
      %p181 = scmp.eq.s32.totalorder %s24, 0
      %p182 = por %p180, %p181
      %p183 = scmp.ne.s32.totalorder %s175, %s177
      %p184 = scmp.eq.s32.totalorder %s29, 1
      %p185 = por %p183, %p184
      %p186 = scmp.ne.s32.totalorder %s177, %s178
      %p187 = scmp.eq.s32.totalorder %s29, 0
      %p188 = por %p186, %p187
      %p189 = scmp.ne.s32.totalorder %s177, %s178
      %p190 = scmp.eq.s32.totalorder %s30, 1
      %p191 = por %p189, %p190
      %p193 = scmp.ne.s32.totalorder %s178, %s192
      %p194 = scmp.eq.s32.totalorder %s30, 0
      %p195 = por %p193, %p194
      %s197 = sadd.s32 %s196, 1
      %p200 = scmp.eq.s32.totalorder %s24, 1
      %p201 = scmp.ne.s32.totalorder %s196, %s198
      %p202 = scmp.eq.s32.totalorder %s24, 0
      %p203 = por %p201, %p202
      %p204 = scmp.ne.s32.totalorder %s196, %s198
      %p205 = scmp.eq.s32.totalorder %s29, 1
      %p206 = por %p204, %p205
      %p207 = scmp.ne.s32.totalorder %s198, %s199
      %p208 = scmp.eq.s32.totalorder %s29, 0
      %p209 = por %p207, %p208
      %p210 = scmp.ne.s32.totalorder %s198, %s199
      %p211 = scmp.eq.s32.totalorder %s30, 1
      %p212 = por %p210, %p211
      %p214 = scmp.ne.s32.totalorder %s199, %s213
      %p215 = scmp.eq.s32.totalorder %s30, 0
      %p216 = por %p214, %p215
      %s218 = sadd.s32 %s217, 1
      %p221 = scmp.eq.s32.totalorder %s24, 1
      %p222 = scmp.ne.s32.totalorder %s217, %s219
      %p223 = scmp.eq.s32.totalorder %s24, 0
      %p224 = por %p222, %p223
      %p225 = scmp.ne.s32.totalorder %s217, %s219
      %p226 = scmp.eq.s32.totalorder %s29, 1
      %p227 = por %p225, %p226
      %p228 = scmp.ne.s32.totalorder %s219, %s220
      %p229 = scmp.eq.s32.totalorder %s29, 0
      %p230 = por %p228, %p229
      %p231 = scmp.ne.s32.totalorder %s219, %s220
      %p232 = scmp.eq.s32.totalorder %s30, 1
      %p233 = por %p231, %p232
      %p235 = scmp.ne.s32.totalorder %s220, %s234
      %p236 = scmp.eq.s32.totalorder %s30, 0
      %p237 = por %p235, %p236
      %s239 = sadd.s32 %s238, 1
      %p242 = scmp.eq.s32.totalorder %s24, 1
      %p243 = scmp.ne.s32.totalorder %s238, %s240
      %p244 = scmp.eq.s32.totalorder %s24, 0
      %p245 = por %p243, %p244
      %p246 = scmp.ne.s32.totalorder %s238, %s240
      %p247 = scmp.eq.s32.totalorder %s29, 1
      %p248 = por %p246, %p247
      %p249 = scmp.ne.s32.totalorder %s240, %s241
      %p250 = scmp.eq.s32.totalorder %s29, 0
      %p251 = por %p249, %p250
      %p252 = scmp.ne.s32.totalorder %s240, %s241
      %p253 = scmp.eq.s32.totalorder %s30, 1
      %p254 = por %p252, %p253
      %p256 = scmp.ne.s32.totalorder %s241, %s255
      %p257 = scmp.eq.s32.totalorder %s30, 0
      %p258 = por %p256, %p257
      %s260 = sadd.s32 %s259, 1
      %p263 = scmp.eq.s32.totalorder %s24, 1
      %p264 = scmp.ne.s32.totalorder %s259, %s261
      %p265 = scmp.eq.s32.totalorder %s24, 0
      %p266 = por %p264, %p265
      %p267 = scmp.ne.s32.totalorder %s259, %s261
      %p268 = scmp.eq.s32.totalorder %s29, 1
      %p269 = por %p267, %p268
      %p270 = scmp.ne.s32.totalorder %s261, %s262
      %p271 = scmp.eq.s32.totalorder %s29, 0
      %p272 = por %p270, %p271
      %p273 = scmp.ne.s32.totalorder %s261, %s262
      %p274 = scmp.eq.s32.totalorder %s30, 1
      %p275 = por %p273, %p274
      %p277 = scmp.ne.s32.totalorder %s262, %s276
      %p278 = scmp.eq.s32.totalorder %s30, 0
      %p279 = por %p277, %p278
      %s281 = sadd.s32 %s280, 1
      %p284 = scmp.eq.s32.totalorder %s24, 1
      %p285 = scmp.ne.s32.totalorder %s280, %s282
      %p286 = scmp.eq.s32.totalorder %s24, 0
      %p287 = por %p285, %p286
      %p288 = scmp.ne.s32.totalorder %s280, %s282
      %p289 = scmp.eq.s32.totalorder %s29, 1
      %p290 = por %p288, %p289
      %p291 = scmp.ne.s32.totalorder %s282, %s283
      %p292 = scmp.eq.s32.totalorder %s29, 0
      %p293 = por %p291, %p292
      %p294 = scmp.ne.s32.totalorder %s282, %s283
      %p295 = scmp.eq.s32.totalorder %s30, 1
      %p296 = por %p294, %p295
      %p298 = scmp.ne.s32.totalorder %s283, %s297
      %p299 = scmp.eq.s32.totalorder %s30, 0
      %p300 = por %p298, %p299
      %s302 = sadd.s32 %s301, 1
      %p305 = scmp.eq.s32.totalorder %s24, 1
      %p306 = scmp.ne.s32.totalorder %s301, %s303
      %p307 = scmp.eq.s32.totalorder %s24, 0
      %p308 = por %p306, %p307
      %p309 = scmp.ne.s32.totalorder %s301, %s303
      %p310 = scmp.eq.s32.totalorder %s29, 1
      %p311 = por %p309, %p310
      %p312 = scmp.ne.s32.totalorder %s303, %s304
      %p313 = scmp.eq.s32.totalorder %s29, 0
      %p314 = por %p312, %p313
      %p315 = scmp.ne.s32.totalorder %s303, %s304
      %p316 = scmp.eq.s32.totalorder %s30, 1
      %p317 = por %p315, %p316
      %p319 = scmp.ne.s32.totalorder %s304, %s318
      %p320 = scmp.eq.s32.totalorder %s30, 0
      %p321 = por %p319, %p320
      %s323 = sadd.s32 %s322, 1
      %p326 = scmp.eq.s32.totalorder %s24, 1
      %p327 = scmp.ne.s32.totalorder %s322, %s324
      %p328 = scmp.eq.s32.totalorder %s24, 0
      %p329 = por %p327, %p328
      %p330 = scmp.ne.s32.totalorder %s322, %s324
      %p331 = scmp.eq.s32.totalorder %s29, 1
      %p332 = por %p330, %p331
      %p333 = scmp.ne.s32.totalorder %s324, %s325
      %p334 = scmp.eq.s32.totalorder %s29, 0
      %p335 = por %p333, %p334
      %p336 = scmp.ne.s32.totalorder %s324, %s325
      %p337 = scmp.eq.s32.totalorder %s30, 1
      %p338 = por %p336, %p337
      %p340 = scmp.ne.s32.totalorder %s325, %s339
      %p341 = scmp.eq.s32.totalorder %s30, 0
      %p342 = por %p340, %p341
      %s344 = sadd.s32 %s343, 1
      %p347 = scmp.eq.s32.totalorder %s24, 1
      %p348 = scmp.ne.s32.totalorder %s343, %s345
      %p349 = scmp.eq.s32.totalorder %s24, 0
      %p350 = por %p348, %p349
      %p351 = scmp.ne.s32.totalorder %s343, %s345
      %p352 = scmp.eq.s32.totalorder %s29, 1
      %p353 = por %p351, %p352
      %p354 = scmp.ne.s32.totalorder %s345, %s346
      %p355 = scmp.eq.s32.totalorder %s29, 0
      %p356 = por %p354, %p355
      %p357 = scmp.ne.s32.totalorder %s345, %s346
      %p358 = scmp.eq.s32.totalorder %s30, 1
      %p359 = por %p357, %p358
      %p361 = scmp.ne.s32.totalorder %s346, %s360
      %p362 = scmp.eq.s32.totalorder %s30, 0
      %p363 = por %p361, %p362
      %s365 = sadd.s32 %s364, 1
      %p368 = scmp.eq.s32.totalorder %s24, 1
      %p369 = scmp.ne.s32.totalorder %s364, %s366
      %p370 = scmp.eq.s32.totalorder %s24, 0
      %p371 = por %p369, %p370
      %p372 = scmp.ne.s32.totalorder %s364, %s366
      %p373 = scmp.eq.s32.totalorder %s29, 1
      %p374 = por %p372, %p373
      %p375 = scmp.ne.s32.totalorder %s366, %s367
      %p376 = scmp.eq.s32.totalorder %s29, 0
      %p377 = por %p375, %p376
      %p378 = scmp.ne.s32.totalorder %s366, %s367
      %p379 = scmp.eq.s32.totalorder %s30, 1
      %p380 = por %p378, %p379
      %p382 = scmp.ne.s32.totalorder %s367, %s381
      %p383 = scmp.eq.s32.totalorder %s30, 0
      %p384 = por %p382, %p383
      %s386 = sadd.s32 %s385, 1
      %p389 = scmp.eq.s32.totalorder %s24, 1
      %p390 = scmp.ne.s32.totalorder %s385, %s387
      %p391 = scmp.eq.s32.totalorder %s24, 0
      %p392 = por %p390, %p391
      %p393 = scmp.ne.s32.totalorder %s385, %s387
      %p394 = scmp.eq.s32.totalorder %s29, 1
      %p395 = por %p393, %p394
      %p396 = scmp.ne.s32.totalorder %s387, %s388
      %p397 = scmp.eq.s32.totalorder %s29, 0
      %p398 = por %p396, %p397
      %p399 = scmp.ne.s32.totalorder %s387, %s388
      %p400 = scmp.eq.s32.totalorder %s30, 1
      %p401 = por %p399, %p400
      %p403 = scmp.ne.s32.totalorder %s388, %s402
      %p404 = scmp.eq.s32.totalorder %s30, 0
      %p405 = por %p403, %p404
      %s406 = ssub.s32 %s31, %s43
      %s407 = ssub.s32 %s32, %s39
      %s408 = sor.u32 %s406, %s407
      %p409 = scmp.eq.s32.totalorder %s408, 0
      %s411 = sadd.s32 %s410, 1
      %s412 = scalar_select %p409, %s410, %s411
      %p415 = pneg %p409
      %p416 = scmp.eq.s32.totalorder %s24, 1
      %p417 = por %p415, %p416
      %p418 = scmp.ne.s32.totalorder %s410, %s413
      %p419 = scmp.eq.s32.totalorder %s24, 0
      %p420 = por %p418, %p419
      %p421 = scmp.ne.s32.totalorder %s410, %s413
      %p422 = scmp.eq.s32.totalorder %s29, 1
      %p423 = por %p421, %p422
      %p424 = scmp.ne.s32.totalorder %s413, %s414
      %p425 = scmp.eq.s32.totalorder %s29, 0
      %p426 = por %p424, %p425
      %p427 = scmp.ne.s32.totalorder %s413, %s414
      %p428 = scmp.eq.s32.totalorder %s30, 1
      %p429 = por %p427, %p428
      %p431 = scmp.ne.s32.totalorder %s414, %s430
      %p432 = scmp.eq.s32.totalorder %s30, 0
      %p433 = por %p431, %p432
      %p434 = scmp.le.s32.totalorder 1, %s24
      %p435 = scmp.lt.s32.totalorder %s24, 3
      %p436 = pnand %p434, %p435
      %p437 = pneg %p436
      // Predicated region
      $region9: #{_lambda_.10} parent=5 // pred_check
        _
      $region10: #{_lambda_.10} parent=5 // pred_check_branch
        %439 = sbr.rel (%p436) target = $region12
      $region11: #{_lambda_.10} parent=5 // pred_region
        %s440 = ssub.s32 %s24, 1
        // Predicated region
        $region13: #{_lambda_.10} parent=11 // pred_check
          %p441 = pneg %p83
        $region14: #{_lambda_.10} parent=11 // pred_check_branch
          %443 = sbr.rel (%p441) target = $region16
        $region15: #{_lambda_.10} parent=11 // pred_region
          _
        $region16: #{_lambda_.10} parent=11 // pred_fallthru
          _
        // Predicated region
        $region17: #{_lambda_.10} parent=11 // pred_check
          %p444 = pneg %p104
        $region18: #{_lambda_.10} parent=11 // pred_check_branch
          %446 = sbr.rel (%p444) target = $region20
        $region19: #{_lambda_.10} parent=11 // pred_region
          _
        $region20: #{_lambda_.10} parent=11 // pred_fallthru
          _
        // Predicated region
        $region21: #{_lambda_.10} parent=11 // pred_check
          %p447 = pneg %p125
        $region22: #{_lambda_.10} parent=11 // pred_check_branch
          %449 = sbr.rel (%p447) target = $region24
        $region23: #{_lambda_.10} parent=11 // pred_region
          _
        $region24: #{_lambda_.10} parent=11 // pred_fallthru
          _
        // Predicated region
        $region25: #{_lambda_.10} parent=11 // pred_check
          %p450 = pneg %p146
        $region26: #{_lambda_.10} parent=11 // pred_check_branch
          %452 = sbr.rel (%p450) target = $region28
        $region27: #{_lambda_.10} parent=11 // pred_region
          _
        $region28: #{_lambda_.10} parent=11 // pred_fallthru
          _
        // Predicated region
        $region29: #{_lambda_.10} parent=11 // pred_check
          %p453 = pneg %p167
        $region30: #{_lambda_.10} parent=11 // pred_check_branch
          %455 = sbr.rel (%p453) target = $region32
        $region31: #{_lambda_.10} parent=11 // pred_region
          _
        $region32: #{_lambda_.10} parent=11 // pred_fallthru
          _
        // Predicated region
        $region33: #{_lambda_.10} parent=11 // pred_check
          %p456 = pneg %p188
        $region34: #{_lambda_.10} parent=11 // pred_check_branch
          %458 = sbr.rel (%p456) target = $region36
        $region35: #{_lambda_.10} parent=11 // pred_region
          _
        $region36: #{_lambda_.10} parent=11 // pred_fallthru
          _
        // Predicated region
        $region37: #{_lambda_.10} parent=11 // pred_check
          %p459 = pneg %p209
        $region38: #{_lambda_.10} parent=11 // pred_check_branch
          %461 = sbr.rel (%p459) target = $region40
        $region39: #{_lambda_.10} parent=11 // pred_region
          _
        $region40: #{_lambda_.10} parent=11 // pred_fallthru
          _
        // Predicated region
        $region41: #{_lambda_.10} parent=11 // pred_check
          %p462 = pneg %p230
        $region42: #{_lambda_.10} parent=11 // pred_check_branch
          %464 = sbr.rel (%p462) target = $region44
        $region43: #{_lambda_.10} parent=11 // pred_region
          _
        $region44: #{_lambda_.10} parent=11 // pred_fallthru
          _
        // Predicated region
        $region45: #{_lambda_.10} parent=11 // pred_check
          %p465 = pneg %p251
        $region46: #{_lambda_.10} parent=11 // pred_check_branch
          %467 = sbr.rel (%p465) target = $region48
        $region47: #{_lambda_.10} parent=11 // pred_region
          _
        $region48: #{_lambda_.10} parent=11 // pred_fallthru
          _
        // Predicated region
        $region49: #{_lambda_.10} parent=11 // pred_check
          %p468 = pneg %p272
        $region50: #{_lambda_.10} parent=11 // pred_check_branch
          %470 = sbr.rel (%p468) target = $region52
        $region51: #{_lambda_.10} parent=11 // pred_region
          _
        $region52: #{_lambda_.10} parent=11 // pred_fallthru
          _
        // Predicated region
        $region53: #{_lambda_.10} parent=11 // pred_check
          %p471 = pneg %p293
        $region54: #{_lambda_.10} parent=11 // pred_check_branch
          %473 = sbr.rel (%p471) target = $region56
        $region55: #{_lambda_.10} parent=11 // pred_region
          _
        $region56: #{_lambda_.10} parent=11 // pred_fallthru
          _
        // Predicated region
        $region57: #{_lambda_.10} parent=11 // pred_check
          %p474 = pneg %p314
        $region58: #{_lambda_.10} parent=11 // pred_check_branch
          %476 = sbr.rel (%p474) target = $region60
        $region59: #{_lambda_.10} parent=11 // pred_region
          _
        $region60: #{_lambda_.10} parent=11 // pred_fallthru
          _
        // Predicated region
        $region61: #{_lambda_.10} parent=11 // pred_check
          %p477 = pneg %p335
        $region62: #{_lambda_.10} parent=11 // pred_check_branch
          %479 = sbr.rel (%p477) target = $region64
        $region63: #{_lambda_.10} parent=11 // pred_region
          %481 = vsyncadd [#allocation3], 0
          %s482 = sshll.u32 %s13, 4
          %s483 = int_to_ptr.hbm [resolvable:$true] %s482
          %s484 = sshll.u32 [#allocation2], 4
          %s485 = int_to_ptr.vmem [resolvable:$true] %s484
          %490 = dma.hbm_to_vmem [thread:$0]  %s483, 256, %s485, [#allocation3], 64, 64, 4
        $region64: #{_lambda_.10} parent=11 // pred_fallthru
          _
        // Predicated region
        $region65: #{_lambda_.10} parent=11 // pred_check
          %p491 = pneg %p356
        $region66: #{_lambda_.10} parent=11 // pred_check_branch
          %493 = sbr.rel (%p491) target = $region68
        $region67: #{_lambda_.10} parent=11 // pred_region
          _
        $region68: #{_lambda_.10} parent=11 // pred_fallthru
          _
        // Predicated region
        $region69: #{_lambda_.10} parent=11 // pred_check
          %p494 = pneg %p377
        $region70: #{_lambda_.10} parent=11 // pred_check_branch
          %496 = sbr.rel (%p494) target = $region72
        $region71: #{_lambda_.10} parent=11 // pred_region
          _
        $region72: #{_lambda_.10} parent=11 // pred_fallthru
          _
        // Predicated region
        $region73: #{_lambda_.10} parent=11 // pred_check
          %p497 = pneg %p398
        $region74: #{_lambda_.10} parent=11 // pred_check_branch
          %499 = sbr.rel (%p497) target = $region76
        $region75: #{_lambda_.10} parent=11 // pred_region
          _
        $region76: #{_lambda_.10} parent=11 // pred_fallthru
          _
      $region12: #{_lambda_.10} parent=5 // pred_fallthru
        _
      %p500 = scmp.lt.s32.totalorder %s24, 2
      // Predicated region
      $region77: #{_lambda_.10} parent=5 // pred_check
        %p501 = pneg %p500
      $region78: #{_lambda_.10} parent=5 // pred_check_branch
        %503 = sbr.rel (%p501) target = $region80
      $region79: #{_lambda_.10} parent=5 // pred_region
        // Predicated region
        $region81: #{_lambda_.10} parent=79 // pred_check
          %p504 = pneg %p56
        $region82: #{_lambda_.10} parent=79 // pred_check_branch
          %506 = sbr.rel (%p504) target = $region84
        $region83: #{_lambda_.10} parent=79 // pred_region
          %p507 = scmp.lt.s32.totalorder %s31, 1
          %s508 = scalar_select %p507, %s31, 1
          %s509 = smul.addr %s508, 8
          %s510 = scalar_lea.vmem %s0, %s509
        $region84: #{_lambda_.10} parent=79 // pred_fallthru
          _
      $region80: #{_lambda_.10} parent=5 // pred_fallthru
        _
      %p511 = scmp.le.s32.totalorder 1, %s24
      %p512 = scmp.lt.s32.totalorder %s24, 3
      %p513 = pnand %p511, %p512
      %p514 = pneg %p513
      // Predicated region
      $region85: #{_lambda_.10} parent=5 // pred_check
        _
      $region86: #{_lambda_.10} parent=5 // pred_check_branch
        %516 = sbr.rel (%p513) target = $region88
      $region87: #{_lambda_.10} parent=5 // pred_region
        %s517 = ssub.s32 %s24, 1
        // Predicated region
        $region89: #{_lambda_.10} parent=87 // pred_check
          %p518 = pneg %p335
        $region90: #{_lambda_.10} parent=87 // pred_check_branch
          %520 = sbr.rel (%p518) target = $region92
        $region91: #{_lambda_.10} parent=87 // pred_region
          %522 = dma.done [#allocation3], 256
        $region92: #{_lambda_.10} parent=87 // pred_fallthru
          _
        %p523 = scmp.lt.s32.totalorder %s33, 1
        %s524 = scalar_select %p523, %s33, 1
        %s525 = smul.addr %s524, 8
        %s526 = scalar_lea.vmem %s0, %s525
        %p527 = pneg %p62
        %p528 = pneg %p59
        %p529 = pneg %p83
        %p530 = pneg %p80
        %p531 = pneg %p104
        %p532 = pneg %p101
        %p533 = pneg %p125
        %p534 = pneg %p122
        %p535 = pneg %p146
        %p536 = pneg %p143
        %p537 = pneg %p167
        %p538 = pneg %p164
        %p539 = pneg %p188
        %p540 = pneg %p185
        %p541 = pneg %p209
        %p542 = pneg %p206
        %p543 = pneg %p230
        %p544 = pneg %p227
        %p545 = pneg %p251
        %p546 = pneg %p248
        %p547 = pneg %p272
        %p548 = pneg %p269
        %p549 = pneg %p293
        %p550 = pneg %p290
        %p551 = pneg %p314
        %p552 = pneg %p311
        %p553 = pneg %p335
        %p554 = pneg %p332
        %p555 = pneg %p356
        %p556 = pneg %p353
        %p557 = pneg %p377
        %p558 = pneg %p374
        %p559 = pneg %p398
        %p560 = pneg %p395
        %p561 = pneg %p426
        %p562 = pneg %p423
        %p563 = scmp.lt.s32.totalorder %s33, 1
        %s564 = scalar_select %p563, %s33, 1
        %p565 = scmp.lt.s32.totalorder %s34, 0
        %s566 = scalar_select %p565, %s34, 0
        %s567 = sadd.s32 %s566, %s564
        %s568 = smul.addr %s567, 8
        %s569 = scalar_lea.vmem %s17, %s568
        %p570 = scmp.lt.s32.totalorder %s33, 1
        %s571 = scalar_select %p570, %s33, 1
        %s572 = smul.addr %s571, 8
        %s573 = scalar_lea.vmem %s0, %s572
        %p574 = scmp.lt.s32.totalorder %s33, 1
        %s575 = scalar_select %p574, %s33, 1
        %p576 = scmp.lt.s32.totalorder %s34, 0
        %s577 = scalar_select %p576, %s34, 0
        %s578 = sadd.s32 %s577, %s575
        %s579 = smul.addr %s578, 8
        %s580 = scalar_lea.vmem %s17, %s579
        %v582 = vld [vmem:[%s573] sm:$0xff]
        %vm583 = vcmask 261120
        %v584 = vsel %vm583, %v582, 0.0
        %585 = vadd.xlane.f32.xlu0 %v584
        %v586 = vpop.xlane.xlu0 %585
        %v587 = vrcp.pop 32.0
        %v588 = vmul.f32 32.0, %v587
        %v589 = vsub.f32 1.0, %v588
        %v590 = vmul.f32 %v587, %v589
        %v591 = vadd.f32 %v587, %v590
        %vm592 = vweird.f32 %v587
        %v593 = vsel %vm592, %v587, %v591
        %v594 = vmul.f32 %v586, %v593
        %v595 = vsub.f32 %v582, %v594
        %v596 = vmul.f32 %v595, %v595
        %v597 = vsel %vm583, %v596, 0.0
        %598 = vadd.xlane.f32.xlu0 %v597
        %v599 = vpop.xlane.xlu0 %598
        %v600 = vmul.f32 %v599, %v593
        %v601 = vadd.f32 %v600, 1e-05
        %v602 = vrsqrt.pop %v601
        %v603 = vmul.f32 %v602, %v601
        %v604 = vmul.f32 %v603, %v602
        %v605 = vmul.f32 0.5, %v604
        %v606 = vsub.f32 1.5, %v605
        %v607 = vmul.f32 %v602, %v606
        %vm608 = vweird.f32 %v601
        %vm609 = vweird.f32 %v602
        %vm610 = vmor %vm608, %vm609
        %v611 = vsel %vm610, %v602, %v607
        %v612 = vmul.f32 %v595, %v611
        %v613 = vld [vmem:[%s1] sm:$0x1]
        %v615 = vperm.slane %v613, 0
        %v617 = vmul.f32 %v612, %v615
        %v618 = vld [vmem:[%s2] sm:$0x1]
        %v620 = vperm.slane %v618, 0
        %v622 = vadd.f32 %v617, %v620
        %v623 = vpack.c.bf16 %v622, %v622
        %v624 = vld [vmem:[%s3] sm:$0xf]
        %v625 = vld [vmem:[%s3 + $0x4] sm:$0xf]
        %v626 = vld [vmem:[%s3 + $0x8] sm:$0xf]
        %v627 = vld [vmem:[%s3 + $0xc] sm:$0xf]
        %v628 = vld [vmem:[%s4] sm:$0x1]
        %v630 = vperm.slane %v628, 0
        %v636 = vunpack.c.l.b16 %v624
        %v637 = vunpack.c.l.b16 %v625
        %v638 = vunpack.c.l.b16 %v626
        %v639 = vunpack.c.l.b16 %v627
        %v640 = vpack.c.b16 %v637, %v636
        %v641 = vpack.c.b16 %v639, %v638
        %v645 = vsel %vm583, %v623, 0
        %647 = vmatpush.bf16.msra.mxu0 0
        %648 = vmatpush.bf16.msra.mxu0 0
        %649 = vmatpush.bf16.msra.mxu0 0
        %650 = vmatpush.bf16.msra.mxu0 0
        %651 = vmatpush.bf16.msra.mxu0 0
        %652 = vmatpush.bf16.msra.mxu0 0
        %653 = vmatpush.bf16.msra.mxu0 %v641
        %654 = vmatpush.bf16.msra.mxu0 %v640
        %655 = vmatmul.bf16.gmra.mxu0 %v645
        %v656 = vpop.f32.mrf.mxu0
        %v657 = vadd.f32 %v630, %v656
        %v658 = vpop.f32.mrf.mxu0
        %659 = vdwg.mxu0
        %v660 = vld [vmem:[%s5] sm:$0xf]
        %v661 = vld [vmem:[%s5 + $0x4] sm:$0xf]
        %v662 = vld [vmem:[%s5 + $0x8] sm:$0xf]
        %v663 = vld [vmem:[%s5 + $0xc] sm:$0xf]
        %v664 = vld [vmem:[%s6] sm:$0x1]
        %v666 = vperm.slane %v664, 0
        %v672 = vunpack.c.l.b16 %v660
        %v673 = vunpack.c.l.b16 %v661
        %v674 = vunpack.c.l.b16 %v662
        %v675 = vunpack.c.l.b16 %v663
        %v676 = vpack.c.b16 %v673, %v672
        %v677 = vpack.c.b16 %v675, %v674
        %680 = vmatpush.bf16.msra.mxu0 0
        %681 = vmatpush.bf16.msra.mxu0 0
        %682 = vmatpush.bf16.msra.mxu0 0
        %683 = vmatpush.bf16.msra.mxu0 0
        %684 = vmatpush.bf16.msra.mxu0 0
        %685 = vmatpush.bf16.msra.mxu0 0
        %686 = vmatpush.bf16.msra.mxu0 %v677
        %687 = vmatpush.bf16.msra.mxu0 %v676
        %688 = vmatmul.bf16.gmra.mxu0 %v645
        %v689 = vpop.f32.mrf.mxu0
        %v690 = vadd.f32 %v666, %v689
        %v691 = vpop.f32.mrf.mxu0
        %692 = vdwg.mxu0
        %v693 = vld [vmem:[%s7] sm:$0xf]
        %v694 = vld [vmem:[%s7 + $0x4] sm:$0xf]
        %v695 = vld [vmem:[%s7 + $0x8] sm:$0xf]
        %v696 = vld [vmem:[%s7 + $0xc] sm:$0xf]
        %v697 = vld [vmem:[%s8] sm:$0x1]
        %v699 = vperm.slane %v697, 0
        %v705 = vunpack.c.l.b16 %v693
        %v706 = vunpack.c.l.b16 %v694
        %v707 = vunpack.c.l.b16 %v695
        %v708 = vunpack.c.l.b16 %v696
        %v709 = vpack.c.b16 %v706, %v705
        %v710 = vpack.c.b16 %v708, %v707
        %713 = vmatpush.bf16.msra.mxu0 0
        %714 = vmatpush.bf16.msra.mxu0 0
        %715 = vmatpush.bf16.msra.mxu0 0
        %716 = vmatpush.bf16.msra.mxu0 0
        %717 = vmatpush.bf16.msra.mxu0 0
        %718 = vmatpush.bf16.msra.mxu0 0
        %719 = vmatpush.bf16.msra.mxu0 %v710
        %720 = vmatpush.bf16.msra.mxu0 %v709
        %721 = vmatmul.bf16.gmra.mxu0 %v645
        %v722 = vpop.f32.mrf.mxu0
        %v723 = vadd.f32 %v699, %v722
        %v724 = vpop.f32.mrf.mxu0
        %725 = vdwg.mxu0
        %v726 = vpack.c.bf16 %v657, %v657
        %728 = vrot.lane.b32.xlu0 %v726, 120
        %v729 = vpop.permute.xlu0 %728
        %730 = vrot.lane.b32.xlu0 %v726, 112
        %v731 = vpop.permute.xlu0 %730
        %732 = vrot.lane.b32.xlu0 %v726, 104
        %v733 = vpop.permute.xlu0 %732
        %v736 = vpack.i.b16 %v729, %v726
        %v737 = vshrl.u32 %v726, 16
        %v738 = vshrl.u32 %v729, 16
        %v739 = vpack.i.b16 %v738, %v737
        %v742 = vpack.i.b16 %v733, %v731
        %v743 = vshrl.u32 %v731, 16
        %v744 = vshrl.u32 %v733, 16
        %v745 = vpack.i.b16 %v744, %v743
        %v748 = vunpack.c.l.s4 1983009808
        %v749 = vunpack.c.0.s8 %v748
        %v750 = vperm.slane %v736, %v749
        %v753 = vunpack.c.l.s4 1983009808
        %v754 = vunpack.c.0.s8 %v753
        %v755 = vperm.slane %v742, %v754
        %v756 = vrot.slane %v755, 4
        %vm757 = vcmask 1047556
        %v758 = vsel %vm757, %v756, %v750
        %v759 = vrot.slane %v750, 4
        %v760 = vsel %vm757, %v755, %v759
        %v762 = vunpack.c.l.s4 1934713408
        %v763 = vunpack.c.0.s8 %v762
        %v764 = vperm.slane %v758, %v763
        %v766 = vunpack.c.l.s4 1934713408
        %v767 = vunpack.c.0.s8 %v766
        %v768 = vperm.slane %v760, %v767
        %v769 = vrot.slane %v764, 4
        %v770 = vsel %vm757, 0, %v769
        %v771 = vrot.slane %v768, 4
        %v772 = vsel %vm757, 0, %v771
        %v775 = vunpack.c.l.s4 1983009808
        %v776 = vunpack.c.0.s8 %v775
        %v777 = vperm.slane %v739, %v776
        %v780 = vunpack.c.l.s4 1983009808
        %v781 = vunpack.c.0.s8 %v780
        %v782 = vperm.slane %v745, %v781
        %v783 = vrot.slane %v782, 4
        %v784 = vsel %vm757, %v783, %v777
        %v785 = vrot.slane %v777, 4
        %v786 = vsel %vm757, %v782, %v785
        %v788 = vunpack.c.l.s4 1934713408
        %v789 = vunpack.c.0.s8 %v788
        %v790 = vperm.slane %v784, %v789
        %v792 = vunpack.c.l.s4 1934713408
        %v793 = vunpack.c.0.s8 %v792
        %v794 = vperm.slane %v786, %v793
        %v795 = vrot.slane %v790, 4
        %v796 = vsel %vm757, 0, %v795
        %v797 = vrot.slane %v794, 4
        %v798 = vsel %vm757, 0, %v797
        %v799 = vsel %vm757, %v771, %v764
        %v801 = vunpack.c.l.s4 1983009808
        %v802 = vunpack.c.0.s8 %v801
        %v803 = vperm.slane %v799, %v802
        %v804 = vrot.slane %v772, 4
        %v805 = vsel %vm757, %v804, %v770
        %v807 = vunpack.c.l.s4 1983009808
        %v808 = vunpack.c.0.s8 %v807
        %v809 = vperm.slane %v805, %v808
        %v810 = vrot.slane %v809, 4
        %v811 = vsel %vm757, %v810, %v803
        %v813 = vunpack.c.l.s4 1934713408
        %v814 = vunpack.c.0.s8 %v813
        %v815 = vperm.slane %v811, %v814
        %v816 = vrot.slane %v815, 4
        %v817 = vsel %vm757, 0, %v816
        %v818 = vsel %vm757, %v797, %v790
        %v820 = vunpack.c.l.s4 1983009808
        %v821 = vunpack.c.0.s8 %v820
        %v822 = vperm.slane %v818, %v821
        %v823 = vrot.slane %v798, 4
        %v824 = vsel %vm757, %v823, %v796
        %v826 = vunpack.c.l.s4 1983009808
        %v827 = vunpack.c.0.s8 %v826
        %v828 = vperm.slane %v824, %v827
        %v829 = vrot.slane %v828, 4
        %v830 = vsel %vm757, %v829, %v822
        %v832 = vunpack.c.l.s4 1934713408
        %v833 = vunpack.c.0.s8 %v832
        %v834 = vperm.slane %v830, %v833
        %v835 = vrot.slane %v834, 4
        %v836 = vsel %vm757, 0, %v835
        %v839 = vpack.i.b16 %v834, %v815
        %v840 = vshrl.u32 %v815, 16
        %v841 = vshrl.u32 %v834, 16
        %v842 = vpack.i.b16 %v841, %v840
        %v845 = vpack.i.b16 %v836, %v817
        %v846 = vshrl.u32 %v817, 16
        %v847 = vshrl.u32 %v836, 16
        %v848 = vpack.i.b16 %v847, %v846
        %v849 = vpack.c.bf16 %v690, %v690
        %851 = vrot.lane.b32.xlu0 %v849, 120
        %v852 = vpop.permute.xlu0 %851
        %853 = vrot.lane.b32.xlu0 %v849, 112
        %v854 = vpop.permute.xlu0 %853
        %855 = vrot.lane.b32.xlu0 %v849, 104
        %v856 = vpop.permute.xlu0 %855
        %v859 = vpack.i.b16 %v852, %v849
        %v860 = vshrl.u32 %v849, 16
        %v861 = vshrl.u32 %v852, 16
        %v862 = vpack.i.b16 %v861, %v860
        %v865 = vpack.i.b16 %v856, %v854
        %v866 = vshrl.u32 %v854, 16
        %v867 = vshrl.u32 %v856, 16
        %v868 = vpack.i.b16 %v867, %v866
        %v871 = vunpack.c.l.s4 1983009808
        %v872 = vunpack.c.0.s8 %v871
        %v873 = vperm.slane %v859, %v872
        %v876 = vunpack.c.l.s4 1983009808
        %v877 = vunpack.c.0.s8 %v876
        %v878 = vperm.slane %v865, %v877
        %v879 = vrot.slane %v878, 4
        %v880 = vsel %vm757, %v879, %v873
        %v881 = vrot.slane %v873, 4
        %v882 = vsel %vm757, %v878, %v881
        %v884 = vunpack.c.l.s4 1934713408
        %v885 = vunpack.c.0.s8 %v884
        %v886 = vperm.slane %v880, %v885
        %v888 = vunpack.c.l.s4 1934713408
        %v889 = vunpack.c.0.s8 %v888
        %v890 = vperm.slane %v882, %v889
        %v891 = vrot.slane %v886, 4
        %v892 = vsel %vm757, 0, %v891
        %v893 = vrot.slane %v890, 4
        %v894 = vsel %vm757, 0, %v893
        %v897 = vunpack.c.l.s4 1983009808
        %v898 = vunpack.c.0.s8 %v897
        %v899 = vperm.slane %v862, %v898
        %v902 = vunpack.c.l.s4 1983009808
        %v903 = vunpack.c.0.s8 %v902
        %v904 = vperm.slane %v868, %v903
        %v905 = vrot.slane %v904, 4
        %v906 = vsel %vm757, %v905, %v899
        %v907 = vrot.slane %v899, 4
        %v908 = vsel %vm757, %v904, %v907
        %v910 = vunpack.c.l.s4 1934713408
        %v911 = vunpack.c.0.s8 %v910
        %v912 = vperm.slane %v906, %v911
        %v914 = vunpack.c.l.s4 1934713408
        %v915 = vunpack.c.0.s8 %v914
        %v916 = vperm.slane %v908, %v915
        %v917 = vrot.slane %v912, 4
        %v918 = vsel %vm757, 0, %v917
        %v919 = vrot.slane %v916, 4
        %v920 = vsel %vm757, 0, %v919
        %v921 = vsel %vm757, %v893, %v886
        %v923 = vunpack.c.l.s4 1983009808
        %v924 = vunpack.c.0.s8 %v923
        %v925 = vperm.slane %v921, %v924
        %v926 = vrot.slane %v894, 4
        %v927 = vsel %vm757, %v926, %v892
        %v929 = vunpack.c.l.s4 1983009808
        %v930 = vunpack.c.0.s8 %v929
        %v931 = vperm.slane %v927, %v930
        %v932 = vrot.slane %v931, 4
        %v933 = vsel %vm757, %v932, %v925
        %v935 = vunpack.c.l.s4 1934713408
        %v936 = vunpack.c.0.s8 %v935
        %v937 = vperm.slane %v933, %v936
        %v938 = vrot.slane %v937, 4
        %v939 = vsel %vm757, 0, %v938
        %v940 = vsel %vm757, %v919, %v912
        %v942 = vunpack.c.l.s4 1983009808
        %v943 = vunpack.c.0.s8 %v942
        %v944 = vperm.slane %v940, %v943
        %v945 = vrot.slane %v920, 4
        %v946 = vsel %vm757, %v945, %v918
        %v948 = vunpack.c.l.s4 1983009808
        %v949 = vunpack.c.0.s8 %v948
        %v950 = vperm.slane %v946, %v949
        %v951 = vrot.slane %v950, 4
        %v952 = vsel %vm757, %v951, %v944
        %v954 = vunpack.c.l.s4 1934713408
        %v955 = vunpack.c.0.s8 %v954
        %v956 = vperm.slane %v952, %v955
        %v957 = vrot.slane %v956, 4
        %v958 = vsel %vm757, 0, %v957
        %v961 = vpack.i.b16 %v956, %v937
        %v962 = vshrl.u32 %v937, 16
        %v963 = vshrl.u32 %v956, 16
        %v964 = vpack.i.b16 %v963, %v962
        %v967 = vpack.i.b16 %v958, %v939
        %v968 = vshrl.u32 %v939, 16
        %v969 = vshrl.u32 %v958, 16
        %v970 = vpack.i.b16 %v969, %v968
        %v971 = vpack.c.bf16 %v723, %v723
        %973 = vrot.lane.b32.xlu0 %v971, 120
        %v974 = vpop.permute.xlu0 %973
        %975 = vrot.lane.b32.xlu0 %v971, 112
        %v976 = vpop.permute.xlu0 %975
        %977 = vrot.lane.b32.xlu0 %v971, 104
        %v978 = vpop.permute.xlu0 %977
        %v981 = vpack.i.b16 %v974, %v971
        %v982 = vshrl.u32 %v971, 16
        %v983 = vshrl.u32 %v974, 16
        %v984 = vpack.i.b16 %v983, %v982
        %v987 = vpack.i.b16 %v978, %v976
        %v988 = vshrl.u32 %v976, 16
        %v989 = vshrl.u32 %v978, 16
        %v990 = vpack.i.b16 %v989, %v988
        %v993 = vunpack.c.l.s4 1983009808
        %v994 = vunpack.c.0.s8 %v993
        %v995 = vperm.slane %v981, %v994
        %v998 = vunpack.c.l.s4 1983009808
        %v999 = vunpack.c.0.s8 %v998
        %v1000 = vperm.slane %v987, %v999
        %v1001 = vrot.slane %v1000, 4
        %v1002 = vsel %vm757, %v1001, %v995
        %v1003 = vrot.slane %v995, 4
        %v1004 = vsel %vm757, %v1000, %v1003
        %v1006 = vunpack.c.l.s4 1934713408
        %v1007 = vunpack.c.0.s8 %v1006
        %v1008 = vperm.slane %v1002, %v1007
        %v1010 = vunpack.c.l.s4 1934713408
        %v1011 = vunpack.c.0.s8 %v1010
        %v1012 = vperm.slane %v1004, %v1011
        %v1013 = vrot.slane %v1008, 4
        %v1014 = vsel %vm757, 0, %v1013
        %v1015 = vrot.slane %v1012, 4
        %v1016 = vsel %vm757, 0, %v1015
        %v1019 = vunpack.c.l.s4 1983009808
        %v1020 = vunpack.c.0.s8 %v1019
        %v1021 = vperm.slane %v984, %v1020
        %v1024 = vunpack.c.l.s4 1983009808
        %v1025 = vunpack.c.0.s8 %v1024
        %v1026 = vperm.slane %v990, %v1025
        %v1027 = vrot.slane %v1026, 4
        %v1028 = vsel %vm757, %v1027, %v1021
        %v1029 = vrot.slane %v1021, 4
        %v1030 = vsel %vm757, %v1026, %v1029
        %v1032 = vunpack.c.l.s4 1934713408
        %v1033 = vunpack.c.0.s8 %v1032
        %v1034 = vperm.slane %v1028, %v1033
        %v1036 = vunpack.c.l.s4 1934713408
        %v1037 = vunpack.c.0.s8 %v1036
        %v1038 = vperm.slane %v1030, %v1037
        %v1039 = vrot.slane %v1034, 4
        %v1040 = vsel %vm757, 0, %v1039
        %v1041 = vrot.slane %v1038, 4
        %v1042 = vsel %vm757, 0, %v1041
        %v1043 = vsel %vm757, %v1015, %v1008
        %v1045 = vunpack.c.l.s4 1983009808
        %v1046 = vunpack.c.0.s8 %v1045
        %v1047 = vperm.slane %v1043, %v1046
        %v1048 = vrot.slane %v1016, 4
        %v1049 = vsel %vm757, %v1048, %v1014
        %v1051 = vunpack.c.l.s4 1983009808
        %v1052 = vunpack.c.0.s8 %v1051
        %v1053 = vperm.slane %v1049, %v1052
        %v1054 = vrot.slane %v1053, 4
        %v1055 = vsel %vm757, %v1054, %v1047
        %v1057 = vunpack.c.l.s4 1934713408
        %v1058 = vunpack.c.0.s8 %v1057
        %v1059 = vperm.slane %v1055, %v1058
        %v1060 = vrot.slane %v1059, 4
        %v1061 = vsel %vm757, 0, %v1060
        %v1062 = vsel %vm757, %v1041, %v1034
        %v1064 = vunpack.c.l.s4 1983009808
        %v1065 = vunpack.c.0.s8 %v1064
        %v1066 = vperm.slane %v1062, %v1065
        %v1067 = vrot.slane %v1042, 4
        %v1068 = vsel %vm757, %v1067, %v1040
        %v1070 = vunpack.c.l.s4 1983009808
        %v1071 = vunpack.c.0.s8 %v1070
        %v1072 = vperm.slane %v1068, %v1071
        %v1073 = vrot.slane %v1072, 4
        %v1074 = vsel %vm757, %v1073, %v1066
        %v1076 = vunpack.c.l.s4 1934713408
        %v1077 = vunpack.c.0.s8 %v1076
        %v1078 = vperm.slane %v1074, %v1077
        %v1079 = vrot.slane %v1078, 4
        %v1080 = vsel %vm757, 0, %v1079
        %v1083 = vpack.i.b16 %v1078, %v1059
        %v1084 = vshrl.u32 %v1059, 16
        %v1085 = vshrl.u32 %v1078, 16
        %v1086 = vpack.i.b16 %v1085, %v1084
        %v1089 = vpack.i.b16 %v1080, %v1061
        %v1090 = vshrl.u32 %v1061, 16
        %v1091 = vshrl.u32 %v1080, 16
        %v1092 = vpack.i.b16 %v1091, %v1090
        %vm1093 = vcmask 64512
        %v1095 = vsel %vm1093, %v839, 0
        %v1098 = vsel %vm1093, %v961, 0
        %1100 = vmatpush.bf16.xpose.msra.mxu0 0
        %1101 = vmatpush.bf16.xpose.msra.mxu0 0
        %1102 = vmatpush.bf16.xpose.msra.mxu0 0
        %1103 = vmatpush.bf16.xpose.msra.mxu0 0
        %1104 = vmatpush.bf16.xpose.msra.mxu0 0
        %1105 = vmatpush.bf16.xpose.msra.mxu0 0
        %1106 = vmatpush.bf16.xpose.msra.mxu0 0
        %1107 = vmatpush.bf16.xpose.msra.mxu0 %v1098
        %1108 = vmatmul.bf16.gmra.mxu0 %v1095
        %v1109 = vpop.f32.mrf.mxu0
        %v1110 = vadd.f32 0.0, %v1109
        %v1111 = vpop.f32.mrf.mxu0
        %1112 = vdwg.mxu0
        %v1114 = vsel %vm1093, %v842, 0
        %v1117 = vsel %vm1093, %v964, 0
        %1119 = vmatpush.bf16.xpose.msra.mxu0 0
        %1120 = vmatpush.bf16.xpose.msra.mxu0 0
        %1121 = vmatpush.bf16.xpose.msra.mxu0 0
        %1122 = vmatpush.bf16.xpose.msra.mxu0 0
        %1123 = vmatpush.bf16.xpose.msra.mxu0 0
        %1124 = vmatpush.bf16.xpose.msra.mxu0 0
        %1125 = vmatpush.bf16.xpose.msra.mxu0 0
        %1126 = vmatpush.bf16.xpose.msra.mxu0 %v1117
        %1127 = vmatmul.bf16.gmra.mxu0 %v1114
        %v1128 = vpop.f32.mrf.mxu0
        %v1129 = vadd.f32 0.0, %v1128
        %v1130 = vpop.f32.mrf.mxu0
        %1131 = vdwg.mxu0
        %v1133 = vsel %vm1093, %v845, 0
        %v1136 = vsel %vm1093, %v967, 0
        %1138 = vmatpush.bf16.xpose.msra.mxu0 0
        %1139 = vmatpush.bf16.xpose.msra.mxu0 0
        %1140 = vmatpush.bf16.xpose.msra.mxu0 0
        %1141 = vmatpush.bf16.xpose.msra.mxu0 0
        %1142 = vmatpush.bf16.xpose.msra.mxu0 0
        %1143 = vmatpush.bf16.xpose.msra.mxu0 0
        %1144 = vmatpush.bf16.xpose.msra.mxu0 0
        %1145 = vmatpush.bf16.xpose.msra.mxu0 %v1136
        %1146 = vmatmul.bf16.gmra.mxu0 %v1133
        %v1147 = vpop.f32.mrf.mxu0
        %v1148 = vadd.f32 0.0, %v1147
        %v1149 = vpop.f32.mrf.mxu0
        %1150 = vdwg.mxu0
        %v1152 = vsel %vm1093, %v848, 0
        %v1155 = vsel %vm1093, %v970, 0
        %1157 = vmatpush.bf16.xpose.msra.mxu0 0
        %1158 = vmatpush.bf16.xpose.msra.mxu0 0
        %1159 = vmatpush.bf16.xpose.msra.mxu0 0
        %1160 = vmatpush.bf16.xpose.msra.mxu0 0
        %1161 = vmatpush.bf16.xpose.msra.mxu0 0
        %1162 = vmatpush.bf16.xpose.msra.mxu0 0
        %1163 = vmatpush.bf16.xpose.msra.mxu0 0
        %1164 = vmatpush.bf16.xpose.msra.mxu0 %v1155
        %1165 = vmatmul.bf16.gmra.mxu0 %v1152
        %v1166 = vpop.f32.mrf.mxu0
        %v1167 = vadd.f32 0.0, %v1166
        %v1168 = vpop.f32.mrf.mxu0
        %1169 = vdwg.mxu0
        %v1170 = vmul.f32 %v1110, 0.35355338
        %v1171 = vmul.f32 %v1129, 0.35355338
        %v1172 = vmul.f32 %v1148, 0.35355338
        %v1173 = vmul.f32 %v1167, 0.35355338
        %v1174 = vlaneseq
        %v1175 = vand.u32 %v1174, 127
        %vm1176 = vcmp.lt.s32.totalorder %v1175, 5
        %v1177 = vsel %vm1176, %v1170, -1e+30
        %v1178 = vsel %vm1176, %v1171, -1e+30
        %v1179 = vsel %vm1176, %v1172, -1e+30
        %v1180 = vsel %vm1176, %v1173, -1e+30
        %v1181 = vsel %vm1093, %v1177, -inf
        %1182 = vmax.xlane.f32.xlu0 %v1181
        %v1183 = vpop.xlane.xlu0 %1182
        %v1184 = vsel %vm1093, %v1178, -inf
        %1185 = vmax.xlane.f32.xlu0 %v1184
        %v1186 = vpop.xlane.xlu0 %1185
        %v1187 = vsel %vm1093, %v1179, -inf
        %1188 = vmax.xlane.f32.xlu0 %v1187
        %v1189 = vpop.xlane.xlu0 %1188
        %v1190 = vsel %vm1093, %v1180, -inf
        %1191 = vmax.xlane.f32.xlu0 %v1190
        %v1192 = vpop.xlane.xlu0 %1191
        %v1193 = vsub.f32 %v1177, %v1183
        %v1194 = vsub.f32 %v1178, %v1186
        %v1195 = vsub.f32 %v1179, %v1189
        %v1196 = vsub.f32 %v1180, %v1192
        %v1197 = vmul.f32 %v1193, 1.442695
        %v1198 = vpow.pop %v1197
        %v1199 = vmul.f32 %v1194, 1.442695
        %v1200 = vpow.pop %v1199
        %v1201 = vmul.f32 %v1195, 1.442695
        %v1202 = vpow.pop %v1201
        %v1203 = vmul.f32 %v1196, 1.442695
        %v1204 = vpow.pop %v1203
        %v1205 = vsel %vm1093, %v1198, 0.0
        %1206 = vadd.xlane.f32.xlu0 %v1205
        %v1207 = vpop.xlane.xlu0 %1206
        %v1208 = vsel %vm1093, %v1200, 0.0
        %1209 = vadd.xlane.f32.xlu0 %v1208
        %v1210 = vpop.xlane.xlu0 %1209
        %v1211 = vsel %vm1093, %v1202, 0.0
        %1212 = vadd.xlane.f32.xlu0 %v1211
        %v1213 = vpop.xlane.xlu0 %1212
        %v1214 = vsel %vm1093, %v1204, 0.0
        %1215 = vadd.xlane.f32.xlu0 %v1214
        %v1216 = vpop.xlane.xlu0 %1215
        %v1217 = vrcp.pop %v1207
        %v1218 = vrcp.pop %v1210
        %v1219 = vrcp.pop %v1213
        %v1220 = vrcp.pop %v1216
        %v1221 = vmul.f32 %v1198, %v1217
        %v1222 = vmul.f32 %v1200, %v1218
        %v1223 = vmul.f32 %v1202, %v1219
        %v1224 = vmul.f32 %v1204, %v1220
        %v1225 = vpack.c.bf16 %v1221, %v1221
        %v1226 = vpack.c.bf16 %v1222, %v1222
        %v1227 = vpack.c.bf16 %v1223, %v1223
        %v1228 = vpack.c.bf16 %v1224, %v1224
        %v1230 = vsel %vm1093, %v1225, 0
        %vm1232 = vcmask 1043456
        %v1234 = vsel %vm1232, %v1083, 0
        %1236 = vmatpush.bf16.msra.mxu0 0
        %1237 = vmatpush.bf16.msra.mxu0 0
        %1238 = vmatpush.bf16.msra.mxu0 0
        %1239 = vmatpush.bf16.msra.mxu0 0
        %1240 = vmatpush.bf16.msra.mxu0 0
        %1241 = vmatpush.bf16.msra.mxu0 0
        %1242 = vmatpush.bf16.msra.mxu0 0
        %1243 = vmatpush.bf16.msra.mxu0 %v1234
        %1244 = vmatmul.bf16.gmra.mxu0 %v1230
        %v1245 = vpop.f32.mrf.mxu0
        %v1246 = vadd.f32 0.0, %v1245
        %v1247 = vpop.f32.mrf.mxu0
        %1248 = vdwg.mxu0
        %v1250 = vsel %vm1093, %v1226, 0
        %v1253 = vsel %vm1232, %v1086, 0
        %1255 = vmatpush.bf16.msra.mxu0 0
        %1256 = vmatpush.bf16.msra.mxu0 0
        %1257 = vmatpush.bf16.msra.mxu0 0
        %1258 = vmatpush.bf16.msra.mxu0 0
        %1259 = vmatpush.bf16.msra.mxu0 0
        %1260 = vmatpush.bf16.msra.mxu0 0
        %1261 = vmatpush.bf16.msra.mxu0 0
        %1262 = vmatpush.bf16.msra.mxu0 %v1253
        %1263 = vmatmul.bf16.gmra.mxu0 %v1250
        %v1264 = vpop.f32.mrf.mxu0
        %v1265 = vadd.f32 0.0, %v1264
        %v1266 = vpop.f32.mrf.mxu0
        %1267 = vdwg.mxu0
        %v1269 = vsel %vm1093, %v1227, 0
        %v1272 = vsel %vm1232, %v1089, 0
        %1274 = vmatpush.bf16.msra.mxu0 0
        %1275 = vmatpush.bf16.msra.mxu0 0
        %1276 = vmatpush.bf16.msra.mxu0 0
        %1277 = vmatpush.bf16.msra.mxu0 0
        %1278 = vmatpush.bf16.msra.mxu0 0
        %1279 = vmatpush.bf16.msra.mxu0 0
        %1280 = vmatpush.bf16.msra.mxu0 0
        %1281 = vmatpush.bf16.msra.mxu0 %v1272
        %1282 = vmatmul.bf16.gmra.mxu0 %v1269
        %v1283 = vpop.f32.mrf.mxu0
        %v1284 = vadd.f32 0.0, %v1283
        %v1285 = vpop.f32.mrf.mxu0
        %1286 = vdwg.mxu0
        %v1288 = vsel %vm1093, %v1228, 0
        %v1291 = vsel %vm1232, %v1092, 0
        %1293 = vmatpush.bf16.msra.mxu0 0
        %1294 = vmatpush.bf16.msra.mxu0 0
        %1295 = vmatpush.bf16.msra.mxu0 0
        %1296 = vmatpush.bf16.msra.mxu0 0
        %1297 = vmatpush.bf16.msra.mxu0 0
        %1298 = vmatpush.bf16.msra.mxu0 0
        %1299 = vmatpush.bf16.msra.mxu0 0
        %1300 = vmatpush.bf16.msra.mxu0 %v1291
        %1301 = vmatmul.bf16.gmra.mxu0 %v1288
        %v1302 = vpop.f32.mrf.mxu0
        %v1303 = vadd.f32 0.0, %v1302
        %v1304 = vpop.f32.mrf.mxu0
        %1305 = vdwg.mxu0
        %v1306 = vrot.slane %v1284, 4
        %vm1307 = vcmask 1047556
        %v1308 = vsel %vm1307, %v1306, %v1246
        %v1309 = vrot.slane %v1246, 4
        %v1310 = vsel %vm1307, %v1284, %v1309
        %v1312 = vunpack.c.l.s4 1983009808
        %v1313 = vunpack.c.0.s8 %v1312
        %v1314 = vperm.slane %v1308, %v1313
        %v1316 = vunpack.c.l.s4 1983009808
        %v1317 = vunpack.c.0.s8 %v1316
        %v1318 = vperm.slane %v1310, %v1317
        %v1319 = vrot.slane %v1303, 4
        %v1320 = vsel %vm1307, %v1319, %v1265
        %v1321 = vrot.slane %v1265, 4
        %v1322 = vsel %vm1307, %v1303, %v1321
        %v1324 = vunpack.c.l.s4 1983009808
        %v1325 = vunpack.c.0.s8 %v1324
        %v1326 = vperm.slane %v1320, %v1325
        %v1328 = vunpack.c.l.s4 1983009808
        %v1329 = vunpack.c.0.s8 %v1328
        %v1330 = vperm.slane %v1322, %v1329
        %v1331 = vrot.slane %v1326, 4
        %v1332 = vsel %vm1307, %v1331, %v1314
        %v1333 = vrot.slane %v1314, 4
        %v1334 = vsel %vm1307, %v1326, %v1333
        %v1336 = vunpack.c.l.s4 1934713408
        %v1337 = vunpack.c.0.s8 %v1336
        %v1338 = vperm.slane %v1332, %v1337
        %v1340 = vunpack.c.l.s4 1934713408
        %v1341 = vunpack.c.0.s8 %v1340
        %v1342 = vperm.slane %v1334, %v1341
        %v1343 = vrot.slane %v1330, 4
        %v1344 = vsel %vm1307, %v1343, %v1318
        %v1345 = vrot.slane %v1318, 4
        %v1346 = vsel %vm1307, %v1330, %v1345
        %v1348 = vunpack.c.l.s4 1934713408
        %v1349 = vunpack.c.0.s8 %v1348
        %v1350 = vperm.slane %v1344, %v1349
        %v1352 = vunpack.c.l.s4 1934713408
        %v1353 = vunpack.c.0.s8 %v1352
        %v1354 = vperm.slane %v1346, %v1353
        %v1355 = vrot.slane %v1338, 4
        %v1356 = vsel %vm1307, 0.0, %v1355
        %v1357 = vrot.slane %v1342, 4
        %v1358 = vsel %vm1307, 0.0, %v1357
        %v1359 = vrot.slane %v1350, 4
        %v1360 = vsel %vm1307, 0.0, %v1359
        %v1361 = vrot.slane %v1354, 4
        %v1362 = vsel %vm1307, 0.0, %v1361
        %v1363 = vsel %vm1307, %v1357, %v1338
        %v1365 = vunpack.c.l.s4 1983009808
        %v1366 = vunpack.c.0.s8 %v1365
        %v1367 = vperm.slane %v1363, %v1366
        %v1368 = vrot.slane %v1358, 4
        %v1369 = vsel %vm1307, %v1368, %v1356
        %v1371 = vunpack.c.l.s4 1983009808
        %v1372 = vunpack.c.0.s8 %v1371
        %v1373 = vperm.slane %v1369, %v1372
        %v1374 = vsel %vm1307, %v1361, %v1350
        %v1376 = vunpack.c.l.s4 1983009808
        %v1377 = vunpack.c.0.s8 %v1376
        %v1378 = vperm.slane %v1374, %v1377
        %v1379 = vrot.slane %v1362, 4
        %v1380 = vsel %vm1307, %v1379, %v1360
        %v1382 = vunpack.c.l.s4 1983009808
        %v1383 = vunpack.c.0.s8 %v1382
        %v1384 = vperm.slane %v1380, %v1383
        %v1385 = vrot.slane %v1373, 4
        %v1386 = vsel %vm1307, %v1385, %v1367
        %v1387 = vrot.slane %v1367, 4
        %v1388 = vsel %vm1307, %v1373, %v1387
        %v1390 = vunpack.c.l.s4 1934713408
        %v1391 = vunpack.c.0.s8 %v1390
        %v1392 = vperm.slane %v1386, %v1391
        %v1394 = vunpack.c.l.s4 1934713408
        %v1395 = vunpack.c.0.s8 %v1394
        %v1396 = vperm.slane %v1388, %v1395
        %v1397 = vrot.slane %v1384, 4
        %v1398 = vsel %vm1307, %v1397, %v1378
        %v1399 = vrot.slane %v1378, 4
        %v1400 = vsel %vm1307, %v1384, %v1399
        %v1402 = vunpack.c.l.s4 1934713408
        %v1403 = vunpack.c.0.s8 %v1402
        %v1404 = vperm.slane %v1398, %v1403
        %v1406 = vunpack.c.l.s4 1934713408
        %v1407 = vunpack.c.0.s8 %v1406
        %v1408 = vperm.slane %v1400, %v1407
        %v1409 = vrot.slane %v1404, 4
        %v1410 = vsel %vm1307, %v1409, %v1392
        %v1411 = vrot.slane %v1392, 4
        %v1412 = vsel %vm1307, %v1404, %v1411
        %v1413 = vrot.slane %v1408, 4
        %v1414 = vsel %vm1307, %v1413, %v1396
        %v1415 = vrot.slane %v1396, 4
        %v1416 = vsel %vm1307, %v1408, %v1415
        %1418 = vrot.lane.b32.xlu0 %v1412, 8
        %v1419 = vpop.permute.xlu0 %1418
        %1422 = vrot.lane.b32.xlu0 %v1414, 16
        %v1423 = vpop.permute.xlu0 %1422
        %1426 = vrot.lane.b32.xlu0 %v1416, 24
        %v1427 = vpop.permute.xlu0 %1426
        %v1429 = vsel %vm1093, %v1410, %v1419
        %vm1430 = vcmask 130048
        %v1431 = vsel %vm1430, %v1429, %v1423
        %vm1432 = vcmask 195584
        %v1433 = vsel %vm1432, %v1431, %v1427
        %v1434 = vpack.c.bf16 %v1433, %v1433
        %v1435 = vld [vmem:[%s9] sm:$0xf]
        %v1436 = vld [vmem:[%s9 + $0x4] sm:$0xf]
        %v1437 = vld [vmem:[%s9 + $0x8] sm:$0xf]
        %v1438 = vld [vmem:[%s9 + $0xc] sm:$0xf]
        %v1439 = vld [vmem:[%s10] sm:$0x1]
        %v1441 = vperm.slane %v1439, 0
        %v1447 = vunpack.c.l.b16 %v1435
        %v1448 = vunpack.c.l.b16 %v1436
        %v1449 = vunpack.c.l.b16 %v1437
        %v1450 = vunpack.c.l.b16 %v1438
        %v1451 = vpack.c.b16 %v1448, %v1447
        %v1452 = vpack.c.b16 %v1450, %v1449
        %v1456 = vsel %vm583, %v1434, 0
        %1458 = vmatpush.bf16.msra.mxu0 0
        %1459 = vmatpush.bf16.msra.mxu0 0
        %1460 = vmatpush.bf16.msra.mxu0 0
        %1461 = vmatpush.bf16.msra.mxu0 0
        %1462 = vmatpush.bf16.msra.mxu0 0
        %1463 = vmatpush.bf16.msra.mxu0 0
        %1464 = vmatpush.bf16.msra.mxu0 %v1452
        %1465 = vmatpush.bf16.msra.mxu0 %v1451
        %1466 = vmatmul.bf16.gmra.mxu0 %v1456
        %v1467 = vpop.f32.mrf.mxu0
        %v1468 = vadd.f32 %v1441, %v1467
        %v1469 = vpop.f32.mrf.mxu0
        %1470 = vdwg.mxu0
        %v1471 = vadd.f32 %v582, %v1468
        %v1472 = vsel %vm583, %v1471, 0.0
        %1473 = vadd.xlane.f32.xlu0 %v1472
        %v1474 = vpop.xlane.xlu0 %1473
        %v1475 = vmul.f32 %v1474, %v593
        %v1476 = vsub.f32 %v1471, %v1475
        %v1477 = vmul.f32 %v1476, %v1476
        %v1478 = vsel %vm583, %v1477, 0.0
        %1479 = vadd.xlane.f32.xlu0 %v1478
        %v1480 = vpop.xlane.xlu0 %1479
        %v1481 = vmul.f32 %v1480, %v593
        %v1482 = vadd.f32 %v1481, 1e-05
        %v1483 = vrsqrt.pop %v1482
        %v1484 = vmul.f32 %v1483, %v1482
        %v1485 = vmul.f32 %v1484, %v1483
        %v1486 = vmul.f32 0.5, %v1485
        %v1487 = vsub.f32 1.5, %v1486
        %v1488 = vmul.f32 %v1483, %v1487
        %vm1489 = vweird.f32 %v1482
        %vm1490 = vweird.f32 %v1483
        %vm1491 = vmor %vm1489, %vm1490
        %v1492 = vsel %vm1491, %v1483, %v1488
        %v1493 = vmul.f32 %v1476, %v1492
        %v1494 = vld [vmem:[%s11] sm:$0x1]
        %v1496 = vperm.slane %v1494, 0
        %v1498 = vmul.f32 %v1493, %v1496
        %v1499 = vld [vmem:[%s12] sm:$0x1]
        %v1501 = vperm.slane %v1499, 0
        %v1503 = vadd.f32 %v1498, %v1501
        %v1504 = vpack.c.bf16 %v1503, %v1503
        %v1505 = vld [vmem:[#allocation2] sm:$0xf]
        %v1506 = vld [vmem:[#allocation2 + $0x4] sm:$0xf]
        %v1507 = vld [vmem:[#allocation2 + $0x8] sm:$0xf]
        %v1508 = vld [vmem:[#allocation2 + $0xc] sm:$0xf]
        %v1509 = vld [vmem:[%s14] sm:$0x1]
        %v1511 = vperm.slane %v1509, 0
        %v1517 = vunpack.c.l.b16 %v1505
        %v1518 = vunpack.c.l.b16 %v1506
        %v1519 = vunpack.c.l.b16 %v1507
        %v1520 = vunpack.c.l.b16 %v1508
        %v1521 = vpack.c.b16 %v1518, %v1517
        %v1522 = vpack.c.b16 %v1520, %v1519
        %v1526 = vsel %vm583, %v1504, 0
        %1528 = vmatpush.bf16.msra.mxu0 0
        %1529 = vmatpush.bf16.msra.mxu0 0
        %1530 = vmatpush.bf16.msra.mxu0 0
        %1531 = vmatpush.bf16.msra.mxu0 0
        %1532 = vmatpush.bf16.msra.mxu0 0
        %1533 = vmatpush.bf16.msra.mxu0 0
        %1534 = vmatpush.bf16.msra.mxu0 %v1522
        %1535 = vmatpush.bf16.msra.mxu0 %v1521
        %1536 = vmatmul.bf16.gmra.mxu0 %v1526
        %v1537 = vpop.f32.mrf.mxu0
        %v1538 = vadd.f32 %v1511, %v1537
        %v1539 = vpop.f32.mrf.mxu0
        %1540 = vdwg.mxu0
        %v1541 = vmul.f32 %v1538, 0.5
        %v1542 = vmul.f32 %v1538, 0.70710677
        %v1543 = vmul.f32 %v1542, %v1542
        %v1544 = vmin.f32 16.0, %v1543
        %v1545 = vmul.f32 %v1544, 2.1237322e-06
        %v1546 = vadd.f32 %v1545, 0.00028619796
        %v1547 = vmul.f32 %v1544, %v1546
        %v1548 = vadd.f32 %v1547, 0.0036580483
        %v1549 = vmul.f32 %v1544, %v1548
        %v1550 = vadd.f32 %v1549, 0.05243302
        %v1551 = vmul.f32 %v1544, %v1550
        %v1552 = vadd.f32 %v1551, 0.18741608
        %v1553 = vmul.f32 %v1544, %v1552
        %v1554 = vadd.f32 %v1553, 1.1283791
        %v1555 = vmul.f32 %v1542, %v1554
        %v1556 = vmul.f32 %v1544, 3.8918573e-05
        %v1557 = vadd.f32 %v1556, 0.001143296
        %v1558 = vmul.f32 %v1544, %v1557
        %v1559 = vadd.f32 %v1558, 0.014752088
        %v1560 = vmul.f32 %v1544, %v1559
        %v1561 = vadd.f32 %v1560, 0.112945676
        %v1562 = vmul.f32 %v1544, %v1561
        %v1563 = vadd.f32 %v1562, 0.4994258
        %v1564 = vmul.f32 %v1544, %v1563
        %v1565 = vadd.f32 %v1564, 1.0
        %v1566 = vrcp.pop %v1565
        %v1567 = vmul.f32 %v1565, %v1566
        %v1568 = vsub.f32 1.0, %v1567
        %v1569 = vmul.f32 %v1566, %v1568
        %v1570 = vadd.f32 %v1566, %v1569
        %vm1571 = vweird.f32 %v1565
        %vm1572 = vweird.f32 %v1566
        %vm1573 = vmor %vm1571, %vm1572
        %v1574 = vsel %vm1573, %v1566, %v1570
        %v1575 = vand.u32 2147483647, %v1565
        %vm1576 = vcmp.eq.f32.partialorder %v1575, 8.507059e+37
        %v1577 = vand.u32 %v1565, 2147483648
        %v1578 = vor.u32 1.1754944e-38, %v1577
        %v1579 = vsel %vm1576, %v1578, %v1574
        %v1580 = vmul.f32 %v1555, %v1579
        %v1581 = vmin.f32 %v1580, 1.0
        %v1582 = vmax.f32 %v1581, -1.0
        %v1583 = vadd.f32 %v1582, 1.0
        %v1584 = vmul.f32 %v1541, %v1583
        %v1585 = vpack.c.bf16 %v1584, %v1584
        %v1586 = vld [vmem:[%s15] sm:$0xf]
        %v1587 = vld [vmem:[%s15 + $0x4] sm:$0xf]
        %v1588 = vld [vmem:[%s15 + $0x8] sm:$0xf]
        %v1589 = vld [vmem:[%s15 + $0xc] sm:$0xf]
        %v1590 = vld [vmem:[%s15 + $0x10] sm:$0xf]
        %v1591 = vld [vmem:[%s15 + $0x14] sm:$0xf]
        %v1592 = vld [vmem:[%s15 + $0x18] sm:$0xf]
        %v1593 = vld [vmem:[%s15 + $0x1c] sm:$0xf]
        %v1594 = vld [vmem:[%s15 + $0x20] sm:$0xf]
        %v1595 = vld [vmem:[%s15 + $0x24] sm:$0xf]
        %v1596 = vld [vmem:[%s15 + $0x28] sm:$0xf]
        %v1597 = vld [vmem:[%s15 + $0x2c] sm:$0xf]
        %v1598 = vld [vmem:[%s15 + $0x30] sm:$0xf]
        %v1599 = vld [vmem:[%s15 + $0x34] sm:$0xf]
        %v1600 = vld [vmem:[%s15 + $0x38] sm:$0xf]
        %v1601 = vld [vmem:[%s15 + $0x3c] sm:$0xf]
        %v1602 = vld [vmem:[%s16] sm:$0x1]
        %v1604 = vperm.slane %v1602, 0
        %v1622 = vunpack.c.l.b16 %v1586
        %v1623 = vunpack.c.l.b16 %v1587
        %v1624 = vunpack.c.l.b16 %v1588
        %v1625 = vunpack.c.l.b16 %v1589
        %v1626 = vunpack.c.l.b16 %v1590
        %v1627 = vunpack.c.l.b16 %v1591
        %v1628 = vunpack.c.l.b16 %v1592
        %v1629 = vunpack.c.l.b16 %v1593
        %v1630 = vunpack.c.l.b16 %v1594
        %v1631 = vunpack.c.l.b16 %v1595
        %v1632 = vunpack.c.l.b16 %v1596
        %v1633 = vunpack.c.l.b16 %v1597
        %v1634 = vunpack.c.l.b16 %v1598
        %v1635 = vunpack.c.l.b16 %v1599
        %v1636 = vunpack.c.l.b16 %v1600
        %v1637 = vunpack.c.l.b16 %v1601
        %v1638 = vpack.c.b16 %v1623, %v1622
        %v1639 = vpack.c.b16 %v1625, %v1624
        %v1640 = vpack.c.b16 %v1627, %v1626
        %v1641 = vpack.c.b16 %v1629, %v1628
        %v1642 = vpack.c.b16 %v1631, %v1630
        %v1643 = vpack.c.b16 %v1633, %v1632
        %v1644 = vpack.c.b16 %v1635, %v1634
        %v1645 = vpack.c.b16 %v1637, %v1636
        %1654 = vmatpush.bf16.msra.mxu0 %v1645
        %1655 = vmatpush.bf16.msra.mxu0 %v1644
        %1656 = vmatpush.bf16.msra.mxu0 %v1643
        %1657 = vmatpush.bf16.msra.mxu0 %v1642
        %1658 = vmatpush.bf16.msra.mxu0 %v1641
        %1659 = vmatpush.bf16.msra.mxu0 %v1640
        %1660 = vmatpush.bf16.msra.mxu0 %v1639
        %1661 = vmatpush.bf16.msra.mxu0 %v1638
        %1662 = vmatmul.bf16.gmra.mxu0 %v1585
        %v1663 = vpop.f32.mrf.mxu0
        %v1664 = vadd.f32 %v1604, %v1663
        %v1665 = vpop.f32.mrf.mxu0
        %1666 = vdwg.mxu0
        %v1667 = vadd.f32 %v1471, %v1664
        %1668 = vst.msk [vmem:[%s580] sm:$0xff] %vm583, %v1667
        %p1669 = scmp.lt.s32.totalorder %s33, 1
        %s1670 = scalar_select %p1669, %s33, 1
        %p1671 = scmp.lt.s32.totalorder %s34, 0
        %s1672 = scalar_select %p1671, %s34, 0
        %s1673 = sadd.s32 %s1672, %s1670
        %s1674 = smul.addr %s1673, 8
        %s1675 = scalar_lea.vmem %s17, %s1674
        // Predicated region
        $region93: #{_lambda_.10} parent=87 // pred_check
          %p1676 = pneg %p423
        $region94: #{_lambda_.10} parent=87 // pred_check_branch
          %1678 = sbr.rel (%p1676) target = $region96
        $region95: #{_lambda_.10} parent=87 // pred_region
          _
        $region96: #{_lambda_.10} parent=87 // pred_fallthru
          _
      $region88: #{_lambda_.10} parent=5 // pred_fallthru
        _
      %p1679 = scmp.le.s32.totalorder 2, %s24
      // Predicated region
      $region97: #{_lambda_.10} parent=5 // pred_check
        %p1680 = pneg %p1679
      $region98: #{_lambda_.10} parent=5 // pred_check_branch
        %1682 = sbr.rel (%p1680) target = $region100
      $region99: #{_lambda_.10} parent=5 // pred_region
        %s1683 = ssub.s32 %s24, 2
        // Predicated region
        $region101: #{_lambda_.10} parent=99 // pred_check
          %p1684 = pneg %p429
        $region102: #{_lambda_.10} parent=99 // pred_check_branch
          %1686 = sbr.rel (%p1684) target = $region104
        $region103: #{_lambda_.10} parent=99 // pred_region
          %p1687 = scmp.lt.s32.totalorder %s35, 1
          %s1688 = scalar_select %p1687, %s35, 1
          %p1689 = scmp.lt.s32.totalorder %s36, 0
          %s1690 = scalar_select %p1689, %s36, 0
          %s1691 = sadd.s32 %s1690, %s1688
          %s1692 = smul.addr %s1691, 8
          %s1693 = scalar_lea.vmem %s17, %s1692
        $region104: #{_lambda_.10} parent=99 // pred_fallthru
          _
      $region100: #{_lambda_.10} parent=5 // pred_fallthru
        _
    $region6: #{_lambda_.10} parent=1 // loop_footer
      %s28 = sadd.s32 1, %s24
    $region7: #{_lambda_.10} parent=1 // loop_footer_branch
      %23 = sbr.rel target = $region3
    $region8: #{_lambda_.10} parent=1 // loop_exit
      _
    %1694 = vsyncpa [#allocation3], 1
    %s1695 = scalar_lea.sflag [#allocation3], 1
    %1696 = vsyncpa %s1695, 1

// kernel: _lambda_.17
$region0: #{_lambda_.17}
  #allocation0 [shape = 'u32[]', space=smem, size = 0x4, offset = 0x4, fixed_abs, tag = 'smem constant byte address 0x4 - core index']
  #allocation1 [shape = 'u32[72,128]{1,0:T(1,128)}', space=vmem, size = 0x9000, scoped, tag = 'internal scratch']
  %s0 = inlined_call_operand.vmem [shape: f32[2,8,32], index: 0, kind: input, shape index: {}, may-alias: {0,19}]
  %s1 = inlined_call_operand.vmem [shape: f32[1,32], index: 1, kind: input, shape index: {}, may-alias: {1,11,17}]
  %s2 = inlined_call_operand.vmem [shape: f32[1,32], index: 2, kind: input, shape index: {}, may-alias: {2,4,6,8,10,12,16,18}]
  %s3 = inlined_call_operand.vmem [shape: bf16[32,32], index: 3, kind: input, shape index: {}]
  %s4 = inlined_call_operand.vmem [shape: f32[1,32], index: 4, kind: input, shape index: {}, may-alias: {2,4,6,8,10,12,16,18}]
  %s5 = inlined_call_operand.vmem [shape: bf16[32,32], index: 5, kind: input, shape index: {}]
  %s6 = inlined_call_operand.vmem [shape: f32[1,32], index: 6, kind: input, shape index: {}, may-alias: {2,4,6,8,10,12,16,18}]
  %s7 = inlined_call_operand.vmem [shape: bf16[32,32], index: 7, kind: input, shape index: {}]
  %s8 = inlined_call_operand.vmem [shape: f32[1,32], index: 8, kind: input, shape index: {}, may-alias: {2,4,6,8,10,12,16,18}]
  %s9 = inlined_call_operand.vmem [shape: bf16[32,32], index: 9, kind: input, shape index: {}]
  %s10 = inlined_call_operand.vmem [shape: f32[1,32], index: 10, kind: input, shape index: {}, may-alias: {2,4,6,8,10,12,16,18}]
  %s11 = inlined_call_operand.vmem [shape: f32[1,32], index: 11, kind: input, shape index: {}, may-alias: {1,11,17}]
  %s12 = inlined_call_operand.vmem [shape: f32[1,32], index: 12, kind: input, shape index: {}, may-alias: {2,4,6,8,10,12,16,18}]
  %s13 = inlined_call_operand.vmem [shape: bf16[32,128], index: 13, kind: input, shape index: {}]
  %s14 = inlined_call_operand.vmem [shape: f32[1,128], index: 14, kind: input, shape index: {}]
  %s15 = inlined_call_operand.vmem [shape: bf16[128,32], index: 15, kind: input, shape index: {}]
  %s16 = inlined_call_operand.vmem [shape: f32[1,32], index: 16, kind: input, shape index: {}, may-alias: {2,4,6,8,10,12,16,18}]
  %s17 = inlined_call_operand.vmem [shape: f32[1,32], index: 17, kind: input, shape index: {}, may-alias: {1,11,17}]
  %s18 = inlined_call_operand.vmem [shape: f32[1,32], index: 18, kind: input, shape index: {}, may-alias: {2,4,6,8,10,12,16,18}]
  %s19 = inlined_call_operand.vmem [shape: f32[2,8,32], index: 19, kind: output, shape index: {0}, may-alias: {0,19}]
  %s20 = inlined_call_operand.vmem [shape: f32[2,2,8,8], index: 20, kind: output, shape index: {1}]
  %s21 = inlined_call_operand.vmem [shape: f32[2,8,32], index: 21, kind: output, shape index: {2}]
  %22 = xla_tuple %s19, %s20, %s21
  %s23 = sld [smem:[#allocation0]]
  $region125: #{_lambda_.17} parent=0
    _
  %s25 = ssub.s32 1, %s23
  %s26 = scalar_select 0, %s25, %s23
  loop: start=0, step=1, limit=4
  $region2: #{_lambda_.17} parent=0 // loop_pre_header
    _
  $region3: #{_lambda_.17} parent=0 // loop_header
    %s28 = sphi 0, %s32
    %p29 = scmp.ge.s32.totalorder %s28, 4
    %s35 = sphi 0, %s47
    %s36 = sphi 0, %s43
    %s37 = sphi 0, %s35
    %s38 = sphi 0, %s36
    %s39 = sphi 0, %s37
    %s40 = sphi 0, %s38
    %s50 = sphi 0, %s52
    %s53 = sphi 0, %s50
    %s54 = sphi 0, %s53
    %s70 = sphi 0, %s54
    %s74 = sphi 0, %s74
    %s76 = sphi 0, %s74
    %s77 = sphi 0, %s76
    %s91 = sphi 0, %s77
    %s95 = sphi 0, %s95
    %s97 = sphi 0, %s95
    %s98 = sphi 0, %s97
    %s112 = sphi 0, %s98
    %s116 = sphi 0, %s116
    %s118 = sphi 0, %s116
    %s119 = sphi 0, %s118
    %s133 = sphi 0, %s119
    %s137 = sphi 0, %s137
    %s139 = sphi 0, %s137
    %s140 = sphi 0, %s139
    %s154 = sphi 0, %s140
    %s158 = sphi 0, %s158
    %s160 = sphi 0, %s158
    %s161 = sphi 0, %s160
    %s175 = sphi 0, %s161
    %s179 = sphi 0, %s179
    %s181 = sphi 0, %s179
    %s182 = sphi 0, %s181
    %s196 = sphi 0, %s182
    %s200 = sphi 0, %s200
    %s202 = sphi 0, %s200
    %s203 = sphi 0, %s202
    %s217 = sphi 0, %s203
    %s221 = sphi 0, %s221
    %s223 = sphi 0, %s221
    %s224 = sphi 0, %s223
    %s238 = sphi 0, %s224
    %s242 = sphi 0, %s242
    %s244 = sphi 0, %s242
    %s245 = sphi 0, %s244
    %s259 = sphi 0, %s245
    %s263 = sphi 0, %s263
    %s265 = sphi 0, %s263
    %s266 = sphi 0, %s265
    %s280 = sphi 0, %s266
    %s284 = sphi 0, %s284
    %s286 = sphi 0, %s284
    %s287 = sphi 0, %s286
    %s301 = sphi 0, %s287
    %s305 = sphi 0, %s305
    %s307 = sphi 0, %s305
    %s308 = sphi 0, %s307
    %s322 = sphi 0, %s308
    %s326 = sphi 0, %s326
    %s328 = sphi 0, %s326
    %s329 = sphi 0, %s328
    %s343 = sphi 0, %s329
    %s347 = sphi 0, %s347
    %s349 = sphi 0, %s347
    %s350 = sphi 0, %s349
    %s364 = sphi 0, %s350
    %s368 = sphi 0, %s368
    %s370 = sphi 0, %s368
    %s371 = sphi 0, %s370
    %s385 = sphi 0, %s371
    %s389 = sphi 0, %s389
    %s391 = sphi 0, %s389
    %s392 = sphi 0, %s391
    %s406 = sphi 0, %s392
    %s410 = sphi 0, %s410
    %s412 = sphi 0, %s410
    %s413 = sphi 0, %s412
    %s427 = sphi 0, %s413
    %s431 = sphi 0, %s431
    %s433 = sphi 0, %s431
    %s434 = sphi 0, %s433
    %s448 = sphi 0, %s434
    %s456 = sphi 0, %s458
    %s459 = sphi 0, %s456
    %s460 = sphi 0, %s459
    %s476 = sphi 0, %s460
    %s484 = sphi 0, %s486
    %s487 = sphi 0, %s484
    %s488 = sphi 0, %s487
    %s504 = sphi 0, %s488
    %s512 = sphi 0, %s514
    %s515 = sphi 0, %s512
    %s516 = sphi 0, %s515
    %s532 = sphi 0, %s516
  $region4: #{_lambda_.17} parent=0 // loop_header_branch
    %31 = sbr.rel (%p29) target = $region8
  $region5: #{_lambda_.17} parent=0 // loop_body
    %s33 = ssub.s32 %s28, 1
    %s34 = ssub.s32 %s28, 2
    %s41 = sadd.s32 1, %s36
    %p42 = scmp.ge.s32.totalorder %s41, 1
    %s43 = scalar_select %p42, 0, %s41
    %s44 = sadd.s32 1, %s35
    %s45 = scalar_select %p42, %s44, %s35
    %p46 = scmp.ge.s32.totalorder %s45, 2
    %s47 = scalar_select %p46, 0, %s45
    %s48 = ssub.s32 %s35, %s47
    %p49 = scmp.eq.s32.totalorder %s48, 0
    %s51 = sadd.s32 %s50, 1
    %s52 = scalar_select %p49, %s50, %s51
    %p55 = pneg %p49
    %p56 = scmp.eq.s32.totalorder %s28, 1
    %p57 = por %p55, %p56
    %p58 = scmp.ne.s32.totalorder %s50, %s53
    %p59 = scmp.eq.s32.totalorder %s28, 0
    %p60 = por %p58, %p59
    %p61 = scmp.ne.s32.totalorder %s50, %s53
    %p62 = scmp.eq.s32.totalorder %s33, 1
    %p63 = por %p61, %p62
    %p64 = scmp.ne.s32.totalorder %s53, %s54
    %p65 = scmp.eq.s32.totalorder %s33, 0
    %p66 = por %p64, %p65
    %p67 = scmp.ne.s32.totalorder %s53, %s54
    %p68 = scmp.eq.s32.totalorder %s34, 1
    %p69 = por %p67, %p68
    %p71 = scmp.ne.s32.totalorder %s54, %s70
    %p72 = scmp.eq.s32.totalorder %s34, 0
    %p73 = por %p71, %p72
    %s75 = sadd.s32 %s74, 1
    %p78 = scmp.eq.s32.totalorder %s28, 1
    %p79 = scmp.ne.s32.totalorder %s74, %s76
    %p80 = scmp.eq.s32.totalorder %s28, 0
    %p81 = por %p79, %p80
    %p82 = scmp.ne.s32.totalorder %s74, %s76
    %p83 = scmp.eq.s32.totalorder %s33, 1
    %p84 = por %p82, %p83
    %p85 = scmp.ne.s32.totalorder %s76, %s77
    %p86 = scmp.eq.s32.totalorder %s33, 0
    %p87 = por %p85, %p86
    %p88 = scmp.ne.s32.totalorder %s76, %s77
    %p89 = scmp.eq.s32.totalorder %s34, 1
    %p90 = por %p88, %p89
    %p92 = scmp.ne.s32.totalorder %s77, %s91
    %p93 = scmp.eq.s32.totalorder %s34, 0
    %p94 = por %p92, %p93
    %s96 = sadd.s32 %s95, 1
    %p99 = scmp.eq.s32.totalorder %s28, 1
    %p100 = scmp.ne.s32.totalorder %s95, %s97
    %p101 = scmp.eq.s32.totalorder %s28, 0
    %p102 = por %p100, %p101
    %p103 = scmp.ne.s32.totalorder %s95, %s97
    %p104 = scmp.eq.s32.totalorder %s33, 1
    %p105 = por %p103, %p104
    %p106 = scmp.ne.s32.totalorder %s97, %s98
    %p107 = scmp.eq.s32.totalorder %s33, 0
    %p108 = por %p106, %p107
    %p109 = scmp.ne.s32.totalorder %s97, %s98
    %p110 = scmp.eq.s32.totalorder %s34, 1
    %p111 = por %p109, %p110
    %p113 = scmp.ne.s32.totalorder %s98, %s112
    %p114 = scmp.eq.s32.totalorder %s34, 0
    %p115 = por %p113, %p114
    %s117 = sadd.s32 %s116, 1
    %p120 = scmp.eq.s32.totalorder %s28, 1
    %p121 = scmp.ne.s32.totalorder %s116, %s118
    %p122 = scmp.eq.s32.totalorder %s28, 0
    %p123 = por %p121, %p122
    %p124 = scmp.ne.s32.totalorder %s116, %s118
    %p125 = scmp.eq.s32.totalorder %s33, 1
    %p126 = por %p124, %p125
    %p127 = scmp.ne.s32.totalorder %s118, %s119
    %p128 = scmp.eq.s32.totalorder %s33, 0
    %p129 = por %p127, %p128
    %p130 = scmp.ne.s32.totalorder %s118, %s119
    %p131 = scmp.eq.s32.totalorder %s34, 1
    %p132 = por %p130, %p131
    %p134 = scmp.ne.s32.totalorder %s119, %s133
    %p135 = scmp.eq.s32.totalorder %s34, 0
    %p136 = por %p134, %p135
    %s138 = sadd.s32 %s137, 1
    %p141 = scmp.eq.s32.totalorder %s28, 1
    %p142 = scmp.ne.s32.totalorder %s137, %s139
    %p143 = scmp.eq.s32.totalorder %s28, 0
    %p144 = por %p142, %p143
    %p145 = scmp.ne.s32.totalorder %s137, %s139
    %p146 = scmp.eq.s32.totalorder %s33, 1
    %p147 = por %p145, %p146
    %p148 = scmp.ne.s32.totalorder %s139, %s140
    %p149 = scmp.eq.s32.totalorder %s33, 0
    %p150 = por %p148, %p149
    %p151 = scmp.ne.s32.totalorder %s139, %s140
    %p152 = scmp.eq.s32.totalorder %s34, 1
    %p153 = por %p151, %p152
    %p155 = scmp.ne.s32.totalorder %s140, %s154
    %p156 = scmp.eq.s32.totalorder %s34, 0
    %p157 = por %p155, %p156
    %s159 = sadd.s32 %s158, 1
    %p162 = scmp.eq.s32.totalorder %s28, 1
    %p163 = scmp.ne.s32.totalorder %s158, %s160
    %p164 = scmp.eq.s32.totalorder %s28, 0
    %p165 = por %p163, %p164
    %p166 = scmp.ne.s32.totalorder %s158, %s160
    %p167 = scmp.eq.s32.totalorder %s33, 1
    %p168 = por %p166, %p167
    %p169 = scmp.ne.s32.totalorder %s160, %s161
    %p170 = scmp.eq.s32.totalorder %s33, 0
    %p171 = por %p169, %p170
    %p172 = scmp.ne.s32.totalorder %s160, %s161
    %p173 = scmp.eq.s32.totalorder %s34, 1
    %p174 = por %p172, %p173
    %p176 = scmp.ne.s32.totalorder %s161, %s175
    %p177 = scmp.eq.s32.totalorder %s34, 0
    %p178 = por %p176, %p177
    %s180 = sadd.s32 %s179, 1
    %p183 = scmp.eq.s32.totalorder %s28, 1
    %p184 = scmp.ne.s32.totalorder %s179, %s181
    %p185 = scmp.eq.s32.totalorder %s28, 0
    %p186 = por %p184, %p185
    %p187 = scmp.ne.s32.totalorder %s179, %s181
    %p188 = scmp.eq.s32.totalorder %s33, 1
    %p189 = por %p187, %p188
    %p190 = scmp.ne.s32.totalorder %s181, %s182
    %p191 = scmp.eq.s32.totalorder %s33, 0
    %p192 = por %p190, %p191
    %p193 = scmp.ne.s32.totalorder %s181, %s182
    %p194 = scmp.eq.s32.totalorder %s34, 1
    %p195 = por %p193, %p194
    %p197 = scmp.ne.s32.totalorder %s182, %s196
    %p198 = scmp.eq.s32.totalorder %s34, 0
    %p199 = por %p197, %p198
    %s201 = sadd.s32 %s200, 1
    %p204 = scmp.eq.s32.totalorder %s28, 1
    %p205 = scmp.ne.s32.totalorder %s200, %s202
    %p206 = scmp.eq.s32.totalorder %s28, 0
    %p207 = por %p205, %p206
    %p208 = scmp.ne.s32.totalorder %s200, %s202
    %p209 = scmp.eq.s32.totalorder %s33, 1
    %p210 = por %p208, %p209
    %p211 = scmp.ne.s32.totalorder %s202, %s203
    %p212 = scmp.eq.s32.totalorder %s33, 0
    %p213 = por %p211, %p212
    %p214 = scmp.ne.s32.totalorder %s202, %s203
    %p215 = scmp.eq.s32.totalorder %s34, 1
    %p216 = por %p214, %p215
    %p218 = scmp.ne.s32.totalorder %s203, %s217
    %p219 = scmp.eq.s32.totalorder %s34, 0
    %p220 = por %p218, %p219
    %s222 = sadd.s32 %s221, 1
    %p225 = scmp.eq.s32.totalorder %s28, 1
    %p226 = scmp.ne.s32.totalorder %s221, %s223
    %p227 = scmp.eq.s32.totalorder %s28, 0
    %p228 = por %p226, %p227
    %p229 = scmp.ne.s32.totalorder %s221, %s223
    %p230 = scmp.eq.s32.totalorder %s33, 1
    %p231 = por %p229, %p230
    %p232 = scmp.ne.s32.totalorder %s223, %s224
    %p233 = scmp.eq.s32.totalorder %s33, 0
    %p234 = por %p232, %p233
    %p235 = scmp.ne.s32.totalorder %s223, %s224
    %p236 = scmp.eq.s32.totalorder %s34, 1
    %p237 = por %p235, %p236
    %p239 = scmp.ne.s32.totalorder %s224, %s238
    %p240 = scmp.eq.s32.totalorder %s34, 0
    %p241 = por %p239, %p240
    %s243 = sadd.s32 %s242, 1
    %p246 = scmp.eq.s32.totalorder %s28, 1
    %p247 = scmp.ne.s32.totalorder %s242, %s244
    %p248 = scmp.eq.s32.totalorder %s28, 0
    %p249 = por %p247, %p248
    %p250 = scmp.ne.s32.totalorder %s242, %s244
    %p251 = scmp.eq.s32.totalorder %s33, 1
    %p252 = por %p250, %p251
    %p253 = scmp.ne.s32.totalorder %s244, %s245
    %p254 = scmp.eq.s32.totalorder %s33, 0
    %p255 = por %p253, %p254
    %p256 = scmp.ne.s32.totalorder %s244, %s245
    %p257 = scmp.eq.s32.totalorder %s34, 1
    %p258 = por %p256, %p257
    %p260 = scmp.ne.s32.totalorder %s245, %s259
    %p261 = scmp.eq.s32.totalorder %s34, 0
    %p262 = por %p260, %p261
    %s264 = sadd.s32 %s263, 1
    %p267 = scmp.eq.s32.totalorder %s28, 1
    %p268 = scmp.ne.s32.totalorder %s263, %s265
    %p269 = scmp.eq.s32.totalorder %s28, 0
    %p270 = por %p268, %p269
    %p271 = scmp.ne.s32.totalorder %s263, %s265
    %p272 = scmp.eq.s32.totalorder %s33, 1
    %p273 = por %p271, %p272
    %p274 = scmp.ne.s32.totalorder %s265, %s266
    %p275 = scmp.eq.s32.totalorder %s33, 0
    %p276 = por %p274, %p275
    %p277 = scmp.ne.s32.totalorder %s265, %s266
    %p278 = scmp.eq.s32.totalorder %s34, 1
    %p279 = por %p277, %p278
    %p281 = scmp.ne.s32.totalorder %s266, %s280
    %p282 = scmp.eq.s32.totalorder %s34, 0
    %p283 = por %p281, %p282
    %s285 = sadd.s32 %s284, 1
    %p288 = scmp.eq.s32.totalorder %s28, 1
    %p289 = scmp.ne.s32.totalorder %s284, %s286
    %p290 = scmp.eq.s32.totalorder %s28, 0
    %p291 = por %p289, %p290
    %p292 = scmp.ne.s32.totalorder %s284, %s286
    %p293 = scmp.eq.s32.totalorder %s33, 1
    %p294 = por %p292, %p293
    %p295 = scmp.ne.s32.totalorder %s286, %s287
    %p296 = scmp.eq.s32.totalorder %s33, 0
    %p297 = por %p295, %p296
    %p298 = scmp.ne.s32.totalorder %s286, %s287
    %p299 = scmp.eq.s32.totalorder %s34, 1
    %p300 = por %p298, %p299
    %p302 = scmp.ne.s32.totalorder %s287, %s301
    %p303 = scmp.eq.s32.totalorder %s34, 0
    %p304 = por %p302, %p303
    %s306 = sadd.s32 %s305, 1
    %p309 = scmp.eq.s32.totalorder %s28, 1
    %p310 = scmp.ne.s32.totalorder %s305, %s307
    %p311 = scmp.eq.s32.totalorder %s28, 0
    %p312 = por %p310, %p311
    %p313 = scmp.ne.s32.totalorder %s305, %s307
    %p314 = scmp.eq.s32.totalorder %s33, 1
    %p315 = por %p313, %p314
    %p316 = scmp.ne.s32.totalorder %s307, %s308
    %p317 = scmp.eq.s32.totalorder %s33, 0
    %p318 = por %p316, %p317
    %p319 = scmp.ne.s32.totalorder %s307, %s308
    %p320 = scmp.eq.s32.totalorder %s34, 1
    %p321 = por %p319, %p320
    %p323 = scmp.ne.s32.totalorder %s308, %s322
    %p324 = scmp.eq.s32.totalorder %s34, 0
    %p325 = por %p323, %p324
    %s327 = sadd.s32 %s326, 1
    %p330 = scmp.eq.s32.totalorder %s28, 1
    %p331 = scmp.ne.s32.totalorder %s326, %s328
    %p332 = scmp.eq.s32.totalorder %s28, 0
    %p333 = por %p331, %p332
    %p334 = scmp.ne.s32.totalorder %s326, %s328
    %p335 = scmp.eq.s32.totalorder %s33, 1
    %p336 = por %p334, %p335
    %p337 = scmp.ne.s32.totalorder %s328, %s329
    %p338 = scmp.eq.s32.totalorder %s33, 0
    %p339 = por %p337, %p338
    %p340 = scmp.ne.s32.totalorder %s328, %s329
    %p341 = scmp.eq.s32.totalorder %s34, 1
    %p342 = por %p340, %p341
    %p344 = scmp.ne.s32.totalorder %s329, %s343
    %p345 = scmp.eq.s32.totalorder %s34, 0
    %p346 = por %p344, %p345
    %s348 = sadd.s32 %s347, 1
    %p351 = scmp.eq.s32.totalorder %s28, 1
    %p352 = scmp.ne.s32.totalorder %s347, %s349
    %p353 = scmp.eq.s32.totalorder %s28, 0
    %p354 = por %p352, %p353
    %p355 = scmp.ne.s32.totalorder %s347, %s349
    %p356 = scmp.eq.s32.totalorder %s33, 1
    %p357 = por %p355, %p356
    %p358 = scmp.ne.s32.totalorder %s349, %s350
    %p359 = scmp.eq.s32.totalorder %s33, 0
    %p360 = por %p358, %p359
    %p361 = scmp.ne.s32.totalorder %s349, %s350
    %p362 = scmp.eq.s32.totalorder %s34, 1
    %p363 = por %p361, %p362
    %p365 = scmp.ne.s32.totalorder %s350, %s364
    %p366 = scmp.eq.s32.totalorder %s34, 0
    %p367 = por %p365, %p366
    %s369 = sadd.s32 %s368, 1
    %p372 = scmp.eq.s32.totalorder %s28, 1
    %p373 = scmp.ne.s32.totalorder %s368, %s370
    %p374 = scmp.eq.s32.totalorder %s28, 0
    %p375 = por %p373, %p374
    %p376 = scmp.ne.s32.totalorder %s368, %s370
    %p377 = scmp.eq.s32.totalorder %s33, 1
    %p378 = por %p376, %p377
    %p379 = scmp.ne.s32.totalorder %s370, %s371
    %p380 = scmp.eq.s32.totalorder %s33, 0
    %p381 = por %p379, %p380
    %p382 = scmp.ne.s32.totalorder %s370, %s371
    %p383 = scmp.eq.s32.totalorder %s34, 1
    %p384 = por %p382, %p383
    %p386 = scmp.ne.s32.totalorder %s371, %s385
    %p387 = scmp.eq.s32.totalorder %s34, 0
    %p388 = por %p386, %p387
    %s390 = sadd.s32 %s389, 1
    %p393 = scmp.eq.s32.totalorder %s28, 1
    %p394 = scmp.ne.s32.totalorder %s389, %s391
    %p395 = scmp.eq.s32.totalorder %s28, 0
    %p396 = por %p394, %p395
    %p397 = scmp.ne.s32.totalorder %s389, %s391
    %p398 = scmp.eq.s32.totalorder %s33, 1
    %p399 = por %p397, %p398
    %p400 = scmp.ne.s32.totalorder %s391, %s392
    %p401 = scmp.eq.s32.totalorder %s33, 0
    %p402 = por %p400, %p401
    %p403 = scmp.ne.s32.totalorder %s391, %s392
    %p404 = scmp.eq.s32.totalorder %s34, 1
    %p405 = por %p403, %p404
    %p407 = scmp.ne.s32.totalorder %s392, %s406
    %p408 = scmp.eq.s32.totalorder %s34, 0
    %p409 = por %p407, %p408
    %s411 = sadd.s32 %s410, 1
    %p414 = scmp.eq.s32.totalorder %s28, 1
    %p415 = scmp.ne.s32.totalorder %s410, %s412
    %p416 = scmp.eq.s32.totalorder %s28, 0
    %p417 = por %p415, %p416
    %p418 = scmp.ne.s32.totalorder %s410, %s412
    %p419 = scmp.eq.s32.totalorder %s33, 1
    %p420 = por %p418, %p419
    %p421 = scmp.ne.s32.totalorder %s412, %s413
    %p422 = scmp.eq.s32.totalorder %s33, 0
    %p423 = por %p421, %p422
    %p424 = scmp.ne.s32.totalorder %s412, %s413
    %p425 = scmp.eq.s32.totalorder %s34, 1
    %p426 = por %p424, %p425
    %p428 = scmp.ne.s32.totalorder %s413, %s427
    %p429 = scmp.eq.s32.totalorder %s34, 0
    %p430 = por %p428, %p429
    %s432 = sadd.s32 %s431, 1
    %p435 = scmp.eq.s32.totalorder %s28, 1
    %p436 = scmp.ne.s32.totalorder %s431, %s433
    %p437 = scmp.eq.s32.totalorder %s28, 0
    %p438 = por %p436, %p437
    %p439 = scmp.ne.s32.totalorder %s431, %s433
    %p440 = scmp.eq.s32.totalorder %s33, 1
    %p441 = por %p439, %p440
    %p442 = scmp.ne.s32.totalorder %s433, %s434
    %p443 = scmp.eq.s32.totalorder %s33, 0
    %p444 = por %p442, %p443
    %p445 = scmp.ne.s32.totalorder %s433, %s434
    %p446 = scmp.eq.s32.totalorder %s34, 1
    %p447 = por %p445, %p446
    %p449 = scmp.ne.s32.totalorder %s434, %s448
    %p450 = scmp.eq.s32.totalorder %s34, 0
    %p451 = por %p449, %p450
    %s452 = ssub.s32 %s35, %s47
    %s453 = ssub.s32 %s36, %s43
    %s454 = sor.u32 %s452, %s453
    %p455 = scmp.eq.s32.totalorder %s454, 0
    %s457 = sadd.s32 %s456, 1
    %s458 = scalar_select %p455, %s456, %s457
    %p461 = pneg %p455
    %p462 = scmp.eq.s32.totalorder %s28, 1
    %p463 = por %p461, %p462
    %p464 = scmp.ne.s32.totalorder %s456, %s459
    %p465 = scmp.eq.s32.totalorder %s28, 0
    %p466 = por %p464, %p465
    %p467 = scmp.ne.s32.totalorder %s456, %s459
    %p468 = scmp.eq.s32.totalorder %s33, 1
    %p469 = por %p467, %p468
    %p470 = scmp.ne.s32.totalorder %s459, %s460
    %p471 = scmp.eq.s32.totalorder %s33, 0
    %p472 = por %p470, %p471
    %p473 = scmp.ne.s32.totalorder %s459, %s460
    %p474 = scmp.eq.s32.totalorder %s34, 1
    %p475 = por %p473, %p474
    %p477 = scmp.ne.s32.totalorder %s460, %s476
    %p478 = scmp.eq.s32.totalorder %s34, 0
    %p479 = por %p477, %p478
    %s480 = ssub.s32 %s35, %s47
    %s481 = ssub.s32 %s36, %s43
    %s482 = sor.u32 %s480, %s481
    %p483 = scmp.eq.s32.totalorder %s482, 0
    %s485 = sadd.s32 %s484, 1
    %s486 = scalar_select %p483, %s484, %s485
    %p489 = pneg %p483
    %p490 = scmp.eq.s32.totalorder %s28, 1
    %p491 = por %p489, %p490
    %p492 = scmp.ne.s32.totalorder %s484, %s487
    %p493 = scmp.eq.s32.totalorder %s28, 0
    %p494 = por %p492, %p493
    %p495 = scmp.ne.s32.totalorder %s484, %s487
    %p496 = scmp.eq.s32.totalorder %s33, 1
    %p497 = por %p495, %p496
    %p498 = scmp.ne.s32.totalorder %s487, %s488
    %p499 = scmp.eq.s32.totalorder %s33, 0
    %p500 = por %p498, %p499
    %p501 = scmp.ne.s32.totalorder %s487, %s488
    %p502 = scmp.eq.s32.totalorder %s34, 1
    %p503 = por %p501, %p502
    %p505 = scmp.ne.s32.totalorder %s488, %s504
    %p506 = scmp.eq.s32.totalorder %s34, 0
    %p507 = por %p505, %p506
    %s508 = ssub.s32 %s35, %s47
    %s509 = ssub.s32 %s36, %s43
    %s510 = sor.u32 %s508, %s509
    %p511 = scmp.eq.s32.totalorder %s510, 0
    %s513 = sadd.s32 %s512, 1
    %s514 = scalar_select %p511, %s512, %s513
    %p517 = pneg %p511
    %p518 = scmp.eq.s32.totalorder %s28, 1
    %p519 = por %p517, %p518
    %p520 = scmp.ne.s32.totalorder %s512, %s515
    %p521 = scmp.eq.s32.totalorder %s28, 0
    %p522 = por %p520, %p521
    %p523 = scmp.ne.s32.totalorder %s512, %s515
    %p524 = scmp.eq.s32.totalorder %s33, 1
    %p525 = por %p523, %p524
    %p526 = scmp.ne.s32.totalorder %s515, %s516
    %p527 = scmp.eq.s32.totalorder %s33, 0
    %p528 = por %p526, %p527
    %p529 = scmp.ne.s32.totalorder %s515, %s516
    %p530 = scmp.eq.s32.totalorder %s34, 1
    %p531 = por %p529, %p530
    %p533 = scmp.ne.s32.totalorder %s516, %s532
    %p534 = scmp.eq.s32.totalorder %s34, 0
    %p535 = por %p533, %p534
    %p536 = scmp.le.s32.totalorder 1, %s28
    %p537 = scmp.lt.s32.totalorder %s28, 3
    %p538 = pnand %p536, %p537
    %p539 = pneg %p538
    // Predicated region
    $region9: #{_lambda_.17} parent=5 // pred_check
      _
    $region10: #{_lambda_.17} parent=5 // pred_check_branch
      %541 = sbr.rel (%p538) target = $region12
    $region11: #{_lambda_.17} parent=5 // pred_region
      %s542 = ssub.s32 %s28, 1
      // Predicated region
      $region13: #{_lambda_.17} parent=11 // pred_check
        %p543 = pneg %p87
      $region14: #{_lambda_.17} parent=11 // pred_check_branch
        %545 = sbr.rel (%p543) target = $region16
      $region15: #{_lambda_.17} parent=11 // pred_region
        _
      $region16: #{_lambda_.17} parent=11 // pred_fallthru
        _
      // Predicated region
      $region17: #{_lambda_.17} parent=11 // pred_check
        %p546 = pneg %p108
      $region18: #{_lambda_.17} parent=11 // pred_check_branch
        %548 = sbr.rel (%p546) target = $region20
      $region19: #{_lambda_.17} parent=11 // pred_region
        _
      $region20: #{_lambda_.17} parent=11 // pred_fallthru
        _
      // Predicated region
      $region21: #{_lambda_.17} parent=11 // pred_check
        %p549 = pneg %p129
      $region22: #{_lambda_.17} parent=11 // pred_check_branch
        %551 = sbr.rel (%p549) target = $region24
      $region23: #{_lambda_.17} parent=11 // pred_region
        _
      $region24: #{_lambda_.17} parent=11 // pred_fallthru
        _
      // Predicated region
      $region25: #{_lambda_.17} parent=11 // pred_check
        %p552 = pneg %p150
      $region26: #{_lambda_.17} parent=11 // pred_check_branch
        %554 = sbr.rel (%p552) target = $region28
      $region27: #{_lambda_.17} parent=11 // pred_region
        _
      $region28: #{_lambda_.17} parent=11 // pred_fallthru
        _
      // Predicated region
      $region29: #{_lambda_.17} parent=11 // pred_check
        %p555 = pneg %p171
      $region30: #{_lambda_.17} parent=11 // pred_check_branch
        %557 = sbr.rel (%p555) target = $region32
      $region31: #{_lambda_.17} parent=11 // pred_region
        _
      $region32: #{_lambda_.17} parent=11 // pred_fallthru
        _
      // Predicated region
      $region33: #{_lambda_.17} parent=11 // pred_check
        %p558 = pneg %p192
      $region34: #{_lambda_.17} parent=11 // pred_check_branch
        %560 = sbr.rel (%p558) target = $region36
      $region35: #{_lambda_.17} parent=11 // pred_region
        _
      $region36: #{_lambda_.17} parent=11 // pred_fallthru
        _
      // Predicated region
      $region37: #{_lambda_.17} parent=11 // pred_check
        %p561 = pneg %p213
      $region38: #{_lambda_.17} parent=11 // pred_check_branch
        %563 = sbr.rel (%p561) target = $region40
      $region39: #{_lambda_.17} parent=11 // pred_region
        _
      $region40: #{_lambda_.17} parent=11 // pred_fallthru
        _
      // Predicated region
      $region41: #{_lambda_.17} parent=11 // pred_check
        %p564 = pneg %p234
      $region42: #{_lambda_.17} parent=11 // pred_check_branch
        %566 = sbr.rel (%p564) target = $region44
      $region43: #{_lambda_.17} parent=11 // pred_region
        _
      $region44: #{_lambda_.17} parent=11 // pred_fallthru
        _
      // Predicated region
      $region45: #{_lambda_.17} parent=11 // pred_check
        %p567 = pneg %p255
      $region46: #{_lambda_.17} parent=11 // pred_check_branch
        %569 = sbr.rel (%p567) target = $region48
      $region47: #{_lambda_.17} parent=11 // pred_region
        _
      $region48: #{_lambda_.17} parent=11 // pred_fallthru
        _
      // Predicated region
      $region49: #{_lambda_.17} parent=11 // pred_check
        %p570 = pneg %p276
      $region50: #{_lambda_.17} parent=11 // pred_check_branch
        %572 = sbr.rel (%p570) target = $region52
      $region51: #{_lambda_.17} parent=11 // pred_region
        _
      $region52: #{_lambda_.17} parent=11 // pred_fallthru
        _
      // Predicated region
      $region53: #{_lambda_.17} parent=11 // pred_check
        %p573 = pneg %p297
      $region54: #{_lambda_.17} parent=11 // pred_check_branch
        %575 = sbr.rel (%p573) target = $region56
      $region55: #{_lambda_.17} parent=11 // pred_region
        _
      $region56: #{_lambda_.17} parent=11 // pred_fallthru
        _
      // Predicated region
      $region57: #{_lambda_.17} parent=11 // pred_check
        %p576 = pneg %p318
      $region58: #{_lambda_.17} parent=11 // pred_check_branch
        %578 = sbr.rel (%p576) target = $region60
      $region59: #{_lambda_.17} parent=11 // pred_region
        _
      $region60: #{_lambda_.17} parent=11 // pred_fallthru
        _
      // Predicated region
      $region61: #{_lambda_.17} parent=11 // pred_check
        %p579 = pneg %p339
      $region62: #{_lambda_.17} parent=11 // pred_check_branch
        %581 = sbr.rel (%p579) target = $region64
      $region63: #{_lambda_.17} parent=11 // pred_region
        _
      $region64: #{_lambda_.17} parent=11 // pred_fallthru
        _
      // Predicated region
      $region65: #{_lambda_.17} parent=11 // pred_check
        %p582 = pneg %p360
      $region66: #{_lambda_.17} parent=11 // pred_check_branch
        %584 = sbr.rel (%p582) target = $region68
      $region67: #{_lambda_.17} parent=11 // pred_region
        _
      $region68: #{_lambda_.17} parent=11 // pred_fallthru
        _
      // Predicated region
      $region69: #{_lambda_.17} parent=11 // pred_check
        %p585 = pneg %p381
      $region70: #{_lambda_.17} parent=11 // pred_check_branch
        %587 = sbr.rel (%p585) target = $region72
      $region71: #{_lambda_.17} parent=11 // pred_region
        _
      $region72: #{_lambda_.17} parent=11 // pred_fallthru
        _
      // Predicated region
      $region73: #{_lambda_.17} parent=11 // pred_check
        %p588 = pneg %p402
      $region74: #{_lambda_.17} parent=11 // pred_check_branch
        %590 = sbr.rel (%p588) target = $region76
      $region75: #{_lambda_.17} parent=11 // pred_region
        _
      $region76: #{_lambda_.17} parent=11 // pred_fallthru
        _
      // Predicated region
      $region77: #{_lambda_.17} parent=11 // pred_check
        %p591 = pneg %p423
      $region78: #{_lambda_.17} parent=11 // pred_check_branch
        %593 = sbr.rel (%p591) target = $region80
      $region79: #{_lambda_.17} parent=11 // pred_region
        _
      $region80: #{_lambda_.17} parent=11 // pred_fallthru
        _
      // Predicated region
      $region81: #{_lambda_.17} parent=11 // pred_check
        %p594 = pneg %p444
      $region82: #{_lambda_.17} parent=11 // pred_check_branch
        %596 = sbr.rel (%p594) target = $region84
      $region83: #{_lambda_.17} parent=11 // pred_region
        _
      $region84: #{_lambda_.17} parent=11 // pred_fallthru
        _
    $region12: #{_lambda_.17} parent=5 // pred_fallthru
      _
    %p597 = scmp.lt.s32.totalorder %s28, 2
    // Predicated region
    $region85: #{_lambda_.17} parent=5 // pred_check
      %p598 = pneg %p597
    $region86: #{_lambda_.17} parent=5 // pred_check_branch
      %600 = sbr.rel (%p598) target = $region88
    $region87: #{_lambda_.17} parent=5 // pred_region
      // Predicated region
      $region89: #{_lambda_.17} parent=87 // pred_check
        %p601 = pneg %p60
      $region90: #{_lambda_.17} parent=87 // pred_check_branch
        %603 = sbr.rel (%p601) target = $region92
      $region91: #{_lambda_.17} parent=87 // pred_region
        %p604 = scmp.lt.s32.totalorder %s35, 1
        %s605 = scalar_select %p604, %s35, 1
        %s606 = smul.addr %s605, 8
        %s607 = scalar_lea.vmem %s0, %s606
      $region92: #{_lambda_.17} parent=87 // pred_fallthru
        _
    $region88: #{_lambda_.17} parent=5 // pred_fallthru
      _
    %p608 = scmp.le.s32.totalorder 1, %s28
    %p609 = scmp.lt.s32.totalorder %s28, 3
    %p610 = pnand %p608, %p609
    %p611 = pneg %p610
    // Predicated region
    $region93: #{_lambda_.17} parent=5 // pred_check
      _
    $region94: #{_lambda_.17} parent=5 // pred_check_branch
      %613 = sbr.rel (%p610) target = $region96
    $region95: #{_lambda_.17} parent=5 // pred_region
      %s614 = ssub.s32 %s28, 1
      %p615 = scmp.lt.s32.totalorder %s37, 1
      %s616 = scalar_select %p615, %s37, 1
      %s617 = smul.addr %s616, 8
      %s618 = scalar_lea.vmem %s0, %s617
      %p619 = pneg %p66
      %p620 = pneg %p63
      %p621 = pneg %p87
      %p622 = pneg %p84
      %p623 = pneg %p108
      %p624 = pneg %p105
      %p625 = pneg %p129
      %p626 = pneg %p126
      %p627 = pneg %p150
      %p628 = pneg %p147
      %p629 = pneg %p171
      %p630 = pneg %p168
      %p631 = pneg %p192
      %p632 = pneg %p189
      %p633 = pneg %p213
      %p634 = pneg %p210
      %p635 = pneg %p234
      %p636 = pneg %p231
      %p637 = pneg %p255
      %p638 = pneg %p252
      %p639 = pneg %p276
      %p640 = pneg %p273
      %p641 = pneg %p297
      %p642 = pneg %p294
      %p643 = pneg %p318
      %p644 = pneg %p315
      %p645 = pneg %p339
      %p646 = pneg %p336
      %p647 = pneg %p360
      %p648 = pneg %p357
      %p649 = pneg %p381
      %p650 = pneg %p378
      %p651 = pneg %p402
      %p652 = pneg %p399
      %p653 = pneg %p423
      %p654 = pneg %p420
      %p655 = pneg %p444
      %p656 = pneg %p441
      %p657 = pneg %p472
      %p658 = pneg %p469
      %p659 = scmp.lt.s32.totalorder %s37, 1
      %s660 = scalar_select %p659, %s37, 1
      %p661 = scmp.lt.s32.totalorder %s38, 0
      %s662 = scalar_select %p661, %s38, 0
      %s663 = sadd.s32 %s662, %s660
      %s664 = smul.addr %s663, 8
      %s665 = scalar_lea.vmem %s19, %s664
      %p666 = pneg %p500
      %p667 = pneg %p497
      %p668 = scmp.lt.s32.totalorder %s37, 1
      %s669 = scalar_select %p668, %s37, 1
      %p670 = scmp.lt.s32.totalorder %s38, 0
      %s671 = scalar_select %p670, %s38, 0
      %s672 = smul.addr %s669, 2
      %s673 = sadd.s32 %s671, %s672
      %s674 = smul.addr %s673, 8
      %s675 = scalar_lea.vmem %s20, %s674
      %p676 = pneg %p528
      %p677 = pneg %p525
      %p678 = scmp.lt.s32.totalorder %s37, 1
      %s679 = scalar_select %p678, %s37, 1
      %p680 = scmp.lt.s32.totalorder %s38, 0
      %s681 = scalar_select %p680, %s38, 0
      %s682 = sadd.s32 %s681, %s679
      %s683 = smul.addr %s682, 8
      %s684 = scalar_lea.vmem %s21, %s683
      %p685 = scmp.lt.s32.totalorder %s37, 1
      %s686 = scalar_select %p685, %s37, 1
      %s687 = smul.addr %s686, 8
      %s688 = scalar_lea.vmem %s0, %s687
      %p689 = scmp.lt.s32.totalorder %s37, 1
      %s690 = scalar_select %p689, %s37, 1
      %p691 = scmp.lt.s32.totalorder %s38, 0
      %s692 = scalar_select %p691, %s38, 0
      %s693 = sadd.s32 %s692, %s690
      %s694 = smul.addr %s693, 8
      %s695 = scalar_lea.vmem %s19, %s694
      %p696 = scmp.lt.s32.totalorder %s37, 1
      %s697 = scalar_select %p696, %s37, 1
      %p698 = scmp.lt.s32.totalorder %s38, 0
      %s699 = scalar_select %p698, %s38, 0
      %s700 = smul.addr %s697, 2
      %s701 = sadd.s32 %s699, %s700
      %s702 = smul.addr %s701, 8
      %s703 = scalar_lea.vmem %s20, %s702
      %p704 = scmp.lt.s32.totalorder %s37, 1
      %s705 = scalar_select %p704, %s37, 1
      %p706 = scmp.lt.s32.totalorder %s38, 0
      %s707 = scalar_select %p706, %s38, 0
      %s708 = sadd.s32 %s707, %s705
      %s709 = smul.addr %s708, 8
      %s710 = scalar_lea.vmem %s21, %s709
      %v712 = vld [vmem:[%s688] sm:$0xff]
      %vm713 = vcmask 261120
      %v714 = vsel %vm713, %v712, 0.0
      %715 = vadd.xlane.f32.xlu0 %v714
      %v716 = vpop.xlane.xlu0 %715
      %v717 = vrcp.pop 32.0
      %v718 = vmul.f32 32.0, %v717
      %v719 = vsub.f32 1.0, %v718
      %v720 = vmul.f32 %v717, %v719
      %v721 = vadd.f32 %v717, %v720
      %vm722 = vweird.f32 %v717
      %v723 = vsel %vm722, %v717, %v721
      %v724 = vmul.f32 %v716, %v723
      %v725 = vsub.f32 %v712, %v724
      %v726 = vmul.f32 %v725, %v725
      %v727 = vsel %vm713, %v726, 0.0
      %728 = vadd.xlane.f32.xlu0 %v727
      %v729 = vpop.xlane.xlu0 %728
      %v730 = vmul.f32 %v729, %v723
      %v731 = vadd.f32 %v730, 1e-05
      %v732 = vrsqrt.pop %v731
      %v733 = vmul.f32 %v732, %v731
      %v734 = vmul.f32 %v733, %v732
      %v735 = vmul.f32 0.5, %v734
      %v736 = vsub.f32 1.5, %v735
      %v737 = vmul.f32 %v732, %v736
      %vm738 = vweird.f32 %v731
      %vm739 = vweird.f32 %v732
      %vm740 = vmor %vm738, %vm739
      %v741 = vsel %vm740, %v732, %v737
      %v742 = vmul.f32 %v725, %v741
      %v743 = vld [vmem:[%s1] sm:$0x1]
      %v745 = vperm.slane %v743, 0
      %v747 = vmul.f32 %v742, %v745
      %v748 = vld [vmem:[%s2] sm:$0x1]
      %v750 = vperm.slane %v748, 0
      %v752 = vadd.f32 %v747, %v750
      %v753 = vpack.c.bf16 %v752, %v752
      %v754 = vld [vmem:[%s3] sm:$0xf]
      %v755 = vld [vmem:[%s3 + $0x4] sm:$0xf]
      %v756 = vld [vmem:[%s3 + $0x8] sm:$0xf]
      %v757 = vld [vmem:[%s3 + $0xc] sm:$0xf]
      %v758 = vld [vmem:[%s4] sm:$0x1]
      %v760 = vperm.slane %v758, 0
      %v766 = vunpack.c.l.b16 %v754
      %v767 = vunpack.c.l.b16 %v755
      %v768 = vunpack.c.l.b16 %v756
      %v769 = vunpack.c.l.b16 %v757
      %v770 = vpack.c.b16 %v767, %v766
      %v771 = vpack.c.b16 %v769, %v768
      %v775 = vsel %vm713, %v753, 0
      %777 = vmatpush.bf16.msra.mxu0 0
      %778 = vmatpush.bf16.msra.mxu0 0
      %779 = vmatpush.bf16.msra.mxu0 0
      %780 = vmatpush.bf16.msra.mxu0 0
      %781 = vmatpush.bf16.msra.mxu0 0
      %782 = vmatpush.bf16.msra.mxu0 0
      %783 = vmatpush.bf16.msra.mxu0 %v771
      %784 = vmatpush.bf16.msra.mxu0 %v770
      %785 = vmatmul.bf16.gmra.mxu0 %v775
      %v786 = vpop.f32.mrf.mxu0
      %v787 = vadd.f32 %v760, %v786
      %v788 = vpop.f32.mrf.mxu0
      %789 = vdwg.mxu0
      %v790 = vld [vmem:[%s5] sm:$0xf]
      %v791 = vld [vmem:[%s5 + $0x4] sm:$0xf]
      %v792 = vld [vmem:[%s5 + $0x8] sm:$0xf]
      %v793 = vld [vmem:[%s5 + $0xc] sm:$0xf]
      %v794 = vld [vmem:[%s6] sm:$0x1]
      %v796 = vperm.slane %v794, 0
      %v802 = vunpack.c.l.b16 %v790
      %v803 = vunpack.c.l.b16 %v791
      %v804 = vunpack.c.l.b16 %v792
      %v805 = vunpack.c.l.b16 %v793
      %v806 = vpack.c.b16 %v803, %v802
      %v807 = vpack.c.b16 %v805, %v804
      %810 = vmatpush.bf16.msra.mxu0 0
      %811 = vmatpush.bf16.msra.mxu0 0
      %812 = vmatpush.bf16.msra.mxu0 0
      %813 = vmatpush.bf16.msra.mxu0 0
      %814 = vmatpush.bf16.msra.mxu0 0
      %815 = vmatpush.bf16.msra.mxu0 0
      %816 = vmatpush.bf16.msra.mxu0 %v807
      %817 = vmatpush.bf16.msra.mxu0 %v806
      %818 = vmatmul.bf16.gmra.mxu0 %v775
      %v819 = vpop.f32.mrf.mxu0
      %v820 = vadd.f32 %v796, %v819
      %v821 = vpop.f32.mrf.mxu0
      %822 = vdwg.mxu0
      %v823 = vld [vmem:[%s7] sm:$0xf]
      %v824 = vld [vmem:[%s7 + $0x4] sm:$0xf]
      %v825 = vld [vmem:[%s7 + $0x8] sm:$0xf]
      %v826 = vld [vmem:[%s7 + $0xc] sm:$0xf]
      %v827 = vld [vmem:[%s8] sm:$0x1]
      %v829 = vperm.slane %v827, 0
      %v835 = vunpack.c.l.b16 %v823
      %v836 = vunpack.c.l.b16 %v824
      %v837 = vunpack.c.l.b16 %v825
      %v838 = vunpack.c.l.b16 %v826
      %v839 = vpack.c.b16 %v836, %v835
      %v840 = vpack.c.b16 %v838, %v837
      %843 = vmatpush.bf16.msra.mxu0 0
      %844 = vmatpush.bf16.msra.mxu0 0
      %845 = vmatpush.bf16.msra.mxu0 0
      %846 = vmatpush.bf16.msra.mxu0 0
      %847 = vmatpush.bf16.msra.mxu0 0
      %848 = vmatpush.bf16.msra.mxu0 0
      %849 = vmatpush.bf16.msra.mxu0 %v840
      %850 = vmatpush.bf16.msra.mxu0 %v839
      %851 = vmatmul.bf16.gmra.mxu0 %v775
      %v852 = vpop.f32.mrf.mxu0
      %v853 = vadd.f32 %v829, %v852
      %v854 = vpop.f32.mrf.mxu0
      %855 = vdwg.mxu0
      %v856 = vpack.c.bf16 %v787, %v787
      %858 = vrot.lane.b32.xlu0 %v856, 112
      %v859 = vpop.permute.xlu0 %858
      %v862 = vpack.i.b16 %v859, %v856
      %v863 = vshrl.u32 %v856, 16
      %v864 = vshrl.u32 %v859, 16
      %v865 = vpack.i.b16 %v864, %v863
      %v868 = vunpack.c.l.s4 1983009808
      %v869 = vunpack.c.0.s8 %v868
      %v870 = vperm.slane %v862, %v869
      %v871 = vrot.slane %v870, 4
      %vm872 = vcmask 1047556
      %v873 = vsel %vm872, 0, %v871
      %v875 = vunpack.c.l.s4 1934713408
      %v876 = vunpack.c.0.s8 %v875
      %v877 = vperm.slane %v870, %v876
      %v879 = vunpack.c.l.s4 1934713408
      %v880 = vunpack.c.0.s8 %v879
      %v881 = vperm.slane %v873, %v880
      %v882 = vrot.slane %v877, 4
      %v883 = vsel %vm872, 0, %v882
      %v884 = vrot.slane %v881, 4
      %v885 = vsel %vm872, 0, %v884
      %v888 = vunpack.c.l.s4 1983009808
      %v889 = vunpack.c.0.s8 %v888
      %v890 = vperm.slane %v865, %v889
      %v891 = vrot.slane %v890, 4
      %v892 = vsel %vm872, 0, %v891
      %v894 = vunpack.c.l.s4 1934713408
      %v895 = vunpack.c.0.s8 %v894
      %v896 = vperm.slane %v890, %v895
      %v898 = vunpack.c.l.s4 1934713408
      %v899 = vunpack.c.0.s8 %v898
      %v900 = vperm.slane %v892, %v899
      %v901 = vrot.slane %v896, 4
      %v902 = vsel %vm872, 0, %v901
      %v903 = vrot.slane %v900, 4
      %v904 = vsel %vm872, 0, %v903
      %v905 = vsel %vm872, %v884, %v877
      %v907 = vunpack.c.l.s4 1983009808
      %v908 = vunpack.c.0.s8 %v907
      %v909 = vperm.slane %v905, %v908
      %v910 = vrot.slane %v885, 4
      %v911 = vsel %vm872, %v910, %v883
      %v913 = vunpack.c.l.s4 1983009808
      %v914 = vunpack.c.0.s8 %v913
      %v915 = vperm.slane %v911, %v914
      %v916 = vrot.slane %v915, 4
      %v917 = vsel %vm872, %v916, %v909
      %v919 = vunpack.c.l.s4 1934713408
      %v920 = vunpack.c.0.s8 %v919
      %v921 = vperm.slane %v917, %v920
      %v922 = vsel %vm872, %v903, %v896
      %v924 = vunpack.c.l.s4 1983009808
      %v925 = vunpack.c.0.s8 %v924
      %v926 = vperm.slane %v922, %v925
      %v927 = vrot.slane %v904, 4
      %v928 = vsel %vm872, %v927, %v902
      %v930 = vunpack.c.l.s4 1983009808
      %v931 = vunpack.c.0.s8 %v930
      %v932 = vperm.slane %v928, %v931
      %v933 = vrot.slane %v932, 4
      %v934 = vsel %vm872, %v933, %v926
      %v936 = vunpack.c.l.s4 1934713408
      %v937 = vunpack.c.0.s8 %v936
      %v938 = vperm.slane %v934, %v937
      %v941 = vpack.i.b16 %v938, %v921
      %v942 = vshrl.u32 %v921, 16
      %v943 = vshrl.u32 %v938, 16
      %v944 = vpack.i.b16 %v943, %v942
      %v945 = vpack.c.bf16 %v820, %v820
      %947 = vrot.lane.b32.xlu0 %v945, 112
      %v948 = vpop.permute.xlu0 %947
      %v951 = vpack.i.b16 %v948, %v945
      %v952 = vshrl.u32 %v945, 16
      %v953 = vshrl.u32 %v948, 16
      %v954 = vpack.i.b16 %v953, %v952
      %v957 = vunpack.c.l.s4 1983009808
      %v958 = vunpack.c.0.s8 %v957
      %v959 = vperm.slane %v951, %v958
      %v960 = vrot.slane %v959, 4
      %v961 = vsel %vm872, 0, %v960
      %v963 = vunpack.c.l.s4 1934713408
      %v964 = vunpack.c.0.s8 %v963
      %v965 = vperm.slane %v959, %v964
      %v967 = vunpack.c.l.s4 1934713408
      %v968 = vunpack.c.0.s8 %v967
      %v969 = vperm.slane %v961, %v968
      %v970 = vrot.slane %v965, 4
      %v971 = vsel %vm872, 0, %v970
      %v972 = vrot.slane %v969, 4
      %v973 = vsel %vm872, 0, %v972
      %v976 = vunpack.c.l.s4 1983009808
      %v977 = vunpack.c.0.s8 %v976
      %v978 = vperm.slane %v954, %v977
      %v979 = vrot.slane %v978, 4
      %v980 = vsel %vm872, 0, %v979
      %v982 = vunpack.c.l.s4 1934713408
      %v983 = vunpack.c.0.s8 %v982
      %v984 = vperm.slane %v978, %v983
      %v986 = vunpack.c.l.s4 1934713408
      %v987 = vunpack.c.0.s8 %v986
      %v988 = vperm.slane %v980, %v987
      %v989 = vrot.slane %v984, 4
      %v990 = vsel %vm872, 0, %v989
      %v991 = vrot.slane %v988, 4
      %v992 = vsel %vm872, 0, %v991
      %v993 = vsel %vm872, %v972, %v965
      %v995 = vunpack.c.l.s4 1983009808
      %v996 = vunpack.c.0.s8 %v995
      %v997 = vperm.slane %v993, %v996
      %v998 = vrot.slane %v973, 4
      %v999 = vsel %vm872, %v998, %v971
      %v1001 = vunpack.c.l.s4 1983009808
      %v1002 = vunpack.c.0.s8 %v1001
      %v1003 = vperm.slane %v999, %v1002
      %v1004 = vrot.slane %v1003, 4
      %v1005 = vsel %vm872, %v1004, %v997
      %v1007 = vunpack.c.l.s4 1934713408
      %v1008 = vunpack.c.0.s8 %v1007
      %v1009 = vperm.slane %v1005, %v1008
      %v1010 = vsel %vm872, %v991, %v984
      %v1012 = vunpack.c.l.s4 1983009808
      %v1013 = vunpack.c.0.s8 %v1012
      %v1014 = vperm.slane %v1010, %v1013
      %v1015 = vrot.slane %v992, 4
      %v1016 = vsel %vm872, %v1015, %v990
      %v1018 = vunpack.c.l.s4 1983009808
      %v1019 = vunpack.c.0.s8 %v1018
      %v1020 = vperm.slane %v1016, %v1019
      %v1021 = vrot.slane %v1020, 4
      %v1022 = vsel %vm872, %v1021, %v1014
      %v1024 = vunpack.c.l.s4 1934713408
      %v1025 = vunpack.c.0.s8 %v1024
      %v1026 = vperm.slane %v1022, %v1025
      %v1029 = vpack.i.b16 %v1026, %v1009
      %v1030 = vshrl.u32 %v1009, 16
      %v1031 = vshrl.u32 %v1026, 16
      %v1032 = vpack.i.b16 %v1031, %v1030
      %v1033 = vpack.c.bf16 %v853, %v853
      %1035 = vrot.lane.b32.xlu0 %v1033, 112
      %v1036 = vpop.permute.xlu0 %1035
      %v1039 = vpack.i.b16 %v1036, %v1033
      %v1040 = vshrl.u32 %v1033, 16
      %v1041 = vshrl.u32 %v1036, 16
      %v1042 = vpack.i.b16 %v1041, %v1040
      %v1045 = vunpack.c.l.s4 1983009808
      %v1046 = vunpack.c.0.s8 %v1045
      %v1047 = vperm.slane %v1039, %v1046
      %v1048 = vrot.slane %v1047, 4
      %v1049 = vsel %vm872, 0, %v1048
      %v1051 = vunpack.c.l.s4 1934713408
      %v1052 = vunpack.c.0.s8 %v1051
      %v1053 = vperm.slane %v1047, %v1052
      %v1055 = vunpack.c.l.s4 1934713408
      %v1056 = vunpack.c.0.s8 %v1055
      %v1057 = vperm.slane %v1049, %v1056
      %v1058 = vrot.slane %v1053, 4
      %v1059 = vsel %vm872, 0, %v1058
      %v1060 = vrot.slane %v1057, 4
      %v1061 = vsel %vm872, 0, %v1060
      %v1064 = vunpack.c.l.s4 1983009808
      %v1065 = vunpack.c.0.s8 %v1064
      %v1066 = vperm.slane %v1042, %v1065
      %v1067 = vrot.slane %v1066, 4
      %v1068 = vsel %vm872, 0, %v1067
      %v1070 = vunpack.c.l.s4 1934713408
      %v1071 = vunpack.c.0.s8 %v1070
      %v1072 = vperm.slane %v1066, %v1071
      %v1074 = vunpack.c.l.s4 1934713408
      %v1075 = vunpack.c.0.s8 %v1074
      %v1076 = vperm.slane %v1068, %v1075
      %v1077 = vrot.slane %v1072, 4
      %v1078 = vsel %vm872, 0, %v1077
      %v1079 = vrot.slane %v1076, 4
      %v1080 = vsel %vm872, 0, %v1079
      %v1081 = vsel %vm872, %v1060, %v1053
      %v1083 = vunpack.c.l.s4 1983009808
      %v1084 = vunpack.c.0.s8 %v1083
      %v1085 = vperm.slane %v1081, %v1084
      %v1086 = vrot.slane %v1061, 4
      %v1087 = vsel %vm872, %v1086, %v1059
      %v1089 = vunpack.c.l.s4 1983009808
      %v1090 = vunpack.c.0.s8 %v1089
      %v1091 = vperm.slane %v1087, %v1090
      %v1092 = vrot.slane %v1091, 4
      %v1093 = vsel %vm872, %v1092, %v1085
      %v1095 = vunpack.c.l.s4 1934713408
      %v1096 = vunpack.c.0.s8 %v1095
      %v1097 = vperm.slane %v1093, %v1096
      %v1098 = vsel %vm872, %v1079, %v1072
      %v1100 = vunpack.c.l.s4 1983009808
      %v1101 = vunpack.c.0.s8 %v1100
      %v1102 = vperm.slane %v1098, %v1101
      %v1103 = vrot.slane %v1080, 4
      %v1104 = vsel %vm872, %v1103, %v1078
      %v1106 = vunpack.c.l.s4 1983009808
      %v1107 = vunpack.c.0.s8 %v1106
      %v1108 = vperm.slane %v1104, %v1107
      %v1109 = vrot.slane %v1108, 4
      %v1110 = vsel %vm872, %v1109, %v1102
      %v1112 = vunpack.c.l.s4 1934713408
      %v1113 = vunpack.c.0.s8 %v1112
      %v1114 = vperm.slane %v1110, %v1113
      %v1117 = vpack.i.b16 %v1114, %v1097
      %v1118 = vshrl.u32 %v1097, 16
      %v1119 = vshrl.u32 %v1114, 16
      %v1120 = vpack.i.b16 %v1119, %v1118
      %vm1121 = vcmask 130048
      %v1123 = vsel %vm1121, %v941, 0
      %v1126 = vsel %vm1121, %v1029, 0
      %1128 = vmatpush.bf16.xpose.msra.mxu0 0
      %1129 = vmatpush.bf16.xpose.msra.mxu0 0
      %1130 = vmatpush.bf16.xpose.msra.mxu0 0
      %1131 = vmatpush.bf16.xpose.msra.mxu0 0
      %1132 = vmatpush.bf16.xpose.msra.mxu0 0
      %1133 = vmatpush.bf16.xpose.msra.mxu0 0
      %1134 = vmatpush.bf16.xpose.msra.mxu0 0
      %1135 = vmatpush.bf16.xpose.msra.mxu0 %v1126
      %1136 = vmatmul.bf16.gmra.mxu0 %v1123
      %v1137 = vpop.f32.mrf.mxu0
      %v1138 = vadd.f32 0.0, %v1137
      %v1139 = vpop.f32.mrf.mxu0
      %1140 = vdwg.mxu0
      %v1142 = vsel %vm1121, %v944, 0
      %v1145 = vsel %vm1121, %v1032, 0
      %1147 = vmatpush.bf16.xpose.msra.mxu0 0
      %1148 = vmatpush.bf16.xpose.msra.mxu0 0
      %1149 = vmatpush.bf16.xpose.msra.mxu0 0
      %1150 = vmatpush.bf16.xpose.msra.mxu0 0
      %1151 = vmatpush.bf16.xpose.msra.mxu0 0
      %1152 = vmatpush.bf16.xpose.msra.mxu0 0
      %1153 = vmatpush.bf16.xpose.msra.mxu0 0
      %1154 = vmatpush.bf16.xpose.msra.mxu0 %v1145
      %1155 = vmatmul.bf16.gmra.mxu0 %v1142
      %v1156 = vpop.f32.mrf.mxu0
      %v1157 = vadd.f32 0.0, %v1156
      %v1158 = vpop.f32.mrf.mxu0
      %1159 = vdwg.mxu0
      %v1160 = vmul.f32 %v1138, 0.25
      %v1161 = vmul.f32 %v1157, 0.25
      %v1162 = vlaneseq
      %v1163 = vand.u32 %v1162, 127
      %vm1164 = vcmp.lt.s32.totalorder %v1163, 5
      %v1165 = vsel %vm1164, %v1160, -1e+30
      %v1166 = vsel %vm1164, %v1161, -1e+30
      %vm1167 = vcmask 64512
      %v1168 = vsel %vm1167, %v1165, -inf
      %1169 = vmax.xlane.f32.xlu0 %v1168
      %v1170 = vpop.xlane.xlu0 %1169
      %v1171 = vsel %vm1167, %v1166, -inf
      %1172 = vmax.xlane.f32.xlu0 %v1171
      %v1173 = vpop.xlane.xlu0 %1172
      %v1174 = vsub.f32 %v1165, %v1170
      %v1175 = vsub.f32 %v1166, %v1173
      %v1176 = vmul.f32 %v1174, 1.442695
      %v1177 = vpow.pop %v1176
      %v1178 = vmul.f32 %v1175, 1.442695
      %v1179 = vpow.pop %v1178
      %v1180 = vsel %vm1167, %v1177, 0.0
      %1181 = vadd.xlane.f32.xlu0 %v1180
      %v1182 = vpop.xlane.xlu0 %1181
      %v1183 = vsel %vm1167, %v1179, 0.0
      %1184 = vadd.xlane.f32.xlu0 %v1183
      %v1185 = vpop.xlane.xlu0 %1184
      %v1186 = vrcp.pop %v1182
      %v1187 = vmul.f32 %v1182, %v1186
      %v1188 = vsub.f32 1.0, %v1187
      %v1189 = vmul.f32 %v1186, %v1188
      %v1190 = vadd.f32 %v1186, %v1189
      %vm1191 = vweird.f32 %v1182
      %vm1192 = vweird.f32 %v1186
      %vm1193 = vmor %vm1191, %vm1192
      %v1194 = vsel %vm1193, %v1186, %v1190
      %v1195 = vand.u32 2147483647, %v1182
      %vm1196 = vcmp.eq.f32.partialorder %v1195, 8.507059e+37
      %v1197 = vand.u32 %v1182, 2147483648
      %v1198 = vor.u32 1.1754944e-38, %v1197
      %v1199 = vsel %vm1196, %v1198, %v1194
      %v1200 = vmul.f32 %v1177, %v1199
      %v1201 = vrcp.pop %v1185
      %v1202 = vmul.f32 %v1185, %v1201
      %v1203 = vsub.f32 1.0, %v1202
      %v1204 = vmul.f32 %v1201, %v1203
      %v1205 = vadd.f32 %v1201, %v1204
      %vm1206 = vweird.f32 %v1185
      %vm1207 = vweird.f32 %v1201
      %vm1208 = vmor %vm1206, %vm1207
      %v1209 = vsel %vm1208, %v1201, %v1205
      %v1210 = vand.u32 2147483647, %v1185
      %vm1211 = vcmp.eq.f32.partialorder %v1210, 8.507059e+37
      %v1212 = vand.u32 %v1185, 2147483648
      %v1213 = vor.u32 1.1754944e-38, %v1212
      %v1214 = vsel %vm1211, %v1213, %v1209
      %v1215 = vmul.f32 %v1179, %v1214
      %1216 = vst.msk [vmem:[%s703] sm:$0xff] %vm1167, %v1200
      %1217 = vst.msk [vmem:[%s703 + $0x8] sm:$0xff] %vm1167, %v1215
      %v1218 = vpack.c.bf16 %v1200, %v1200
      %v1219 = vpack.c.bf16 %v1215, %v1215
      %v1221 = vsel %vm1167, %v1218, 0
      %vm1223 = vcmask 1043456
      %v1225 = vsel %vm1223, %v1117, 0
      %1227 = vmatpush.bf16.msra.mxu0 0
      %1228 = vmatpush.bf16.msra.mxu0 0
      %1229 = vmatpush.bf16.msra.mxu0 0
      %1230 = vmatpush.bf16.msra.mxu0 0
      %1231 = vmatpush.bf16.msra.mxu0 0
      %1232 = vmatpush.bf16.msra.mxu0 0
      %1233 = vmatpush.bf16.msra.mxu0 0
      %1234 = vmatpush.bf16.msra.mxu0 %v1225
      %1235 = vmatmul.bf16.gmra.mxu0 %v1221
      %v1236 = vpop.f32.mrf.mxu0
      %v1237 = vadd.f32 0.0, %v1236
      %v1238 = vpop.f32.mrf.mxu0
      %1239 = vdwg.mxu0
      %v1241 = vsel %vm1167, %v1219, 0
      %v1244 = vsel %vm1223, %v1120, 0
      %1246 = vmatpush.bf16.msra.mxu0 0
      %1247 = vmatpush.bf16.msra.mxu0 0
      %1248 = vmatpush.bf16.msra.mxu0 0
      %1249 = vmatpush.bf16.msra.mxu0 0
      %1250 = vmatpush.bf16.msra.mxu0 0
      %1251 = vmatpush.bf16.msra.mxu0 0
      %1252 = vmatpush.bf16.msra.mxu0 0
      %1253 = vmatpush.bf16.msra.mxu0 %v1244
      %1254 = vmatmul.bf16.gmra.mxu0 %v1241
      %v1255 = vpop.f32.mrf.mxu0
      %v1256 = vadd.f32 0.0, %v1255
      %v1257 = vpop.f32.mrf.mxu0
      %1258 = vdwg.mxu0
      %v1259 = vrot.slane %v1237, 4
      %vm1260 = vcmask 1047556
      %v1261 = vsel %vm1260, 0.0, %v1259
      %v1263 = vunpack.c.l.s4 1983009808
      %v1264 = vunpack.c.0.s8 %v1263
      %v1265 = vperm.slane %v1237, %v1264
      %v1267 = vunpack.c.l.s4 1983009808
      %v1268 = vunpack.c.0.s8 %v1267
      %v1269 = vperm.slane %v1261, %v1268
      %v1270 = vrot.slane %v1256, 4
      %v1271 = vsel %vm1260, 0.0, %v1270
      %v1273 = vunpack.c.l.s4 1983009808
      %v1274 = vunpack.c.0.s8 %v1273
      %v1275 = vperm.slane %v1256, %v1274
      %v1277 = vunpack.c.l.s4 1983009808
      %v1278 = vunpack.c.0.s8 %v1277
      %v1279 = vperm.slane %v1271, %v1278
      %v1280 = vrot.slane %v1275, 4
      %v1281 = vsel %vm1260, %v1280, %v1265
      %v1282 = vrot.slane %v1265, 4
      %v1283 = vsel %vm1260, %v1275, %v1282
      %v1285 = vunpack.c.l.s4 1934713408
      %v1286 = vunpack.c.0.s8 %v1285
      %v1287 = vperm.slane %v1281, %v1286
      %v1289 = vunpack.c.l.s4 1934713408
      %v1290 = vunpack.c.0.s8 %v1289
      %v1291 = vperm.slane %v1283, %v1290
      %v1292 = vrot.slane %v1279, 4
      %v1293 = vsel %vm1260, %v1292, %v1269
      %v1294 = vrot.slane %v1269, 4
      %v1295 = vsel %vm1260, %v1279, %v1294
      %v1297 = vunpack.c.l.s4 1934713408
      %v1298 = vunpack.c.0.s8 %v1297
      %v1299 = vperm.slane %v1293, %v1298
      %v1301 = vunpack.c.l.s4 1934713408
      %v1302 = vunpack.c.0.s8 %v1301
      %v1303 = vperm.slane %v1295, %v1302
      %v1304 = vrot.slane %v1287, 4
      %v1305 = vsel %vm1260, 0.0, %v1304
      %v1306 = vrot.slane %v1291, 4
      %v1307 = vsel %vm1260, 0.0, %v1306
      %v1308 = vrot.slane %v1299, 4
      %v1309 = vsel %vm1260, 0.0, %v1308
      %v1310 = vrot.slane %v1303, 4
      %v1311 = vsel %vm1260, 0.0, %v1310
      %v1312 = vsel %vm1260, %v1306, %v1287
      %v1314 = vunpack.c.l.s4 1983009808
      %v1315 = vunpack.c.0.s8 %v1314
      %v1316 = vperm.slane %v1312, %v1315
      %v1317 = vrot.slane %v1307, 4
      %v1318 = vsel %vm1260, %v1317, %v1305
      %v1320 = vunpack.c.l.s4 1983009808
      %v1321 = vunpack.c.0.s8 %v1320
      %v1322 = vperm.slane %v1318, %v1321
      %v1323 = vsel %vm1260, %v1310, %v1299
      %v1325 = vunpack.c.l.s4 1983009808
      %v1326 = vunpack.c.0.s8 %v1325
      %v1327 = vperm.slane %v1323, %v1326
      %v1328 = vrot.slane %v1311, 4
      %v1329 = vsel %vm1260, %v1328, %v1309
      %v1331 = vunpack.c.l.s4 1983009808
      %v1332 = vunpack.c.0.s8 %v1331
      %v1333 = vperm.slane %v1329, %v1332
      %v1334 = vrot.slane %v1322, 4
      %v1335 = vsel %vm1260, %v1334, %v1316
      %v1337 = vunpack.c.l.s4 1934713408
      %v1338 = vunpack.c.0.s8 %v1337
      %v1339 = vperm.slane %v1335, %v1338
      %v1340 = vrot.slane %v1333, 4
      %v1341 = vsel %vm1260, %v1340, %v1327
      %v1343 = vunpack.c.l.s4 1934713408
      %v1344 = vunpack.c.0.s8 %v1343
      %v1345 = vperm.slane %v1341, %v1344
      %v1346 = vrot.slane %v1345, 4
      %v1347 = vsel %vm1260, %v1346, %v1339
      %v1348 = vrot.slane %v1339, 4
      %v1349 = vsel %vm1260, %v1345, %v1348
      %1351 = vrot.lane.b32.xlu0 %v1349, 16
      %v1352 = vpop.permute.xlu0 %1351
      %v1354 = vsel %vm1121, %v1347, %v1352
      %v1355 = vpack.c.bf16 %v1354, %v1354
      %v1356 = vld [vmem:[%s9] sm:$0xf]
      %v1357 = vld [vmem:[%s9 + $0x4] sm:$0xf]
      %v1358 = vld [vmem:[%s9 + $0x8] sm:$0xf]
      %v1359 = vld [vmem:[%s9 + $0xc] sm:$0xf]
      %v1360 = vld [vmem:[%s10] sm:$0x1]
      %v1362 = vperm.slane %v1360, 0
      %v1368 = vunpack.c.l.b16 %v1356
      %v1369 = vunpack.c.l.b16 %v1357
      %v1370 = vunpack.c.l.b16 %v1358
      %v1371 = vunpack.c.l.b16 %v1359
      %v1372 = vpack.c.b16 %v1369, %v1368
      %v1373 = vpack.c.b16 %v1371, %v1370
      %v1377 = vsel %vm713, %v1355, 0
      %1379 = vmatpush.bf16.msra.mxu0 0
      %1380 = vmatpush.bf16.msra.mxu0 0
      %1381 = vmatpush.bf16.msra.mxu0 0
      %1382 = vmatpush.bf16.msra.mxu0 0
      %1383 = vmatpush.bf16.msra.mxu0 0
      %1384 = vmatpush.bf16.msra.mxu0 0
      %1385 = vmatpush.bf16.msra.mxu0 %v1373
      %1386 = vmatpush.bf16.msra.mxu0 %v1372
      %1387 = vmatmul.bf16.gmra.mxu0 %v1377
      %v1388 = vpop.f32.mrf.mxu0
      %v1389 = vadd.f32 %v1362, %v1388
      %v1390 = vpop.f32.mrf.mxu0
      %1391 = vdwg.mxu0
      %v1392 = vadd.f32 %v712, %v1389
      %v1393 = vsel %vm713, %v1392, 0.0
      %1394 = vadd.xlane.f32.xlu0 %v1393
      %v1395 = vpop.xlane.xlu0 %1394
      %v1396 = vmul.f32 %v1395, %v723
      %v1397 = vsub.f32 %v1392, %v1396
      %v1398 = vmul.f32 %v1397, %v1397
      %v1399 = vsel %vm713, %v1398, 0.0
      %1400 = vadd.xlane.f32.xlu0 %v1399
      %v1401 = vpop.xlane.xlu0 %1400
      %v1402 = vmul.f32 %v1401, %v723
      %v1403 = vadd.f32 %v1402, 1e-05
      %v1404 = vrsqrt.pop %v1403
      %v1405 = vmul.f32 %v1404, %v1403
      %v1406 = vmul.f32 %v1405, %v1404
      %v1407 = vmul.f32 0.5, %v1406
      %v1408 = vsub.f32 1.5, %v1407
      %v1409 = vmul.f32 %v1404, %v1408
      %vm1410 = vweird.f32 %v1403
      %vm1411 = vweird.f32 %v1404
      %vm1412 = vmor %vm1410, %vm1411
      %v1413 = vsel %vm1412, %v1404, %v1409
      %v1414 = vmul.f32 %v1397, %v1413
      %v1415 = vld [vmem:[%s11] sm:$0x1]
      %v1417 = vperm.slane %v1415, 0
      %v1419 = vmul.f32 %v1414, %v1417
      %v1420 = vld [vmem:[%s12] sm:$0x1]
      %v1422 = vperm.slane %v1420, 0
      %v1424 = vadd.f32 %v1419, %v1422
      %v1425 = vpack.c.bf16 %v1424, %v1424
      %v1426 = vld [vmem:[%s13] sm:$0xf]
      %v1427 = vld [vmem:[%s13 + $0x4] sm:$0xf]
      %v1428 = vld [vmem:[%s13 + $0x8] sm:$0xf]
      %v1429 = vld [vmem:[%s13 + $0xc] sm:$0xf]
      %v1430 = vld [vmem:[%s14] sm:$0x1]
      %v1432 = vperm.slane %v1430, 0
      %v1438 = vunpack.c.l.b16 %v1426
      %v1439 = vunpack.c.l.b16 %v1427
      %v1440 = vunpack.c.l.b16 %v1428
      %v1441 = vunpack.c.l.b16 %v1429
      %v1442 = vpack.c.b16 %v1439, %v1438
      %v1443 = vpack.c.b16 %v1441, %v1440
      %v1447 = vsel %vm713, %v1425, 0
      %1449 = vmatpush.bf16.msra.mxu0 0
      %1450 = vmatpush.bf16.msra.mxu0 0
      %1451 = vmatpush.bf16.msra.mxu0 0
      %1452 = vmatpush.bf16.msra.mxu0 0
      %1453 = vmatpush.bf16.msra.mxu0 0
      %1454 = vmatpush.bf16.msra.mxu0 0
      %1455 = vmatpush.bf16.msra.mxu0 %v1443
      %1456 = vmatpush.bf16.msra.mxu0 %v1442
      %1457 = vmatmul.bf16.gmra.mxu0 %v1447
      %v1458 = vpop.f32.mrf.mxu0
      %v1459 = vadd.f32 %v1432, %v1458
      %v1460 = vpop.f32.mrf.mxu0
      %1461 = vdwg.mxu0
      %v1462 = vmul.f32 %v1459, 0.5
      %v1463 = vmul.f32 %v1459, 0.70710677
      %v1464 = vmul.f32 %v1463, %v1463
      %v1465 = vmin.f32 16.0, %v1464
      %v1466 = vmul.f32 %v1465, 2.1237322e-06
      %v1467 = vadd.f32 %v1466, 0.00028619796
      %v1468 = vmul.f32 %v1465, %v1467
      %v1469 = vadd.f32 %v1468, 0.0036580483
      %v1470 = vmul.f32 %v1465, %v1469
      %v1471 = vadd.f32 %v1470, 0.05243302
      %v1472 = vmul.f32 %v1465, %v1471
      %v1473 = vadd.f32 %v1472, 0.18741608
      %v1474 = vmul.f32 %v1465, %v1473
      %v1475 = vadd.f32 %v1474, 1.1283791
      %v1476 = vmul.f32 %v1463, %v1475
      %v1477 = vmul.f32 %v1465, 3.8918573e-05
      %v1478 = vadd.f32 %v1477, 0.001143296
      %v1479 = vmul.f32 %v1465, %v1478
      %v1480 = vadd.f32 %v1479, 0.014752088
      %v1481 = vmul.f32 %v1465, %v1480
      %v1482 = vadd.f32 %v1481, 0.112945676
      %v1483 = vmul.f32 %v1465, %v1482
      %v1484 = vadd.f32 %v1483, 0.4994258
      %v1485 = vmul.f32 %v1465, %v1484
      %v1486 = vadd.f32 %v1485, 1.0
      %v1487 = vrcp.pop %v1486
      %v1488 = vmul.f32 %v1486, %v1487
      %v1489 = vsub.f32 1.0, %v1488
      %v1490 = vmul.f32 %v1487, %v1489
      %v1491 = vadd.f32 %v1487, %v1490
      %vm1492 = vweird.f32 %v1486
      %vm1493 = vweird.f32 %v1487
      %vm1494 = vmor %vm1492, %vm1493
      %v1495 = vsel %vm1494, %v1487, %v1491
      %v1496 = vand.u32 2147483647, %v1486
      %vm1497 = vcmp.eq.f32.partialorder %v1496, 8.507059e+37
      %v1498 = vand.u32 %v1486, 2147483648
      %v1499 = vor.u32 1.1754944e-38, %v1498
      %v1500 = vsel %vm1497, %v1499, %v1495
      %v1501 = vmul.f32 %v1476, %v1500
      %v1502 = vmin.f32 %v1501, 1.0
      %v1503 = vmax.f32 %v1502, -1.0
      %v1504 = vadd.f32 %v1503, 1.0
      %v1505 = vmul.f32 %v1462, %v1504
      %v1506 = vpack.c.bf16 %v1505, %v1505
      %v1507 = vld [vmem:[%s15] sm:$0xf]
      %v1508 = vld [vmem:[%s15 + $0x4] sm:$0xf]
      %v1509 = vld [vmem:[%s15 + $0x8] sm:$0xf]
      %v1510 = vld [vmem:[%s15 + $0xc] sm:$0xf]
      %v1511 = vld [vmem:[%s15 + $0x10] sm:$0xf]
      %v1512 = vld [vmem:[%s15 + $0x14] sm:$0xf]
      %v1513 = vld [vmem:[%s15 + $0x18] sm:$0xf]
      %v1514 = vld [vmem:[%s15 + $0x1c] sm:$0xf]
      %v1515 = vld [vmem:[%s15 + $0x20] sm:$0xf]
      %v1516 = vld [vmem:[%s15 + $0x24] sm:$0xf]
      %v1517 = vld [vmem:[%s15 + $0x28] sm:$0xf]
      %v1518 = vld [vmem:[%s15 + $0x2c] sm:$0xf]
      %v1519 = vld [vmem:[%s15 + $0x30] sm:$0xf]
      %v1520 = vld [vmem:[%s15 + $0x34] sm:$0xf]
      %v1521 = vld [vmem:[%s15 + $0x38] sm:$0xf]
      %v1522 = vld [vmem:[%s15 + $0x3c] sm:$0xf]
      %v1523 = vld [vmem:[%s16] sm:$0x1]
      %v1525 = vperm.slane %v1523, 0
      %v1543 = vunpack.c.l.b16 %v1507
      %v1544 = vunpack.c.l.b16 %v1508
      %v1545 = vunpack.c.l.b16 %v1509
      %v1546 = vunpack.c.l.b16 %v1510
      %v1547 = vunpack.c.l.b16 %v1511
      %v1548 = vunpack.c.l.b16 %v1512
      %v1549 = vunpack.c.l.b16 %v1513
      %v1550 = vunpack.c.l.b16 %v1514
      %v1551 = vunpack.c.l.b16 %v1515
      %v1552 = vunpack.c.l.b16 %v1516
      %v1553 = vunpack.c.l.b16 %v1517
      %v1554 = vunpack.c.l.b16 %v1518
      %v1555 = vunpack.c.l.b16 %v1519
      %v1556 = vunpack.c.l.b16 %v1520
      %v1557 = vunpack.c.l.b16 %v1521
      %v1558 = vunpack.c.l.b16 %v1522
      %v1559 = vpack.c.b16 %v1544, %v1543
      %v1560 = vpack.c.b16 %v1546, %v1545
      %v1561 = vpack.c.b16 %v1548, %v1547
      %v1562 = vpack.c.b16 %v1550, %v1549
      %v1563 = vpack.c.b16 %v1552, %v1551
      %v1564 = vpack.c.b16 %v1554, %v1553
      %v1565 = vpack.c.b16 %v1556, %v1555
      %v1566 = vpack.c.b16 %v1558, %v1557
      %1575 = vmatpush.bf16.msra.mxu0 %v1566
      %1576 = vmatpush.bf16.msra.mxu0 %v1565
      %1577 = vmatpush.bf16.msra.mxu0 %v1564
      %1578 = vmatpush.bf16.msra.mxu0 %v1563
      %1579 = vmatpush.bf16.msra.mxu0 %v1562
      %1580 = vmatpush.bf16.msra.mxu0 %v1561
      %1581 = vmatpush.bf16.msra.mxu0 %v1560
      %1582 = vmatpush.bf16.msra.mxu0 %v1559
      %1583 = vmatmul.bf16.gmra.mxu0 %v1506
      %v1584 = vpop.f32.mrf.mxu0
      %v1585 = vadd.f32 %v1525, %v1584
      %v1586 = vpop.f32.mrf.mxu0
      %1587 = vdwg.mxu0
      %v1588 = vadd.f32 %v1392, %v1585
      %1589 = vst.msk [vmem:[%s695] sm:$0xff] %vm713, %v1588
      %v1590 = vsel %vm713, %v1588, 0.0
      %1591 = vadd.xlane.f32.xlu0 %v1590
      %v1592 = vpop.xlane.xlu0 %1591
      %v1593 = vmul.f32 %v1592, %v723
      %v1594 = vsub.f32 %v1588, %v1593
      %v1595 = vmul.f32 %v1594, %v1594
      %v1596 = vsel %vm713, %v1595, 0.0
      %1597 = vadd.xlane.f32.xlu0 %v1596
      %v1598 = vpop.xlane.xlu0 %1597
      %v1599 = vmul.f32 %v1598, %v723
      %v1600 = vadd.f32 %v1599, 1e-05
      %v1601 = vrsqrt.pop %v1600
      %v1602 = vmul.f32 %v1601, %v1600
      %v1603 = vmul.f32 %v1602, %v1601
      %v1604 = vmul.f32 0.5, %v1603
      %v1605 = vsub.f32 1.5, %v1604
      %v1606 = vmul.f32 %v1601, %v1605
      %vm1607 = vweird.f32 %v1600
      %vm1608 = vweird.f32 %v1601
      %vm1609 = vmor %vm1607, %vm1608
      %v1610 = vsel %vm1609, %v1601, %v1606
      %v1611 = vmul.f32 %v1594, %v1610
      %v1612 = vld [vmem:[%s17] sm:$0x1]
      %v1614 = vperm.slane %v1612, 0
      %v1616 = vmul.f32 %v1611, %v1614
      %v1617 = vld [vmem:[%s18] sm:$0x1]
      %v1619 = vperm.slane %v1617, 0
      %v1621 = vadd.f32 %v1616, %v1619
      %1622 = vst.msk [vmem:[%s710] sm:$0xff] %vm713, %v1621
      %p1623 = scmp.lt.s32.totalorder %s37, 1
      %s1624 = scalar_select %p1623, %s37, 1
      %p1625 = scmp.lt.s32.totalorder %s38, 0
      %s1626 = scalar_select %p1625, %s38, 0
      %s1627 = sadd.s32 %s1626, %s1624
      %s1628 = smul.addr %s1627, 8
      %s1629 = scalar_lea.vmem %s19, %s1628
      %p1630 = scmp.lt.s32.totalorder %s37, 1
      %s1631 = scalar_select %p1630, %s37, 1
      %p1632 = scmp.lt.s32.totalorder %s38, 0
      %s1633 = scalar_select %p1632, %s38, 0
      %s1634 = smul.addr %s1631, 2
      %s1635 = sadd.s32 %s1633, %s1634
      %s1636 = smul.addr %s1635, 8
      %s1637 = scalar_lea.vmem %s20, %s1636
      %p1638 = scmp.lt.s32.totalorder %s37, 1
      %s1639 = scalar_select %p1638, %s37, 1
      %p1640 = scmp.lt.s32.totalorder %s38, 0
      %s1641 = scalar_select %p1640, %s38, 0
      %s1642 = sadd.s32 %s1641, %s1639
      %s1643 = smul.addr %s1642, 8
      %s1644 = scalar_lea.vmem %s21, %s1643
      // Predicated region
      $region97: #{_lambda_.17} parent=95 // pred_check
        %p1645 = pneg %p469
      $region98: #{_lambda_.17} parent=95 // pred_check_branch
        %1647 = sbr.rel (%p1645) target = $region100
      $region99: #{_lambda_.17} parent=95 // pred_region
        _
      $region100: #{_lambda_.17} parent=95 // pred_fallthru
        _
      // Predicated region
      $region101: #{_lambda_.17} parent=95 // pred_check
        %p1648 = pneg %p497
      $region102: #{_lambda_.17} parent=95 // pred_check_branch
        %1650 = sbr.rel (%p1648) target = $region104
      $region103: #{_lambda_.17} parent=95 // pred_region
        _
      $region104: #{_lambda_.17} parent=95 // pred_fallthru
        _
      // Predicated region
      $region105: #{_lambda_.17} parent=95 // pred_check
        %p1651 = pneg %p525
      $region106: #{_lambda_.17} parent=95 // pred_check_branch
        %1653 = sbr.rel (%p1651) target = $region108
      $region107: #{_lambda_.17} parent=95 // pred_region
        _
      $region108: #{_lambda_.17} parent=95 // pred_fallthru
        _
    $region96: #{_lambda_.17} parent=5 // pred_fallthru
      _
    %p1654 = scmp.le.s32.totalorder 2, %s28
    // Predicated region
    $region109: #{_lambda_.17} parent=5 // pred_check
      %p1655 = pneg %p1654
    $region110: #{_lambda_.17} parent=5 // pred_check_branch
      %1657 = sbr.rel (%p1655) target = $region112
    $region111: #{_lambda_.17} parent=5 // pred_region
      %s1658 = ssub.s32 %s28, 2
      // Predicated region
      $region113: #{_lambda_.17} parent=111 // pred_check
        %p1659 = pneg %p475
      $region114: #{_lambda_.17} parent=111 // pred_check_branch
        %1661 = sbr.rel (%p1659) target = $region116
      $region115: #{_lambda_.17} parent=111 // pred_region
        %p1662 = scmp.lt.s32.totalorder %s39, 1
        %s1663 = scalar_select %p1662, %s39, 1
        %p1664 = scmp.lt.s32.totalorder %s40, 0
        %s1665 = scalar_select %p1664, %s40, 0
        %s1666 = sadd.s32 %s1665, %s1663
        %s1667 = smul.addr %s1666, 8
        %s1668 = scalar_lea.vmem %s19, %s1667
      $region116: #{_lambda_.17} parent=111 // pred_fallthru
        _
      // Predicated region
      $region117: #{_lambda_.17} parent=111 // pred_check
        %p1669 = pneg %p503
      $region118: #{_lambda_.17} parent=111 // pred_check_branch
        %1671 = sbr.rel (%p1669) target = $region120
      $region119: #{_lambda_.17} parent=111 // pred_region
        %p1672 = scmp.lt.s32.totalorder %s39, 1
        %s1673 = scalar_select %p1672, %s39, 1
        %p1674 = scmp.lt.s32.totalorder %s40, 0
        %s1675 = scalar_select %p1674, %s40, 0
        %s1676 = smul.addr %s1673, 2
        %s1677 = sadd.s32 %s1675, %s1676
        %s1678 = smul.addr %s1677, 8
        %s1679 = scalar_lea.vmem %s20, %s1678
      $region120: #{_lambda_.17} parent=111 // pred_fallthru
        _
      // Predicated region
      $region121: #{_lambda_.17} parent=111 // pred_check
        %p1680 = pneg %p531
      $region122: #{_lambda_.17} parent=111 // pred_check_branch
        %1682 = sbr.rel (%p1680) target = $region124
      $region123: #{_lambda_.17} parent=111 // pred_region
        %p1683 = scmp.lt.s32.totalorder %s39, 1
        %s1684 = scalar_select %p1683, %s39, 1
        %p1685 = scmp.lt.s32.totalorder %s40, 0
        %s1686 = scalar_select %p1685, %s40, 0
        %s1687 = sadd.s32 %s1686, %s1684
        %s1688 = smul.addr %s1687, 8
        %s1689 = scalar_lea.vmem %s21, %s1688
      $region124: #{_lambda_.17} parent=111 // pred_fallthru
        _
    $region112: #{_lambda_.17} parent=5 // pred_fallthru
      _
  $region6: #{_lambda_.17} parent=0 // loop_footer
    %s32 = sadd.s32 1, %s28
  $region7: #{_lambda_.17} parent=0 // loop_footer_branch
    %27 = sbr.rel target = $region3
  $region8: #{_lambda_.17} parent=0 // loop_exit
    _

</llo_original>
